<compile_context>
chip_gen: v7x
topology: tpu7x:2x2x1
jax: 0.10.0
libtpu: 0.0.40
codegen_flags: <defaults>
</compile_context>

<pallas_src>
import functools
import math

import jax
import jax.numpy as jnp
from jax.experimental import pallas as pl
from jax.experimental.pallas import tpu as pltpu  # noqa: F401


# ----------------------------------------------------------------------------
# Fused kernel (whole batch in one invocation, no grid)
# ----------------------------------------------------------------------------

def _connect_fused_kernel(x_ref, wf_ref, segw2_ref, cdw2_ref,
                          caw1_ref, cawhw_ref, vec_ref, out_ref,
                          *, N, H, W, Cin, NC, NN, P):
    HW = H * W
    xp = x_ref[...]                                  # (N, H+2, W+2, Cin) bf16
    vec = vec_ref[...]                               # (8, L) f32 packed vectors

    # ---- shared first 3x3 conv (pad=1) for all three branches via ONE bf16
    #      im2col and one (N*HW, 9*Cin) x (9*Cin, 3*Cin) matmul.
    patches = jnp.concatenate(
        [xp[:, ky:ky + H, kx:kx + W, :] for ky in range(3) for kx in range(3)],
        axis=-1).reshape(N * HW, 9 * Cin)                       # bf16
    h_all = jnp.dot(patches, wf_ref[...],
                    preferred_element_type=jnp.float32)         # (N*HW, 3*Cin)
    h_all = jnp.maximum(h_all + vec[0:1, 0:3 * Cin], 0.0)

    # ---- seg head: 1x1 conv + sigmoid (lane-aligned slice 2*Cin:3*Cin)
    seg = jnp.dot(h_all[:, 2 * Cin:3 * Cin].astype(jnp.bfloat16),
                  segw2_ref[...], preferred_element_type=jnp.float32)
    seg = jax.nn.sigmoid(seg + vec[1:2, 0:NC])                  # (N*HW, NC)

    # ---- both connect second convs from ONE shared zero-bordered bf16 buffer
    #      (channels 0:Cin = connect (dil=1), Cin:2*Cin = connect_d1 (dil=3)).
    hv = h_all[:, 0:2 * Cin].astype(jnp.bfloat16).reshape(N, H, W, 2 * Cin)
    zr = jnp.zeros((N, P, W, 2 * Cin), hv.dtype)
    hp = jnp.concatenate([zr, hv, zr], axis=1)                  # (N, H+2P, W, 2C)
    zc = jnp.zeros((N, H + 2 * P, P, 2 * Cin), hv.dtype)
    hp = jnp.concatenate([zc, hp, zc], axis=2)                  # (N, H+2P, W+2P, 2C)

    def taps(dil, c0):
        return [hp[:, P + (ky - 1) * dil: P + (ky - 1) * dil + H,
                   P + (kx - 1) * dil: P + (kx - 1) * dil + W,
                   c0:c0 + Cin]
                for ky in range(3) for kx in range(3)]

    # One block-structured matmul produces both connect heads (N*HW, 2*NN).
    p2 = jnp.concatenate(taps(1, 0) + taps(3, Cin),
                         axis=-1).reshape(N * HW, 18 * Cin)     # bf16
    con = jnp.dot(p2, cdw2_ref[...],
                  preferred_element_type=jnp.float32) + vec[2:3, 0:2 * NN]

    # ---- fused CoordAtt over both branches (block-diagonal weights,
    #      eval-mode BN folded into scale/shift, h_swish, sigmoid gates).
    M2 = caw1_ref.shape[1]                                      # 2*mip
    v = con.reshape(N, H, W, 2 * NN)
    xh = jnp.mean(v, axis=2)                                    # (N, H, 2*NN)
    xw = jnp.mean(v, axis=1)                                    # (N, W, 2*NN)
    y = jnp.concatenate([xh, xw], axis=1).reshape(N * (H + W), 2 * NN)
    y = jnp.dot(y, caw1_ref[...], preferred_element_type=jnp.float32)
    y = y + vec[3:4, 0:M2]
    y = y * vec[4:5, 0:M2] + vec[5:6, 0:M2]                     # folded BN
    y = y * (jnp.clip(y + 3.0, 0.0, 6.0) * (1.0 / 6.0))         # h_swish
    ahw = jnp.dot(y, cawhw_ref[...],
                  preferred_element_type=jnp.float32).reshape(N, H + W, 4 * NN)
    a_h = jax.nn.sigmoid(ahw[:, :H, 0:2 * NN] + vec[6:7, 0:2 * NN])   # (N,H,2NN)
    a_w = jax.nn.sigmoid(ahw[:, H:, 2 * NN:4 * NN] + vec[7:8, 0:2 * NN])  # (N,W,2NN)
    out = v * a_h[:, :, None, :] * a_w[:, None, :, :]           # (N, H, W, 2*NN)

    # ---- single lane-dense channels-first output: (Cpad, HW) per image.
    Cpad = out_ref.shape[1]
    seg3 = seg.reshape(N, HW, NC)
    out3 = out.reshape(N, HW, 2 * NN)
    pad = Cpad - (NC + 2 * NN)
    zp = [jnp.zeros((HW, pad), jnp.float32)] if pad else []
    for n in range(N):
        comb = jnp.concatenate([seg3[n], out3[n]] + zp, axis=-1)   # (HW, Cpad)
        out_ref[n] = comb.T                                        # (Cpad, HW)


# ----------------------------------------------------------------------------
# Forward wrapper (single grid-less pallas_call, 7 inputs, 1 packed output)
# ----------------------------------------------------------------------------

@jax.jit
def connect_forward(x_nchw, params):
    p = params
    N, Cin, H, W = x_nchw.shape
    HW = H * W

    x = jnp.transpose(x_nchw, (0, 2, 3, 1))                      # NCHW -> NHWC
    xp = jnp.pad(x, ((0, 0), (1, 1), (1, 1), (0, 0))).astype(jnp.bfloat16)

    # Fused first-conv weight, lane order [connect | connect_d1 | seg].
    wf = jnp.concatenate([p["c_w1"], p["d_w1"], p["seg_w1"]], axis=-1)
    wf = wf.reshape(9 * Cin, 3 * Cin).astype(jnp.bfloat16)
    bf = jnp.concatenate([p["c_b1"], p["d_b1"], p["seg_b1"]], axis=-1)

    segw2 = p["seg_w2"].astype(jnp.bfloat16)                     # (Cin, NC)
    NC = segw2.shape[-1]
    cw2 = p["c_w2"].reshape(9 * Cin, -1)                         # (576, NN)
    dw2 = p["d_w2"].reshape(9 * Cin, -1)
    NN = cw2.shape[-1]
    z9 = jnp.zeros_like(cw2)
    cdw2 = jnp.concatenate(
        [jnp.concatenate([cw2, z9], axis=1),
         jnp.concatenate([z9, dw2], axis=1)], axis=0).astype(jnp.bfloat16)

    # Fused (block-diagonal) CoordAtt weights for both branches.
    ca0, ca1 = p["ca0"], p["ca1"]
    mip = ca0["w1"].shape[-1]
    zw1 = jnp.zeros((NN, mip), jnp.float32)
    ca_w1 = jnp.concatenate(
        [jnp.concatenate([ca0["w1"], zw1], axis=1),
         jnp.concatenate([zw1, ca1["w1"]], axis=1)], axis=0)     # (2NN, 2mip)
    zhw = jnp.zeros((mip, NN), jnp.float32)
    blk = lambda a, b: jnp.concatenate(
        [jnp.concatenate([a, zhw], axis=1),
         jnp.concatenate([zhw, b], axis=1)], axis=0)             # (2mip, 2NN)
    ca_whw = jnp.concatenate([blk(ca0["wh"], ca1["wh"]),
                              blk(ca0["ww"], ca1["ww"])], axis=1)  # (2mip, 4NN)

    # Pack every small bias / BN vector into one (8, L) array (1 DMA).
    L = max(256, ((3 * Cin + 127) // 128) * 128)

    def row(v):
        v = v.reshape(-1)
        return jnp.pad(v, (0, L - v.shape[0]))

    cat2 = lambda k: jnp.concatenate([ca0[k].reshape(-1), ca1[k].reshape(-1)])
    vecs = jnp.stack([
        row(bf),                                                 # first-conv bias
        row(p["seg_b2"]),                                        # seg 1x1 bias
        row(jnp.concatenate([p["c_b2"].reshape(-1), p["d_b2"].reshape(-1)])),
        row(cat2("b1")), row(cat2("bn_scale")), row(cat2("bn_shift")),
        row(cat2("bh")), row(cat2("bw")),
    ])                                                           # (8, L) f32

    Cpad = ((NC + 2 * NN + 7) // 8) * 8
    kern = functools.partial(_connect_fused_kernel, N=N, H=H, W=W,
                             Cin=Cin, NC=NC, NN=NN, P=4)

    out = pl.pallas_call(
        kern,
        out_shape=jax.ShapeDtypeStruct((N, Cpad, HW), jnp.float32),
    )(xp, wf, segw2, cdw2, ca_w1, ca_whw, vecs)

    # (N, Cpad, HW) is channels-first and lane-dense; wrapper slicing is cheap.
    seg = out[:, 0:NC].reshape(N, NC, H, W)
    con0 = out[:, NC:NC + NN].reshape(N, NN, H, W)
    con1 = out[:, NC + NN:NC + 2 * NN].reshape(N, NN, H, W)
    return seg, con0, con1


# ----------------------------------------------------------------------------
# Parameter init (deterministic, mirrors _init_weight: kaiming_normal on conv
# weights, BN gamma=1 / beta=0; conv biases keep PyTorch default uniform init)
# ----------------------------------------------------------------------------

def _kaiming_conv(key, kh, kw, cin, cout):
    fan_in = cin * kh * kw
    std = math.sqrt(2.0 / fan_in)
    return jax.random.normal(key, (kh, kw, cin, cout), jnp.float32) * std


def _conv_bias(key, kh, kw, cin, cout):
    bound = 1.0 / math.sqrt(cin * kh * kw)
    return jax.random.uniform(key, (1, cout), jnp.float32, -bound, bound)


def make_coordatt_params(key, inp, oup, reduction=32):
    mip = max(8, inp // reduction)
    k = jax.random.split(key, 6)
    eps = 1e-5
    return {
        "w1": _kaiming_conv(k[0], 1, 1, inp, mip).reshape(inp, mip),
        "b1": _conv_bias(k[1], 1, 1, inp, mip),
        # BN(gamma=1, beta=0, running mean=0, var=1) folded to scale/shift
        "bn_scale": jnp.full((1, mip), 1.0 / math.sqrt(1.0 + eps), jnp.float32),
        "bn_shift": jnp.zeros((1, mip), jnp.float32),
        "wh": _kaiming_conv(k[2], 1, 1, mip, oup).reshape(mip, oup),
        "bh": _conv_bias(k[3], 1, 1, mip, oup),
        "ww": _kaiming_conv(k[4], 1, 1, mip, oup).reshape(mip, oup),
        "bw": _conv_bias(k[5], 1, 1, mip, oup),
    }


def make_connect_params(key, num_classes, num_neighbor):
    k = jax.random.split(key, 14)
    return {
        # seg_branch
        "seg_w1": _kaiming_conv(k[0], 3, 3, 64, 64),
        "seg_b1": _conv_bias(k[1], 3, 3, 64, 64),
        "seg_w2": _kaiming_conv(k[2], 1, 1, 64, num_classes).reshape(64, num_classes),
        "seg_b2": _conv_bias(k[3], 1, 1, 64, num_classes),
        # connect_branch (dilation 1)
        "c_w1": _kaiming_conv(k[4], 3, 3, 64, 64),
        "c_b1": _conv_bias(k[5], 3, 3, 64, 64),
        "c_w2": _kaiming_conv(k[6], 3, 3, 64, num_neighbor),
        "c_b2": _conv_bias(k[7], 3, 3, 64, num_neighbor),
        # connect_branch_d1 (dilation 3)
        "d_w1": _kaiming_conv(k[8], 3, 3, 64, 64),
        "d_b1": _conv_bias(k[9], 3, 3, 64, 64),
        "d_w2": _kaiming_conv(k[10], 3, 3, 64, num_neighbor),
        "d_b2": _conv_bias(k[11], 3, 3, 64, num_neighbor),
        # CoordAtt modules
        "ca0": make_coordatt_params(k[12], num_neighbor, num_neighbor),
        "ca1": make_coordatt_params(k[13], num_neighbor, num_neighbor),
    }


# ----------------------------------------------------------------------------
# Main
# ----------------------------------------------------------------------------

if __name__ == "__main__":
    N, C, H, W = 2, 64, 16, 16
    num_classes = 2
    num_neighbor = 9

    key = jax.random.PRNGKey(0)
    k_x, k_p = jax.random.split(key)
    x = jax.random.normal(k_x, (N, C, H, W), jnp.float32)
    params = make_connect_params(k_p, num_classes, num_neighbor)

    seg, con0, con1 = connect_forward(x, params)
    jax.block_until_ready((seg, con0, con1))

    assert seg.shape == (N, num_classes, H, W)
    assert con0.shape == (N, num_neighbor, H, W)
    assert con1.shape == (N, num_neighbor, H, W)
    assert bool(jnp.isfinite(seg).all() & jnp.isfinite(con0).all()
                & jnp.isfinite(con1).all())
    # sigmoid output range sanity
    assert bool((seg >= 0.0).all() & (seg <= 1.0).all())

    print("KERNEL_OK")
</pallas_src>

<mosaic_0001>
module attributes {stable_mosaic.version = 11 : i64} {
  func.func @_connect_fused_kernel(%arg0: memref<2x18x18x64xbf16, #tpu.memory_space<vmem>>, %arg1: memref<576x192xbf16, #tpu.memory_space<vmem>>, %arg2: memref<64x2xbf16, #tpu.memory_space<vmem>>, %arg3: memref<1152x18xbf16, #tpu.memory_space<vmem>>, %arg4: memref<18x16xf32, #tpu.memory_space<vmem>>, %arg5: memref<16x36xf32, #tpu.memory_space<vmem>>, %arg6: memref<8x256xf32, #tpu.memory_space<vmem>>, %arg7: memref<2x24x256xf32, #tpu.memory_space<vmem>>) attributes {dimension_semantics = [], scalar_prefetch = 0 : i64, scratch_operands = 0 : i64, tpu.core_type = #tpu.core_type<tc>} {
    %c0 = arith.constant 0 : index
    %c0_0 = arith.constant 0 : index
    %c0_1 = arith.constant 0 : index
    %c0_2 = arith.constant 0 : index
    %0 = vector.load %arg0[%c0, %c0_0, %c0_1, %c0_2] : memref<2x18x18x64xbf16, #tpu.memory_space<vmem>>, vector<2x18x18x64xbf16>
    %c0_3 = arith.constant 0 : index
    %c0_4 = arith.constant 0 : index
    %1 = vector.load %arg6[%c0_3, %c0_4] : memref<8x256xf32, #tpu.memory_space<vmem>>, vector<8x256xf32>
    %2 = vector.extract_strided_slice %0 {offsets = [0, 0, 0, 0], sizes = [2, 16, 16, 64], strides = [1, 1, 1, 1]} : vector<2x18x18x64xbf16> to vector<2x16x16x64xbf16>
    %3 = vector.extract_strided_slice %0 {offsets = [0, 0, 1, 0], sizes = [2, 16, 16, 64], strides = [1, 1, 1, 1]} : vector<2x18x18x64xbf16> to vector<2x16x16x64xbf16>
    %4 = vector.extract_strided_slice %0 {offsets = [0, 0, 2, 0], sizes = [2, 16, 16, 64], strides = [1, 1, 1, 1]} : vector<2x18x18x64xbf16> to vector<2x16x16x64xbf16>
    %5 = vector.extract_strided_slice %0 {offsets = [0, 1, 0, 0], sizes = [2, 16, 16, 64], strides = [1, 1, 1, 1]} : vector<2x18x18x64xbf16> to vector<2x16x16x64xbf16>
    %6 = vector.extract_strided_slice %0 {offsets = [0, 1, 1, 0], sizes = [2, 16, 16, 64], strides = [1, 1, 1, 1]} : vector<2x18x18x64xbf16> to vector<2x16x16x64xbf16>
    %7 = vector.extract_strided_slice %0 {offsets = [0, 1, 2, 0], sizes = [2, 16, 16, 64], strides = [1, 1, 1, 1]} : vector<2x18x18x64xbf16> to vector<2x16x16x64xbf16>
    %8 = vector.extract_strided_slice %0 {offsets = [0, 2, 0, 0], sizes = [2, 16, 16, 64], strides = [1, 1, 1, 1]} : vector<2x18x18x64xbf16> to vector<2x16x16x64xbf16>
    %9 = vector.extract_strided_slice %0 {offsets = [0, 2, 1, 0], sizes = [2, 16, 16, 64], strides = [1, 1, 1, 1]} : vector<2x18x18x64xbf16> to vector<2x16x16x64xbf16>
    %10 = vector.extract_strided_slice %0 {offsets = [0, 2, 2, 0], sizes = [2, 16, 16, 64], strides = [1, 1, 1, 1]} : vector<2x18x18x64xbf16> to vector<2x16x16x64xbf16>
    %11 = tpu.concatenate %2, %3, %4, %5, %6, %7, %8, %9, %10 in 3 : vector<2x16x16x64xbf16>, vector<2x16x16x64xbf16>, vector<2x16x16x64xbf16>, vector<2x16x16x64xbf16>, vector<2x16x16x64xbf16>, vector<2x16x16x64xbf16>, vector<2x16x16x64xbf16>, vector<2x16x16x64xbf16>, vector<2x16x16x64xbf16> -> vector<2x16x16x576xbf16>
    %12 = vector.shape_cast %11 : vector<2x16x16x576xbf16> to vector<512x576xbf16>
    %c0_5 = arith.constant 0 : index
    %c0_6 = arith.constant 0 : index
    %13 = vector.load %arg1[%c0_5, %c0_6] : memref<576x192xbf16, #tpu.memory_space<vmem>>, vector<576x192xbf16>
    %cst = arith.constant dense<0.000000e+00> : vector<512x192xf32>
    %14 = tpu.matmul %12, %13, %cst {dimension_numbers = #tpu.dot_dimension_numbers<[1], [0], [0], [1], [0, 0, 1, 1], [], []>} : vector<512x576xbf16>, vector<576x192xbf16>, vector<512x192xf32> -> vector<512x192xf32>
    %15 = vector.extract_strided_slice %1 {offsets = [0, 0], sizes = [1, 192], strides = [1, 1]} : vector<8x256xf32> to vector<1x192xf32>
    %16 = vector.broadcast %15 : vector<1x192xf32> to vector<512x192xf32>
    %17 = arith.addf %14, %16 : vector<512x192xf32>
    %cst_7 = arith.constant 0.000000e+00 : f32
    %18 = vector.broadcast %cst_7 : f32 to vector<512x192xf32>
    %19 = arith.maximumf %17, %18 : vector<512x192xf32>
    %20 = vector.extract_strided_slice %19 {offsets = [0, 128], sizes = [512, 64], strides = [1, 1]} : vector<512x192xf32> to vector<512x64xf32>
    %21 = arith.truncf %20 : vector<512x64xf32> to vector<512x64xbf16>
    %c0_8 = arith.constant 0 : index
    %c0_9 = arith.constant 0 : index
    %22 = vector.load %arg2[%c0_8, %c0_9] : memref<64x2xbf16, #tpu.memory_space<vmem>>, vector<64x2xbf16>
    %cst_10 = arith.constant dense<0.000000e+00> : vector<512x2xf32>
    %23 = tpu.matmul %21, %22, %cst_10 {dimension_numbers = #tpu.dot_dimension_numbers<[1], [0], [0], [1], [0, 0, 1, 1], [], []>} : vector<512x64xbf16>, vector<64x2xbf16>, vector<512x2xf32> -> vector<512x2xf32>
    %24 = vector.extract_strided_slice %1 {offsets = [1, 0], sizes = [1, 2], strides = [1, 1]} : vector<8x256xf32> to vector<1x2xf32>
    %25 = vector.broadcast %24 : vector<1x2xf32> to vector<512x2xf32>
    %26 = arith.addf %23, %25 : vector<512x2xf32>
    %27 = arith.negf %26 : vector<512x2xf32>
    %28 = math.exp %27 : vector<512x2xf32>
    %cst_11 = arith.constant 1.000000e+00 : f32
    %29 = vector.broadcast %cst_11 : f32 to vector<512x2xf32>
    %30 = arith.addf %29, %28 : vector<512x2xf32>
    %31 = arith.divf %29, %30 : vector<512x2xf32>
    %32 = vector.extract_strided_slice %19 {offsets = [0, 0], sizes = [512, 128], strides = [1, 1]} : vector<512x192xf32> to vector<512x128xf32>
    %33 = arith.truncf %32 : vector<512x128xf32> to vector<512x128xbf16>
    %34 = vector.shape_cast %33 : vector<512x128xbf16> to vector<2x16x16x128xbf16>
    %cst_12 = arith.constant 0.000000e+00 : bf16
    %35 = vector.broadcast %cst_12 : bf16 to vector<2x4x16x128xbf16>
    %36 = tpu.concatenate %35, %34, %35 in 1 : vector<2x4x16x128xbf16>, vector<2x16x16x128xbf16>, vector<2x4x16x128xbf16> -> vector<2x24x16x128xbf16>
    %cst_13 = arith.constant 0.000000e+00 : bf16
    %37 = vector.broadcast %cst_13 : bf16 to vector<2x24x4x128xbf16>
    %38 = tpu.concatenate %37, %36, %37 in 2 : vector<2x24x4x128xbf16>, vector<2x24x16x128xbf16>, vector<2x24x4x128xbf16> -> vector<2x24x24x128xbf16>
    %39 = vector.extract_strided_slice %38 {offsets = [0, 3, 3, 0], sizes = [2, 16, 16, 64], strides = [1, 1, 1, 1]} : vector<2x24x24x128xbf16> to vector<2x16x16x64xbf16>
    %40 = vector.extract_strided_slice %38 {offsets = [0, 3, 4, 0], sizes = [2, 16, 16, 64], strides = [1, 1, 1, 1]} : vector<2x24x24x128xbf16> to vector<2x16x16x64xbf16>
    %41 = vector.extract_strided_slice %38 {offsets = [0, 3, 5, 0], sizes = [2, 16, 16, 64], strides = [1, 1, 1, 1]} : vector<2x24x24x128xbf16> to vector<2x16x16x64xbf16>
    %42 = vector.extract_strided_slice %38 {offsets = [0, 4, 3, 0], sizes = [2, 16, 16, 64], strides = [1, 1, 1, 1]} : vector<2x24x24x128xbf16> to vector<2x16x16x64xbf16>
    %43 = vector.extract_strided_slice %38 {offsets = [0, 4, 4, 0], sizes = [2, 16, 16, 64], strides = [1, 1, 1, 1]} : vector<2x24x24x128xbf16> to vector<2x16x16x64xbf16>
    %44 = vector.extract_strided_slice %38 {offsets = [0, 4, 5, 0], sizes = [2, 16, 16, 64], strides = [1, 1, 1, 1]} : vector<2x24x24x128xbf16> to vector<2x16x16x64xbf16>
    %45 = vector.extract_strided_slice %38 {offsets = [0, 5, 3, 0], sizes = [2, 16, 16, 64], strides = [1, 1, 1, 1]} : vector<2x24x24x128xbf16> to vector<2x16x16x64xbf16>
    %46 = vector.extract_strided_slice %38 {offsets = [0, 5, 4, 0], sizes = [2, 16, 16, 64], strides = [1, 1, 1, 1]} : vector<2x24x24x128xbf16> to vector<2x16x16x64xbf16>
    %47 = vector.extract_strided_slice %38 {offsets = [0, 5, 5, 0], sizes = [2, 16, 16, 64], strides = [1, 1, 1, 1]} : vector<2x24x24x128xbf16> to vector<2x16x16x64xbf16>
    %48 = vector.extract_strided_slice %38 {offsets = [0, 1, 1, 64], sizes = [2, 16, 16, 64], strides = [1, 1, 1, 1]} : vector<2x24x24x128xbf16> to vector<2x16x16x64xbf16>
    %49 = vector.extract_strided_slice %38 {offsets = [0, 1, 4, 64], sizes = [2, 16, 16, 64], strides = [1, 1, 1, 1]} : vector<2x24x24x128xbf16> to vector<2x16x16x64xbf16>
    %50 = vector.extract_strided_slice %38 {offsets = [0, 1, 7, 64], sizes = [2, 16, 16, 64], strides = [1, 1, 1, 1]} : vector<2x24x24x128xbf16> to vector<2x16x16x64xbf16>
    %51 = vector.extract_strided_slice %38 {offsets = [0, 4, 1, 64], sizes = [2, 16, 16, 64], strides = [1, 1, 1, 1]} : vector<2x24x24x128xbf16> to vector<2x16x16x64xbf16>
    %52 = vector.extract_strided_slice %38 {offsets = [0, 4, 4, 64], sizes = [2, 16, 16, 64], strides = [1, 1, 1, 1]} : vector<2x24x24x128xbf16> to vector<2x16x16x64xbf16>
    %53 = vector.extract_strided_slice %38 {offsets = [0, 4, 7, 64], sizes = [2, 16, 16, 64], strides = [1, 1, 1, 1]} : vector<2x24x24x128xbf16> to vector<2x16x16x64xbf16>
    %54 = vector.extract_strided_slice %38 {offsets = [0, 7, 1, 64], sizes = [2, 16, 16, 64], strides = [1, 1, 1, 1]} : vector<2x24x24x128xbf16> to vector<2x16x16x64xbf16>
    %55 = vector.extract_strided_slice %38 {offsets = [0, 7, 4, 64], sizes = [2, 16, 16, 64], strides = [1, 1, 1, 1]} : vector<2x24x24x128xbf16> to vector<2x16x16x64xbf16>
    %56 = vector.extract_strided_slice %38 {offsets = [0, 7, 7, 64], sizes = [2, 16, 16, 64], strides = [1, 1, 1, 1]} : vector<2x24x24x128xbf16> to vector<2x16x16x64xbf16>
    %57 = tpu.concatenate %39, %40, %41, %42, %43, %44, %45, %46, %47, %48, %49, %50, %51, %52, %53, %54 in 3 : vector<2x16x16x64xbf16>, vector<2x16x16x64xbf16>, vector<2x16x16x64xbf16>, vector<2x16x16x64xbf16>, vector<2x16x16x64xbf16>, vector<2x16x16x64xbf16>, vector<2x16x16x64xbf16>, vector<2x16x16x64xbf16>, vector<2x16x16x64xbf16>, vector<2x16x16x64xbf16>, vector<2x16x16x64xbf16>, vector<2x16x16x64xbf16>, vector<2x16x16x64xbf16>, vector<2x16x16x64xbf16>, vector<2x16x16x64xbf16>, vector<2x16x16x64xbf16> -> vector<2x16x16x1024xbf16>
    %58 = tpu.concatenate %55, %56 in 3 : vector<2x16x16x64xbf16>, vector<2x16x16x64xbf16> -> vector<2x16x16x128xbf16>
    %59 = tpu.concatenate %57, %58 in 3 : vector<2x16x16x1024xbf16>, vector<2x16x16x128xbf16> -> vector<2x16x16x1152xbf16>
    %60 = vector.shape_cast %59 : vector<2x16x16x1152xbf16> to vector<512x1152xbf16>
    %c0_14 = arith.constant 0 : index
    %c0_15 = arith.constant 0 : index
    %61 = vector.load %arg3[%c0_14, %c0_15] : memref<1152x18xbf16, #tpu.memory_space<vmem>>, vector<1152x18xbf16>
    %cst_16 = arith.constant dense<0.000000e+00> : vector<512x18xf32>
    %62 = tpu.matmul %60, %61, %cst_16 {dimension_numbers = #tpu.dot_dimension_numbers<[1], [0], [0], [1], [0, 0, 1, 1], [], []>} : vector<512x1152xbf16>, vector<1152x18xbf16>, vector<512x18xf32> -> vector<512x18xf32>
    %63 = vector.extract_strided_slice %1 {offsets = [2, 0], sizes = [1, 18], strides = [1, 1]} : vector<8x256xf32> to vector<1x18xf32>
    %64 = vector.broadcast %63 : vector<1x18xf32> to vector<512x18xf32>
    %65 = arith.addf %62, %64 : vector<512x18xf32>
    %66 = vector.shape_cast %65 : vector<512x18xf32> to vector<2x16x16x18xf32>
    %cst_17 = arith.constant dense<0.000000e+00> : vector<2x16x18xf32>
    %67 = vector.multi_reduction <add>, %66, %cst_17 [2] : vector<2x16x16x18xf32> to vector<2x16x18xf32>
    %cst_18 = arith.constant 1.600000e+01 : f32
    %68 = vector.broadcast %cst_18 : f32 to vector<2x16x18xf32>
    %69 = arith.divf %67, %68 : vector<2x16x18xf32>
    %cst_19 = arith.constant dense<0.000000e+00> : vector<2x16x18xf32>
    %70 = vector.multi_reduction <add>, %66, %cst_19 [1] : vector<2x16x16x18xf32> to vector<2x16x18xf32>
    %cst_20 = arith.constant 1.600000e+01 : f32
    %71 = vector.broadcast %cst_20 : f32 to vector<2x16x18xf32>
    %72 = arith.divf %70, %71 : vector<2x16x18xf32>
    %73 = tpu.concatenate %69, %72 in 1 : vector<2x16x18xf32>, vector<2x16x18xf32> -> vector<2x32x18xf32>
    %74 = vector.shape_cast %73 : vector<2x32x18xf32> to vector<64x18xf32>
    %c0_21 = arith.constant 0 : index
    %c0_22 = arith.constant 0 : index
    %75 = vector.load %arg4[%c0_21, %c0_22] : memref<18x16xf32, #tpu.memory_space<vmem>>, vector<18x16xf32>
    %cst_23 = arith.constant dense<0.000000e+00> : vector<64x16xf32>
    %76 = tpu.matmul %74, %75, %cst_23 {dimension_numbers = #tpu.dot_dimension_numbers<[1], [0], [0], [1], [0, 0, 1, 1], [], []>} : vector<64x18xf32>, vector<18x16xf32>, vector<64x16xf32> -> vector<64x16xf32>
    %77 = vector.extract_strided_slice %1 {offsets = [3, 0], sizes = [1, 16], strides = [1, 1]} : vector<8x256xf32> to vector<1x16xf32>
    %78 = vector.broadcast %77 : vector<1x16xf32> to vector<64x16xf32>
    %79 = arith.addf %76, %78 : vector<64x16xf32>
    %80 = vector.extract_strided_slice %1 {offsets = [4, 0], sizes = [1, 16], strides = [1, 1]} : vector<8x256xf32> to vector<1x16xf32>
    %81 = vector.broadcast %80 : vector<1x16xf32> to vector<64x16xf32>
    %82 = arith.mulf %79, %81 : vector<64x16xf32>
    %83 = vector.extract_strided_slice %1 {offsets = [5, 0], sizes = [1, 16], strides = [1, 1]} : vector<8x256xf32> to vector<1x16xf32>
    %84 = vector.broadcast %83 : vector<1x16xf32> to vector<64x16xf32>
    %85 = arith.addf %82, %84 : vector<64x16xf32>
    %cst_24 = arith.constant 3.000000e+00 : f32
    %86 = vector.broadcast %cst_24 : f32 to vector<64x16xf32>
    %87 = arith.addf %85, %86 : vector<64x16xf32>
    %cst_25 = arith.constant 0.000000e+00 : f32
    %cst_26 = arith.constant 6.000000e+00 : f32
    %88 = vector.broadcast %cst_25 : f32 to vector<64x16xf32>
    %89 = arith.maximumf %88, %87 : vector<64x16xf32>
    %90 = vector.broadcast %cst_26 : f32 to vector<64x16xf32>
    %91 = arith.minimumf %90, %89 : vector<64x16xf32>
    %cst_27 = arith.constant 0.166666672 : f32
    %92 = vector.broadcast %cst_27 : f32 to vector<64x16xf32>
    %93 = arith.mulf %91, %92 : vector<64x16xf32>
    %94 = arith.mulf %85, %93 : vector<64x16xf32>
    %c0_28 = arith.constant 0 : index
    %c0_29 = arith.constant 0 : index
    %95 = vector.load %arg5[%c0_28, %c0_29] : memref<16x36xf32, #tpu.memory_space<vmem>>, vector<16x36xf32>
    %cst_30 = arith.constant dense<0.000000e+00> : vector<64x36xf32>
    %96 = tpu.matmul %94, %95, %cst_30 {dimension_numbers = #tpu.dot_dimension_numbers<[1], [0], [0], [1], [0, 0, 1, 1], [], []>} : vector<64x16xf32>, vector<16x36xf32>, vector<64x36xf32> -> vector<64x36xf32>
    %97 = vector.shape_cast %96 : vector<64x36xf32> to vector<2x32x36xf32>
    %98 = vector.extract_strided_slice %97 {offsets = [0, 0, 0], sizes = [2, 16, 18], strides = [1, 1, 1]} : vector<2x32x36xf32> to vector<2x16x18xf32>
    %99 = vector.extract_strided_slice %1 {offsets = [6, 0], sizes = [1, 18], strides = [1, 1]} : vector<8x256xf32> to vector<1x18xf32>
    %100 = vector.shape_cast %99 : vector<1x18xf32> to vector<1x1x18xf32>
    %101 = vector.broadcast %100 : vector<1x1x18xf32> to vector<2x16x18xf32>
    %102 = arith.addf %98, %101 : vector<2x16x18xf32>
    %103 = arith.negf %102 : vector<2x16x18xf32>
    %104 = math.exp %103 : vector<2x16x18xf32>
    %cst_31 = arith.constant 1.000000e+00 : f32
    %105 = vector.broadcast %cst_31 : f32 to vector<2x16x18xf32>
    %106 = arith.addf %105, %104 : vector<2x16x18xf32>
    %107 = arith.divf %105, %106 : vector<2x16x18xf32>
    %108 = vector.extract_strided_slice %97 {offsets = [0, 16, 18], sizes = [2, 16, 18], strides = [1, 1, 1]} : vector<2x32x36xf32> to vector<2x16x18xf32>
    %109 = vector.extract_strided_slice %1 {offsets = [7, 0], sizes = [1, 18], strides = [1, 1]} : vector<8x256xf32> to vector<1x18xf32>
    %110 = vector.shape_cast %109 : vector<1x18xf32> to vector<1x1x18xf32>
    %111 = vector.broadcast %110 : vector<1x1x18xf32> to vector<2x16x18xf32>
    %112 = arith.addf %108, %111 : vector<2x16x18xf32>
    %113 = arith.negf %112 : vector<2x16x18xf32>
    %114 = math.exp %113 : vector<2x16x18xf32>
    %cst_32 = arith.constant 1.000000e+00 : f32
    %115 = vector.broadcast %cst_32 : f32 to vector<2x16x18xf32>
    %116 = arith.addf %115, %114 : vector<2x16x18xf32>
    %117 = arith.divf %115, %116 : vector<2x16x18xf32>
    %118 = vector.shape_cast %107 : vector<2x16x18xf32> to vector<2x16x1x18xf32>
    %119 = vector.broadcast %118 : vector<2x16x1x18xf32> to vector<2x16x16x18xf32>
    %120 = arith.mulf %66, %119 : vector<2x16x16x18xf32>
    %121 = vector.shape_cast %117 : vector<2x16x18xf32> to vector<2x1x16x18xf32>
    %122 = vector.broadcast %121 : vector<2x1x16x18xf32> to vector<2x16x16x18xf32>
    %123 = arith.mulf %120, %122 : vector<2x16x16x18xf32>
    %124 = vector.shape_cast %31 : vector<512x2xf32> to vector<2x256x2xf32>
    %125 = vector.shape_cast %123 : vector<2x16x16x18xf32> to vector<2x256x18xf32>
    %cst_33 = arith.constant 0.000000e+00 : f32
    %126 = vector.broadcast %cst_33 : f32 to vector<256x4xf32>
    %127 = vector.extract_strided_slice %124 {offsets = [0, 0, 0], sizes = [1, 256, 2], strides = [1, 1, 1]} : vector<2x256x2xf32> to vector<1x256x2xf32>
    %128 = vector.shape_cast %127 : vector<1x256x2xf32> to vector<256x2xf32>
    %129 = vector.extract_strided_slice %125 {offsets = [0, 0, 0], sizes = [1, 256, 18], strides = [1, 1, 1]} : vector<2x256x18xf32> to vector<1x256x18xf32>
    %130 = vector.shape_cast %129 : vector<1x256x18xf32> to vector<256x18xf32>
    %131 = tpu.concatenate %128, %130, %126 in 1 : vector<256x2xf32>, vector<256x18xf32>, vector<256x4xf32> -> vector<256x24xf32>
    %132 = tpu.transpose %131, [1, 0] : vector<256x24xf32> -> vector<24x256xf32>
    %c0_34 = arith.constant 0 : index
    %c0_35 = arith.constant 0 : index
    %c0_36 = arith.constant 0 : index
    %133 = vector.load %arg7[%c0_34, %c0_35, %c0_36] : memref<2x24x256xf32, #tpu.memory_space<vmem>>, vector<1x24x256xf32>
    %134 = vector.shape_cast %133 : vector<1x24x256xf32> to vector<24x256xf32>
    %135 = vector.shape_cast %132 : vector<24x256xf32> to vector<1x24x256xf32>
    tpu.vector_store %arg7[%c0_34, %c0_35, %c0_36], %135 {strides = array<i32>} : memref<2x24x256xf32, #tpu.memory_space<vmem>>, vector<1x24x256xf32>,
    %136 = vector.extract_strided_slice %124 {offsets = [1, 0, 0], sizes = [1, 256, 2], strides = [1, 1, 1]} : vector<2x256x2xf32> to vector<1x256x2xf32>
    %137 = vector.shape_cast %136 : vector<1x256x2xf32> to vector<256x2xf32>
    %138 = vector.extract_strided_slice %125 {offsets = [1, 0, 0], sizes = [1, 256, 18], strides = [1, 1, 1]} : vector<2x256x18xf32> to vector<1x256x18xf32>
    %139 = vector.shape_cast %138 : vector<1x256x18xf32> to vector<256x18xf32>
    %140 = tpu.concatenate %137, %139, %126 in 1 : vector<256x2xf32>, vector<256x18xf32>, vector<256x4xf32> -> vector<256x24xf32>
    %141 = tpu.transpose %140, [1, 0] : vector<256x24xf32> -> vector<24x256xf32>
    %c1 = arith.constant 1 : index
    %c0_37 = arith.constant 0 : index
    %c0_38 = arith.constant 0 : index
    %142 = vector.load %arg7[%c1, %c0_37, %c0_38] : memref<2x24x256xf32, #tpu.memory_space<vmem>>, vector<1x24x256xf32>
    %143 = vector.shape_cast %142 : vector<1x24x256xf32> to vector<24x256xf32>
    %144 = vector.shape_cast %141 : vector<24x256xf32> to vector<1x24x256xf32>
    tpu.vector_store %arg7[%c1, %c0_37, %c0_38], %144 {strides = array<i32>} : memref<2x24x256xf32, #tpu.memory_space<vmem>>, vector<1x24x256xf32>,
    return
  }
}

</mosaic_0001>

<llo_original>
// kernel: connect_forward.1
$region0: #{connect_forward.1}
  #allocation0 [shape = 'u32[]', space=smem, size = 0x4, offset = 0x4, fixed_abs, tag = 'smem constant byte address 0x4 - core index']
  #allocation1 [shape = 'u32[144,128]{1,0:T(1,128)}', space=vmem, size = 0x12000, scoped, tag = 'internal scratch']
  %s0 = inlined_call_operand.vmem [shape: bf16[2,18,18,64], index: 0, kind: input, shape index: {}]
  %s1 = inlined_call_operand.vmem [shape: bf16[576,192], index: 1, kind: input, shape index: {}]
  %s2 = inlined_call_operand.vmem [shape: bf16[64,2], index: 2, kind: input, shape index: {}]
  %s3 = inlined_call_operand.vmem [shape: bf16[1152,18], index: 3, kind: input, shape index: {}]
  %s4 = inlined_call_operand.vmem [shape: f32[18,16], index: 4, kind: input, shape index: {}]
  %s5 = inlined_call_operand.vmem [shape: f32[16,36], index: 5, kind: input, shape index: {}]
  %s6 = inlined_call_operand.vmem [shape: f32[8,256], index: 6, kind: input, shape index: {}]
  %s7 = inlined_call_operand.vmem [shape: f32[2,24,256], index: 7, kind: output, shape index: {}]
  %s8 = sld [smem:[#allocation0]]
  $region38: #{connect_forward.1} parent=0
    _
  %s10 = ssub.s32 1, %s8
  %s11 = scalar_select 0, %s10, %s8
  // Predicated region
  $region2: #{connect_forward.1} parent=0 // pred_check
    _
  $region3: #{connect_forward.1} parent=0 // pred_check_branch
    %13 = sbr.rel (0) target = $region5
  $region4: #{connect_forward.1} parent=0 // pred_region
    _
  $region5: #{connect_forward.1} parent=0 // pred_fallthru
    _
  // Predicated region
  $region6: #{connect_forward.1} parent=0 // pred_check
    _
  $region7: #{connect_forward.1} parent=0 // pred_check_branch
    %15 = sbr.rel (0) target = $region9
  $region8: #{connect_forward.1} parent=0 // pred_region
    _
  $region9: #{connect_forward.1} parent=0 // pred_fallthru
    _
  // Predicated region
  $region10: #{connect_forward.1} parent=0 // pred_check
    _
  $region11: #{connect_forward.1} parent=0 // pred_check_branch
    %17 = sbr.rel (0) target = $region13
  $region12: #{connect_forward.1} parent=0 // pred_region
    _
  $region13: #{connect_forward.1} parent=0 // pred_fallthru
    _
  // Predicated region
  $region14: #{connect_forward.1} parent=0 // pred_check
    _
  $region15: #{connect_forward.1} parent=0 // pred_check_branch
    %19 = sbr.rel (0) target = $region17
  $region16: #{connect_forward.1} parent=0 // pred_region
    _
  $region17: #{connect_forward.1} parent=0 // pred_fallthru
    _
  // Predicated region
  $region18: #{connect_forward.1} parent=0 // pred_check
    _
  $region19: #{connect_forward.1} parent=0 // pred_check_branch
    %21 = sbr.rel (0) target = $region21
  $region20: #{connect_forward.1} parent=0 // pred_region
    _
  $region21: #{connect_forward.1} parent=0 // pred_fallthru
    _
  // Predicated region
  $region22: #{connect_forward.1} parent=0 // pred_check
    _
  $region23: #{connect_forward.1} parent=0 // pred_check_branch
    %23 = sbr.rel (0) target = $region25
  $region24: #{connect_forward.1} parent=0 // pred_region
    _
  $region25: #{connect_forward.1} parent=0 // pred_fallthru
    _
  // Predicated region
  $region26: #{connect_forward.1} parent=0 // pred_check
    _
  $region27: #{connect_forward.1} parent=0 // pred_check_branch
    %25 = sbr.rel (0) target = $region29
  $region28: #{connect_forward.1} parent=0 // pred_region
    _
  $region29: #{connect_forward.1} parent=0 // pred_fallthru
    _
  %v27 = vld [vmem:[%s0] sm:$0xf]
  %v28 = vld [vmem:[%s0 + $0x4] sm:$0xf]
  %v29 = vld [vmem:[%s0 + $0x8] sm:$0x1]
  %v30 = vld [vmem:[%s0 + $0xc] sm:$0xf]
  %v31 = vld [vmem:[%s0 + $0x10] sm:$0xf]
  %v32 = vld [vmem:[%s0 + $0x14] sm:$0x1]
  %v33 = vld [vmem:[%s0 + $0x18] sm:$0xf]
  %v34 = vld [vmem:[%s0 + $0x1c] sm:$0xf]
  %v35 = vld [vmem:[%s0 + $0x20] sm:$0x1]
  %v36 = vld [vmem:[%s0 + $0x24] sm:$0xf]
  %v37 = vld [vmem:[%s0 + $0x28] sm:$0xf]
  %v38 = vld [vmem:[%s0 + $0x2c] sm:$0x1]
  %v39 = vld [vmem:[%s0 + $0x30] sm:$0xf]
  %v40 = vld [vmem:[%s0 + $0x34] sm:$0xf]
  %v41 = vld [vmem:[%s0 + $0x38] sm:$0x1]
  %v42 = vld [vmem:[%s0 + $0x3c] sm:$0xf]
  %v43 = vld [vmem:[%s0 + $0x40] sm:$0xf]
  %v44 = vld [vmem:[%s0 + $0x44] sm:$0x1]
  %v45 = vld [vmem:[%s0 + $0x48] sm:$0xf]
  %v46 = vld [vmem:[%s0 + $0x4c] sm:$0xf]
  %v47 = vld [vmem:[%s0 + $0x50] sm:$0x1]
  %v48 = vld [vmem:[%s0 + $0x54] sm:$0xf]
  %v49 = vld [vmem:[%s0 + $0x58] sm:$0xf]
  %v50 = vld [vmem:[%s0 + $0x5c] sm:$0x1]
  %v51 = vld [vmem:[%s0 + $0x60] sm:$0xf]
  %v52 = vld [vmem:[%s0 + $0x64] sm:$0xf]
  %v53 = vld [vmem:[%s0 + $0x68] sm:$0x1]
  %v54 = vld [vmem:[%s0 + $0x6c] sm:$0xf]
  %v55 = vld [vmem:[%s0 + $0x70] sm:$0xf]
  %v56 = vld [vmem:[%s0 + $0x74] sm:$0x1]
  %v57 = vld [vmem:[%s0 + $0x78] sm:$0xf]
  %v58 = vld [vmem:[%s0 + $0x7c] sm:$0xf]
  %v59 = vld [vmem:[%s0 + $0x80] sm:$0x1]
  %v60 = vld [vmem:[%s0 + $0x84] sm:$0xf]
  %v61 = vld [vmem:[%s0 + $0x88] sm:$0xf]
  %v62 = vld [vmem:[%s0 + $0x8c] sm:$0x1]
  %v63 = vld [vmem:[%s0 + $0x90] sm:$0xf]
  %v64 = vld [vmem:[%s0 + $0x94] sm:$0xf]
  %v65 = vld [vmem:[%s0 + $0x98] sm:$0x1]
  %v66 = vld [vmem:[%s0 + $0x9c] sm:$0xf]
  %v67 = vld [vmem:[%s0 + $0xa0] sm:$0xf]
  %v68 = vld [vmem:[%s0 + $0xa4] sm:$0x1]
  %v69 = vld [vmem:[%s0 + $0xa8] sm:$0xf]
  %v70 = vld [vmem:[%s0 + $0xac] sm:$0xf]
  %v71 = vld [vmem:[%s0 + $0xb0] sm:$0x1]
  %v72 = vld [vmem:[%s0 + $0xb4] sm:$0xf]
  %v73 = vld [vmem:[%s0 + $0xb8] sm:$0xf]
  %v74 = vld [vmem:[%s0 + $0xbc] sm:$0x1]
  %v75 = vld [vmem:[%s0 + $0xc0] sm:$0xf]
  %v76 = vld [vmem:[%s0 + $0xc4] sm:$0xf]
  %v77 = vld [vmem:[%s0 + $0xc8] sm:$0x1]
  %v78 = vld [vmem:[%s0 + $0xcc] sm:$0xf]
  %v79 = vld [vmem:[%s0 + $0xd0] sm:$0xf]
  %v80 = vld [vmem:[%s0 + $0xd4] sm:$0x1]
  %v81 = vld [vmem:[%s0 + $0xd8] sm:$0xf]
  %v82 = vld [vmem:[%s0 + $0xdc] sm:$0xf]
  %v83 = vld [vmem:[%s0 + $0xe0] sm:$0x1]
  %v84 = vld [vmem:[%s0 + $0xe4] sm:$0xf]
  %v85 = vld [vmem:[%s0 + $0xe8] sm:$0xf]
  %v86 = vld [vmem:[%s0 + $0xec] sm:$0x1]
  %v87 = vld [vmem:[%s0 + $0xf0] sm:$0xf]
  %v88 = vld [vmem:[%s0 + $0xf4] sm:$0xf]
  %v89 = vld [vmem:[%s0 + $0xf8] sm:$0x1]
  %v90 = vld [vmem:[%s0 + $0xfc] sm:$0xf]
  %v91 = vld [vmem:[%s0 + $0x100] sm:$0xf]
  %v92 = vld [vmem:[%s0 + $0x104] sm:$0x1]
  %v93 = vld [vmem:[%s0 + $0x108] sm:$0xf]
  %v94 = vld [vmem:[%s0 + $0x10c] sm:$0xf]
  %v95 = vld [vmem:[%s0 + $0x110] sm:$0x1]
  %v96 = vld [vmem:[%s0 + $0x114] sm:$0xf]
  %v97 = vld [vmem:[%s0 + $0x118] sm:$0xf]
  %v98 = vld [vmem:[%s0 + $0x11c] sm:$0x1]
  %v99 = vld [vmem:[%s0 + $0x120] sm:$0xf]
  %v100 = vld [vmem:[%s0 + $0x124] sm:$0xf]
  %v101 = vld [vmem:[%s0 + $0x128] sm:$0x1]
  %v102 = vld [vmem:[%s0 + $0x12c] sm:$0xf]
  %v103 = vld [vmem:[%s0 + $0x130] sm:$0xf]
  %v104 = vld [vmem:[%s0 + $0x134] sm:$0x1]
  %v105 = vld [vmem:[%s0 + $0x138] sm:$0xf]
  %v106 = vld [vmem:[%s0 + $0x13c] sm:$0xf]
  %v107 = vld [vmem:[%s0 + $0x140] sm:$0x1]
  %v108 = vld [vmem:[%s0 + $0x144] sm:$0xf]
  %v109 = vld [vmem:[%s0 + $0x148] sm:$0xf]
  %v110 = vld [vmem:[%s0 + $0x14c] sm:$0x1]
  %v111 = vld [vmem:[%s0 + $0x150] sm:$0xf]
  %v112 = vld [vmem:[%s0 + $0x154] sm:$0xf]
  %v113 = vld [vmem:[%s0 + $0x158] sm:$0x1]
  %v114 = vld [vmem:[%s0 + $0x15c] sm:$0xf]
  %v115 = vld [vmem:[%s0 + $0x160] sm:$0xf]
  %v116 = vld [vmem:[%s0 + $0x164] sm:$0x1]
  %v117 = vld [vmem:[%s0 + $0x168] sm:$0xf]
  %v118 = vld [vmem:[%s0 + $0x16c] sm:$0xf]
  %v119 = vld [vmem:[%s0 + $0x170] sm:$0x1]
  %v120 = vld [vmem:[%s0 + $0x174] sm:$0xf]
  %v121 = vld [vmem:[%s0 + $0x178] sm:$0xf]
  %v122 = vld [vmem:[%s0 + $0x17c] sm:$0x1]
  %v123 = vld [vmem:[%s0 + $0x180] sm:$0xf]
  %v124 = vld [vmem:[%s0 + $0x184] sm:$0xf]
  %v125 = vld [vmem:[%s0 + $0x188] sm:$0x1]
  %v126 = vld [vmem:[%s0 + $0x18c] sm:$0xf]
  %v127 = vld [vmem:[%s0 + $0x190] sm:$0xf]
  %v128 = vld [vmem:[%s0 + $0x194] sm:$0x1]
  %v129 = vld [vmem:[%s0 + $0x198] sm:$0xf]
  %v130 = vld [vmem:[%s0 + $0x19c] sm:$0xf]
  %v131 = vld [vmem:[%s0 + $0x1a0] sm:$0x1]
  %v132 = vld [vmem:[%s0 + $0x1a4] sm:$0xf]
  %v133 = vld [vmem:[%s0 + $0x1a8] sm:$0xf]
  %v134 = vld [vmem:[%s0 + $0x1ac] sm:$0x1]
  %v135 = vld [vmem:[%s6] sm:$0xff]
  %v136 = vld [vmem:[%s6 + $0x8] sm:$0xff]
  %v201 = vunpack.c.l.b16 %v27
  %v202 = vunpack.c.l.b16 %v28
  %v203 = vunpack.c.l.b16 %v30
  %v204 = vunpack.c.l.b16 %v31
  %v205 = vunpack.c.l.b16 %v33
  %v206 = vunpack.c.l.b16 %v34
  %v207 = vunpack.c.l.b16 %v36
  %v208 = vunpack.c.l.b16 %v37
  %v209 = vunpack.c.l.b16 %v39
  %v210 = vunpack.c.l.b16 %v40
  %v211 = vunpack.c.l.b16 %v42
  %v212 = vunpack.c.l.b16 %v43
  %v213 = vunpack.c.l.b16 %v45
  %v214 = vunpack.c.l.b16 %v46
  %v215 = vunpack.c.l.b16 %v48
  %v216 = vunpack.c.l.b16 %v49
  %v217 = vunpack.c.l.b16 %v51
  %v218 = vunpack.c.l.b16 %v52
  %v219 = vunpack.c.l.b16 %v54
  %v220 = vunpack.c.l.b16 %v55
  %v221 = vunpack.c.l.b16 %v57
  %v222 = vunpack.c.l.b16 %v58
  %v223 = vunpack.c.l.b16 %v60
  %v224 = vunpack.c.l.b16 %v61
  %v225 = vunpack.c.l.b16 %v63
  %v226 = vunpack.c.l.b16 %v64
  %v227 = vunpack.c.l.b16 %v66
  %v228 = vunpack.c.l.b16 %v67
  %v229 = vunpack.c.l.b16 %v69
  %v230 = vunpack.c.l.b16 %v70
  %v231 = vunpack.c.l.b16 %v72
  %v232 = vunpack.c.l.b16 %v73
  %v233 = vunpack.c.l.b16 %v81
  %v234 = vunpack.c.l.b16 %v82
  %v235 = vunpack.c.l.b16 %v84
  %v236 = vunpack.c.l.b16 %v85
  %v237 = vunpack.c.l.b16 %v87
  %v238 = vunpack.c.l.b16 %v88
  %v239 = vunpack.c.l.b16 %v90
  %v240 = vunpack.c.l.b16 %v91
  %v241 = vunpack.c.l.b16 %v93
  %v242 = vunpack.c.l.b16 %v94
  %v243 = vunpack.c.l.b16 %v96
  %v244 = vunpack.c.l.b16 %v97
  %v245 = vunpack.c.l.b16 %v99
  %v246 = vunpack.c.l.b16 %v100
  %v247 = vunpack.c.l.b16 %v102
  %v248 = vunpack.c.l.b16 %v103
  %v249 = vunpack.c.l.b16 %v105
  %v250 = vunpack.c.l.b16 %v106
  %v251 = vunpack.c.l.b16 %v108
  %v252 = vunpack.c.l.b16 %v109
  %v253 = vunpack.c.l.b16 %v111
  %v254 = vunpack.c.l.b16 %v112
  %v255 = vunpack.c.l.b16 %v114
  %v256 = vunpack.c.l.b16 %v115
  %v257 = vunpack.c.l.b16 %v117
  %v258 = vunpack.c.l.b16 %v118
  %v259 = vunpack.c.l.b16 %v120
  %v260 = vunpack.c.l.b16 %v121
  %v261 = vunpack.c.l.b16 %v123
  %v262 = vunpack.c.l.b16 %v124
  %v263 = vunpack.c.l.b16 %v126
  %v264 = vunpack.c.l.b16 %v127
  %v265 = vpack.c.b16 %v202, %v201
  %v266 = vpack.c.b16 %v204, %v203
  %v267 = vpack.c.b16 %v206, %v205
  %v268 = vpack.c.b16 %v208, %v207
  %v269 = vpack.c.b16 %v210, %v209
  %v270 = vpack.c.b16 %v212, %v211
  %v271 = vpack.c.b16 %v214, %v213
  %v272 = vpack.c.b16 %v216, %v215
  %v273 = vpack.c.b16 %v218, %v217
  %v274 = vpack.c.b16 %v220, %v219
  %v275 = vpack.c.b16 %v222, %v221
  %v276 = vpack.c.b16 %v224, %v223
  %v277 = vpack.c.b16 %v226, %v225
  %v278 = vpack.c.b16 %v228, %v227
  %v279 = vpack.c.b16 %v230, %v229
  %v280 = vpack.c.b16 %v232, %v231
  %v281 = vpack.c.b16 %v234, %v233
  %v282 = vpack.c.b16 %v236, %v235
  %v283 = vpack.c.b16 %v238, %v237
  %v284 = vpack.c.b16 %v240, %v239
  %v285 = vpack.c.b16 %v242, %v241
  %v286 = vpack.c.b16 %v244, %v243
  %v287 = vpack.c.b16 %v246, %v245
  %v288 = vpack.c.b16 %v248, %v247
  %v289 = vpack.c.b16 %v250, %v249
  %v290 = vpack.c.b16 %v252, %v251
  %v291 = vpack.c.b16 %v254, %v253
  %v292 = vpack.c.b16 %v256, %v255
  %v293 = vpack.c.b16 %v258, %v257
  %v294 = vpack.c.b16 %v260, %v259
  %v295 = vpack.c.b16 %v262, %v261
  %v296 = vpack.c.b16 %v264, %v263
  %v329 = vunpack.c.l.b16 %v29
  %v330 = vunpack.c.l.b16 %v32
  %v331 = vunpack.c.l.b16 %v35
  %v332 = vunpack.c.l.b16 %v38
  %v333 = vunpack.c.l.b16 %v41
  %v334 = vunpack.c.l.b16 %v44
  %v335 = vunpack.c.l.b16 %v47
  %v336 = vunpack.c.l.b16 %v50
  %v337 = vunpack.c.l.b16 %v53
  %v338 = vunpack.c.l.b16 %v56
  %v339 = vunpack.c.l.b16 %v59
  %v340 = vunpack.c.l.b16 %v62
  %v341 = vunpack.c.l.b16 %v65
  %v342 = vunpack.c.l.b16 %v68
  %v343 = vunpack.c.l.b16 %v71
  %v344 = vunpack.c.l.b16 %v74
  %v345 = vunpack.c.l.b16 %v83
  %v346 = vunpack.c.l.b16 %v86
  %v347 = vunpack.c.l.b16 %v89
  %v348 = vunpack.c.l.b16 %v92
  %v349 = vunpack.c.l.b16 %v95
  %v350 = vunpack.c.l.b16 %v98
  %v351 = vunpack.c.l.b16 %v101
  %v352 = vunpack.c.l.b16 %v104
  %v353 = vunpack.c.l.b16 %v107
  %v354 = vunpack.c.l.b16 %v110
  %v355 = vunpack.c.l.b16 %v113
  %v356 = vunpack.c.l.b16 %v116
  %v357 = vunpack.c.l.b16 %v119
  %v358 = vunpack.c.l.b16 %v122
  %v359 = vunpack.c.l.b16 %v125
  %v360 = vunpack.c.l.b16 %v128
  %v361 = vpack.c.b16 %v329, %v329
  %v362 = vpack.c.b16 %v330, %v330
  %v363 = vpack.c.b16 %v331, %v331
  %v364 = vpack.c.b16 %v332, %v332
  %v365 = vpack.c.b16 %v333, %v333
  %v366 = vpack.c.b16 %v334, %v334
  %v367 = vpack.c.b16 %v335, %v335
  %v368 = vpack.c.b16 %v336, %v336
  %v369 = vpack.c.b16 %v337, %v337
  %v370 = vpack.c.b16 %v338, %v338
  %v371 = vpack.c.b16 %v339, %v339
  %v372 = vpack.c.b16 %v340, %v340
  %v373 = vpack.c.b16 %v341, %v341
  %v374 = vpack.c.b16 %v342, %v342
  %v375 = vpack.c.b16 %v343, %v343
  %v376 = vpack.c.b16 %v344, %v344
  %v377 = vpack.c.b16 %v345, %v345
  %v378 = vpack.c.b16 %v346, %v346
  %v379 = vpack.c.b16 %v347, %v347
  %v380 = vpack.c.b16 %v348, %v348
  %v381 = vpack.c.b16 %v349, %v349
  %v382 = vpack.c.b16 %v350, %v350
  %v383 = vpack.c.b16 %v351, %v351
  %v384 = vpack.c.b16 %v352, %v352
  %v385 = vpack.c.b16 %v353, %v353
  %v386 = vpack.c.b16 %v354, %v354
  %v387 = vpack.c.b16 %v355, %v355
  %v388 = vpack.c.b16 %v356, %v356
  %v389 = vpack.c.b16 %v357, %v357
  %v390 = vpack.c.b16 %v358, %v358
  %v391 = vpack.c.b16 %v359, %v359
  %v392 = vpack.c.b16 %v360, %v360
  %vm393 = vsmask.f32 7424
  %v395 = vshrl.u32 %v265, 16
  %v397 = vshll.u32 %v265, 16
  %v399 = vrot.slane %v397, 1
  %v400 = vor.u32 %v395, %v399
  %v402 = vshll.u32 %v361, 16
  %v404 = vrot.slane %v402, 1
  %v405 = vsel %vm393, %v400, %v404
  %v407 = vshrl.u32 %v266, 16
  %v409 = vshll.u32 %v266, 16
  %v411 = vrot.slane %v409, 1
  %v412 = vor.u32 %v407, %v411
  %v414 = vshll.u32 %v362, 16
  %v416 = vrot.slane %v414, 1
  %v417 = vsel %vm393, %v412, %v416
  %v419 = vshrl.u32 %v267, 16
  %v421 = vshll.u32 %v267, 16
  %v423 = vrot.slane %v421, 1
  %v424 = vor.u32 %v419, %v423
  %v426 = vshll.u32 %v363, 16
  %v428 = vrot.slane %v426, 1
  %v429 = vsel %vm393, %v424, %v428
  %v431 = vshrl.u32 %v268, 16
  %v433 = vshll.u32 %v268, 16
  %v435 = vrot.slane %v433, 1
  %v436 = vor.u32 %v431, %v435
  %v438 = vshll.u32 %v364, 16
  %v440 = vrot.slane %v438, 1
  %v441 = vsel %vm393, %v436, %v440
  %v443 = vshrl.u32 %v269, 16
  %v445 = vshll.u32 %v269, 16
  %v447 = vrot.slane %v445, 1
  %v448 = vor.u32 %v443, %v447
  %v450 = vshll.u32 %v365, 16
  %v452 = vrot.slane %v450, 1
  %v453 = vsel %vm393, %v448, %v452
  %v455 = vshrl.u32 %v270, 16
  %v457 = vshll.u32 %v270, 16
  %v459 = vrot.slane %v457, 1
  %v460 = vor.u32 %v455, %v459
  %v462 = vshll.u32 %v366, 16
  %v464 = vrot.slane %v462, 1
  %v465 = vsel %vm393, %v460, %v464
  %v467 = vshrl.u32 %v271, 16
  %v469 = vshll.u32 %v271, 16
  %v471 = vrot.slane %v469, 1
  %v472 = vor.u32 %v467, %v471
  %v474 = vshll.u32 %v367, 16
  %v476 = vrot.slane %v474, 1
  %v477 = vsel %vm393, %v472, %v476
  %v479 = vshrl.u32 %v272, 16
  %v481 = vshll.u32 %v272, 16
  %v483 = vrot.slane %v481, 1
  %v484 = vor.u32 %v479, %v483
  %v486 = vshll.u32 %v368, 16
  %v488 = vrot.slane %v486, 1
  %v489 = vsel %vm393, %v484, %v488
  %v491 = vshrl.u32 %v273, 16
  %v493 = vshll.u32 %v273, 16
  %v495 = vrot.slane %v493, 1
  %v496 = vor.u32 %v491, %v495
  %v498 = vshll.u32 %v369, 16
  %v500 = vrot.slane %v498, 1
  %v501 = vsel %vm393, %v496, %v500
  %v503 = vshrl.u32 %v274, 16
  %v505 = vshll.u32 %v274, 16
  %v507 = vrot.slane %v505, 1
  %v508 = vor.u32 %v503, %v507
  %v510 = vshll.u32 %v370, 16
  %v512 = vrot.slane %v510, 1
  %v513 = vsel %vm393, %v508, %v512
  %v515 = vshrl.u32 %v275, 16
  %v517 = vshll.u32 %v275, 16
  %v519 = vrot.slane %v517, 1
  %v520 = vor.u32 %v515, %v519
  %v522 = vshll.u32 %v371, 16
  %v524 = vrot.slane %v522, 1
  %v525 = vsel %vm393, %v520, %v524
  %v527 = vshrl.u32 %v276, 16
  %v529 = vshll.u32 %v276, 16
  %v531 = vrot.slane %v529, 1
  %v532 = vor.u32 %v527, %v531
  %v534 = vshll.u32 %v372, 16
  %v536 = vrot.slane %v534, 1
  %v537 = vsel %vm393, %v532, %v536
  %v539 = vshrl.u32 %v277, 16
  %v541 = vshll.u32 %v277, 16
  %v543 = vrot.slane %v541, 1
  %v544 = vor.u32 %v539, %v543
  %v546 = vshll.u32 %v373, 16
  %v548 = vrot.slane %v546, 1
  %v549 = vsel %vm393, %v544, %v548
  %v551 = vshrl.u32 %v278, 16
  %v553 = vshll.u32 %v278, 16
  %v555 = vrot.slane %v553, 1
  %v556 = vor.u32 %v551, %v555
  %v558 = vshll.u32 %v374, 16
  %v560 = vrot.slane %v558, 1
  %v561 = vsel %vm393, %v556, %v560
  %v563 = vshrl.u32 %v279, 16
  %v565 = vshll.u32 %v279, 16
  %v567 = vrot.slane %v565, 1
  %v568 = vor.u32 %v563, %v567
  %v570 = vshll.u32 %v375, 16
  %v572 = vrot.slane %v570, 1
  %v573 = vsel %vm393, %v568, %v572
  %v575 = vshrl.u32 %v280, 16
  %v577 = vshll.u32 %v280, 16
  %v579 = vrot.slane %v577, 1
  %v580 = vor.u32 %v575, %v579
  %v582 = vshll.u32 %v376, 16
  %v584 = vrot.slane %v582, 1
  %v585 = vsel %vm393, %v580, %v584
  %v587 = vshrl.u32 %v281, 16
  %v589 = vshll.u32 %v281, 16
  %v591 = vrot.slane %v589, 1
  %v592 = vor.u32 %v587, %v591
  %v594 = vshll.u32 %v377, 16
  %v596 = vrot.slane %v594, 1
  %v597 = vsel %vm393, %v592, %v596
  %v599 = vshrl.u32 %v282, 16
  %v601 = vshll.u32 %v282, 16
  %v603 = vrot.slane %v601, 1
  %v604 = vor.u32 %v599, %v603
  %v606 = vshll.u32 %v378, 16
  %v608 = vrot.slane %v606, 1
  %v609 = vsel %vm393, %v604, %v608
  %v611 = vshrl.u32 %v283, 16
  %v613 = vshll.u32 %v283, 16
  %v615 = vrot.slane %v613, 1
  %v616 = vor.u32 %v611, %v615
  %v618 = vshll.u32 %v379, 16
  %v620 = vrot.slane %v618, 1
  %v621 = vsel %vm393, %v616, %v620
  %v623 = vshrl.u32 %v284, 16
  %v625 = vshll.u32 %v284, 16
  %v627 = vrot.slane %v625, 1
  %v628 = vor.u32 %v623, %v627
  %v630 = vshll.u32 %v380, 16
  %v632 = vrot.slane %v630, 1
  %v633 = vsel %vm393, %v628, %v632
  %v635 = vshrl.u32 %v285, 16
  %v637 = vshll.u32 %v285, 16
  %v639 = vrot.slane %v637, 1
  %v640 = vor.u32 %v635, %v639
  %v642 = vshll.u32 %v381, 16
  %v644 = vrot.slane %v642, 1
  %v645 = vsel %vm393, %v640, %v644
  %v647 = vshrl.u32 %v286, 16
  %v649 = vshll.u32 %v286, 16
  %v651 = vrot.slane %v649, 1
  %v652 = vor.u32 %v647, %v651
  %v654 = vshll.u32 %v382, 16
  %v656 = vrot.slane %v654, 1
  %v657 = vsel %vm393, %v652, %v656
  %v659 = vshrl.u32 %v287, 16
  %v661 = vshll.u32 %v287, 16
  %v663 = vrot.slane %v661, 1
  %v664 = vor.u32 %v659, %v663
  %v666 = vshll.u32 %v383, 16
  %v668 = vrot.slane %v666, 1
  %v669 = vsel %vm393, %v664, %v668
  %v671 = vshrl.u32 %v288, 16
  %v673 = vshll.u32 %v288, 16
  %v675 = vrot.slane %v673, 1
  %v676 = vor.u32 %v671, %v675
  %v678 = vshll.u32 %v384, 16
  %v680 = vrot.slane %v678, 1
  %v681 = vsel %vm393, %v676, %v680
  %v683 = vshrl.u32 %v289, 16
  %v685 = vshll.u32 %v289, 16
  %v687 = vrot.slane %v685, 1
  %v688 = vor.u32 %v683, %v687
  %v690 = vshll.u32 %v385, 16
  %v692 = vrot.slane %v690, 1
  %v693 = vsel %vm393, %v688, %v692
  %v695 = vshrl.u32 %v290, 16
  %v697 = vshll.u32 %v290, 16
  %v699 = vrot.slane %v697, 1
  %v700 = vor.u32 %v695, %v699
  %v702 = vshll.u32 %v386, 16
  %v704 = vrot.slane %v702, 1
  %v705 = vsel %vm393, %v700, %v704
  %v707 = vshrl.u32 %v291, 16
  %v709 = vshll.u32 %v291, 16
  %v711 = vrot.slane %v709, 1
  %v712 = vor.u32 %v707, %v711
  %v714 = vshll.u32 %v387, 16
  %v716 = vrot.slane %v714, 1
  %v717 = vsel %vm393, %v712, %v716
  %v719 = vshrl.u32 %v292, 16
  %v721 = vshll.u32 %v292, 16
  %v723 = vrot.slane %v721, 1
  %v724 = vor.u32 %v719, %v723
  %v726 = vshll.u32 %v388, 16
  %v728 = vrot.slane %v726, 1
  %v729 = vsel %vm393, %v724, %v728
  %v731 = vshrl.u32 %v293, 16
  %v733 = vshll.u32 %v293, 16
  %v735 = vrot.slane %v733, 1
  %v736 = vor.u32 %v731, %v735
  %v738 = vshll.u32 %v389, 16
  %v740 = vrot.slane %v738, 1
  %v741 = vsel %vm393, %v736, %v740
  %v743 = vshrl.u32 %v294, 16
  %v745 = vshll.u32 %v294, 16
  %v747 = vrot.slane %v745, 1
  %v748 = vor.u32 %v743, %v747
  %v750 = vshll.u32 %v390, 16
  %v752 = vrot.slane %v750, 1
  %v753 = vsel %vm393, %v748, %v752
  %v755 = vshrl.u32 %v295, 16
  %v757 = vshll.u32 %v295, 16
  %v759 = vrot.slane %v757, 1
  %v760 = vor.u32 %v755, %v759
  %v762 = vshll.u32 %v391, 16
  %v764 = vrot.slane %v762, 1
  %v765 = vsel %vm393, %v760, %v764
  %v767 = vshrl.u32 %v296, 16
  %v769 = vshll.u32 %v296, 16
  %v771 = vrot.slane %v769, 1
  %v772 = vor.u32 %v767, %v771
  %v774 = vshll.u32 %v392, 16
  %v776 = vrot.slane %v774, 1
  %v777 = vsel %vm393, %v772, %v776
  %778 = vrot.lane.b32.xlu0 %v405, 64
  %v779 = vpop.permute.xlu0 %778
  %780 = vrot.lane.b32.xlu0 %v417, 64
  %v781 = vpop.permute.xlu0 %780
  %782 = vrot.lane.b32.xlu0 %v429, 64
  %v783 = vpop.permute.xlu0 %782
  %784 = vrot.lane.b32.xlu0 %v441, 64
  %v785 = vpop.permute.xlu0 %784
  %786 = vrot.lane.b32.xlu0 %v453, 64
  %v787 = vpop.permute.xlu0 %786
  %788 = vrot.lane.b32.xlu0 %v465, 64
  %v789 = vpop.permute.xlu0 %788
  %790 = vrot.lane.b32.xlu0 %v477, 64
  %v791 = vpop.permute.xlu0 %790
  %792 = vrot.lane.b32.xlu0 %v489, 64
  %v793 = vpop.permute.xlu0 %792
  %794 = vrot.lane.b32.xlu0 %v501, 64
  %v795 = vpop.permute.xlu0 %794
  %796 = vrot.lane.b32.xlu0 %v513, 64
  %v797 = vpop.permute.xlu0 %796
  %798 = vrot.lane.b32.xlu0 %v525, 64
  %v799 = vpop.permute.xlu0 %798
  %800 = vrot.lane.b32.xlu0 %v537, 64
  %v801 = vpop.permute.xlu0 %800
  %802 = vrot.lane.b32.xlu0 %v549, 64
  %v803 = vpop.permute.xlu0 %802
  %804 = vrot.lane.b32.xlu0 %v561, 64
  %v805 = vpop.permute.xlu0 %804
  %806 = vrot.lane.b32.xlu0 %v573, 64
  %v807 = vpop.permute.xlu0 %806
  %808 = vrot.lane.b32.xlu0 %v585, 64
  %v809 = vpop.permute.xlu0 %808
  %810 = vrot.lane.b32.xlu0 %v597, 64
  %v811 = vpop.permute.xlu0 %810
  %812 = vrot.lane.b32.xlu0 %v609, 64
  %v813 = vpop.permute.xlu0 %812
  %814 = vrot.lane.b32.xlu0 %v621, 64
  %v815 = vpop.permute.xlu0 %814
  %816 = vrot.lane.b32.xlu0 %v633, 64
  %v817 = vpop.permute.xlu0 %816
  %818 = vrot.lane.b32.xlu0 %v645, 64
  %v819 = vpop.permute.xlu0 %818
  %820 = vrot.lane.b32.xlu0 %v657, 64
  %v821 = vpop.permute.xlu0 %820
  %822 = vrot.lane.b32.xlu0 %v669, 64
  %v823 = vpop.permute.xlu0 %822
  %824 = vrot.lane.b32.xlu0 %v681, 64
  %v825 = vpop.permute.xlu0 %824
  %826 = vrot.lane.b32.xlu0 %v693, 64
  %v827 = vpop.permute.xlu0 %826
  %828 = vrot.lane.b32.xlu0 %v705, 64
  %v829 = vpop.permute.xlu0 %828
  %830 = vrot.lane.b32.xlu0 %v717, 64
  %v831 = vpop.permute.xlu0 %830
  %832 = vrot.lane.b32.xlu0 %v729, 64
  %v833 = vpop.permute.xlu0 %832
  %834 = vrot.lane.b32.xlu0 %v741, 64
  %v835 = vpop.permute.xlu0 %834
  %836 = vrot.lane.b32.xlu0 %v753, 64
  %v837 = vpop.permute.xlu0 %836
  %838 = vrot.lane.b32.xlu0 %v765, 64
  %v839 = vpop.permute.xlu0 %838
  %840 = vrot.lane.b32.xlu0 %v777, 64
  %v841 = vpop.permute.xlu0 %840
  %vm842 = vcmask 1046528
  %v843 = vrot.slane %v265, 1
  %v844 = vrot.slane %v361, 1
  %v845 = vsel %vm842, %v843, %v844
  %v846 = vrot.slane %v266, 1
  %v847 = vrot.slane %v362, 1
  %v848 = vsel %vm842, %v846, %v847
  %v849 = vrot.slane %v267, 1
  %v850 = vrot.slane %v363, 1
  %v851 = vsel %vm842, %v849, %v850
  %v852 = vrot.slane %v268, 1
  %v853 = vrot.slane %v364, 1
  %v854 = vsel %vm842, %v852, %v853
  %v855 = vrot.slane %v269, 1
  %v856 = vrot.slane %v365, 1
  %v857 = vsel %vm842, %v855, %v856
  %v858 = vrot.slane %v270, 1
  %v859 = vrot.slane %v366, 1
  %v860 = vsel %vm842, %v858, %v859
  %v861 = vrot.slane %v271, 1
  %v862 = vrot.slane %v367, 1
  %v863 = vsel %vm842, %v861, %v862
  %v864 = vrot.slane %v272, 1
  %v865 = vrot.slane %v368, 1
  %v866 = vsel %vm842, %v864, %v865
  %v867 = vrot.slane %v273, 1
  %v868 = vrot.slane %v369, 1
  %v869 = vsel %vm842, %v867, %v868
  %v870 = vrot.slane %v274, 1
  %v871 = vrot.slane %v370, 1
  %v872 = vsel %vm842, %v870, %v871
  %v873 = vrot.slane %v275, 1
  %v874 = vrot.slane %v371, 1
  %v875 = vsel %vm842, %v873, %v874
  %v876 = vrot.slane %v276, 1
  %v877 = vrot.slane %v372, 1
  %v878 = vsel %vm842, %v876, %v877
  %v879 = vrot.slane %v277, 1
  %v880 = vrot.slane %v373, 1
  %v881 = vsel %vm842, %v879, %v880
  %v882 = vrot.slane %v278, 1
  %v883 = vrot.slane %v374, 1
  %v884 = vsel %vm842, %v882, %v883
  %v885 = vrot.slane %v279, 1
  %v886 = vrot.slane %v375, 1
  %v887 = vsel %vm842, %v885, %v886
  %v888 = vrot.slane %v280, 1
  %v889 = vrot.slane %v376, 1
  %v890 = vsel %vm842, %v888, %v889
  %v891 = vrot.slane %v281, 1
  %v892 = vrot.slane %v377, 1
  %v893 = vsel %vm842, %v891, %v892
  %v894 = vrot.slane %v282, 1
  %v895 = vrot.slane %v378, 1
  %v896 = vsel %vm842, %v894, %v895
  %v897 = vrot.slane %v283, 1
  %v898 = vrot.slane %v379, 1
  %v899 = vsel %vm842, %v897, %v898
  %v900 = vrot.slane %v284, 1
  %v901 = vrot.slane %v380, 1
  %v902 = vsel %vm842, %v900, %v901
  %v903 = vrot.slane %v285, 1
  %v904 = vrot.slane %v381, 1
  %v905 = vsel %vm842, %v903, %v904
  %v906 = vrot.slane %v286, 1
  %v907 = vrot.slane %v382, 1
  %v908 = vsel %vm842, %v906, %v907
  %v909 = vrot.slane %v287, 1
  %v910 = vrot.slane %v383, 1
  %v911 = vsel %vm842, %v909, %v910
  %v912 = vrot.slane %v288, 1
  %v913 = vrot.slane %v384, 1
  %v914 = vsel %vm842, %v912, %v913
  %v915 = vrot.slane %v289, 1
  %v916 = vrot.slane %v385, 1
  %v917 = vsel %vm842, %v915, %v916
  %v918 = vrot.slane %v290, 1
  %v919 = vrot.slane %v386, 1
  %v920 = vsel %vm842, %v918, %v919
  %v921 = vrot.slane %v291, 1
  %v922 = vrot.slane %v387, 1
  %v923 = vsel %vm842, %v921, %v922
  %v924 = vrot.slane %v292, 1
  %v925 = vrot.slane %v388, 1
  %v926 = vsel %vm842, %v924, %v925
  %v927 = vrot.slane %v293, 1
  %v928 = vrot.slane %v389, 1
  %v929 = vsel %vm842, %v927, %v928
  %v930 = vrot.slane %v294, 1
  %v931 = vrot.slane %v390, 1
  %v932 = vsel %vm842, %v930, %v931
  %v933 = vrot.slane %v295, 1
  %v934 = vrot.slane %v391, 1
  %v935 = vsel %vm842, %v933, %v934
  %v936 = vrot.slane %v296, 1
  %v937 = vrot.slane %v392, 1
  %v938 = vsel %vm842, %v936, %v937
  %v943 = vunpack.c.l.b16 %v75
  %v944 = vunpack.c.l.b16 %v76
  %v945 = vunpack.c.l.b16 %v129
  %v946 = vunpack.c.l.b16 %v130
  %v947 = vpack.c.b16 %v944, %v943
  %v948 = vpack.c.b16 %v946, %v945
  %949 = vrot.lane.b32.xlu0 %v266, 64
  %v950 = vpop.permute.xlu0 %949
  %951 = vrot.lane.b32.xlu0 %v267, 64
  %v952 = vpop.permute.xlu0 %951
  %953 = vrot.lane.b32.xlu0 %v268, 64
  %v954 = vpop.permute.xlu0 %953
  %955 = vrot.lane.b32.xlu0 %v269, 64
  %v956 = vpop.permute.xlu0 %955
  %957 = vrot.lane.b32.xlu0 %v270, 64
  %v958 = vpop.permute.xlu0 %957
  %959 = vrot.lane.b32.xlu0 %v271, 64
  %v960 = vpop.permute.xlu0 %959
  %961 = vrot.lane.b32.xlu0 %v272, 64
  %v962 = vpop.permute.xlu0 %961
  %963 = vrot.lane.b32.xlu0 %v273, 64
  %v964 = vpop.permute.xlu0 %963
  %965 = vrot.lane.b32.xlu0 %v274, 64
  %v966 = vpop.permute.xlu0 %965
  %967 = vrot.lane.b32.xlu0 %v275, 64
  %v968 = vpop.permute.xlu0 %967
  %969 = vrot.lane.b32.xlu0 %v276, 64
  %v970 = vpop.permute.xlu0 %969
  %971 = vrot.lane.b32.xlu0 %v277, 64
  %v972 = vpop.permute.xlu0 %971
  %973 = vrot.lane.b32.xlu0 %v278, 64
  %v974 = vpop.permute.xlu0 %973
  %975 = vrot.lane.b32.xlu0 %v279, 64
  %v976 = vpop.permute.xlu0 %975
  %977 = vrot.lane.b32.xlu0 %v280, 64
  %v978 = vpop.permute.xlu0 %977
  %979 = vrot.lane.b32.xlu0 %v947, 64
  %v980 = vpop.permute.xlu0 %979
  %981 = vrot.lane.b32.xlu0 %v282, 64
  %v982 = vpop.permute.xlu0 %981
  %983 = vrot.lane.b32.xlu0 %v283, 64
  %v984 = vpop.permute.xlu0 %983
  %985 = vrot.lane.b32.xlu0 %v284, 64
  %v986 = vpop.permute.xlu0 %985
  %987 = vrot.lane.b32.xlu0 %v285, 64
  %v988 = vpop.permute.xlu0 %987
  %989 = vrot.lane.b32.xlu0 %v286, 64
  %v990 = vpop.permute.xlu0 %989
  %991 = vrot.lane.b32.xlu0 %v287, 64
  %v992 = vpop.permute.xlu0 %991
  %993 = vrot.lane.b32.xlu0 %v288, 64
  %v994 = vpop.permute.xlu0 %993
  %995 = vrot.lane.b32.xlu0 %v289, 64
  %v996 = vpop.permute.xlu0 %995
  %997 = vrot.lane.b32.xlu0 %v290, 64
  %v998 = vpop.permute.xlu0 %997
  %999 = vrot.lane.b32.xlu0 %v291, 64
  %v1000 = vpop.permute.xlu0 %999
  %1001 = vrot.lane.b32.xlu0 %v292, 64
  %v1002 = vpop.permute.xlu0 %1001
  %1003 = vrot.lane.b32.xlu0 %v293, 64
  %v1004 = vpop.permute.xlu0 %1003
  %1005 = vrot.lane.b32.xlu0 %v294, 64
  %v1006 = vpop.permute.xlu0 %1005
  %1007 = vrot.lane.b32.xlu0 %v295, 64
  %v1008 = vpop.permute.xlu0 %1007
  %1009 = vrot.lane.b32.xlu0 %v296, 64
  %v1010 = vpop.permute.xlu0 %1009
  %1011 = vrot.lane.b32.xlu0 %v948, 64
  %v1012 = vpop.permute.xlu0 %1011
  %v1015 = vunpack.c.l.b16 %v77
  %v1016 = vunpack.c.l.b16 %v131
  %v1017 = vpack.c.b16 %v1015, %v1015
  %v1018 = vpack.c.b16 %v1016, %v1016
  %v1020 = vshrl.u32 %v947, 16
  %v1022 = vshll.u32 %v947, 16
  %v1024 = vrot.slane %v1022, 1
  %v1025 = vor.u32 %v1020, %v1024
  %v1027 = vshll.u32 %v1017, 16
  %v1029 = vrot.slane %v1027, 1
  %v1030 = vsel %vm393, %v1025, %v1029
  %v1032 = vshrl.u32 %v948, 16
  %v1034 = vshll.u32 %v948, 16
  %v1036 = vrot.slane %v1034, 1
  %v1037 = vor.u32 %v1032, %v1036
  %v1039 = vshll.u32 %v1018, 16
  %v1041 = vrot.slane %v1039, 1
  %v1042 = vsel %vm393, %v1037, %v1041
  %v1043 = vrot.slane %v947, 1
  %v1044 = vrot.slane %v1017, 1
  %v1045 = vsel %vm842, %v1043, %v1044
  %v1046 = vrot.slane %v948, 1
  %v1047 = vrot.slane %v1018, 1
  %v1048 = vsel %vm842, %v1046, %v1047
  %1049 = vrot.lane.b32.xlu0 %v848, 64
  %v1050 = vpop.permute.xlu0 %1049
  %1051 = vrot.lane.b32.xlu0 %v851, 64
  %v1052 = vpop.permute.xlu0 %1051
  %1053 = vrot.lane.b32.xlu0 %v854, 64
  %v1054 = vpop.permute.xlu0 %1053
  %1055 = vrot.lane.b32.xlu0 %v857, 64
  %v1056 = vpop.permute.xlu0 %1055
  %1057 = vrot.lane.b32.xlu0 %v860, 64
  %v1058 = vpop.permute.xlu0 %1057
  %1059 = vrot.lane.b32.xlu0 %v863, 64
  %v1060 = vpop.permute.xlu0 %1059
  %1061 = vrot.lane.b32.xlu0 %v866, 64
  %v1062 = vpop.permute.xlu0 %1061
  %1063 = vrot.lane.b32.xlu0 %v869, 64
  %v1064 = vpop.permute.xlu0 %1063
  %1065 = vrot.lane.b32.xlu0 %v872, 64
  %v1066 = vpop.permute.xlu0 %1065
  %1067 = vrot.lane.b32.xlu0 %v875, 64
  %v1068 = vpop.permute.xlu0 %1067
  %1069 = vrot.lane.b32.xlu0 %v878, 64
  %v1070 = vpop.permute.xlu0 %1069
  %1071 = vrot.lane.b32.xlu0 %v881, 64
  %v1072 = vpop.permute.xlu0 %1071
  %1073 = vrot.lane.b32.xlu0 %v884, 64
  %v1074 = vpop.permute.xlu0 %1073
  %1075 = vrot.lane.b32.xlu0 %v887, 64
  %v1076 = vpop.permute.xlu0 %1075
  %1077 = vrot.lane.b32.xlu0 %v890, 64
  %v1078 = vpop.permute.xlu0 %1077
  %1079 = vrot.lane.b32.xlu0 %v1045, 64
  %v1080 = vpop.permute.xlu0 %1079
  %1081 = vrot.lane.b32.xlu0 %v896, 64
  %v1082 = vpop.permute.xlu0 %1081
  %1083 = vrot.lane.b32.xlu0 %v899, 64
  %v1084 = vpop.permute.xlu0 %1083
  %1085 = vrot.lane.b32.xlu0 %v902, 64
  %v1086 = vpop.permute.xlu0 %1085
  %1087 = vrot.lane.b32.xlu0 %v905, 64
  %v1088 = vpop.permute.xlu0 %1087
  %1089 = vrot.lane.b32.xlu0 %v908, 64
  %v1090 = vpop.permute.xlu0 %1089
  %1091 = vrot.lane.b32.xlu0 %v911, 64
  %v1092 = vpop.permute.xlu0 %1091
  %1093 = vrot.lane.b32.xlu0 %v914, 64
  %v1094 = vpop.permute.xlu0 %1093
  %1095 = vrot.lane.b32.xlu0 %v917, 64
  %v1096 = vpop.permute.xlu0 %1095
  %1097 = vrot.lane.b32.xlu0 %v920, 64
  %v1098 = vpop.permute.xlu0 %1097
  %1099 = vrot.lane.b32.xlu0 %v923, 64
  %v1100 = vpop.permute.xlu0 %1099
  %1101 = vrot.lane.b32.xlu0 %v926, 64
  %v1102 = vpop.permute.xlu0 %1101
  %1103 = vrot.lane.b32.xlu0 %v929, 64
  %v1104 = vpop.permute.xlu0 %1103
  %1105 = vrot.lane.b32.xlu0 %v932, 64
  %v1106 = vpop.permute.xlu0 %1105
  %1107 = vrot.lane.b32.xlu0 %v935, 64
  %v1108 = vpop.permute.xlu0 %1107
  %1109 = vrot.lane.b32.xlu0 %v938, 64
  %v1110 = vpop.permute.xlu0 %1109
  %1111 = vrot.lane.b32.xlu0 %v1048, 64
  %v1112 = vpop.permute.xlu0 %1111
  %v1117 = vunpack.c.l.b16 %v78
  %v1118 = vunpack.c.l.b16 %v79
  %v1119 = vunpack.c.l.b16 %v132
  %v1120 = vunpack.c.l.b16 %v133
  %v1121 = vpack.c.b16 %v1118, %v1117
  %v1122 = vpack.c.b16 %v1120, %v1119
  %v1125 = vunpack.c.l.b16 %v80
  %v1126 = vunpack.c.l.b16 %v134
  %v1127 = vpack.c.b16 %v1125, %v1125
  %v1128 = vpack.c.b16 %v1126, %v1126
  %v1130 = vshrl.u32 %v1121, 16
  %v1132 = vshll.u32 %v1121, 16
  %v1134 = vrot.slane %v1132, 1
  %v1135 = vor.u32 %v1130, %v1134
  %v1137 = vshll.u32 %v1127, 16
  %v1139 = vrot.slane %v1137, 1
  %v1140 = vsel %vm393, %v1135, %v1139
  %v1142 = vshrl.u32 %v1122, 16
  %v1144 = vshll.u32 %v1122, 16
  %v1146 = vrot.slane %v1144, 1
  %v1147 = vor.u32 %v1142, %v1146
  %v1149 = vshll.u32 %v1128, 16
  %v1151 = vrot.slane %v1149, 1
  %v1152 = vsel %vm393, %v1147, %v1151
  %1153 = vrot.lane.b32.xlu0 %v1030, 64
  %v1154 = vpop.permute.xlu0 %1153
  %1155 = vrot.lane.b32.xlu0 %v1140, 64
  %v1156 = vpop.permute.xlu0 %1155
  %1157 = vrot.lane.b32.xlu0 %v1042, 64
  %v1158 = vpop.permute.xlu0 %1157
  %1159 = vrot.lane.b32.xlu0 %v1152, 64
  %v1160 = vpop.permute.xlu0 %1159
  %v1161 = vrot.slane %v1121, 1
  %v1162 = vrot.slane %v1127, 1
  %v1163 = vsel %vm842, %v1161, %v1162
  %v1164 = vrot.slane %v1122, 1
  %v1165 = vrot.slane %v1128, 1
  %v1166 = vsel %vm842, %v1164, %v1165
  %vm1167 = vcmask 523264
  %v1169 = vsel %vm1167, %v265, %v779
  %v1172 = vsel %vm1167, %v266, %v781
  %v1175 = vsel %vm1167, %v267, %v783
  %v1178 = vsel %vm1167, %v268, %v785
  %v1181 = vsel %vm1167, %v269, %v787
  %v1184 = vsel %vm1167, %v270, %v789
  %v1187 = vsel %vm1167, %v271, %v791
  %v1190 = vsel %vm1167, %v272, %v793
  %v1193 = vsel %vm1167, %v273, %v795
  %v1196 = vsel %vm1167, %v274, %v797
  %v1199 = vsel %vm1167, %v275, %v799
  %v1202 = vsel %vm1167, %v276, %v801
  %v1205 = vsel %vm1167, %v277, %v803
  %v1208 = vsel %vm1167, %v278, %v805
  %v1211 = vsel %vm1167, %v279, %v807
  %v1214 = vsel %vm1167, %v280, %v809
  %v1217 = vsel %vm1167, %v281, %v811
  %v1220 = vsel %vm1167, %v282, %v813
  %v1223 = vsel %vm1167, %v283, %v815
  %v1226 = vsel %vm1167, %v284, %v817
  %v1229 = vsel %vm1167, %v285, %v819
  %v1232 = vsel %vm1167, %v286, %v821
  %v1235 = vsel %vm1167, %v287, %v823
  %v1238 = vsel %vm1167, %v288, %v825
  %v1241 = vsel %vm1167, %v289, %v827
  %v1244 = vsel %vm1167, %v290, %v829
  %v1247 = vsel %vm1167, %v291, %v831
  %v1250 = vsel %vm1167, %v292, %v833
  %v1253 = vsel %vm1167, %v293, %v835
  %v1256 = vsel %vm1167, %v294, %v837
  %v1259 = vsel %vm1167, %v295, %v839
  %v1262 = vsel %vm1167, %v296, %v841
  %v1266 = vsel %vm1167, %v845, %v950
  %v1270 = vsel %vm1167, %v848, %v952
  %v1274 = vsel %vm1167, %v851, %v954
  %v1278 = vsel %vm1167, %v854, %v956
  %v1282 = vsel %vm1167, %v857, %v958
  %v1286 = vsel %vm1167, %v860, %v960
  %v1290 = vsel %vm1167, %v863, %v962
  %v1294 = vsel %vm1167, %v866, %v964
  %v1298 = vsel %vm1167, %v869, %v966
  %v1302 = vsel %vm1167, %v872, %v968
  %v1306 = vsel %vm1167, %v875, %v970
  %v1310 = vsel %vm1167, %v878, %v972
  %v1314 = vsel %vm1167, %v881, %v974
  %v1318 = vsel %vm1167, %v884, %v976
  %v1322 = vsel %vm1167, %v887, %v978
  %v1326 = vsel %vm1167, %v890, %v980
  %v1330 = vsel %vm1167, %v893, %v982
  %v1334 = vsel %vm1167, %v896, %v984
  %v1338 = vsel %vm1167, %v899, %v986
  %v1342 = vsel %vm1167, %v902, %v988
  %v1346 = vsel %vm1167, %v905, %v990
  %v1350 = vsel %vm1167, %v908, %v992
  %v1354 = vsel %vm1167, %v911, %v994
  %v1358 = vsel %vm1167, %v914, %v996
  %v1362 = vsel %vm1167, %v917, %v998
  %v1366 = vsel %vm1167, %v920, %v1000
  %v1370 = vsel %vm1167, %v923, %v1002
  %v1374 = vsel %vm1167, %v926, %v1004
  %v1378 = vsel %vm1167, %v929, %v1006
  %v1382 = vsel %vm1167, %v932, %v1008
  %v1386 = vsel %vm1167, %v935, %v1010
  %v1390 = vsel %vm1167, %v938, %v1012
  %v1394 = vsel %vm1167, %v417, %v1050
  %v1398 = vsel %vm1167, %v429, %v1052
  %v1402 = vsel %vm1167, %v441, %v1054
  %v1406 = vsel %vm1167, %v453, %v1056
  %v1410 = vsel %vm1167, %v465, %v1058
  %v1414 = vsel %vm1167, %v477, %v1060
  %v1418 = vsel %vm1167, %v489, %v1062
  %v1422 = vsel %vm1167, %v501, %v1064
  %v1426 = vsel %vm1167, %v513, %v1066
  %v1430 = vsel %vm1167, %v525, %v1068
  %v1434 = vsel %vm1167, %v537, %v1070
  %v1438 = vsel %vm1167, %v549, %v1072
  %v1442 = vsel %vm1167, %v561, %v1074
  %v1446 = vsel %vm1167, %v573, %v1076
  %v1450 = vsel %vm1167, %v585, %v1078
  %v1454 = vsel %vm1167, %v1030, %v1080
  %v1458 = vsel %vm1167, %v609, %v1082
  %v1462 = vsel %vm1167, %v621, %v1084
  %v1466 = vsel %vm1167, %v633, %v1086
  %v1470 = vsel %vm1167, %v645, %v1088
  %v1474 = vsel %vm1167, %v657, %v1090
  %v1478 = vsel %vm1167, %v669, %v1092
  %v1482 = vsel %vm1167, %v681, %v1094
  %v1486 = vsel %vm1167, %v693, %v1096
  %v1490 = vsel %vm1167, %v705, %v1098
  %v1494 = vsel %vm1167, %v717, %v1100
  %v1498 = vsel %vm1167, %v729, %v1102
  %v1502 = vsel %vm1167, %v741, %v1104
  %v1506 = vsel %vm1167, %v753, %v1106
  %v1510 = vsel %vm1167, %v765, %v1108
  %v1514 = vsel %vm1167, %v777, %v1110
  %v1518 = vsel %vm1167, %v1042, %v1112
  %v1521 = vsel %vm1167, %v947, %v1154
  %v1524 = vsel %vm1167, %v1121, %v1156
  %v1527 = vsel %vm1167, %v948, %v1158
  %v1530 = vsel %vm1167, %v1122, %v1160
  %v1532 = vld [vmem:[%s1] sm:$0xff]
  %v1533 = vld [vmem:[%s1 + $0x8] sm:$0xff]
  %v1534 = vld [vmem:[%s1 + $0x10] sm:$0xff]
  %v1535 = vld [vmem:[%s1 + $0x18] sm:$0xff]
  %v1536 = vld [vmem:[%s1 + $0x20] sm:$0xff]
  %v1537 = vld [vmem:[%s1 + $0x28] sm:$0xff]
  %v1538 = vld [vmem:[%s1 + $0x30] sm:$0xff]
  %v1539 = vld [vmem:[%s1 + $0x38] sm:$0xff]
  %v1540 = vld [vmem:[%s1 + $0x40] sm:$0xff]
  %v1541 = vld [vmem:[%s1 + $0x48] sm:$0xff]
  %v1542 = vld [vmem:[%s1 + $0x50] sm:$0xff]
  %v1543 = vld [vmem:[%s1 + $0x58] sm:$0xff]
  %v1544 = vld [vmem:[%s1 + $0x60] sm:$0xff]
  %v1545 = vld [vmem:[%s1 + $0x68] sm:$0xff]
  %v1546 = vld [vmem:[%s1 + $0x70] sm:$0xff]
  %v1547 = vld [vmem:[%s1 + $0x78] sm:$0xff]
  %v1548 = vld [vmem:[%s1 + $0x80] sm:$0xff]
  %v1549 = vld [vmem:[%s1 + $0x88] sm:$0xff]
  %v1550 = vld [vmem:[%s1 + $0x90] sm:$0xff]
  %v1551 = vld [vmem:[%s1 + $0x98] sm:$0xff]
  %v1552 = vld [vmem:[%s1 + $0xa0] sm:$0xff]
  %v1553 = vld [vmem:[%s1 + $0xa8] sm:$0xff]
  %v1554 = vld [vmem:[%s1 + $0xb0] sm:$0xff]
  %v1555 = vld [vmem:[%s1 + $0xb8] sm:$0xff]
  %v1556 = vld [vmem:[%s1 + $0xc0] sm:$0xff]
  %v1557 = vld [vmem:[%s1 + $0xc8] sm:$0xff]
  %v1558 = vld [vmem:[%s1 + $0xd0] sm:$0xff]
  %v1559 = vld [vmem:[%s1 + $0xd8] sm:$0xff]
  %v1560 = vld [vmem:[%s1 + $0xe0] sm:$0xff]
  %v1561 = vld [vmem:[%s1 + $0xe8] sm:$0xff]
  %v1562 = vld [vmem:[%s1 + $0xf0] sm:$0xff]
  %v1563 = vld [vmem:[%s1 + $0xf8] sm:$0xff]
  %v1564 = vld [vmem:[%s1 + $0x100] sm:$0xff]
  %v1565 = vld [vmem:[%s1 + $0x108] sm:$0xff]
  %v1566 = vld [vmem:[%s1 + $0x110] sm:$0xff]
  %v1567 = vld [vmem:[%s1 + $0x118] sm:$0xff]
  %v1568 = vld [vmem:[%s1 + $0x120] sm:$0xff]
  %v1569 = vld [vmem:[%s1 + $0x128] sm:$0xff]
  %v1570 = vld [vmem:[%s1 + $0x130] sm:$0xff]
  %v1571 = vld [vmem:[%s1 + $0x138] sm:$0xff]
  %v1572 = vld [vmem:[%s1 + $0x140] sm:$0xff]
  %v1573 = vld [vmem:[%s1 + $0x148] sm:$0xff]
  %v1574 = vld [vmem:[%s1 + $0x150] sm:$0xff]
  %v1575 = vld [vmem:[%s1 + $0x158] sm:$0xff]
  %v1576 = vld [vmem:[%s1 + $0x160] sm:$0xff]
  %v1577 = vld [vmem:[%s1 + $0x168] sm:$0xff]
  %v1578 = vld [vmem:[%s1 + $0x170] sm:$0xff]
  %v1579 = vld [vmem:[%s1 + $0x178] sm:$0xff]
  %v1580 = vld [vmem:[%s1 + $0x180] sm:$0xff]
  %v1581 = vld [vmem:[%s1 + $0x188] sm:$0xff]
  %v1582 = vld [vmem:[%s1 + $0x190] sm:$0xff]
  %v1583 = vld [vmem:[%s1 + $0x198] sm:$0xff]
  %v1584 = vld [vmem:[%s1 + $0x1a0] sm:$0xff]
  %v1585 = vld [vmem:[%s1 + $0x1a8] sm:$0xff]
  %v1586 = vld [vmem:[%s1 + $0x1b0] sm:$0xff]
  %v1587 = vld [vmem:[%s1 + $0x1b8] sm:$0xff]
  %v1588 = vld [vmem:[%s1 + $0x1c0] sm:$0xff]
  %v1589 = vld [vmem:[%s1 + $0x1c8] sm:$0xff]
  %v1590 = vld [vmem:[%s1 + $0x1d0] sm:$0xff]
  %v1591 = vld [vmem:[%s1 + $0x1d8] sm:$0xff]
  %v1592 = vld [vmem:[%s1 + $0x1e0] sm:$0xff]
  %v1593 = vld [vmem:[%s1 + $0x1e8] sm:$0xff]
  %v1594 = vld [vmem:[%s1 + $0x1f0] sm:$0xff]
  %v1595 = vld [vmem:[%s1 + $0x1f8] sm:$0xff]
  %v1596 = vld [vmem:[%s1 + $0x200] sm:$0xff]
  %v1597 = vld [vmem:[%s1 + $0x208] sm:$0xff]
  %v1598 = vld [vmem:[%s1 + $0x210] sm:$0xff]
  %v1599 = vld [vmem:[%s1 + $0x218] sm:$0xff]
  %v1600 = vld [vmem:[%s1 + $0x220] sm:$0xff]
  %v1601 = vld [vmem:[%s1 + $0x228] sm:$0xff]
  %v1602 = vld [vmem:[%s1 + $0x230] sm:$0xff]
  %v1603 = vld [vmem:[%s1 + $0x238] sm:$0xff]
  %v1604 = vlaneseq
  %v1605 = vshrl.u32 %v1604, 7
  %v1606 = vsub.s32 0, %v1605
  %v1607 = vrot.slane %v135, %v1606
  %v1608 = vlaneseq
  %v1609 = vshrl.u32 %v1608, 7
  %v1610 = vsub.s32 0, %v1609
  %v1611 = vrot.slane %v136, %v1610
  %v1684 = vunpack.c.l.b16 %v1532
  %v1685 = vunpack.c.h.b16 %v1532
  %v1686 = vunpack.c.l.b16 %v1533
  %v1687 = vunpack.c.h.b16 %v1533
  %v1688 = vunpack.c.l.b16 %v1534
  %v1689 = vunpack.c.h.b16 %v1534
  %v1690 = vunpack.c.l.b16 %v1535
  %v1691 = vunpack.c.h.b16 %v1535
  %v1692 = vunpack.c.l.b16 %v1536
  %v1693 = vunpack.c.h.b16 %v1536
  %v1694 = vunpack.c.l.b16 %v1537
  %v1695 = vunpack.c.h.b16 %v1537
  %v1696 = vunpack.c.l.b16 %v1538
  %v1697 = vunpack.c.h.b16 %v1538
  %v1698 = vunpack.c.l.b16 %v1539
  %v1699 = vunpack.c.h.b16 %v1539
  %v1700 = vunpack.c.l.b16 %v1540
  %v1701 = vunpack.c.h.b16 %v1540
  %v1702 = vunpack.c.l.b16 %v1541
  %v1703 = vunpack.c.h.b16 %v1541
  %v1704 = vunpack.c.l.b16 %v1542
  %v1705 = vunpack.c.h.b16 %v1542
  %v1706 = vunpack.c.l.b16 %v1543
  %v1707 = vunpack.c.h.b16 %v1543
  %v1708 = vunpack.c.l.b16 %v1544
  %v1709 = vunpack.c.h.b16 %v1544
  %v1710 = vunpack.c.l.b16 %v1545
  %v1711 = vunpack.c.h.b16 %v1545
  %v1712 = vunpack.c.l.b16 %v1546
  %v1713 = vunpack.c.h.b16 %v1546
  %v1714 = vunpack.c.l.b16 %v1547
  %v1715 = vunpack.c.h.b16 %v1547
  %v1716 = vunpack.c.l.b16 %v1548
  %v1717 = vunpack.c.h.b16 %v1548
  %v1718 = vunpack.c.l.b16 %v1549
  %v1719 = vunpack.c.h.b16 %v1549
  %v1720 = vunpack.c.l.b16 %v1550
  %v1721 = vunpack.c.h.b16 %v1550
  %v1722 = vunpack.c.l.b16 %v1551
  %v1723 = vunpack.c.h.b16 %v1551
  %v1724 = vunpack.c.l.b16 %v1552
  %v1725 = vunpack.c.h.b16 %v1552
  %v1726 = vunpack.c.l.b16 %v1553
  %v1727 = vunpack.c.h.b16 %v1553
  %v1728 = vunpack.c.l.b16 %v1554
  %v1729 = vunpack.c.h.b16 %v1554
  %v1730 = vunpack.c.l.b16 %v1555
  %v1731 = vunpack.c.h.b16 %v1555
  %v1732 = vunpack.c.l.b16 %v1556
  %v1733 = vunpack.c.h.b16 %v1556
  %v1734 = vunpack.c.l.b16 %v1557
  %v1735 = vunpack.c.h.b16 %v1557
  %v1736 = vunpack.c.l.b16 %v1558
  %v1737 = vunpack.c.h.b16 %v1558
  %v1738 = vunpack.c.l.b16 %v1559
  %v1739 = vunpack.c.h.b16 %v1559
  %v1740 = vunpack.c.l.b16 %v1560
  %v1741 = vunpack.c.h.b16 %v1560
  %v1742 = vunpack.c.l.b16 %v1561
  %v1743 = vunpack.c.h.b16 %v1561
  %v1744 = vunpack.c.l.b16 %v1562
  %v1745 = vunpack.c.h.b16 %v1562
  %v1746 = vunpack.c.l.b16 %v1563
  %v1747 = vunpack.c.h.b16 %v1563
  %v1748 = vunpack.c.l.b16 %v1564
  %v1749 = vunpack.c.h.b16 %v1564
  %v1750 = vunpack.c.l.b16 %v1565
  %v1751 = vunpack.c.h.b16 %v1565
  %v1752 = vunpack.c.l.b16 %v1566
  %v1753 = vunpack.c.h.b16 %v1566
  %v1754 = vunpack.c.l.b16 %v1567
  %v1755 = vunpack.c.h.b16 %v1567
  %v1756 = vunpack.c.l.b16 %v1568
  %v1757 = vunpack.c.h.b16 %v1568
  %v1758 = vunpack.c.l.b16 %v1569
  %v1759 = vunpack.c.h.b16 %v1569
  %v1760 = vunpack.c.l.b16 %v1570
  %v1761 = vunpack.c.h.b16 %v1570
  %v1762 = vunpack.c.l.b16 %v1571
  %v1763 = vunpack.c.h.b16 %v1571
  %v1764 = vunpack.c.l.b16 %v1572
  %v1765 = vunpack.c.h.b16 %v1572
  %v1766 = vunpack.c.l.b16 %v1573
  %v1767 = vunpack.c.h.b16 %v1573
  %v1768 = vunpack.c.l.b16 %v1574
  %v1769 = vunpack.c.h.b16 %v1574
  %v1770 = vunpack.c.l.b16 %v1575
  %v1771 = vunpack.c.h.b16 %v1575
  %v1772 = vunpack.c.l.b16 %v1576
  %v1773 = vunpack.c.h.b16 %v1576
  %v1774 = vunpack.c.l.b16 %v1577
  %v1775 = vunpack.c.h.b16 %v1577
  %v1776 = vunpack.c.l.b16 %v1578
  %v1777 = vunpack.c.h.b16 %v1578
  %v1778 = vunpack.c.l.b16 %v1579
  %v1779 = vunpack.c.h.b16 %v1579
  %v1780 = vunpack.c.l.b16 %v1580
  %v1781 = vunpack.c.h.b16 %v1580
  %v1782 = vunpack.c.l.b16 %v1581
  %v1783 = vunpack.c.h.b16 %v1581
  %v1784 = vunpack.c.l.b16 %v1582
  %v1785 = vunpack.c.h.b16 %v1582
  %v1786 = vunpack.c.l.b16 %v1583
  %v1787 = vunpack.c.h.b16 %v1583
  %v1788 = vunpack.c.l.b16 %v1584
  %v1789 = vunpack.c.h.b16 %v1584
  %v1790 = vunpack.c.l.b16 %v1585
  %v1791 = vunpack.c.h.b16 %v1585
  %v1792 = vunpack.c.l.b16 %v1586
  %v1793 = vunpack.c.h.b16 %v1586
  %v1794 = vunpack.c.l.b16 %v1587
  %v1795 = vunpack.c.h.b16 %v1587
  %v1796 = vunpack.c.l.b16 %v1588
  %v1797 = vunpack.c.h.b16 %v1588
  %v1798 = vunpack.c.l.b16 %v1589
  %v1799 = vunpack.c.h.b16 %v1589
  %v1800 = vunpack.c.l.b16 %v1590
  %v1801 = vunpack.c.h.b16 %v1590
  %v1802 = vunpack.c.l.b16 %v1591
  %v1803 = vunpack.c.h.b16 %v1591
  %v1804 = vunpack.c.l.b16 %v1592
  %v1805 = vunpack.c.h.b16 %v1592
  %v1806 = vunpack.c.l.b16 %v1593
  %v1807 = vunpack.c.h.b16 %v1593
  %v1808 = vunpack.c.l.b16 %v1594
  %v1809 = vunpack.c.h.b16 %v1594
  %v1810 = vunpack.c.l.b16 %v1595
  %v1811 = vunpack.c.h.b16 %v1595
  %v1812 = vunpack.c.l.b16 %v1596
  %v1813 = vunpack.c.h.b16 %v1596
  %v1814 = vunpack.c.l.b16 %v1597
  %v1815 = vunpack.c.h.b16 %v1597
  %v1816 = vunpack.c.l.b16 %v1598
  %v1817 = vunpack.c.h.b16 %v1598
  %v1818 = vunpack.c.l.b16 %v1599
  %v1819 = vunpack.c.h.b16 %v1599
  %v1820 = vunpack.c.l.b16 %v1600
  %v1821 = vunpack.c.h.b16 %v1600
  %v1822 = vunpack.c.l.b16 %v1601
  %v1823 = vunpack.c.h.b16 %v1601
  %v1824 = vunpack.c.l.b16 %v1602
  %v1825 = vunpack.c.h.b16 %v1602
  %v1826 = vunpack.c.l.b16 %v1603
  %v1827 = vunpack.c.h.b16 %v1603
  %v1828 = vpack.c.b16 %v1686, %v1684
  %v1829 = vpack.c.b16 %v1687, %v1685
  %v1830 = vpack.c.b16 %v1690, %v1688
  %v1831 = vpack.c.b16 %v1691, %v1689
  %v1832 = vpack.c.b16 %v1694, %v1692
  %v1833 = vpack.c.b16 %v1695, %v1693
  %v1834 = vpack.c.b16 %v1698, %v1696
  %v1835 = vpack.c.b16 %v1699, %v1697
  %v1836 = vpack.c.b16 %v1702, %v1700
  %v1837 = vpack.c.b16 %v1703, %v1701
  %v1838 = vpack.c.b16 %v1706, %v1704
  %v1839 = vpack.c.b16 %v1707, %v1705
  %v1840 = vpack.c.b16 %v1710, %v1708
  %v1841 = vpack.c.b16 %v1711, %v1709
  %v1842 = vpack.c.b16 %v1714, %v1712
  %v1843 = vpack.c.b16 %v1715, %v1713
  %v1844 = vpack.c.b16 %v1718, %v1716
  %v1845 = vpack.c.b16 %v1719, %v1717
  %v1846 = vpack.c.b16 %v1722, %v1720
  %v1847 = vpack.c.b16 %v1723, %v1721
  %v1848 = vpack.c.b16 %v1726, %v1724
  %v1849 = vpack.c.b16 %v1727, %v1725
  %v1850 = vpack.c.b16 %v1730, %v1728
  %v1851 = vpack.c.b16 %v1731, %v1729
  %v1852 = vpack.c.b16 %v1734, %v1732
  %v1853 = vpack.c.b16 %v1735, %v1733
  %v1854 = vpack.c.b16 %v1738, %v1736
  %v1855 = vpack.c.b16 %v1739, %v1737
  %v1856 = vpack.c.b16 %v1742, %v1740
  %v1857 = vpack.c.b16 %v1743, %v1741
  %v1858 = vpack.c.b16 %v1746, %v1744
  %v1859 = vpack.c.b16 %v1747, %v1745
  %v1860 = vpack.c.b16 %v1750, %v1748
  %v1861 = vpack.c.b16 %v1751, %v1749
  %v1862 = vpack.c.b16 %v1754, %v1752
  %v1863 = vpack.c.b16 %v1755, %v1753
  %v1864 = vpack.c.b16 %v1758, %v1756
  %v1865 = vpack.c.b16 %v1759, %v1757
  %v1866 = vpack.c.b16 %v1762, %v1760
  %v1867 = vpack.c.b16 %v1763, %v1761
  %v1868 = vpack.c.b16 %v1766, %v1764
  %v1869 = vpack.c.b16 %v1767, %v1765
  %v1870 = vpack.c.b16 %v1770, %v1768
  %v1871 = vpack.c.b16 %v1771, %v1769
  %v1872 = vpack.c.b16 %v1774, %v1772
  %v1873 = vpack.c.b16 %v1775, %v1773
  %v1874 = vpack.c.b16 %v1778, %v1776
  %v1875 = vpack.c.b16 %v1779, %v1777
  %v1876 = vpack.c.b16 %v1782, %v1780
  %v1877 = vpack.c.b16 %v1783, %v1781
  %v1878 = vpack.c.b16 %v1786, %v1784
  %v1879 = vpack.c.b16 %v1787, %v1785
  %v1880 = vpack.c.b16 %v1790, %v1788
  %v1881 = vpack.c.b16 %v1791, %v1789
  %v1882 = vpack.c.b16 %v1794, %v1792
  %v1883 = vpack.c.b16 %v1795, %v1793
  %v1884 = vpack.c.b16 %v1798, %v1796
  %v1885 = vpack.c.b16 %v1799, %v1797
  %v1886 = vpack.c.b16 %v1802, %v1800
  %v1887 = vpack.c.b16 %v1803, %v1801
  %v1888 = vpack.c.b16 %v1806, %v1804
  %v1889 = vpack.c.b16 %v1807, %v1805
  %v1890 = vpack.c.b16 %v1810, %v1808
  %v1891 = vpack.c.b16 %v1811, %v1809
  %v1892 = vpack.c.b16 %v1814, %v1812
  %v1893 = vpack.c.b16 %v1815, %v1813
  %v1894 = vpack.c.b16 %v1818, %v1816
  %v1895 = vpack.c.b16 %v1819, %v1817
  %v1896 = vpack.c.b16 %v1822, %v1820
  %v1897 = vpack.c.b16 %v1823, %v1821
  %v1898 = vpack.c.b16 %v1826, %v1824
  %v1899 = vpack.c.b16 %v1827, %v1825
  %v1972 = vsel %vm1167, %v851, 0
  %v1974 = vsel %vm1167, %v854, 0
  %v1976 = vsel %vm1167, %v857, 0
  %v1978 = vsel %vm1167, %v860, 0
  %v1980 = vsel %vm1167, %v863, 0
  %v1982 = vsel %vm1167, %v866, 0
  %v1984 = vsel %vm1167, %v869, 0
  %v1986 = vsel %vm1167, %v872, 0
  %v1988 = vsel %vm1167, %v875, 0
  %v1990 = vsel %vm1167, %v878, 0
  %v1992 = vsel %vm1167, %v881, 0
  %v1994 = vsel %vm1167, %v884, 0
  %v1996 = vsel %vm1167, %v887, 0
  %v1998 = vsel %vm1167, %v890, 0
  %v2001 = vsel %vm1167, %v1045, 0
  %v2004 = vsel %vm1167, %v1163, 0
  %v2006 = vsel %vm1167, %v899, 0
  %v2008 = vsel %vm1167, %v902, 0
  %v2010 = vsel %vm1167, %v905, 0
  %v2012 = vsel %vm1167, %v908, 0
  %v2014 = vsel %vm1167, %v911, 0
  %v2016 = vsel %vm1167, %v914, 0
  %v2018 = vsel %vm1167, %v917, 0
  %v2020 = vsel %vm1167, %v920, 0
  %v2022 = vsel %vm1167, %v923, 0
  %v2024 = vsel %vm1167, %v926, 0
  %v2026 = vsel %vm1167, %v929, 0
  %v2028 = vsel %vm1167, %v932, 0
  %v2030 = vsel %vm1167, %v935, 0
  %v2032 = vsel %vm1167, %v938, 0
  %v2035 = vsel %vm1167, %v1048, 0
  %v2038 = vsel %vm1167, %v1166, 0
  %2040 = vmatprep.subr.bf16.mxu0 %v1829
  %2041 = vmatpush1.bf16.msra.mxu0 %v1828
  %2042 = vmatprep.subr.bf16.mxu0 %v1831
  %2043 = vmatpush1.bf16.msra.mxu0 %v1830
  %2044 = vmatprep.subr.bf16.mxu0 %v1833
  %2045 = vmatpush1.bf16.msra.mxu0 %v1832
  %2046 = vmatprep.subr.bf16.mxu0 %v1835
  %2047 = vmatpush1.bf16.msra.mxu0 %v1834
  %2048 = vmatprep.subr.bf16.mxu0 %v1837
  %2049 = vmatpush1.bf16.msra.mxu0 %v1836
  %2050 = vmatprep.subr.bf16.mxu0 %v1839
  %2051 = vmatpush1.bf16.msra.mxu0 %v1838
  %2052 = vmatprep.subr.bf16.mxu0 %v1841
  %2053 = vmatpush1.bf16.msra.mxu0 %v1840
  %2054 = vmatprep.subr.bf16.mxu0 %v1843
  %2055 = vmatpush1.bf16.msra.mxu0 %v1842
  %2056 = vmatprep.subr.bf16.mxu0 %v1845
  %2057 = vmatpush1.bf16.msra.mxu0 %v1844
  %2058 = vmatprep.subr.bf16.mxu0 %v1847
  %2059 = vmatpush1.bf16.msra.mxu0 %v1846
  %2060 = vmatprep.subr.bf16.mxu0 %v1849
  %2061 = vmatpush1.bf16.msra.mxu0 %v1848
  %2062 = vmatprep.subr.bf16.mxu0 %v1851
  %2063 = vmatpush1.bf16.msra.mxu0 %v1850
  %2064 = vmatprep.subr.bf16.mxu0 %v1853
  %2065 = vmatpush1.bf16.msra.mxu0 %v1852
  %2066 = vmatprep.subr.bf16.mxu0 %v1855
  %2067 = vmatpush1.bf16.msra.mxu0 %v1854
  %2068 = vmatprep.subr.bf16.mxu0 %v1857
  %2069 = vmatpush1.bf16.msra.mxu0 %v1856
  %2070 = vmatprep.subr.bf16.mxu0 %v1859
  %2071 = vmatpush1.bf16.msra.mxu0 %v1858
  %2072 = vmatprep.mubr.bf16.mxu0 %v1266
  %2073 = vmatmul.mubr.bf16.gmra.mrb[0].mxu0 %v1169
  %v2074 = vpop.f32.mrb[0].mxu0
  %v2075 = vadd.f32 %v1607, %v2074
  %v2076 = vpop.f32.mrb[0].mxu0
  %v2077 = vadd.f32 %v1611, %v2076
  %v2078 = vpop.f32.mrb[0].mxu0
  %v2079 = vadd.f32 %v1607, %v2078
  %v2080 = vpop.f32.mrb[0].mxu0
  %v2081 = vadd.f32 %v1611, %v2080
  %2082 = vmatprep.mubr.bf16.mxu0 %v1270
  %2083 = vmatmul.mubr.bf16.gmra.mrb[0].mxu0 %v1172
  %v2084 = vpop.f32.mrb[0].mxu0
  %v2085 = vadd.f32 %v1607, %v2084
  %v2086 = vpop.f32.mrb[0].mxu0
  %v2087 = vadd.f32 %v1611, %v2086
  %v2088 = vpop.f32.mrb[0].mxu0
  %v2089 = vadd.f32 %v1607, %v2088
  %v2090 = vpop.f32.mrb[0].mxu0
  %v2091 = vadd.f32 %v1611, %v2090
  %2092 = vmatprep.mubr.bf16.mxu0 %v1274
  %2093 = vmatmul.mubr.bf16.gmra.mrb[0].mxu0 %v1175
  %v2094 = vpop.f32.mrb[0].mxu0
  %v2095 = vadd.f32 %v1607, %v2094
  %v2096 = vpop.f32.mrb[0].mxu0
  %v2097 = vadd.f32 %v1611, %v2096
  %v2098 = vpop.f32.mrb[0].mxu0
  %v2099 = vadd.f32 %v1607, %v2098
  %v2100 = vpop.f32.mrb[0].mxu0
  %v2101 = vadd.f32 %v1611, %v2100
  %2102 = vmatprep.mubr.bf16.mxu0 %v1278
  %2103 = vmatmul.mubr.bf16.gmra.mrb[0].mxu0 %v1178
  %v2104 = vpop.f32.mrb[0].mxu0
  %v2105 = vadd.f32 %v1607, %v2104
  %v2106 = vpop.f32.mrb[0].mxu0
  %v2107 = vadd.f32 %v1611, %v2106
  %v2108 = vpop.f32.mrb[0].mxu0
  %v2109 = vadd.f32 %v1607, %v2108
  %v2110 = vpop.f32.mrb[0].mxu0
  %v2111 = vadd.f32 %v1611, %v2110
  %2112 = vmatprep.mubr.bf16.mxu0 %v1282
  %2113 = vmatmul.mubr.bf16.gmra.mrb[0].mxu0 %v1181
  %v2114 = vpop.f32.mrb[0].mxu0
  %v2115 = vadd.f32 %v1607, %v2114
  %v2116 = vpop.f32.mrb[0].mxu0
  %v2117 = vadd.f32 %v1611, %v2116
  %v2118 = vpop.f32.mrb[0].mxu0
  %v2119 = vadd.f32 %v1607, %v2118
  %v2120 = vpop.f32.mrb[0].mxu0
  %v2121 = vadd.f32 %v1611, %v2120
  %2122 = vmatprep.mubr.bf16.mxu0 %v1286
  %2123 = vmatmul.mubr.bf16.gmra.mrb[0].mxu0 %v1184
  %v2124 = vpop.f32.mrb[0].mxu0
  %v2125 = vadd.f32 %v1607, %v2124
  %v2126 = vpop.f32.mrb[0].mxu0
  %v2127 = vadd.f32 %v1611, %v2126
  %v2128 = vpop.f32.mrb[0].mxu0
  %v2129 = vadd.f32 %v1607, %v2128
  %v2130 = vpop.f32.mrb[0].mxu0
  %v2131 = vadd.f32 %v1611, %v2130
  %2132 = vmatprep.mubr.bf16.mxu0 %v1290
  %2133 = vmatmul.mubr.bf16.gmra.mrb[0].mxu0 %v1187
  %v2134 = vpop.f32.mrb[0].mxu0
  %v2135 = vadd.f32 %v1607, %v2134
  %v2136 = vpop.f32.mrb[0].mxu0
  %v2137 = vadd.f32 %v1611, %v2136
  %v2138 = vpop.f32.mrb[0].mxu0
  %v2139 = vadd.f32 %v1607, %v2138
  %v2140 = vpop.f32.mrb[0].mxu0
  %v2141 = vadd.f32 %v1611, %v2140
  %2142 = vmatprep.mubr.bf16.mxu0 %v1294
  %2143 = vmatmul.mubr.bf16.gmra.mrb[0].mxu0 %v1190
  %v2144 = vpop.f32.mrb[0].mxu0
  %v2145 = vadd.f32 %v1607, %v2144
  %v2146 = vpop.f32.mrb[0].mxu0
  %v2147 = vadd.f32 %v1611, %v2146
  %v2148 = vpop.f32.mrb[0].mxu0
  %v2149 = vadd.f32 %v1607, %v2148
  %v2150 = vpop.f32.mrb[0].mxu0
  %v2151 = vadd.f32 %v1611, %v2150
  %2152 = vmatprep.mubr.bf16.mxu0 %v1298
  %2153 = vmatmul.mubr.bf16.gmra.mrb[0].mxu0 %v1193
  %v2154 = vpop.f32.mrb[0].mxu0
  %v2155 = vadd.f32 %v1607, %v2154
  %v2156 = vpop.f32.mrb[0].mxu0
  %v2157 = vadd.f32 %v1611, %v2156
  %v2158 = vpop.f32.mrb[0].mxu0
  %v2159 = vadd.f32 %v1607, %v2158
  %v2160 = vpop.f32.mrb[0].mxu0
  %v2161 = vadd.f32 %v1611, %v2160
  %2162 = vmatprep.mubr.bf16.mxu0 %v1302
  %2163 = vmatmul.mubr.bf16.gmra.mrb[0].mxu0 %v1196
  %v2164 = vpop.f32.mrb[0].mxu0
  %v2165 = vadd.f32 %v1607, %v2164
  %v2166 = vpop.f32.mrb[0].mxu0
  %v2167 = vadd.f32 %v1611, %v2166
  %v2168 = vpop.f32.mrb[0].mxu0
  %v2169 = vadd.f32 %v1607, %v2168
  %v2170 = vpop.f32.mrb[0].mxu0
  %v2171 = vadd.f32 %v1611, %v2170
  %2172 = vmatprep.mubr.bf16.mxu0 %v1306
  %2173 = vmatmul.mubr.bf16.gmra.mrb[0].mxu0 %v1199
  %v2174 = vpop.f32.mrb[0].mxu0
  %v2175 = vadd.f32 %v1607, %v2174
  %v2176 = vpop.f32.mrb[0].mxu0
  %v2177 = vadd.f32 %v1611, %v2176
  %v2178 = vpop.f32.mrb[0].mxu0
  %v2179 = vadd.f32 %v1607, %v2178
  %v2180 = vpop.f32.mrb[0].mxu0
  %v2181 = vadd.f32 %v1611, %v2180
  %2182 = vmatprep.mubr.bf16.mxu0 %v1310
  %2183 = vmatmul.mubr.bf16.gmra.mrb[0].mxu0 %v1202
  %v2184 = vpop.f32.mrb[0].mxu0
  %v2185 = vadd.f32 %v1607, %v2184
  %v2186 = vpop.f32.mrb[0].mxu0
  %v2187 = vadd.f32 %v1611, %v2186
  %v2188 = vpop.f32.mrb[0].mxu0
  %v2189 = vadd.f32 %v1607, %v2188
  %v2190 = vpop.f32.mrb[0].mxu0
  %v2191 = vadd.f32 %v1611, %v2190
  %2192 = vmatprep.mubr.bf16.mxu0 %v1314
  %2193 = vmatmul.mubr.bf16.gmra.mrb[0].mxu0 %v1205
  %v2194 = vpop.f32.mrb[0].mxu0
  %v2195 = vadd.f32 %v1607, %v2194
  %v2196 = vpop.f32.mrb[0].mxu0
  %v2197 = vadd.f32 %v1611, %v2196
  %v2198 = vpop.f32.mrb[0].mxu0
  %v2199 = vadd.f32 %v1607, %v2198
  %v2200 = vpop.f32.mrb[0].mxu0
  %v2201 = vadd.f32 %v1611, %v2200
  %2202 = vmatprep.mubr.bf16.mxu0 %v1318
  %2203 = vmatmul.mubr.bf16.gmra.mrb[0].mxu0 %v1208
  %v2204 = vpop.f32.mrb[0].mxu0
  %v2205 = vadd.f32 %v1607, %v2204
  %v2206 = vpop.f32.mrb[0].mxu0
  %v2207 = vadd.f32 %v1611, %v2206
  %v2208 = vpop.f32.mrb[0].mxu0
  %v2209 = vadd.f32 %v1607, %v2208
  %v2210 = vpop.f32.mrb[0].mxu0
  %v2211 = vadd.f32 %v1611, %v2210
  %2212 = vmatprep.mubr.bf16.mxu0 %v1322
  %2213 = vmatmul.mubr.bf16.gmra.mrb[0].mxu0 %v1211
  %v2214 = vpop.f32.mrb[0].mxu0
  %v2215 = vadd.f32 %v1607, %v2214
  %v2216 = vpop.f32.mrb[0].mxu0
  %v2217 = vadd.f32 %v1611, %v2216
  %v2218 = vpop.f32.mrb[0].mxu0
  %v2219 = vadd.f32 %v1607, %v2218
  %v2220 = vpop.f32.mrb[0].mxu0
  %v2221 = vadd.f32 %v1611, %v2220
  %2222 = vmatprep.mubr.bf16.mxu0 %v1326
  %2223 = vmatmul.mubr.bf16.gmra.mrb[0].mxu0 %v1214
  %v2224 = vpop.f32.mrb[0].mxu0
  %v2225 = vadd.f32 %v1607, %v2224
  %v2226 = vpop.f32.mrb[0].mxu0
  %v2227 = vadd.f32 %v1611, %v2226
  %v2228 = vpop.f32.mrb[0].mxu0
  %v2229 = vadd.f32 %v1607, %v2228
  %v2230 = vpop.f32.mrb[0].mxu0
  %v2231 = vadd.f32 %v1611, %v2230
  %2232 = vmatprep.mubr.bf16.mxu0 %v1330
  %2233 = vmatmul.mubr.bf16.gmra.mrb[0].mxu0 %v1217
  %v2234 = vpop.f32.mrb[0].mxu0
  %v2235 = vadd.f32 %v1607, %v2234
  %v2236 = vpop.f32.mrb[0].mxu0
  %v2237 = vadd.f32 %v1611, %v2236
  %v2238 = vpop.f32.mrb[0].mxu0
  %v2239 = vadd.f32 %v1607, %v2238
  %v2240 = vpop.f32.mrb[0].mxu0
  %v2241 = vadd.f32 %v1611, %v2240
  %2242 = vmatprep.mubr.bf16.mxu0 %v1334
  %2243 = vmatmul.mubr.bf16.gmra.mrb[0].mxu0 %v1220
  %v2244 = vpop.f32.mrb[0].mxu0
  %v2245 = vadd.f32 %v1607, %v2244
  %v2246 = vpop.f32.mrb[0].mxu0
  %v2247 = vadd.f32 %v1611, %v2246
  %v2248 = vpop.f32.mrb[0].mxu0
  %v2249 = vadd.f32 %v1607, %v2248
  %v2250 = vpop.f32.mrb[0].mxu0
  %v2251 = vadd.f32 %v1611, %v2250
  %2252 = vmatprep.mubr.bf16.mxu0 %v1338
  %2253 = vmatmul.mubr.bf16.gmra.mrb[0].mxu0 %v1223
  %v2254 = vpop.f32.mrb[0].mxu0
  %v2255 = vadd.f32 %v1607, %v2254
  %v2256 = vpop.f32.mrb[0].mxu0
  %v2257 = vadd.f32 %v1611, %v2256
  %v2258 = vpop.f32.mrb[0].mxu0
  %v2259 = vadd.f32 %v1607, %v2258
  %v2260 = vpop.f32.mrb[0].mxu0
  %v2261 = vadd.f32 %v1611, %v2260
  %2262 = vmatprep.mubr.bf16.mxu0 %v1342
  %2263 = vmatmul.mubr.bf16.gmra.mrb[0].mxu0 %v1226
  %v2264 = vpop.f32.mrb[0].mxu0
  %v2265 = vadd.f32 %v1607, %v2264
  %v2266 = vpop.f32.mrb[0].mxu0
  %v2267 = vadd.f32 %v1611, %v2266
  %v2268 = vpop.f32.mrb[0].mxu0
  %v2269 = vadd.f32 %v1607, %v2268
  %v2270 = vpop.f32.mrb[0].mxu0
  %v2271 = vadd.f32 %v1611, %v2270
  %2272 = vmatprep.mubr.bf16.mxu0 %v1346
  %2273 = vmatmul.mubr.bf16.gmra.mrb[0].mxu0 %v1229
  %v2274 = vpop.f32.mrb[0].mxu0
  %v2275 = vadd.f32 %v1607, %v2274
  %v2276 = vpop.f32.mrb[0].mxu0
  %v2277 = vadd.f32 %v1611, %v2276
  %v2278 = vpop.f32.mrb[0].mxu0
  %v2279 = vadd.f32 %v1607, %v2278
  %v2280 = vpop.f32.mrb[0].mxu0
  %v2281 = vadd.f32 %v1611, %v2280
  %2282 = vmatprep.mubr.bf16.mxu0 %v1350
  %2283 = vmatmul.mubr.bf16.gmra.mrb[0].mxu0 %v1232
  %v2284 = vpop.f32.mrb[0].mxu0
  %v2285 = vadd.f32 %v1607, %v2284
  %v2286 = vpop.f32.mrb[0].mxu0
  %v2287 = vadd.f32 %v1611, %v2286
  %v2288 = vpop.f32.mrb[0].mxu0
  %v2289 = vadd.f32 %v1607, %v2288
  %v2290 = vpop.f32.mrb[0].mxu0
  %v2291 = vadd.f32 %v1611, %v2290
  %2292 = vmatprep.mubr.bf16.mxu0 %v1354
  %2293 = vmatmul.mubr.bf16.gmra.mrb[0].mxu0 %v1235
  %v2294 = vpop.f32.mrb[0].mxu0
  %v2295 = vadd.f32 %v1607, %v2294
  %v2296 = vpop.f32.mrb[0].mxu0
  %v2297 = vadd.f32 %v1611, %v2296
  %v2298 = vpop.f32.mrb[0].mxu0
  %v2299 = vadd.f32 %v1607, %v2298
  %v2300 = vpop.f32.mrb[0].mxu0
  %v2301 = vadd.f32 %v1611, %v2300
  %2302 = vmatprep.mubr.bf16.mxu0 %v1358
  %2303 = vmatmul.mubr.bf16.gmra.mrb[0].mxu0 %v1238
  %v2304 = vpop.f32.mrb[0].mxu0
  %v2305 = vadd.f32 %v1607, %v2304
  %v2306 = vpop.f32.mrb[0].mxu0
  %v2307 = vadd.f32 %v1611, %v2306
  %v2308 = vpop.f32.mrb[0].mxu0
  %v2309 = vadd.f32 %v1607, %v2308
  %v2310 = vpop.f32.mrb[0].mxu0
  %v2311 = vadd.f32 %v1611, %v2310
  %2312 = vmatprep.mubr.bf16.mxu0 %v1362
  %2313 = vmatmul.mubr.bf16.gmra.mrb[0].mxu0 %v1241
  %v2314 = vpop.f32.mrb[0].mxu0
  %v2315 = vadd.f32 %v1607, %v2314
  %v2316 = vpop.f32.mrb[0].mxu0
  %v2317 = vadd.f32 %v1611, %v2316
  %v2318 = vpop.f32.mrb[0].mxu0
  %v2319 = vadd.f32 %v1607, %v2318
  %v2320 = vpop.f32.mrb[0].mxu0
  %v2321 = vadd.f32 %v1611, %v2320
  %2322 = vmatprep.mubr.bf16.mxu0 %v1366
  %2323 = vmatmul.mubr.bf16.gmra.mrb[0].mxu0 %v1244
  %v2324 = vpop.f32.mrb[0].mxu0
  %v2325 = vadd.f32 %v1607, %v2324
  %v2326 = vpop.f32.mrb[0].mxu0
  %v2327 = vadd.f32 %v1611, %v2326
  %v2328 = vpop.f32.mrb[0].mxu0
  %v2329 = vadd.f32 %v1607, %v2328
  %v2330 = vpop.f32.mrb[0].mxu0
  %v2331 = vadd.f32 %v1611, %v2330
  %2332 = vmatprep.mubr.bf16.mxu0 %v1370
  %2333 = vmatmul.mubr.bf16.gmra.mrb[0].mxu0 %v1247
  %v2334 = vpop.f32.mrb[0].mxu0
  %v2335 = vadd.f32 %v1607, %v2334
  %v2336 = vpop.f32.mrb[0].mxu0
  %v2337 = vadd.f32 %v1611, %v2336
  %v2338 = vpop.f32.mrb[0].mxu0
  %v2339 = vadd.f32 %v1607, %v2338
  %v2340 = vpop.f32.mrb[0].mxu0
  %v2341 = vadd.f32 %v1611, %v2340
  %2342 = vmatprep.mubr.bf16.mxu0 %v1374
  %2343 = vmatmul.mubr.bf16.gmra.mrb[0].mxu0 %v1250
  %v2344 = vpop.f32.mrb[0].mxu0
  %v2345 = vadd.f32 %v1607, %v2344
  %v2346 = vpop.f32.mrb[0].mxu0
  %v2347 = vadd.f32 %v1611, %v2346
  %v2348 = vpop.f32.mrb[0].mxu0
  %v2349 = vadd.f32 %v1607, %v2348
  %v2350 = vpop.f32.mrb[0].mxu0
  %v2351 = vadd.f32 %v1611, %v2350
  %2352 = vmatprep.mubr.bf16.mxu0 %v1378
  %2353 = vmatmul.mubr.bf16.gmra.mrb[0].mxu0 %v1253
  %v2354 = vpop.f32.mrb[0].mxu0
  %v2355 = vadd.f32 %v1607, %v2354
  %v2356 = vpop.f32.mrb[0].mxu0
  %v2357 = vadd.f32 %v1611, %v2356
  %v2358 = vpop.f32.mrb[0].mxu0
  %v2359 = vadd.f32 %v1607, %v2358
  %v2360 = vpop.f32.mrb[0].mxu0
  %v2361 = vadd.f32 %v1611, %v2360
  %2362 = vmatprep.mubr.bf16.mxu0 %v1382
  %2363 = vmatmul.mubr.bf16.gmra.mrb[0].mxu0 %v1256
  %v2364 = vpop.f32.mrb[0].mxu0
  %v2365 = vadd.f32 %v1607, %v2364
  %v2366 = vpop.f32.mrb[0].mxu0
  %v2367 = vadd.f32 %v1611, %v2366
  %v2368 = vpop.f32.mrb[0].mxu0
  %v2369 = vadd.f32 %v1607, %v2368
  %v2370 = vpop.f32.mrb[0].mxu0
  %v2371 = vadd.f32 %v1611, %v2370
  %2372 = vmatprep.mubr.bf16.mxu0 %v1386
  %2373 = vmatmul.mubr.bf16.gmra.mrb[0].mxu0 %v1259
  %v2374 = vpop.f32.mrb[0].mxu0
  %v2375 = vadd.f32 %v1607, %v2374
  %v2376 = vpop.f32.mrb[0].mxu0
  %v2377 = vadd.f32 %v1611, %v2376
  %v2378 = vpop.f32.mrb[0].mxu0
  %v2379 = vadd.f32 %v1607, %v2378
  %v2380 = vpop.f32.mrb[0].mxu0
  %v2381 = vadd.f32 %v1611, %v2380
  %2382 = vmatprep.mubr.bf16.mxu0 %v1390
  %2383 = vmatmul.mubr.bf16.gmra.mrb[0].mxu0 %v1262
  %v2384 = vpop.f32.mrb[0].mxu0
  %v2385 = vadd.f32 %v1607, %v2384
  %v2386 = vpop.f32.mrb[0].mxu0
  %v2387 = vadd.f32 %v1611, %v2386
  %v2388 = vpop.f32.mrb[0].mxu0
  %v2389 = vadd.f32 %v1607, %v2388
  %v2390 = vpop.f32.mrb[0].mxu0
  %v2391 = vadd.f32 %v1611, %v2390
  %2392 = vdwg.mxu0
  %2393 = vmatprep.subr.bf16.mxu0 %v1861
  %2394 = vmatpush1.bf16.msra.mxu0 %v1860
  %2395 = vmatprep.subr.bf16.mxu0 %v1863
  %2396 = vmatpush1.bf16.msra.mxu0 %v1862
  %2397 = vmatprep.subr.bf16.mxu0 %v1865
  %2398 = vmatpush1.bf16.msra.mxu0 %v1864
  %2399 = vmatprep.subr.bf16.mxu0 %v1867
  %2400 = vmatpush1.bf16.msra.mxu0 %v1866
  %2401 = vmatprep.subr.bf16.mxu0 %v1869
  %2402 = vmatpush1.bf16.msra.mxu0 %v1868
  %2403 = vmatprep.subr.bf16.mxu0 %v1871
  %2404 = vmatpush1.bf16.msra.mxu0 %v1870
  %2405 = vmatprep.subr.bf16.mxu0 %v1873
  %2406 = vmatpush1.bf16.msra.mxu0 %v1872
  %2407 = vmatprep.subr.bf16.mxu0 %v1875
  %2408 = vmatpush1.bf16.msra.mxu0 %v1874
  %2409 = vmatprep.subr.bf16.mxu0 %v1877
  %2410 = vmatpush1.bf16.msra.mxu0 %v1876
  %2411 = vmatprep.subr.bf16.mxu0 %v1879
  %2412 = vmatpush1.bf16.msra.mxu0 %v1878
  %2413 = vmatprep.subr.bf16.mxu0 %v1881
  %2414 = vmatpush1.bf16.msra.mxu0 %v1880
  %2415 = vmatprep.subr.bf16.mxu0 %v1883
  %2416 = vmatpush1.bf16.msra.mxu0 %v1882
  %2417 = vmatprep.subr.bf16.mxu0 %v1885
  %2418 = vmatpush1.bf16.msra.mxu0 %v1884
  %2419 = vmatprep.subr.bf16.mxu0 %v1887
  %2420 = vmatpush1.bf16.msra.mxu0 %v1886
  %2421 = vmatprep.subr.bf16.mxu0 %v1889
  %2422 = vmatpush1.bf16.msra.mxu0 %v1888
  %2423 = vmatprep.subr.bf16.mxu0 %v1891
  %2424 = vmatpush1.bf16.msra.mxu0 %v1890
  %2425 = vmatprep.mubr.bf16.mxu0 %v1175
  %2426 = vmatmul.mubr.bf16.gmra.mrb[0].mxu0 %v1394
  %v2427 = vpop.f32.mrb[0].mxu0
  %v2428 = vadd.f32 %v2075, %v2427
  %v2429 = vpop.f32.mrb[0].mxu0
  %v2430 = vadd.f32 %v2077, %v2429
  %v2431 = vpop.f32.mrb[0].mxu0
  %v2432 = vadd.f32 %v2079, %v2431
  %v2433 = vpop.f32.mrb[0].mxu0
  %v2434 = vadd.f32 %v2081, %v2433
  %2435 = vmatprep.mubr.bf16.mxu0 %v1178
  %2436 = vmatmul.mubr.bf16.gmra.mrb[0].mxu0 %v1398
  %v2437 = vpop.f32.mrb[0].mxu0
  %v2438 = vadd.f32 %v2085, %v2437
  %v2439 = vpop.f32.mrb[0].mxu0
  %v2440 = vadd.f32 %v2087, %v2439
  %v2441 = vpop.f32.mrb[0].mxu0
  %v2442 = vadd.f32 %v2089, %v2441
  %v2443 = vpop.f32.mrb[0].mxu0
  %v2444 = vadd.f32 %v2091, %v2443
  %2445 = vmatprep.mubr.bf16.mxu0 %v1181
  %2446 = vmatmul.mubr.bf16.gmra.mrb[0].mxu0 %v1402
  %v2447 = vpop.f32.mrb[0].mxu0
  %v2448 = vadd.f32 %v2095, %v2447
  %v2449 = vpop.f32.mrb[0].mxu0
  %v2450 = vadd.f32 %v2097, %v2449
  %v2451 = vpop.f32.mrb[0].mxu0
  %v2452 = vadd.f32 %v2099, %v2451
  %v2453 = vpop.f32.mrb[0].mxu0
  %v2454 = vadd.f32 %v2101, %v2453
  %2455 = vmatprep.mubr.bf16.mxu0 %v1184
  %2456 = vmatmul.mubr.bf16.gmra.mrb[0].mxu0 %v1406
  %v2457 = vpop.f32.mrb[0].mxu0
  %v2458 = vadd.f32 %v2105, %v2457
  %v2459 = vpop.f32.mrb[0].mxu0
  %v2460 = vadd.f32 %v2107, %v2459
  %v2461 = vpop.f32.mrb[0].mxu0
  %v2462 = vadd.f32 %v2109, %v2461
  %v2463 = vpop.f32.mrb[0].mxu0
  %v2464 = vadd.f32 %v2111, %v2463
  %2465 = vmatprep.mubr.bf16.mxu0 %v1187
  %2466 = vmatmul.mubr.bf16.gmra.mrb[0].mxu0 %v1410
  %v2467 = vpop.f32.mrb[0].mxu0
  %v2468 = vadd.f32 %v2115, %v2467
  %v2469 = vpop.f32.mrb[0].mxu0
  %v2470 = vadd.f32 %v2117, %v2469
  %v2471 = vpop.f32.mrb[0].mxu0
  %v2472 = vadd.f32 %v2119, %v2471
  %v2473 = vpop.f32.mrb[0].mxu0
  %v2474 = vadd.f32 %v2121, %v2473
  %2475 = vmatprep.mubr.bf16.mxu0 %v1190
  %2476 = vmatmul.mubr.bf16.gmra.mrb[0].mxu0 %v1414
  %v2477 = vpop.f32.mrb[0].mxu0
  %v2478 = vadd.f32 %v2125, %v2477
  %v2479 = vpop.f32.mrb[0].mxu0
  %v2480 = vadd.f32 %v2127, %v2479
  %v2481 = vpop.f32.mrb[0].mxu0
  %v2482 = vadd.f32 %v2129, %v2481
  %v2483 = vpop.f32.mrb[0].mxu0
  %v2484 = vadd.f32 %v2131, %v2483
  %2485 = vmatprep.mubr.bf16.mxu0 %v1193
  %2486 = vmatmul.mubr.bf16.gmra.mrb[0].mxu0 %v1418
  %v2487 = vpop.f32.mrb[0].mxu0
  %v2488 = vadd.f32 %v2135, %v2487
  %v2489 = vpop.f32.mrb[0].mxu0
  %v2490 = vadd.f32 %v2137, %v2489
  %v2491 = vpop.f32.mrb[0].mxu0
  %v2492 = vadd.f32 %v2139, %v2491
  %v2493 = vpop.f32.mrb[0].mxu0
  %v2494 = vadd.f32 %v2141, %v2493
  %2495 = vmatprep.mubr.bf16.mxu0 %v1196
  %2496 = vmatmul.mubr.bf16.gmra.mrb[0].mxu0 %v1422
  %v2497 = vpop.f32.mrb[0].mxu0
  %v2498 = vadd.f32 %v2145, %v2497
  %v2499 = vpop.f32.mrb[0].mxu0
  %v2500 = vadd.f32 %v2147, %v2499
  %v2501 = vpop.f32.mrb[0].mxu0
  %v2502 = vadd.f32 %v2149, %v2501
  %v2503 = vpop.f32.mrb[0].mxu0
  %v2504 = vadd.f32 %v2151, %v2503
  %2505 = vmatprep.mubr.bf16.mxu0 %v1199
  %2506 = vmatmul.mubr.bf16.gmra.mrb[0].mxu0 %v1426
  %v2507 = vpop.f32.mrb[0].mxu0
  %v2508 = vadd.f32 %v2155, %v2507
  %v2509 = vpop.f32.mrb[0].mxu0
  %v2510 = vadd.f32 %v2157, %v2509
  %v2511 = vpop.f32.mrb[0].mxu0
  %v2512 = vadd.f32 %v2159, %v2511
  %v2513 = vpop.f32.mrb[0].mxu0
  %v2514 = vadd.f32 %v2161, %v2513
  %2515 = vmatprep.mubr.bf16.mxu0 %v1202
  %2516 = vmatmul.mubr.bf16.gmra.mrb[0].mxu0 %v1430
  %v2517 = vpop.f32.mrb[0].mxu0
  %v2518 = vadd.f32 %v2165, %v2517
  %v2519 = vpop.f32.mrb[0].mxu0
  %v2520 = vadd.f32 %v2167, %v2519
  %v2521 = vpop.f32.mrb[0].mxu0
  %v2522 = vadd.f32 %v2169, %v2521
  %v2523 = vpop.f32.mrb[0].mxu0
  %v2524 = vadd.f32 %v2171, %v2523
  %2525 = vmatprep.mubr.bf16.mxu0 %v1205
  %2526 = vmatmul.mubr.bf16.gmra.mrb[0].mxu0 %v1434
  %v2527 = vpop.f32.mrb[0].mxu0
  %v2528 = vadd.f32 %v2175, %v2527
  %v2529 = vpop.f32.mrb[0].mxu0
  %v2530 = vadd.f32 %v2177, %v2529
  %v2531 = vpop.f32.mrb[0].mxu0
  %v2532 = vadd.f32 %v2179, %v2531
  %v2533 = vpop.f32.mrb[0].mxu0
  %v2534 = vadd.f32 %v2181, %v2533
  %2535 = vmatprep.mubr.bf16.mxu0 %v1208
  %2536 = vmatmul.mubr.bf16.gmra.mrb[0].mxu0 %v1438
  %v2537 = vpop.f32.mrb[0].mxu0
  %v2538 = vadd.f32 %v2185, %v2537
  %v2539 = vpop.f32.mrb[0].mxu0
  %v2540 = vadd.f32 %v2187, %v2539
  %v2541 = vpop.f32.mrb[0].mxu0
  %v2542 = vadd.f32 %v2189, %v2541
  %v2543 = vpop.f32.mrb[0].mxu0
  %v2544 = vadd.f32 %v2191, %v2543
  %2545 = vmatprep.mubr.bf16.mxu0 %v1211
  %2546 = vmatmul.mubr.bf16.gmra.mrb[0].mxu0 %v1442
  %v2547 = vpop.f32.mrb[0].mxu0
  %v2548 = vadd.f32 %v2195, %v2547
  %v2549 = vpop.f32.mrb[0].mxu0
  %v2550 = vadd.f32 %v2197, %v2549
  %v2551 = vpop.f32.mrb[0].mxu0
  %v2552 = vadd.f32 %v2199, %v2551
  %v2553 = vpop.f32.mrb[0].mxu0
  %v2554 = vadd.f32 %v2201, %v2553
  %2555 = vmatprep.mubr.bf16.mxu0 %v1214
  %2556 = vmatmul.mubr.bf16.gmra.mrb[0].mxu0 %v1446
  %v2557 = vpop.f32.mrb[0].mxu0
  %v2558 = vadd.f32 %v2205, %v2557
  %v2559 = vpop.f32.mrb[0].mxu0
  %v2560 = vadd.f32 %v2207, %v2559
  %v2561 = vpop.f32.mrb[0].mxu0
  %v2562 = vadd.f32 %v2209, %v2561
  %v2563 = vpop.f32.mrb[0].mxu0
  %v2564 = vadd.f32 %v2211, %v2563
  %2565 = vmatprep.mubr.bf16.mxu0 %v1521
  %2566 = vmatmul.mubr.bf16.gmra.mrb[0].mxu0 %v1450
  %v2567 = vpop.f32.mrb[0].mxu0
  %v2568 = vadd.f32 %v2215, %v2567
  %v2569 = vpop.f32.mrb[0].mxu0
  %v2570 = vadd.f32 %v2217, %v2569
  %v2571 = vpop.f32.mrb[0].mxu0
  %v2572 = vadd.f32 %v2219, %v2571
  %v2573 = vpop.f32.mrb[0].mxu0
  %v2574 = vadd.f32 %v2221, %v2573
  %2575 = vmatprep.mubr.bf16.mxu0 %v1524
  %2576 = vmatmul.mubr.bf16.gmra.mrb[0].mxu0 %v1454
  %v2577 = vpop.f32.mrb[0].mxu0
  %v2578 = vadd.f32 %v2225, %v2577
  %v2579 = vpop.f32.mrb[0].mxu0
  %v2580 = vadd.f32 %v2227, %v2579
  %v2581 = vpop.f32.mrb[0].mxu0
  %v2582 = vadd.f32 %v2229, %v2581
  %v2583 = vpop.f32.mrb[0].mxu0
  %v2584 = vadd.f32 %v2231, %v2583
  %2585 = vmatprep.mubr.bf16.mxu0 %v1223
  %2586 = vmatmul.mubr.bf16.gmra.mrb[0].mxu0 %v1458
  %v2587 = vpop.f32.mrb[0].mxu0
  %v2588 = vadd.f32 %v2235, %v2587
  %v2589 = vpop.f32.mrb[0].mxu0
  %v2590 = vadd.f32 %v2237, %v2589
  %v2591 = vpop.f32.mrb[0].mxu0
  %v2592 = vadd.f32 %v2239, %v2591
  %v2593 = vpop.f32.mrb[0].mxu0
  %v2594 = vadd.f32 %v2241, %v2593
  %2595 = vmatprep.mubr.bf16.mxu0 %v1226
  %2596 = vmatmul.mubr.bf16.gmra.mrb[0].mxu0 %v1462
  %v2597 = vpop.f32.mrb[0].mxu0
  %v2598 = vadd.f32 %v2245, %v2597
  %v2599 = vpop.f32.mrb[0].mxu0
  %v2600 = vadd.f32 %v2247, %v2599
  %v2601 = vpop.f32.mrb[0].mxu0
  %v2602 = vadd.f32 %v2249, %v2601
  %v2603 = vpop.f32.mrb[0].mxu0
  %v2604 = vadd.f32 %v2251, %v2603
  %2605 = vmatprep.mubr.bf16.mxu0 %v1229
  %2606 = vmatmul.mubr.bf16.gmra.mrb[0].mxu0 %v1466
  %v2607 = vpop.f32.mrb[0].mxu0
  %v2608 = vadd.f32 %v2255, %v2607
  %v2609 = vpop.f32.mrb[0].mxu0
  %v2610 = vadd.f32 %v2257, %v2609
  %v2611 = vpop.f32.mrb[0].mxu0
  %v2612 = vadd.f32 %v2259, %v2611
  %v2613 = vpop.f32.mrb[0].mxu0
  %v2614 = vadd.f32 %v2261, %v2613
  %2615 = vmatprep.mubr.bf16.mxu0 %v1232
  %2616 = vmatmul.mubr.bf16.gmra.mrb[0].mxu0 %v1470
  %v2617 = vpop.f32.mrb[0].mxu0
  %v2618 = vadd.f32 %v2265, %v2617
  %v2619 = vpop.f32.mrb[0].mxu0
  %v2620 = vadd.f32 %v2267, %v2619
  %v2621 = vpop.f32.mrb[0].mxu0
  %v2622 = vadd.f32 %v2269, %v2621
  %v2623 = vpop.f32.mrb[0].mxu0
  %v2624 = vadd.f32 %v2271, %v2623
  %2625 = vmatprep.mubr.bf16.mxu0 %v1235
  %2626 = vmatmul.mubr.bf16.gmra.mrb[0].mxu0 %v1474
  %v2627 = vpop.f32.mrb[0].mxu0
  %v2628 = vadd.f32 %v2275, %v2627
  %v2629 = vpop.f32.mrb[0].mxu0
  %v2630 = vadd.f32 %v2277, %v2629
  %v2631 = vpop.f32.mrb[0].mxu0
  %v2632 = vadd.f32 %v2279, %v2631
  %v2633 = vpop.f32.mrb[0].mxu0
  %v2634 = vadd.f32 %v2281, %v2633
  %2635 = vmatprep.mubr.bf16.mxu0 %v1238
  %2636 = vmatmul.mubr.bf16.gmra.mrb[0].mxu0 %v1478
  %v2637 = vpop.f32.mrb[0].mxu0
  %v2638 = vadd.f32 %v2285, %v2637
  %v2639 = vpop.f32.mrb[0].mxu0
  %v2640 = vadd.f32 %v2287, %v2639
  %v2641 = vpop.f32.mrb[0].mxu0
  %v2642 = vadd.f32 %v2289, %v2641
  %v2643 = vpop.f32.mrb[0].mxu0
  %v2644 = vadd.f32 %v2291, %v2643
  %2645 = vmatprep.mubr.bf16.mxu0 %v1241
  %2646 = vmatmul.mubr.bf16.gmra.mrb[0].mxu0 %v1482
  %v2647 = vpop.f32.mrb[0].mxu0
  %v2648 = vadd.f32 %v2295, %v2647
  %v2649 = vpop.f32.mrb[0].mxu0
  %v2650 = vadd.f32 %v2297, %v2649
  %v2651 = vpop.f32.mrb[0].mxu0
  %v2652 = vadd.f32 %v2299, %v2651
  %v2653 = vpop.f32.mrb[0].mxu0
  %v2654 = vadd.f32 %v2301, %v2653
  %2655 = vmatprep.mubr.bf16.mxu0 %v1244
  %2656 = vmatmul.mubr.bf16.gmra.mrb[0].mxu0 %v1486
  %v2657 = vpop.f32.mrb[0].mxu0
  %v2658 = vadd.f32 %v2305, %v2657
  %v2659 = vpop.f32.mrb[0].mxu0
  %v2660 = vadd.f32 %v2307, %v2659
  %v2661 = vpop.f32.mrb[0].mxu0
  %v2662 = vadd.f32 %v2309, %v2661
  %v2663 = vpop.f32.mrb[0].mxu0
  %v2664 = vadd.f32 %v2311, %v2663
  %2665 = vmatprep.mubr.bf16.mxu0 %v1247
  %2666 = vmatmul.mubr.bf16.gmra.mrb[0].mxu0 %v1490
  %v2667 = vpop.f32.mrb[0].mxu0
  %v2668 = vadd.f32 %v2315, %v2667
  %v2669 = vpop.f32.mrb[0].mxu0
  %v2670 = vadd.f32 %v2317, %v2669
  %v2671 = vpop.f32.mrb[0].mxu0
  %v2672 = vadd.f32 %v2319, %v2671
  %v2673 = vpop.f32.mrb[0].mxu0
  %v2674 = vadd.f32 %v2321, %v2673
  %2675 = vmatprep.mubr.bf16.mxu0 %v1250
  %2676 = vmatmul.mubr.bf16.gmra.mrb[0].mxu0 %v1494
  %v2677 = vpop.f32.mrb[0].mxu0
  %v2678 = vadd.f32 %v2325, %v2677
  %v2679 = vpop.f32.mrb[0].mxu0
  %v2680 = vadd.f32 %v2327, %v2679
  %v2681 = vpop.f32.mrb[0].mxu0
  %v2682 = vadd.f32 %v2329, %v2681
  %v2683 = vpop.f32.mrb[0].mxu0
  %v2684 = vadd.f32 %v2331, %v2683
  %2685 = vmatprep.mubr.bf16.mxu0 %v1253
  %2686 = vmatmul.mubr.bf16.gmra.mrb[0].mxu0 %v1498
  %v2687 = vpop.f32.mrb[0].mxu0
  %v2688 = vadd.f32 %v2335, %v2687
  %v2689 = vpop.f32.mrb[0].mxu0
  %v2690 = vadd.f32 %v2337, %v2689
  %v2691 = vpop.f32.mrb[0].mxu0
  %v2692 = vadd.f32 %v2339, %v2691
  %v2693 = vpop.f32.mrb[0].mxu0
  %v2694 = vadd.f32 %v2341, %v2693
  %2695 = vmatprep.mubr.bf16.mxu0 %v1256
  %2696 = vmatmul.mubr.bf16.gmra.mrb[0].mxu0 %v1502
  %v2697 = vpop.f32.mrb[0].mxu0
  %v2698 = vadd.f32 %v2345, %v2697
  %v2699 = vpop.f32.mrb[0].mxu0
  %v2700 = vadd.f32 %v2347, %v2699
  %v2701 = vpop.f32.mrb[0].mxu0
  %v2702 = vadd.f32 %v2349, %v2701
  %v2703 = vpop.f32.mrb[0].mxu0
  %v2704 = vadd.f32 %v2351, %v2703
  %2705 = vmatprep.mubr.bf16.mxu0 %v1259
  %2706 = vmatmul.mubr.bf16.gmra.mrb[0].mxu0 %v1506
  %v2707 = vpop.f32.mrb[0].mxu0
  %v2708 = vadd.f32 %v2355, %v2707
  %v2709 = vpop.f32.mrb[0].mxu0
  %v2710 = vadd.f32 %v2357, %v2709
  %v2711 = vpop.f32.mrb[0].mxu0
  %v2712 = vadd.f32 %v2359, %v2711
  %v2713 = vpop.f32.mrb[0].mxu0
  %v2714 = vadd.f32 %v2361, %v2713
  %2715 = vmatprep.mubr.bf16.mxu0 %v1262
  %2716 = vmatmul.mubr.bf16.gmra.mrb[0].mxu0 %v1510
  %v2717 = vpop.f32.mrb[0].mxu0
  %v2718 = vadd.f32 %v2365, %v2717
  %v2719 = vpop.f32.mrb[0].mxu0
  %v2720 = vadd.f32 %v2367, %v2719
  %v2721 = vpop.f32.mrb[0].mxu0
  %v2722 = vadd.f32 %v2369, %v2721
  %v2723 = vpop.f32.mrb[0].mxu0
  %v2724 = vadd.f32 %v2371, %v2723
  %2725 = vmatprep.mubr.bf16.mxu0 %v1527
  %2726 = vmatmul.mubr.bf16.gmra.mrb[0].mxu0 %v1514
  %v2727 = vpop.f32.mrb[0].mxu0
  %v2728 = vadd.f32 %v2375, %v2727
  %v2729 = vpop.f32.mrb[0].mxu0
  %v2730 = vadd.f32 %v2377, %v2729
  %v2731 = vpop.f32.mrb[0].mxu0
  %v2732 = vadd.f32 %v2379, %v2731
  %v2733 = vpop.f32.mrb[0].mxu0
  %v2734 = vadd.f32 %v2381, %v2733
  %2735 = vmatprep.mubr.bf16.mxu0 %v1530
  %2736 = vmatmul.mubr.bf16.gmra.mrb[0].mxu0 %v1518
  %v2737 = vpop.f32.mrb[0].mxu0
  %v2738 = vadd.f32 %v2385, %v2737
  %v2739 = vpop.f32.mrb[0].mxu0
  %v2740 = vadd.f32 %v2387, %v2739
  %v2741 = vpop.f32.mrb[0].mxu0
  %v2742 = vadd.f32 %v2389, %v2741
  %v2743 = vpop.f32.mrb[0].mxu0
  %v2744 = vadd.f32 %v2391, %v2743
  %2745 = vdwg.mxu0
  %2746 = vmatprep.subr.bf16.mxu0 %v1893
  %2747 = vmatpush1.bf16.msra.mxu0 %v1892
  %2748 = vmatprep.subr.bf16.mxu0 %v1895
  %2749 = vmatpush1.bf16.msra.mxu0 %v1894
  %2750 = vmatprep.subr.bf16.mxu0 %v1897
  %2751 = vmatpush1.bf16.msra.mxu0 %v1896
  %2752 = vmatprep.subr.bf16.mxu0 %v1899
  %2753 = vmatpush1.bf16.msra.mxu0 %v1898
  %2754 = vmatprep.subr.bf16.mxu0 0
  %2755 = vmatpush1.bf16.msra.mxu0 0
  %2756 = vmatprep.subr.bf16.mxu0 0
  %2757 = vmatpush1.bf16.msra.mxu0 0
  %2758 = vmatprep.subr.bf16.mxu0 0
  %2759 = vmatpush1.bf16.msra.mxu0 0
  %2760 = vmatprep.subr.bf16.mxu0 0
  %2761 = vmatpush1.bf16.msra.mxu0 0
  %2762 = vmatprep.subr.bf16.mxu0 0
  %2763 = vmatpush1.bf16.msra.mxu0 0
  %2764 = vmatprep.subr.bf16.mxu0 0
  %2765 = vmatpush1.bf16.msra.mxu0 0
  %2766 = vmatprep.subr.bf16.mxu0 0
  %2767 = vmatpush1.bf16.msra.mxu0 0
  %2768 = vmatprep.subr.bf16.mxu0 0
  %2769 = vmatpush1.bf16.msra.mxu0 0
  %2770 = vmatprep.subr.bf16.mxu0 0
  %2771 = vmatpush1.bf16.msra.mxu0 0
  %2772 = vmatprep.subr.bf16.mxu0 0
  %2773 = vmatpush1.bf16.msra.mxu0 0
  %2774 = vmatprep.subr.bf16.mxu0 0
  %2775 = vmatpush1.bf16.msra.mxu0 0
  %2776 = vmatprep.subr.bf16.mxu0 0
  %2777 = vmatpush1.bf16.msra.mxu0 0
  %2778 = vmatprep.mubr.bf16.mxu0 0
  %2779 = vmatmul.mubr.bf16.gmra.mrb[0].mxu0 %v1972
  %v2780 = vpop.f32.mrb[0].mxu0
  %v2781 = vadd.f32 %v2428, %v2780
  %v2782 = vpop.f32.mrb[0].mxu0
  %v2783 = vadd.f32 %v2430, %v2782
  %v2784 = vpop.f32.mrb[0].mxu0
  %v2785 = vadd.f32 %v2432, %v2784
  %v2786 = vpop.f32.mrb[0].mxu0
  %v2787 = vadd.f32 %v2434, %v2786
  %2788 = vmatprep.mubr.bf16.mxu0 0
  %2789 = vmatmul.mubr.bf16.gmra.mrb[0].mxu0 %v1974
  %v2790 = vpop.f32.mrb[0].mxu0
  %v2791 = vadd.f32 %v2438, %v2790
  %v2792 = vpop.f32.mrb[0].mxu0
  %v2793 = vadd.f32 %v2440, %v2792
  %v2794 = vpop.f32.mrb[0].mxu0
  %v2795 = vadd.f32 %v2442, %v2794
  %v2796 = vpop.f32.mrb[0].mxu0
  %v2797 = vadd.f32 %v2444, %v2796
  %2798 = vmatprep.mubr.bf16.mxu0 0
  %2799 = vmatmul.mubr.bf16.gmra.mrb[0].mxu0 %v1976
  %v2800 = vpop.f32.mrb[0].mxu0
  %v2801 = vadd.f32 %v2448, %v2800
  %v2802 = vpop.f32.mrb[0].mxu0
  %v2803 = vadd.f32 %v2450, %v2802
  %v2804 = vpop.f32.mrb[0].mxu0
  %v2805 = vadd.f32 %v2452, %v2804
  %v2806 = vpop.f32.mrb[0].mxu0
  %v2807 = vadd.f32 %v2454, %v2806
  %2808 = vmatprep.mubr.bf16.mxu0 0
  %2809 = vmatmul.mubr.bf16.gmra.mrb[0].mxu0 %v1978
  %v2810 = vpop.f32.mrb[0].mxu0
  %v2811 = vadd.f32 %v2458, %v2810
  %v2812 = vpop.f32.mrb[0].mxu0
  %v2813 = vadd.f32 %v2460, %v2812
  %v2814 = vpop.f32.mrb[0].mxu0
  %v2815 = vadd.f32 %v2462, %v2814
  %v2816 = vpop.f32.mrb[0].mxu0
  %v2817 = vadd.f32 %v2464, %v2816
  %2818 = vmatprep.mubr.bf16.mxu0 0
  %2819 = vmatmul.mubr.bf16.gmra.mrb[0].mxu0 %v1980
  %v2820 = vpop.f32.mrb[0].mxu0
  %v2821 = vadd.f32 %v2468, %v2820
  %v2822 = vpop.f32.mrb[0].mxu0
  %v2823 = vadd.f32 %v2470, %v2822
  %v2824 = vpop.f32.mrb[0].mxu0
  %v2825 = vadd.f32 %v2472, %v2824
  %v2826 = vpop.f32.mrb[0].mxu0
  %v2827 = vadd.f32 %v2474, %v2826
  %2828 = vmatprep.mubr.bf16.mxu0 0
  %2829 = vmatmul.mubr.bf16.gmra.mrb[0].mxu0 %v1982
  %v2830 = vpop.f32.mrb[0].mxu0
  %v2831 = vadd.f32 %v2478, %v2830
  %v2832 = vpop.f32.mrb[0].mxu0
  %v2833 = vadd.f32 %v2480, %v2832
  %v2834 = vpop.f32.mrb[0].mxu0
  %v2835 = vadd.f32 %v2482, %v2834
  %v2836 = vpop.f32.mrb[0].mxu0
  %v2837 = vadd.f32 %v2484, %v2836
  %2838 = vmatprep.mubr.bf16.mxu0 0
  %2839 = vmatmul.mubr.bf16.gmra.mrb[0].mxu0 %v1984
  %v2840 = vpop.f32.mrb[0].mxu0
  %v2841 = vadd.f32 %v2488, %v2840
  %v2842 = vpop.f32.mrb[0].mxu0
  %v2843 = vadd.f32 %v2490, %v2842
  %v2844 = vpop.f32.mrb[0].mxu0
  %v2845 = vadd.f32 %v2492, %v2844
  %v2846 = vpop.f32.mrb[0].mxu0
  %v2847 = vadd.f32 %v2494, %v2846
  %2848 = vmatprep.mubr.bf16.mxu0 0
  %2849 = vmatmul.mubr.bf16.gmra.mrb[0].mxu0 %v1986
  %v2850 = vpop.f32.mrb[0].mxu0
  %v2851 = vadd.f32 %v2498, %v2850
  %v2852 = vpop.f32.mrb[0].mxu0
  %v2853 = vadd.f32 %v2500, %v2852
  %v2854 = vpop.f32.mrb[0].mxu0
  %v2855 = vadd.f32 %v2502, %v2854
  %v2856 = vpop.f32.mrb[0].mxu0
  %v2857 = vadd.f32 %v2504, %v2856
  %2858 = vmatprep.mubr.bf16.mxu0 0
  %2859 = vmatmul.mubr.bf16.gmra.mrb[0].mxu0 %v1988
  %v2860 = vpop.f32.mrb[0].mxu0
  %v2861 = vadd.f32 %v2508, %v2860
  %v2862 = vpop.f32.mrb[0].mxu0
  %v2863 = vadd.f32 %v2510, %v2862
  %v2864 = vpop.f32.mrb[0].mxu0
  %v2865 = vadd.f32 %v2512, %v2864
  %v2866 = vpop.f32.mrb[0].mxu0
  %v2867 = vadd.f32 %v2514, %v2866
  %2868 = vmatprep.mubr.bf16.mxu0 0
  %2869 = vmatmul.mubr.bf16.gmra.mrb[0].mxu0 %v1990
  %v2870 = vpop.f32.mrb[0].mxu0
  %v2871 = vadd.f32 %v2518, %v2870
  %v2872 = vpop.f32.mrb[0].mxu0
  %v2873 = vadd.f32 %v2520, %v2872
  %v2874 = vpop.f32.mrb[0].mxu0
  %v2875 = vadd.f32 %v2522, %v2874
  %v2876 = vpop.f32.mrb[0].mxu0
  %v2877 = vadd.f32 %v2524, %v2876
  %2878 = vmatprep.mubr.bf16.mxu0 0
  %2879 = vmatmul.mubr.bf16.gmra.mrb[0].mxu0 %v1992
  %v2880 = vpop.f32.mrb[0].mxu0
  %v2881 = vadd.f32 %v2528, %v2880
  %v2882 = vpop.f32.mrb[0].mxu0
  %v2883 = vadd.f32 %v2530, %v2882
  %v2884 = vpop.f32.mrb[0].mxu0
  %v2885 = vadd.f32 %v2532, %v2884
  %v2886 = vpop.f32.mrb[0].mxu0
  %v2887 = vadd.f32 %v2534, %v2886
  %2888 = vmatprep.mubr.bf16.mxu0 0
  %2889 = vmatmul.mubr.bf16.gmra.mrb[0].mxu0 %v1994
  %v2890 = vpop.f32.mrb[0].mxu0
  %v2891 = vadd.f32 %v2538, %v2890
  %v2892 = vpop.f32.mrb[0].mxu0
  %v2893 = vadd.f32 %v2540, %v2892
  %v2894 = vpop.f32.mrb[0].mxu0
  %v2895 = vadd.f32 %v2542, %v2894
  %v2896 = vpop.f32.mrb[0].mxu0
  %v2897 = vadd.f32 %v2544, %v2896
  %2898 = vmatprep.mubr.bf16.mxu0 0
  %2899 = vmatmul.mubr.bf16.gmra.mrb[0].mxu0 %v1996
  %v2900 = vpop.f32.mrb[0].mxu0
  %v2901 = vadd.f32 %v2548, %v2900
  %v2902 = vpop.f32.mrb[0].mxu0
  %v2903 = vadd.f32 %v2550, %v2902
  %v2904 = vpop.f32.mrb[0].mxu0
  %v2905 = vadd.f32 %v2552, %v2904
  %v2906 = vpop.f32.mrb[0].mxu0
  %v2907 = vadd.f32 %v2554, %v2906
  %2908 = vmatprep.mubr.bf16.mxu0 0
  %2909 = vmatmul.mubr.bf16.gmra.mrb[0].mxu0 %v1998
  %v2910 = vpop.f32.mrb[0].mxu0
  %v2911 = vadd.f32 %v2558, %v2910
  %v2912 = vpop.f32.mrb[0].mxu0
  %v2913 = vadd.f32 %v2560, %v2912
  %v2914 = vpop.f32.mrb[0].mxu0
  %v2915 = vadd.f32 %v2562, %v2914
  %v2916 = vpop.f32.mrb[0].mxu0
  %v2917 = vadd.f32 %v2564, %v2916
  %2918 = vmatprep.mubr.bf16.mxu0 0
  %2919 = vmatmul.mubr.bf16.gmra.mrb[0].mxu0 %v2001
  %v2920 = vpop.f32.mrb[0].mxu0
  %v2921 = vadd.f32 %v2568, %v2920
  %v2922 = vpop.f32.mrb[0].mxu0
  %v2923 = vadd.f32 %v2570, %v2922
  %v2924 = vpop.f32.mrb[0].mxu0
  %v2925 = vadd.f32 %v2572, %v2924
  %v2926 = vpop.f32.mrb[0].mxu0
  %v2927 = vadd.f32 %v2574, %v2926
  %2928 = vmatprep.mubr.bf16.mxu0 0
  %2929 = vmatmul.mubr.bf16.gmra.mrb[0].mxu0 %v2004
  %v2930 = vpop.f32.mrb[0].mxu0
  %v2931 = vadd.f32 %v2578, %v2930
  %v2932 = vpop.f32.mrb[0].mxu0
  %v2933 = vadd.f32 %v2580, %v2932
  %v2934 = vpop.f32.mrb[0].mxu0
  %v2935 = vadd.f32 %v2582, %v2934
  %v2936 = vpop.f32.mrb[0].mxu0
  %v2937 = vadd.f32 %v2584, %v2936
  %2938 = vmatprep.mubr.bf16.mxu0 0
  %2939 = vmatmul.mubr.bf16.gmra.mrb[0].mxu0 %v2006
  %v2940 = vpop.f32.mrb[0].mxu0
  %v2941 = vadd.f32 %v2588, %v2940
  %v2942 = vpop.f32.mrb[0].mxu0
  %v2943 = vadd.f32 %v2590, %v2942
  %v2944 = vpop.f32.mrb[0].mxu0
  %v2945 = vadd.f32 %v2592, %v2944
  %v2946 = vpop.f32.mrb[0].mxu0
  %v2947 = vadd.f32 %v2594, %v2946
  %2948 = vmatprep.mubr.bf16.mxu0 0
  %2949 = vmatmul.mubr.bf16.gmra.mrb[0].mxu0 %v2008
  %v2950 = vpop.f32.mrb[0].mxu0
  %v2951 = vadd.f32 %v2598, %v2950
  %v2952 = vpop.f32.mrb[0].mxu0
  %v2953 = vadd.f32 %v2600, %v2952
  %v2954 = vpop.f32.mrb[0].mxu0
  %v2955 = vadd.f32 %v2602, %v2954
  %v2956 = vpop.f32.mrb[0].mxu0
  %v2957 = vadd.f32 %v2604, %v2956
  %2958 = vmatprep.mubr.bf16.mxu0 0
  %2959 = vmatmul.mubr.bf16.gmra.mrb[0].mxu0 %v2010
  %v2960 = vpop.f32.mrb[0].mxu0
  %v2961 = vadd.f32 %v2608, %v2960
  %v2962 = vpop.f32.mrb[0].mxu0
  %v2963 = vadd.f32 %v2610, %v2962
  %v2964 = vpop.f32.mrb[0].mxu0
  %v2965 = vadd.f32 %v2612, %v2964
  %v2966 = vpop.f32.mrb[0].mxu0
  %v2967 = vadd.f32 %v2614, %v2966
  %2968 = vmatprep.mubr.bf16.mxu0 0
  %2969 = vmatmul.mubr.bf16.gmra.mrb[0].mxu0 %v2012
  %v2970 = vpop.f32.mrb[0].mxu0
  %v2971 = vadd.f32 %v2618, %v2970
  %v2972 = vpop.f32.mrb[0].mxu0
  %v2973 = vadd.f32 %v2620, %v2972
  %v2974 = vpop.f32.mrb[0].mxu0
  %v2975 = vadd.f32 %v2622, %v2974
  %v2976 = vpop.f32.mrb[0].mxu0
  %v2977 = vadd.f32 %v2624, %v2976
  %2978 = vmatprep.mubr.bf16.mxu0 0
  %2979 = vmatmul.mubr.bf16.gmra.mrb[0].mxu0 %v2014
  %v2980 = vpop.f32.mrb[0].mxu0
  %v2981 = vadd.f32 %v2628, %v2980
  %v2982 = vpop.f32.mrb[0].mxu0
  %v2983 = vadd.f32 %v2630, %v2982
  %v2984 = vpop.f32.mrb[0].mxu0
  %v2985 = vadd.f32 %v2632, %v2984
  %v2986 = vpop.f32.mrb[0].mxu0
  %v2987 = vadd.f32 %v2634, %v2986
  %2988 = vmatprep.mubr.bf16.mxu0 0
  %2989 = vmatmul.mubr.bf16.gmra.mrb[0].mxu0 %v2016
  %v2990 = vpop.f32.mrb[0].mxu0
  %v2991 = vadd.f32 %v2638, %v2990
  %v2992 = vpop.f32.mrb[0].mxu0
  %v2993 = vadd.f32 %v2640, %v2992
  %v2994 = vpop.f32.mrb[0].mxu0
  %v2995 = vadd.f32 %v2642, %v2994
  %v2996 = vpop.f32.mrb[0].mxu0
  %v2997 = vadd.f32 %v2644, %v2996
  %2998 = vmatprep.mubr.bf16.mxu0 0
  %2999 = vmatmul.mubr.bf16.gmra.mrb[0].mxu0 %v2018
  %v3000 = vpop.f32.mrb[0].mxu0
  %v3001 = vadd.f32 %v2648, %v3000
  %v3002 = vpop.f32.mrb[0].mxu0
  %v3003 = vadd.f32 %v2650, %v3002
  %v3004 = vpop.f32.mrb[0].mxu0
  %v3005 = vadd.f32 %v2652, %v3004
  %v3006 = vpop.f32.mrb[0].mxu0
  %v3007 = vadd.f32 %v2654, %v3006
  %3008 = vmatprep.mubr.bf16.mxu0 0
  %3009 = vmatmul.mubr.bf16.gmra.mrb[0].mxu0 %v2020
  %v3010 = vpop.f32.mrb[0].mxu0
  %v3011 = vadd.f32 %v2658, %v3010
  %v3012 = vpop.f32.mrb[0].mxu0
  %v3013 = vadd.f32 %v2660, %v3012
  %v3014 = vpop.f32.mrb[0].mxu0
  %v3015 = vadd.f32 %v2662, %v3014
  %v3016 = vpop.f32.mrb[0].mxu0
  %v3017 = vadd.f32 %v2664, %v3016
  %3018 = vmatprep.mubr.bf16.mxu0 0
  %3019 = vmatmul.mubr.bf16.gmra.mrb[0].mxu0 %v2022
  %v3020 = vpop.f32.mrb[0].mxu0
  %v3021 = vadd.f32 %v2668, %v3020
  %v3022 = vpop.f32.mrb[0].mxu0
  %v3023 = vadd.f32 %v2670, %v3022
  %v3024 = vpop.f32.mrb[0].mxu0
  %v3025 = vadd.f32 %v2672, %v3024
  %v3026 = vpop.f32.mrb[0].mxu0
  %v3027 = vadd.f32 %v2674, %v3026
  %3028 = vmatprep.mubr.bf16.mxu0 0
  %3029 = vmatmul.mubr.bf16.gmra.mrb[0].mxu0 %v2024
  %v3030 = vpop.f32.mrb[0].mxu0
  %v3031 = vadd.f32 %v2678, %v3030
  %v3032 = vpop.f32.mrb[0].mxu0
  %v3033 = vadd.f32 %v2680, %v3032
  %v3034 = vpop.f32.mrb[0].mxu0
  %v3035 = vadd.f32 %v2682, %v3034
  %v3036 = vpop.f32.mrb[0].mxu0
  %v3037 = vadd.f32 %v2684, %v3036
  %3038 = vmatprep.mubr.bf16.mxu0 0
  %3039 = vmatmul.mubr.bf16.gmra.mrb[0].mxu0 %v2026
  %v3040 = vpop.f32.mrb[0].mxu0
  %v3041 = vadd.f32 %v2688, %v3040
  %v3042 = vpop.f32.mrb[0].mxu0
  %v3043 = vadd.f32 %v2690, %v3042
  %v3044 = vpop.f32.mrb[0].mxu0
  %v3045 = vadd.f32 %v2692, %v3044
  %v3046 = vpop.f32.mrb[0].mxu0
  %v3047 = vadd.f32 %v2694, %v3046
  %3048 = vmatprep.mubr.bf16.mxu0 0
  %3049 = vmatmul.mubr.bf16.gmra.mrb[0].mxu0 %v2028
  %v3050 = vpop.f32.mrb[0].mxu0
  %v3051 = vadd.f32 %v2698, %v3050
  %v3052 = vpop.f32.mrb[0].mxu0
  %v3053 = vadd.f32 %v2700, %v3052
  %v3054 = vpop.f32.mrb[0].mxu0
  %v3055 = vadd.f32 %v2702, %v3054
  %v3056 = vpop.f32.mrb[0].mxu0
  %v3057 = vadd.f32 %v2704, %v3056
  %3058 = vmatprep.mubr.bf16.mxu0 0
  %3059 = vmatmul.mubr.bf16.gmra.mrb[0].mxu0 %v2030
  %v3060 = vpop.f32.mrb[0].mxu0
  %v3061 = vadd.f32 %v2708, %v3060
  %v3062 = vpop.f32.mrb[0].mxu0
  %v3063 = vadd.f32 %v2710, %v3062
  %v3064 = vpop.f32.mrb[0].mxu0
  %v3065 = vadd.f32 %v2712, %v3064
  %v3066 = vpop.f32.mrb[0].mxu0
  %v3067 = vadd.f32 %v2714, %v3066
  %3068 = vmatprep.mubr.bf16.mxu0 0
  %3069 = vmatmul.mubr.bf16.gmra.mrb[0].mxu0 %v2032
  %v3070 = vpop.f32.mrb[0].mxu0
  %v3071 = vadd.f32 %v2718, %v3070
  %v3072 = vpop.f32.mrb[0].mxu0
  %v3073 = vadd.f32 %v2720, %v3072
  %v3074 = vpop.f32.mrb[0].mxu0
  %v3075 = vadd.f32 %v2722, %v3074
  %v3076 = vpop.f32.mrb[0].mxu0
  %v3077 = vadd.f32 %v2724, %v3076
  %3078 = vmatprep.mubr.bf16.mxu0 0
  %3079 = vmatmul.mubr.bf16.gmra.mrb[0].mxu0 %v2035
  %v3080 = vpop.f32.mrb[0].mxu0
  %v3081 = vadd.f32 %v2728, %v3080
  %v3082 = vpop.f32.mrb[0].mxu0
  %v3083 = vadd.f32 %v2730, %v3082
  %v3084 = vpop.f32.mrb[0].mxu0
  %v3085 = vadd.f32 %v2732, %v3084
  %v3086 = vpop.f32.mrb[0].mxu0
  %v3087 = vadd.f32 %v2734, %v3086
  %3088 = vmatprep.mubr.bf16.mxu0 0
  %3089 = vmatmul.mubr.bf16.gmra.mrb[0].mxu0 %v2038
  %v3090 = vpop.f32.mrb[0].mxu0
  %v3091 = vadd.f32 %v2738, %v3090
  %v3092 = vpop.f32.mrb[0].mxu0
  %v3093 = vadd.f32 %v2740, %v3092
  %v3094 = vpop.f32.mrb[0].mxu0
  %v3095 = vadd.f32 %v2742, %v3094
  %v3096 = vpop.f32.mrb[0].mxu0
  %v3097 = vadd.f32 %v2744, %v3096
  %3098 = vdwg.mxu0
  %v3099 = vmax.f32 %v2781, 0.0
  %v3100 = vmax.f32 %v2783, 0.0
  %v3101 = vmax.f32 %v2785, 0.0
  %v3102 = vmax.f32 %v2787, 0.0
  %v3103 = vmax.f32 %v2791, 0.0
  %v3104 = vmax.f32 %v2793, 0.0
  %v3105 = vmax.f32 %v2795, 0.0
  %v3106 = vmax.f32 %v2797, 0.0
  %v3107 = vmax.f32 %v2801, 0.0
  %v3108 = vmax.f32 %v2803, 0.0
  %v3109 = vmax.f32 %v2805, 0.0
  %v3110 = vmax.f32 %v2807, 0.0
  %v3111 = vmax.f32 %v2811, 0.0
  %v3112 = vmax.f32 %v2813, 0.0
  %v3113 = vmax.f32 %v2815, 0.0
  %v3114 = vmax.f32 %v2817, 0.0
  %v3115 = vmax.f32 %v2821, 0.0
  %v3116 = vmax.f32 %v2823, 0.0
  %v3117 = vmax.f32 %v2825, 0.0
  %v3118 = vmax.f32 %v2827, 0.0
  %v3119 = vmax.f32 %v2831, 0.0
  %v3120 = vmax.f32 %v2833, 0.0
  %v3121 = vmax.f32 %v2835, 0.0
  %v3122 = vmax.f32 %v2837, 0.0
  %v3123 = vmax.f32 %v2841, 0.0
  %v3124 = vmax.f32 %v2843, 0.0
  %v3125 = vmax.f32 %v2845, 0.0
  %v3126 = vmax.f32 %v2847, 0.0
  %v3127 = vmax.f32 %v2851, 0.0
  %v3128 = vmax.f32 %v2853, 0.0
  %v3129 = vmax.f32 %v2855, 0.0
  %v3130 = vmax.f32 %v2857, 0.0
  %v3131 = vmax.f32 %v2861, 0.0
  %v3132 = vmax.f32 %v2863, 0.0
  %v3133 = vmax.f32 %v2865, 0.0
  %v3134 = vmax.f32 %v2867, 0.0
  %v3135 = vmax.f32 %v2871, 0.0
  %v3136 = vmax.f32 %v2873, 0.0
  %v3137 = vmax.f32 %v2875, 0.0
  %v3138 = vmax.f32 %v2877, 0.0
  %v3139 = vmax.f32 %v2881, 0.0
  %v3140 = vmax.f32 %v2883, 0.0
  %v3141 = vmax.f32 %v2885, 0.0
  %v3142 = vmax.f32 %v2887, 0.0
  %v3143 = vmax.f32 %v2891, 0.0
  %v3144 = vmax.f32 %v2893, 0.0
  %v3145 = vmax.f32 %v2895, 0.0
  %v3146 = vmax.f32 %v2897, 0.0
  %v3147 = vmax.f32 %v2901, 0.0
  %v3148 = vmax.f32 %v2903, 0.0
  %v3149 = vmax.f32 %v2905, 0.0
  %v3150 = vmax.f32 %v2907, 0.0
  %v3151 = vmax.f32 %v2911, 0.0
  %v3152 = vmax.f32 %v2913, 0.0
  %v3153 = vmax.f32 %v2915, 0.0
  %v3154 = vmax.f32 %v2917, 0.0
  %v3155 = vmax.f32 %v2921, 0.0
  %v3156 = vmax.f32 %v2923, 0.0
  %v3157 = vmax.f32 %v2925, 0.0
  %v3158 = vmax.f32 %v2927, 0.0
  %v3159 = vmax.f32 %v2931, 0.0
  %v3160 = vmax.f32 %v2933, 0.0
  %v3161 = vmax.f32 %v2935, 0.0
  %v3162 = vmax.f32 %v2937, 0.0
  %v3163 = vmax.f32 %v2941, 0.0
  %v3164 = vmax.f32 %v2943, 0.0
  %v3165 = vmax.f32 %v2945, 0.0
  %v3166 = vmax.f32 %v2947, 0.0
  %v3167 = vmax.f32 %v2951, 0.0
  %v3168 = vmax.f32 %v2953, 0.0
  %v3169 = vmax.f32 %v2955, 0.0
  %v3170 = vmax.f32 %v2957, 0.0
  %v3171 = vmax.f32 %v2961, 0.0
  %v3172 = vmax.f32 %v2963, 0.0
  %v3173 = vmax.f32 %v2965, 0.0
  %v3174 = vmax.f32 %v2967, 0.0
  %v3175 = vmax.f32 %v2971, 0.0
  %v3176 = vmax.f32 %v2973, 0.0
  %v3177 = vmax.f32 %v2975, 0.0
  %v3178 = vmax.f32 %v2977, 0.0
  %v3179 = vmax.f32 %v2981, 0.0
  %v3180 = vmax.f32 %v2983, 0.0
  %v3181 = vmax.f32 %v2985, 0.0
  %v3182 = vmax.f32 %v2987, 0.0
  %v3183 = vmax.f32 %v2991, 0.0
  %v3184 = vmax.f32 %v2993, 0.0
  %v3185 = vmax.f32 %v2995, 0.0
  %v3186 = vmax.f32 %v2997, 0.0
  %v3187 = vmax.f32 %v3001, 0.0
  %v3188 = vmax.f32 %v3003, 0.0
  %v3189 = vmax.f32 %v3005, 0.0
  %v3190 = vmax.f32 %v3007, 0.0
  %v3191 = vmax.f32 %v3011, 0.0
  %v3192 = vmax.f32 %v3013, 0.0
  %v3193 = vmax.f32 %v3015, 0.0
  %v3194 = vmax.f32 %v3017, 0.0
  %v3195 = vmax.f32 %v3021, 0.0
  %v3196 = vmax.f32 %v3023, 0.0
  %v3197 = vmax.f32 %v3025, 0.0
  %v3198 = vmax.f32 %v3027, 0.0
  %v3199 = vmax.f32 %v3031, 0.0
  %v3200 = vmax.f32 %v3033, 0.0
  %v3201 = vmax.f32 %v3035, 0.0
  %v3202 = vmax.f32 %v3037, 0.0
  %v3203 = vmax.f32 %v3041, 0.0
  %v3204 = vmax.f32 %v3043, 0.0
  %v3205 = vmax.f32 %v3045, 0.0
  %v3206 = vmax.f32 %v3047, 0.0
  %v3207 = vmax.f32 %v3051, 0.0
  %v3208 = vmax.f32 %v3053, 0.0
  %v3209 = vmax.f32 %v3055, 0.0
  %v3210 = vmax.f32 %v3057, 0.0
  %v3211 = vmax.f32 %v3061, 0.0
  %v3212 = vmax.f32 %v3063, 0.0
  %v3213 = vmax.f32 %v3065, 0.0
  %v3214 = vmax.f32 %v3067, 0.0
  %v3215 = vmax.f32 %v3071, 0.0
  %v3216 = vmax.f32 %v3073, 0.0
  %v3217 = vmax.f32 %v3075, 0.0
  %v3218 = vmax.f32 %v3077, 0.0
  %v3219 = vmax.f32 %v3081, 0.0
  %v3220 = vmax.f32 %v3083, 0.0
  %v3221 = vmax.f32 %v3085, 0.0
  %v3222 = vmax.f32 %v3087, 0.0
  %v3223 = vmax.f32 %v3091, 0.0
  %v3224 = vmax.f32 %v3093, 0.0
  %v3225 = vmax.f32 %v3095, 0.0
  %v3226 = vmax.f32 %v3097, 0.0
  %v3227 = vpack.c.bf16 %v3102, %v3100
  %v3228 = vpack.c.bf16 %v3106, %v3104
  %v3229 = vpack.c.bf16 %v3110, %v3108
  %v3230 = vpack.c.bf16 %v3114, %v3112
  %v3231 = vpack.c.bf16 %v3118, %v3116
  %v3232 = vpack.c.bf16 %v3122, %v3120
  %v3233 = vpack.c.bf16 %v3126, %v3124
  %v3234 = vpack.c.bf16 %v3130, %v3128
  %v3235 = vpack.c.bf16 %v3134, %v3132
  %v3236 = vpack.c.bf16 %v3138, %v3136
  %v3237 = vpack.c.bf16 %v3142, %v3140
  %v3238 = vpack.c.bf16 %v3146, %v3144
  %v3239 = vpack.c.bf16 %v3150, %v3148
  %v3240 = vpack.c.bf16 %v3154, %v3152
  %v3241 = vpack.c.bf16 %v3158, %v3156
  %v3242 = vpack.c.bf16 %v3162, %v3160
  %v3243 = vpack.c.bf16 %v3166, %v3164
  %v3244 = vpack.c.bf16 %v3170, %v3168
  %v3245 = vpack.c.bf16 %v3174, %v3172
  %v3246 = vpack.c.bf16 %v3178, %v3176
  %v3247 = vpack.c.bf16 %v3182, %v3180
  %v3248 = vpack.c.bf16 %v3186, %v3184
  %v3249 = vpack.c.bf16 %v3190, %v3188
  %v3250 = vpack.c.bf16 %v3194, %v3192
  %v3251 = vpack.c.bf16 %v3198, %v3196
  %v3252 = vpack.c.bf16 %v3202, %v3200
  %v3253 = vpack.c.bf16 %v3206, %v3204
  %v3254 = vpack.c.bf16 %v3210, %v3208
  %v3255 = vpack.c.bf16 %v3214, %v3212
  %v3256 = vpack.c.bf16 %v3218, %v3216
  %v3257 = vpack.c.bf16 %v3222, %v3220
  %v3258 = vpack.c.bf16 %v3226, %v3224
  %v3259 = vld [vmem:[%s2] sm:$0xf]
  %v3260 = vld [vmem:[%s2 + $0x4] sm:$0xf]
  %v3261 = vld [vmem:[%s2 + $0x8] sm:$0xf]
  %v3262 = vld [vmem:[%s2 + $0xc] sm:$0xf]
  %v3263 = vld [vmem:[%s2 + $0x10] sm:$0xf]
  %v3264 = vld [vmem:[%s2 + $0x14] sm:$0xf]
  %v3265 = vld [vmem:[%s2 + $0x18] sm:$0xf]
  %v3266 = vld [vmem:[%s2 + $0x1c] sm:$0xf]
  %v3267 = vlaneseq
  %v3268 = vshrl.u32 %v3267, 7
  %v3269 = vsub.s32 1, %v3268
  %v3270 = vrot.slane %v135, %v3269
  %v3279 = vunpack.c.l.b16 %v3259
  %v3280 = vunpack.c.l.b16 %v3260
  %v3281 = vunpack.c.l.b16 %v3261
  %v3282 = vunpack.c.l.b16 %v3262
  %v3283 = vunpack.c.l.b16 %v3263
  %v3284 = vunpack.c.l.b16 %v3264
  %v3285 = vunpack.c.l.b16 %v3265
  %v3286 = vunpack.c.l.b16 %v3266
  %v3287 = vpack.c.b16 %v3280, %v3279
  %v3288 = vpack.c.b16 %v3282, %v3281
  %v3289 = vpack.c.b16 %v3284, %v3283
  %v3290 = vpack.c.b16 %v3286, %v3285
  %v3296 = vsel %vm1167, %v3227, 0
  %v3299 = vsel %vm1167, %v3228, 0
  %v3302 = vsel %vm1167, %v3229, 0
  %v3305 = vsel %vm1167, %v3230, 0
  %v3308 = vsel %vm1167, %v3231, 0
  %v3311 = vsel %vm1167, %v3232, 0
  %v3314 = vsel %vm1167, %v3233, 0
  %v3317 = vsel %vm1167, %v3234, 0
  %v3320 = vsel %vm1167, %v3235, 0
  %v3323 = vsel %vm1167, %v3236, 0
  %v3326 = vsel %vm1167, %v3237, 0
  %v3329 = vsel %vm1167, %v3238, 0
  %v3332 = vsel %vm1167, %v3239, 0
  %v3335 = vsel %vm1167, %v3240, 0
  %v3338 = vsel %vm1167, %v3241, 0
  %v3341 = vsel %vm1167, %v3242, 0
  %v3344 = vsel %vm1167, %v3243, 0
  %v3347 = vsel %vm1167, %v3244, 0
  %v3350 = vsel %vm1167, %v3245, 0
  %v3353 = vsel %vm1167, %v3246, 0
  %v3356 = vsel %vm1167, %v3247, 0
  %v3359 = vsel %vm1167, %v3248, 0
  %v3362 = vsel %vm1167, %v3249, 0
  %v3365 = vsel %vm1167, %v3250, 0
  %v3368 = vsel %vm1167, %v3251, 0
  %v3371 = vsel %vm1167, %v3252, 0
  %v3374 = vsel %vm1167, %v3253, 0
  %v3377 = vsel %vm1167, %v3254, 0
  %v3380 = vsel %vm1167, %v3255, 0
  %v3383 = vsel %vm1167, %v3256, 0
  %v3386 = vsel %vm1167, %v3257, 0
  %v3389 = vsel %vm1167, %v3258, 0
  %3391 = vmatprep.subr.bf16.mxu0 0
  %3392 = vmatpush1.bf16.msra.mxu0 %v3287
  %3393 = vmatprep.subr.bf16.mxu0 0
  %3394 = vmatpush1.bf16.msra.mxu0 %v3288
  %3395 = vmatprep.subr.bf16.mxu0 0
  %3396 = vmatpush1.bf16.msra.mxu0 %v3289
  %3397 = vmatprep.subr.bf16.mxu0 0
  %3398 = vmatpush1.bf16.msra.mxu0 %v3290
  %3399 = vmatprep.subr.bf16.mxu0 0
  %3400 = vmatpush1.bf16.msra.mxu0 0
  %3401 = vmatprep.subr.bf16.mxu0 0
  %3402 = vmatpush1.bf16.msra.mxu0 0
  %3403 = vmatprep.subr.bf16.mxu0 0
  %3404 = vmatpush1.bf16.msra.mxu0 0
  %3405 = vmatprep.subr.bf16.mxu0 0
  %3406 = vmatpush1.bf16.msra.mxu0 0
  %3407 = vmatprep.subr.bf16.mxu0 0
  %3408 = vmatpush1.bf16.msra.mxu0 0
  %3409 = vmatprep.subr.bf16.mxu0 0
  %3410 = vmatpush1.bf16.msra.mxu0 0
  %3411 = vmatprep.subr.bf16.mxu0 0
  %3412 = vmatpush1.bf16.msra.mxu0 0
  %3413 = vmatprep.subr.bf16.mxu0 0
  %3414 = vmatpush1.bf16.msra.mxu0 0
  %3415 = vmatprep.subr.bf16.mxu0 0
  %3416 = vmatpush1.bf16.msra.mxu0 0
  %3417 = vmatprep.subr.bf16.mxu0 0
  %3418 = vmatpush1.bf16.msra.mxu0 0
  %3419 = vmatprep.subr.bf16.mxu0 0
  %3420 = vmatpush1.bf16.msra.mxu0 0
  %3421 = vmatprep.subr.bf16.mxu0 0
  %3422 = vmatpush1.bf16.msra.mxu0 0
  %3423 = vmatprep.mubr.bf16.mxu0 0
  %3424 = vmatmul.mubr.bf16.gmra.mrb[0].mxu0 %v3296
  %v3425 = vpop.f32.mrb[0].mxu0
  %v3426 = vadd.f32 %v3270, %v3425
  %v3427 = vpop.f32.mrb[0].mxu0
  %v3428 = vpop.f32.mrb[0].mxu0
  %v3429 = vadd.f32 %v3270, %v3428
  %v3430 = vpop.f32.mrb[0].mxu0
  %3431 = vmatprep.mubr.bf16.mxu0 0
  %3432 = vmatmul.mubr.bf16.gmra.mrb[0].mxu0 %v3299
  %v3433 = vpop.f32.mrb[0].mxu0
  %v3434 = vadd.f32 %v3270, %v3433
  %v3435 = vpop.f32.mrb[0].mxu0
  %v3436 = vpop.f32.mrb[0].mxu0
  %v3437 = vadd.f32 %v3270, %v3436
  %v3438 = vpop.f32.mrb[0].mxu0
  %3439 = vmatprep.mubr.bf16.mxu0 0
  %3440 = vmatmul.mubr.bf16.gmra.mrb[0].mxu0 %v3302
  %v3441 = vpop.f32.mrb[0].mxu0
  %v3442 = vadd.f32 %v3270, %v3441
  %v3443 = vpop.f32.mrb[0].mxu0
  %v3444 = vpop.f32.mrb[0].mxu0
  %v3445 = vadd.f32 %v3270, %v3444
  %v3446 = vpop.f32.mrb[0].mxu0
  %3447 = vmatprep.mubr.bf16.mxu0 0
  %3448 = vmatmul.mubr.bf16.gmra.mrb[0].mxu0 %v3305
  %v3449 = vpop.f32.mrb[0].mxu0
  %v3450 = vadd.f32 %v3270, %v3449
  %v3451 = vpop.f32.mrb[0].mxu0
  %v3452 = vpop.f32.mrb[0].mxu0
  %v3453 = vadd.f32 %v3270, %v3452
  %v3454 = vpop.f32.mrb[0].mxu0
  %3455 = vmatprep.mubr.bf16.mxu0 0
  %3456 = vmatmul.mubr.bf16.gmra.mrb[0].mxu0 %v3308
  %v3457 = vpop.f32.mrb[0].mxu0
  %v3458 = vadd.f32 %v3270, %v3457
  %v3459 = vpop.f32.mrb[0].mxu0
  %v3460 = vpop.f32.mrb[0].mxu0
  %v3461 = vadd.f32 %v3270, %v3460
  %v3462 = vpop.f32.mrb[0].mxu0
  %3463 = vmatprep.mubr.bf16.mxu0 0
  %3464 = vmatmul.mubr.bf16.gmra.mrb[0].mxu0 %v3311
  %v3465 = vpop.f32.mrb[0].mxu0
  %v3466 = vadd.f32 %v3270, %v3465
  %v3467 = vpop.f32.mrb[0].mxu0
  %v3468 = vpop.f32.mrb[0].mxu0
  %v3469 = vadd.f32 %v3270, %v3468
  %v3470 = vpop.f32.mrb[0].mxu0
  %3471 = vmatprep.mubr.bf16.mxu0 0
  %3472 = vmatmul.mubr.bf16.gmra.mrb[0].mxu0 %v3314
  %v3473 = vpop.f32.mrb[0].mxu0
  %v3474 = vadd.f32 %v3270, %v3473
  %v3475 = vpop.f32.mrb[0].mxu0
  %v3476 = vpop.f32.mrb[0].mxu0
  %v3477 = vadd.f32 %v3270, %v3476
  %v3478 = vpop.f32.mrb[0].mxu0
  %3479 = vmatprep.mubr.bf16.mxu0 0
  %3480 = vmatmul.mubr.bf16.gmra.mrb[0].mxu0 %v3317
  %v3481 = vpop.f32.mrb[0].mxu0
  %v3482 = vadd.f32 %v3270, %v3481
  %v3483 = vpop.f32.mrb[0].mxu0
  %v3484 = vpop.f32.mrb[0].mxu0
  %v3485 = vadd.f32 %v3270, %v3484
  %v3486 = vpop.f32.mrb[0].mxu0
  %3487 = vmatprep.mubr.bf16.mxu0 0
  %3488 = vmatmul.mubr.bf16.gmra.mrb[0].mxu0 %v3320
  %v3489 = vpop.f32.mrb[0].mxu0
  %v3490 = vadd.f32 %v3270, %v3489
  %v3491 = vpop.f32.mrb[0].mxu0
  %v3492 = vpop.f32.mrb[0].mxu0
  %v3493 = vadd.f32 %v3270, %v3492
  %v3494 = vpop.f32.mrb[0].mxu0
  %3495 = vmatprep.mubr.bf16.mxu0 0
  %3496 = vmatmul.mubr.bf16.gmra.mrb[0].mxu0 %v3323
  %v3497 = vpop.f32.mrb[0].mxu0
  %v3498 = vadd.f32 %v3270, %v3497
  %v3499 = vpop.f32.mrb[0].mxu0
  %v3500 = vpop.f32.mrb[0].mxu0
  %v3501 = vadd.f32 %v3270, %v3500
  %v3502 = vpop.f32.mrb[0].mxu0
  %3503 = vmatprep.mubr.bf16.mxu0 0
  %3504 = vmatmul.mubr.bf16.gmra.mrb[0].mxu0 %v3326
  %v3505 = vpop.f32.mrb[0].mxu0
  %v3506 = vadd.f32 %v3270, %v3505
  %v3507 = vpop.f32.mrb[0].mxu0
  %v3508 = vpop.f32.mrb[0].mxu0
  %v3509 = vadd.f32 %v3270, %v3508
  %v3510 = vpop.f32.mrb[0].mxu0
  %3511 = vmatprep.mubr.bf16.mxu0 0
  %3512 = vmatmul.mubr.bf16.gmra.mrb[0].mxu0 %v3329
  %v3513 = vpop.f32.mrb[0].mxu0
  %v3514 = vadd.f32 %v3270, %v3513
  %v3515 = vpop.f32.mrb[0].mxu0
  %v3516 = vpop.f32.mrb[0].mxu0
  %v3517 = vadd.f32 %v3270, %v3516
  %v3518 = vpop.f32.mrb[0].mxu0
  %3519 = vmatprep.mubr.bf16.mxu0 0
  %3520 = vmatmul.mubr.bf16.gmra.mrb[0].mxu0 %v3332
  %v3521 = vpop.f32.mrb[0].mxu0
  %v3522 = vadd.f32 %v3270, %v3521
  %v3523 = vpop.f32.mrb[0].mxu0
  %v3524 = vpop.f32.mrb[0].mxu0
  %v3525 = vadd.f32 %v3270, %v3524
  %v3526 = vpop.f32.mrb[0].mxu0
  %3527 = vmatprep.mubr.bf16.mxu0 0
  %3528 = vmatmul.mubr.bf16.gmra.mrb[0].mxu0 %v3335
  %v3529 = vpop.f32.mrb[0].mxu0
  %v3530 = vadd.f32 %v3270, %v3529
  %v3531 = vpop.f32.mrb[0].mxu0
  %v3532 = vpop.f32.mrb[0].mxu0
  %v3533 = vadd.f32 %v3270, %v3532
  %v3534 = vpop.f32.mrb[0].mxu0
  %3535 = vmatprep.mubr.bf16.mxu0 0
  %3536 = vmatmul.mubr.bf16.gmra.mrb[0].mxu0 %v3338
  %v3537 = vpop.f32.mrb[0].mxu0
  %v3538 = vadd.f32 %v3270, %v3537
  %v3539 = vpop.f32.mrb[0].mxu0
  %v3540 = vpop.f32.mrb[0].mxu0
  %v3541 = vadd.f32 %v3270, %v3540
  %v3542 = vpop.f32.mrb[0].mxu0
  %3543 = vmatprep.mubr.bf16.mxu0 0
  %3544 = vmatmul.mubr.bf16.gmra.mrb[0].mxu0 %v3341
  %v3545 = vpop.f32.mrb[0].mxu0
  %v3546 = vadd.f32 %v3270, %v3545
  %v3547 = vpop.f32.mrb[0].mxu0
  %v3548 = vpop.f32.mrb[0].mxu0
  %v3549 = vadd.f32 %v3270, %v3548
  %v3550 = vpop.f32.mrb[0].mxu0
  %3551 = vmatprep.mubr.bf16.mxu0 0
  %3552 = vmatmul.mubr.bf16.gmra.mrb[0].mxu0 %v3344
  %v3553 = vpop.f32.mrb[0].mxu0
  %v3554 = vadd.f32 %v3270, %v3553
  %v3555 = vpop.f32.mrb[0].mxu0
  %v3556 = vpop.f32.mrb[0].mxu0
  %v3557 = vadd.f32 %v3270, %v3556
  %v3558 = vpop.f32.mrb[0].mxu0
  %3559 = vmatprep.mubr.bf16.mxu0 0
  %3560 = vmatmul.mubr.bf16.gmra.mrb[0].mxu0 %v3347
  %v3561 = vpop.f32.mrb[0].mxu0
  %v3562 = vadd.f32 %v3270, %v3561
  %v3563 = vpop.f32.mrb[0].mxu0
  %v3564 = vpop.f32.mrb[0].mxu0
  %v3565 = vadd.f32 %v3270, %v3564
  %v3566 = vpop.f32.mrb[0].mxu0
  %3567 = vmatprep.mubr.bf16.mxu0 0
  %3568 = vmatmul.mubr.bf16.gmra.mrb[0].mxu0 %v3350
  %v3569 = vpop.f32.mrb[0].mxu0
  %v3570 = vadd.f32 %v3270, %v3569
  %v3571 = vpop.f32.mrb[0].mxu0
  %v3572 = vpop.f32.mrb[0].mxu0
  %v3573 = vadd.f32 %v3270, %v3572
  %v3574 = vpop.f32.mrb[0].mxu0
  %3575 = vmatprep.mubr.bf16.mxu0 0
  %3576 = vmatmul.mubr.bf16.gmra.mrb[0].mxu0 %v3353
  %v3577 = vpop.f32.mrb[0].mxu0
  %v3578 = vadd.f32 %v3270, %v3577
  %v3579 = vpop.f32.mrb[0].mxu0
  %v3580 = vpop.f32.mrb[0].mxu0
  %v3581 = vadd.f32 %v3270, %v3580
  %v3582 = vpop.f32.mrb[0].mxu0
  %3583 = vmatprep.mubr.bf16.mxu0 0
  %3584 = vmatmul.mubr.bf16.gmra.mrb[0].mxu0 %v3356
  %v3585 = vpop.f32.mrb[0].mxu0
  %v3586 = vadd.f32 %v3270, %v3585
  %v3587 = vpop.f32.mrb[0].mxu0
  %v3588 = vpop.f32.mrb[0].mxu0
  %v3589 = vadd.f32 %v3270, %v3588
  %v3590 = vpop.f32.mrb[0].mxu0
  %3591 = vmatprep.mubr.bf16.mxu0 0
  %3592 = vmatmul.mubr.bf16.gmra.mrb[0].mxu0 %v3359
  %v3593 = vpop.f32.mrb[0].mxu0
  %v3594 = vadd.f32 %v3270, %v3593
  %v3595 = vpop.f32.mrb[0].mxu0
  %v3596 = vpop.f32.mrb[0].mxu0
  %v3597 = vadd.f32 %v3270, %v3596
  %v3598 = vpop.f32.mrb[0].mxu0
  %3599 = vmatprep.mubr.bf16.mxu0 0
  %3600 = vmatmul.mubr.bf16.gmra.mrb[0].mxu0 %v3362
  %v3601 = vpop.f32.mrb[0].mxu0
  %v3602 = vadd.f32 %v3270, %v3601
  %v3603 = vpop.f32.mrb[0].mxu0
  %v3604 = vpop.f32.mrb[0].mxu0
  %v3605 = vadd.f32 %v3270, %v3604
  %v3606 = vpop.f32.mrb[0].mxu0
  %3607 = vmatprep.mubr.bf16.mxu0 0
  %3608 = vmatmul.mubr.bf16.gmra.mrb[0].mxu0 %v3365
  %v3609 = vpop.f32.mrb[0].mxu0
  %v3610 = vadd.f32 %v3270, %v3609
  %v3611 = vpop.f32.mrb[0].mxu0
  %v3612 = vpop.f32.mrb[0].mxu0
  %v3613 = vadd.f32 %v3270, %v3612
  %v3614 = vpop.f32.mrb[0].mxu0
  %3615 = vmatprep.mubr.bf16.mxu0 0
  %3616 = vmatmul.mubr.bf16.gmra.mrb[0].mxu0 %v3368
  %v3617 = vpop.f32.mrb[0].mxu0
  %v3618 = vadd.f32 %v3270, %v3617
  %v3619 = vpop.f32.mrb[0].mxu0
  %v3620 = vpop.f32.mrb[0].mxu0
  %v3621 = vadd.f32 %v3270, %v3620
  %v3622 = vpop.f32.mrb[0].mxu0
  %3623 = vmatprep.mubr.bf16.mxu0 0
  %3624 = vmatmul.mubr.bf16.gmra.mrb[0].mxu0 %v3371
  %v3625 = vpop.f32.mrb[0].mxu0
  %v3626 = vadd.f32 %v3270, %v3625
  %v3627 = vpop.f32.mrb[0].mxu0
  %v3628 = vpop.f32.mrb[0].mxu0
  %v3629 = vadd.f32 %v3270, %v3628
  %v3630 = vpop.f32.mrb[0].mxu0
  %3631 = vmatprep.mubr.bf16.mxu0 0
  %3632 = vmatmul.mubr.bf16.gmra.mrb[0].mxu0 %v3374
  %v3633 = vpop.f32.mrb[0].mxu0
  %v3634 = vadd.f32 %v3270, %v3633
  %v3635 = vpop.f32.mrb[0].mxu0
  %v3636 = vpop.f32.mrb[0].mxu0
  %v3637 = vadd.f32 %v3270, %v3636
  %v3638 = vpop.f32.mrb[0].mxu0
  %3639 = vmatprep.mubr.bf16.mxu0 0
  %3640 = vmatmul.mubr.bf16.gmra.mrb[0].mxu0 %v3377
  %v3641 = vpop.f32.mrb[0].mxu0
  %v3642 = vadd.f32 %v3270, %v3641
  %v3643 = vpop.f32.mrb[0].mxu0
  %v3644 = vpop.f32.mrb[0].mxu0
  %v3645 = vadd.f32 %v3270, %v3644
  %v3646 = vpop.f32.mrb[0].mxu0
  %3647 = vmatprep.mubr.bf16.mxu0 0
  %3648 = vmatmul.mubr.bf16.gmra.mrb[0].mxu0 %v3380
  %v3649 = vpop.f32.mrb[0].mxu0
  %v3650 = vadd.f32 %v3270, %v3649
  %v3651 = vpop.f32.mrb[0].mxu0
  %v3652 = vpop.f32.mrb[0].mxu0
  %v3653 = vadd.f32 %v3270, %v3652
  %v3654 = vpop.f32.mrb[0].mxu0
  %3655 = vmatprep.mubr.bf16.mxu0 0
  %3656 = vmatmul.mubr.bf16.gmra.mrb[0].mxu0 %v3383
  %v3657 = vpop.f32.mrb[0].mxu0
  %v3658 = vadd.f32 %v3270, %v3657
  %v3659 = vpop.f32.mrb[0].mxu0
  %v3660 = vpop.f32.mrb[0].mxu0
  %v3661 = vadd.f32 %v3270, %v3660
  %v3662 = vpop.f32.mrb[0].mxu0
  %3663 = vmatprep.mubr.bf16.mxu0 0
  %3664 = vmatmul.mubr.bf16.gmra.mrb[0].mxu0 %v3386
  %v3665 = vpop.f32.mrb[0].mxu0
  %v3666 = vadd.f32 %v3270, %v3665
  %v3667 = vpop.f32.mrb[0].mxu0
  %v3668 = vpop.f32.mrb[0].mxu0
  %v3669 = vadd.f32 %v3270, %v3668
  %v3670 = vpop.f32.mrb[0].mxu0
  %3671 = vmatprep.mubr.bf16.mxu0 0
  %3672 = vmatmul.mubr.bf16.gmra.mrb[0].mxu0 %v3389
  %v3673 = vpop.f32.mrb[0].mxu0
  %v3674 = vadd.f32 %v3270, %v3673
  %v3675 = vpop.f32.mrb[0].mxu0
  %v3676 = vpop.f32.mrb[0].mxu0
  %v3677 = vadd.f32 %v3270, %v3676
  %v3678 = vpop.f32.mrb[0].mxu0
  %3679 = vdwg.mxu0
  %v3680 = vxor.u32 %v3426, 2147483648
  %v3681 = vxor.u32 %v3429, 2147483648
  %v3682 = vxor.u32 %v3434, 2147483648
  %v3683 = vxor.u32 %v3437, 2147483648
  %v3684 = vxor.u32 %v3442, 2147483648
  %v3685 = vxor.u32 %v3445, 2147483648
  %v3686 = vxor.u32 %v3450, 2147483648
  %v3687 = vxor.u32 %v3453, 2147483648
  %v3688 = vxor.u32 %v3458, 2147483648
  %v3689 = vxor.u32 %v3461, 2147483648
  %v3690 = vxor.u32 %v3466, 2147483648
  %v3691 = vxor.u32 %v3469, 2147483648
  %v3692 = vxor.u32 %v3474, 2147483648
  %v3693 = vxor.u32 %v3477, 2147483648
  %v3694 = vxor.u32 %v3482, 2147483648
  %v3695 = vxor.u32 %v3485, 2147483648
  %v3696 = vxor.u32 %v3490, 2147483648
  %v3697 = vxor.u32 %v3493, 2147483648
  %v3698 = vxor.u32 %v3498, 2147483648
  %v3699 = vxor.u32 %v3501, 2147483648
  %v3700 = vxor.u32 %v3506, 2147483648
  %v3701 = vxor.u32 %v3509, 2147483648
  %v3702 = vxor.u32 %v3514, 2147483648
  %v3703 = vxor.u32 %v3517, 2147483648
  %v3704 = vxor.u32 %v3522, 2147483648
  %v3705 = vxor.u32 %v3525, 2147483648
  %v3706 = vxor.u32 %v3530, 2147483648
  %v3707 = vxor.u32 %v3533, 2147483648
  %v3708 = vxor.u32 %v3538, 2147483648
  %v3709 = vxor.u32 %v3541, 2147483648
  %v3710 = vxor.u32 %v3546, 2147483648
  %v3711 = vxor.u32 %v3549, 2147483648
  %v3712 = vxor.u32 %v3554, 2147483648
  %v3713 = vxor.u32 %v3557, 2147483648
  %v3714 = vxor.u32 %v3562, 2147483648
  %v3715 = vxor.u32 %v3565, 2147483648
  %v3716 = vxor.u32 %v3570, 2147483648
  %v3717 = vxor.u32 %v3573, 2147483648
  %v3718 = vxor.u32 %v3578, 2147483648
  %v3719 = vxor.u32 %v3581, 2147483648
  %v3720 = vxor.u32 %v3586, 2147483648
  %v3721 = vxor.u32 %v3589, 2147483648
  %v3722 = vxor.u32 %v3594, 2147483648
  %v3723 = vxor.u32 %v3597, 2147483648
  %v3724 = vxor.u32 %v3602, 2147483648
  %v3725 = vxor.u32 %v3605, 2147483648
  %v3726 = vxor.u32 %v3610, 2147483648
  %v3727 = vxor.u32 %v3613, 2147483648
  %v3728 = vxor.u32 %v3618, 2147483648
  %v3729 = vxor.u32 %v3621, 2147483648
  %v3730 = vxor.u32 %v3626, 2147483648
  %v3731 = vxor.u32 %v3629, 2147483648
  %v3732 = vxor.u32 %v3634, 2147483648
  %v3733 = vxor.u32 %v3637, 2147483648
  %v3734 = vxor.u32 %v3642, 2147483648
  %v3735 = vxor.u32 %v3645, 2147483648
  %v3736 = vxor.u32 %v3650, 2147483648
  %v3737 = vxor.u32 %v3653, 2147483648
  %v3738 = vxor.u32 %v3658, 2147483648
  %v3739 = vxor.u32 %v3661, 2147483648
  %v3740 = vxor.u32 %v3666, 2147483648
  %v3741 = vxor.u32 %v3669, 2147483648
  %v3742 = vxor.u32 %v3674, 2147483648
  %v3743 = vxor.u32 %v3677, 2147483648
  %v3744 = vmul.f32 %v3680, 1.442695
  %v3745 = vpow.pop %v3744
  %v3746 = vmul.f32 %v3681, 1.442695
  %v3747 = vpow.pop %v3746
  %v3748 = vmul.f32 %v3682, 1.442695
  %v3749 = vpow.pop %v3748
  %v3750 = vmul.f32 %v3683, 1.442695
  %v3751 = vpow.pop %v3750
  %v3752 = vmul.f32 %v3684, 1.442695
  %v3753 = vpow.pop %v3752
  %v3754 = vmul.f32 %v3685, 1.442695
  %v3755 = vpow.pop %v3754
  %v3756 = vmul.f32 %v3686, 1.442695
  %v3757 = vpow.pop %v3756
  %v3758 = vmul.f32 %v3687, 1.442695
  %v3759 = vpow.pop %v3758
  %v3760 = vmul.f32 %v3688, 1.442695
  %v3761 = vpow.pop %v3760
  %v3762 = vmul.f32 %v3689, 1.442695
  %v3763 = vpow.pop %v3762
  %v3764 = vmul.f32 %v3690, 1.442695
  %v3765 = vpow.pop %v3764
  %v3766 = vmul.f32 %v3691, 1.442695
  %v3767 = vpow.pop %v3766
  %v3768 = vmul.f32 %v3692, 1.442695
  %v3769 = vpow.pop %v3768
  %v3770 = vmul.f32 %v3693, 1.442695
  %v3771 = vpow.pop %v3770
  %v3772 = vmul.f32 %v3694, 1.442695
  %v3773 = vpow.pop %v3772
  %v3774 = vmul.f32 %v3695, 1.442695
  %v3775 = vpow.pop %v3774
  %v3776 = vmul.f32 %v3696, 1.442695
  %v3777 = vpow.pop %v3776
  %v3778 = vmul.f32 %v3697, 1.442695
  %v3779 = vpow.pop %v3778
  %v3780 = vmul.f32 %v3698, 1.442695
  %v3781 = vpow.pop %v3780
  %v3782 = vmul.f32 %v3699, 1.442695
  %v3783 = vpow.pop %v3782
  %v3784 = vmul.f32 %v3700, 1.442695
  %v3785 = vpow.pop %v3784
  %v3786 = vmul.f32 %v3701, 1.442695
  %v3787 = vpow.pop %v3786
  %v3788 = vmul.f32 %v3702, 1.442695
  %v3789 = vpow.pop %v3788
  %v3790 = vmul.f32 %v3703, 1.442695
  %v3791 = vpow.pop %v3790
  %v3792 = vmul.f32 %v3704, 1.442695
  %v3793 = vpow.pop %v3792
  %v3794 = vmul.f32 %v3705, 1.442695
  %v3795 = vpow.pop %v3794
  %v3796 = vmul.f32 %v3706, 1.442695
  %v3797 = vpow.pop %v3796
  %v3798 = vmul.f32 %v3707, 1.442695
  %v3799 = vpow.pop %v3798
  %v3800 = vmul.f32 %v3708, 1.442695
  %v3801 = vpow.pop %v3800
  %v3802 = vmul.f32 %v3709, 1.442695
  %v3803 = vpow.pop %v3802
  %v3804 = vmul.f32 %v3710, 1.442695
  %v3805 = vpow.pop %v3804
  %v3806 = vmul.f32 %v3711, 1.442695
  %v3807 = vpow.pop %v3806
  %v3808 = vmul.f32 %v3712, 1.442695
  %v3809 = vpow.pop %v3808
  %v3810 = vmul.f32 %v3713, 1.442695
  %v3811 = vpow.pop %v3810
  %v3812 = vmul.f32 %v3714, 1.442695
  %v3813 = vpow.pop %v3812
  %v3814 = vmul.f32 %v3715, 1.442695
  %v3815 = vpow.pop %v3814
  %v3816 = vmul.f32 %v3716, 1.442695
  %v3817 = vpow.pop %v3816
  %v3818 = vmul.f32 %v3717, 1.442695
  %v3819 = vpow.pop %v3818
  %v3820 = vmul.f32 %v3718, 1.442695
  %v3821 = vpow.pop %v3820
  %v3822 = vmul.f32 %v3719, 1.442695
  %v3823 = vpow.pop %v3822
  %v3824 = vmul.f32 %v3720, 1.442695
  %v3825 = vpow.pop %v3824
  %v3826 = vmul.f32 %v3721, 1.442695
  %v3827 = vpow.pop %v3826
  %v3828 = vmul.f32 %v3722, 1.442695
  %v3829 = vpow.pop %v3828
  %v3830 = vmul.f32 %v3723, 1.442695
  %v3831 = vpow.pop %v3830
  %v3832 = vmul.f32 %v3724, 1.442695
  %v3833 = vpow.pop %v3832
  %v3834 = vmul.f32 %v3725, 1.442695
  %v3835 = vpow.pop %v3834
  %v3836 = vmul.f32 %v3726, 1.442695
  %v3837 = vpow.pop %v3836
  %v3838 = vmul.f32 %v3727, 1.442695
  %v3839 = vpow.pop %v3838
  %v3840 = vmul.f32 %v3728, 1.442695
  %v3841 = vpow.pop %v3840
  %v3842 = vmul.f32 %v3729, 1.442695
  %v3843 = vpow.pop %v3842
  %v3844 = vmul.f32 %v3730, 1.442695
  %v3845 = vpow.pop %v3844
  %v3846 = vmul.f32 %v3731, 1.442695
  %v3847 = vpow.pop %v3846
  %v3848 = vmul.f32 %v3732, 1.442695
  %v3849 = vpow.pop %v3848
  %v3850 = vmul.f32 %v3733, 1.442695
  %v3851 = vpow.pop %v3850
  %v3852 = vmul.f32 %v3734, 1.442695
  %v3853 = vpow.pop %v3852
  %v3854 = vmul.f32 %v3735, 1.442695
  %v3855 = vpow.pop %v3854
  %v3856 = vmul.f32 %v3736, 1.442695
  %v3857 = vpow.pop %v3856
  %v3858 = vmul.f32 %v3737, 1.442695
  %v3859 = vpow.pop %v3858
  %v3860 = vmul.f32 %v3738, 1.442695
  %v3861 = vpow.pop %v3860
  %v3862 = vmul.f32 %v3739, 1.442695
  %v3863 = vpow.pop %v3862
  %v3864 = vmul.f32 %v3740, 1.442695
  %v3865 = vpow.pop %v3864
  %v3866 = vmul.f32 %v3741, 1.442695
  %v3867 = vpow.pop %v3866
  %v3868 = vmul.f32 %v3742, 1.442695
  %v3869 = vpow.pop %v3868
  %v3870 = vmul.f32 %v3743, 1.442695
  %v3871 = vpow.pop %v3870
  %v3872 = vadd.f32 %v3745, 1.0
  %v3873 = vadd.f32 %v3747, 1.0
  %v3874 = vadd.f32 %v3749, 1.0
  %v3875 = vadd.f32 %v3751, 1.0
  %v3876 = vadd.f32 %v3753, 1.0
  %v3877 = vadd.f32 %v3755, 1.0
  %v3878 = vadd.f32 %v3757, 1.0
  %v3879 = vadd.f32 %v3759, 1.0
  %v3880 = vadd.f32 %v3761, 1.0
  %v3881 = vadd.f32 %v3763, 1.0
  %v3882 = vadd.f32 %v3765, 1.0
  %v3883 = vadd.f32 %v3767, 1.0
  %v3884 = vadd.f32 %v3769, 1.0
  %v3885 = vadd.f32 %v3771, 1.0
  %v3886 = vadd.f32 %v3773, 1.0
  %v3887 = vadd.f32 %v3775, 1.0
  %v3888 = vadd.f32 %v3777, 1.0
  %v3889 = vadd.f32 %v3779, 1.0
  %v3890 = vadd.f32 %v3781, 1.0
  %v3891 = vadd.f32 %v3783, 1.0
  %v3892 = vadd.f32 %v3785, 1.0
  %v3893 = vadd.f32 %v3787, 1.0
  %v3894 = vadd.f32 %v3789, 1.0
  %v3895 = vadd.f32 %v3791, 1.0
  %v3896 = vadd.f32 %v3793, 1.0
  %v3897 = vadd.f32 %v3795, 1.0
  %v3898 = vadd.f32 %v3797, 1.0
  %v3899 = vadd.f32 %v3799, 1.0
  %v3900 = vadd.f32 %v3801, 1.0
  %v3901 = vadd.f32 %v3803, 1.0
  %v3902 = vadd.f32 %v3805, 1.0
  %v3903 = vadd.f32 %v3807, 1.0
  %v3904 = vadd.f32 %v3809, 1.0
  %v3905 = vadd.f32 %v3811, 1.0
  %v3906 = vadd.f32 %v3813, 1.0
  %v3907 = vadd.f32 %v3815, 1.0
  %v3908 = vadd.f32 %v3817, 1.0
  %v3909 = vadd.f32 %v3819, 1.0
  %v3910 = vadd.f32 %v3821, 1.0
  %v3911 = vadd.f32 %v3823, 1.0
  %v3912 = vadd.f32 %v3825, 1.0
  %v3913 = vadd.f32 %v3827, 1.0
  %v3914 = vadd.f32 %v3829, 1.0
  %v3915 = vadd.f32 %v3831, 1.0
  %v3916 = vadd.f32 %v3833, 1.0
  %v3917 = vadd.f32 %v3835, 1.0
  %v3918 = vadd.f32 %v3837, 1.0
  %v3919 = vadd.f32 %v3839, 1.0
  %v3920 = vadd.f32 %v3841, 1.0
  %v3921 = vadd.f32 %v3843, 1.0
  %v3922 = vadd.f32 %v3845, 1.0
  %v3923 = vadd.f32 %v3847, 1.0
  %v3924 = vadd.f32 %v3849, 1.0
  %v3925 = vadd.f32 %v3851, 1.0
  %v3926 = vadd.f32 %v3853, 1.0
  %v3927 = vadd.f32 %v3855, 1.0
  %v3928 = vadd.f32 %v3857, 1.0
  %v3929 = vadd.f32 %v3859, 1.0
  %v3930 = vadd.f32 %v3861, 1.0
  %v3931 = vadd.f32 %v3863, 1.0
  %v3932 = vadd.f32 %v3865, 1.0
  %v3933 = vadd.f32 %v3867, 1.0
  %v3934 = vadd.f32 %v3869, 1.0
  %v3935 = vadd.f32 %v3871, 1.0
  %v3936 = vrcp.pop %v3872
  %v3937 = vmul.f32 1.0, %v3936
  %v3938 = vrcp.pop %v3873
  %v3939 = vmul.f32 1.0, %v3938
  %v3940 = vrcp.pop %v3874
  %v3941 = vmul.f32 1.0, %v3940
  %v3942 = vrcp.pop %v3875
  %v3943 = vmul.f32 1.0, %v3942
  %v3944 = vrcp.pop %v3876
  %v3945 = vmul.f32 1.0, %v3944
  %v3946 = vrcp.pop %v3877
  %v3947 = vmul.f32 1.0, %v3946
  %v3948 = vrcp.pop %v3878
  %v3949 = vmul.f32 1.0, %v3948
  %v3950 = vrcp.pop %v3879
  %v3951 = vmul.f32 1.0, %v3950
  %v3952 = vrcp.pop %v3880
  %v3953 = vmul.f32 1.0, %v3952
  %v3954 = vrcp.pop %v3881
  %v3955 = vmul.f32 1.0, %v3954
  %v3956 = vrcp.pop %v3882
  %v3957 = vmul.f32 1.0, %v3956
  %v3958 = vrcp.pop %v3883
  %v3959 = vmul.f32 1.0, %v3958
  %v3960 = vrcp.pop %v3884
  %v3961 = vmul.f32 1.0, %v3960
  %v3962 = vrcp.pop %v3885
  %v3963 = vmul.f32 1.0, %v3962
  %v3964 = vrcp.pop %v3886
  %v3965 = vmul.f32 1.0, %v3964
  %v3966 = vrcp.pop %v3887
  %v3967 = vmul.f32 1.0, %v3966
  %v3968 = vrcp.pop %v3888
  %v3969 = vmul.f32 1.0, %v3968
  %v3970 = vrcp.pop %v3889
  %v3971 = vmul.f32 1.0, %v3970
  %v3972 = vrcp.pop %v3890
  %v3973 = vmul.f32 1.0, %v3972
  %v3974 = vrcp.pop %v3891
  %v3975 = vmul.f32 1.0, %v3974
  %v3976 = vrcp.pop %v3892
  %v3977 = vmul.f32 1.0, %v3976
  %v3978 = vrcp.pop %v3893
  %v3979 = vmul.f32 1.0, %v3978
  %v3980 = vrcp.pop %v3894
  %v3981 = vmul.f32 1.0, %v3980
  %v3982 = vrcp.pop %v3895
  %v3983 = vmul.f32 1.0, %v3982
  %v3984 = vrcp.pop %v3896
  %v3985 = vmul.f32 1.0, %v3984
  %v3986 = vrcp.pop %v3897
  %v3987 = vmul.f32 1.0, %v3986
  %v3988 = vrcp.pop %v3898
  %v3989 = vmul.f32 1.0, %v3988
  %v3990 = vrcp.pop %v3899
  %v3991 = vmul.f32 1.0, %v3990
  %v3992 = vrcp.pop %v3900
  %v3993 = vmul.f32 1.0, %v3992
  %v3994 = vrcp.pop %v3901
  %v3995 = vmul.f32 1.0, %v3994
  %v3996 = vrcp.pop %v3902
  %v3997 = vmul.f32 1.0, %v3996
  %v3998 = vrcp.pop %v3903
  %v3999 = vmul.f32 1.0, %v3998
  %v4000 = vrcp.pop %v3904
  %v4001 = vmul.f32 1.0, %v4000
  %v4002 = vrcp.pop %v3905
  %v4003 = vmul.f32 1.0, %v4002
  %v4004 = vrcp.pop %v3906
  %v4005 = vmul.f32 1.0, %v4004
  %v4006 = vrcp.pop %v3907
  %v4007 = vmul.f32 1.0, %v4006
  %v4008 = vrcp.pop %v3908
  %v4009 = vmul.f32 1.0, %v4008
  %v4010 = vrcp.pop %v3909
  %v4011 = vmul.f32 1.0, %v4010
  %v4012 = vrcp.pop %v3910
  %v4013 = vmul.f32 1.0, %v4012
  %v4014 = vrcp.pop %v3911
  %v4015 = vmul.f32 1.0, %v4014
  %v4016 = vrcp.pop %v3912
  %v4017 = vmul.f32 1.0, %v4016
  %v4018 = vrcp.pop %v3913
  %v4019 = vmul.f32 1.0, %v4018
  %v4020 = vrcp.pop %v3914
  %v4021 = vmul.f32 1.0, %v4020
  %v4022 = vrcp.pop %v3915
  %v4023 = vmul.f32 1.0, %v4022
  %v4024 = vrcp.pop %v3916
  %v4025 = vmul.f32 1.0, %v4024
  %v4026 = vrcp.pop %v3917
  %v4027 = vmul.f32 1.0, %v4026
  %v4028 = vrcp.pop %v3918
  %v4029 = vmul.f32 1.0, %v4028
  %v4030 = vrcp.pop %v3919
  %v4031 = vmul.f32 1.0, %v4030
  %v4032 = vrcp.pop %v3920
  %v4033 = vmul.f32 1.0, %v4032
  %v4034 = vrcp.pop %v3921
  %v4035 = vmul.f32 1.0, %v4034
  %v4036 = vrcp.pop %v3922
  %v4037 = vmul.f32 1.0, %v4036
  %v4038 = vrcp.pop %v3923
  %v4039 = vmul.f32 1.0, %v4038
  %v4040 = vrcp.pop %v3924
  %v4041 = vmul.f32 1.0, %v4040
  %v4042 = vrcp.pop %v3925
  %v4043 = vmul.f32 1.0, %v4042
  %v4044 = vrcp.pop %v3926
  %v4045 = vmul.f32 1.0, %v4044
  %v4046 = vrcp.pop %v3927
  %v4047 = vmul.f32 1.0, %v4046
  %v4048 = vrcp.pop %v3928
  %v4049 = vmul.f32 1.0, %v4048
  %v4050 = vrcp.pop %v3929
  %v4051 = vmul.f32 1.0, %v4050
  %v4052 = vrcp.pop %v3930
  %v4053 = vmul.f32 1.0, %v4052
  %v4054 = vrcp.pop %v3931
  %v4055 = vmul.f32 1.0, %v4054
  %v4056 = vrcp.pop %v3932
  %v4057 = vmul.f32 1.0, %v4056
  %v4058 = vrcp.pop %v3933
  %v4059 = vmul.f32 1.0, %v4058
  %v4060 = vrcp.pop %v3934
  %v4061 = vmul.f32 1.0, %v4060
  %v4062 = vrcp.pop %v3935
  %v4063 = vmul.f32 1.0, %v4062
  %v4064 = vpack.c.bf16 %v3101, %v3099
  %v4065 = vpack.c.bf16 %v3105, %v3103
  %v4066 = vpack.c.bf16 %v3109, %v3107
  %v4067 = vpack.c.bf16 %v3113, %v3111
  %v4068 = vpack.c.bf16 %v3117, %v3115
  %v4069 = vpack.c.bf16 %v3121, %v3119
  %v4070 = vpack.c.bf16 %v3125, %v3123
  %v4071 = vpack.c.bf16 %v3129, %v3127
  %v4072 = vpack.c.bf16 %v3133, %v3131
  %v4073 = vpack.c.bf16 %v3137, %v3135
  %v4074 = vpack.c.bf16 %v3141, %v3139
  %v4075 = vpack.c.bf16 %v3145, %v3143
  %v4076 = vpack.c.bf16 %v3149, %v3147
  %v4077 = vpack.c.bf16 %v3153, %v3151
  %v4078 = vpack.c.bf16 %v3157, %v3155
  %v4079 = vpack.c.bf16 %v3161, %v3159
  %v4080 = vpack.c.bf16 %v3165, %v3163
  %v4081 = vpack.c.bf16 %v3169, %v3167
  %v4082 = vpack.c.bf16 %v3173, %v3171
  %v4083 = vpack.c.bf16 %v3177, %v3175
  %v4084 = vpack.c.bf16 %v3181, %v3179
  %v4085 = vpack.c.bf16 %v3185, %v3183
  %v4086 = vpack.c.bf16 %v3189, %v3187
  %v4087 = vpack.c.bf16 %v3193, %v3191
  %v4088 = vpack.c.bf16 %v3197, %v3195
  %v4089 = vpack.c.bf16 %v3201, %v3199
  %v4090 = vpack.c.bf16 %v3205, %v3203
  %v4091 = vpack.c.bf16 %v3209, %v3207
  %v4092 = vpack.c.bf16 %v3213, %v3211
  %v4093 = vpack.c.bf16 %v3217, %v3215
  %v4094 = vpack.c.bf16 %v3221, %v3219
  %v4095 = vpack.c.bf16 %v3225, %v3223
  %v4129 = vrot.slane 0, 6
  %v4130 = vrot.slane %v4064, 6
  %v4131 = vrot.slane %v4065, 6
  %v4132 = vrot.slane %v4066, 6
  %v4133 = vrot.slane %v4067, 6
  %v4134 = vrot.slane %v4068, 6
  %v4135 = vrot.slane %v4069, 6
  %v4136 = vrot.slane %v4070, 6
  %v4137 = vrot.slane %v4071, 6
  %v4138 = vrot.slane %v4072, 6
  %v4139 = vrot.slane %v4073, 6
  %v4140 = vrot.slane %v4074, 6
  %v4141 = vrot.slane %v4075, 6
  %v4142 = vrot.slane %v4076, 6
  %v4143 = vrot.slane %v4077, 6
  %v4144 = vrot.slane %v4078, 6
  %v4145 = vrot.slane %v4079, 6
  %v4146 = vrot.slane %v4080, 6
  %v4147 = vrot.slane %v4081, 6
  %v4148 = vrot.slane %v4082, 6
  %v4149 = vrot.slane %v4083, 6
  %v4150 = vrot.slane %v4084, 6
  %v4151 = vrot.slane %v4085, 6
  %v4152 = vrot.slane %v4086, 6
  %v4153 = vrot.slane %v4087, 6
  %v4154 = vrot.slane %v4088, 6
  %v4155 = vrot.slane %v4089, 6
  %v4156 = vrot.slane %v4090, 6
  %v4157 = vrot.slane %v4091, 6
  %v4158 = vrot.slane %v4092, 6
  %v4159 = vrot.slane %v4093, 6
  %v4160 = vrot.slane %v4094, 6
  %v4161 = vrot.slane %v4095, 6
  %vm4162 = vcmask 1041408
  %v4165 = vsel %vm4162, 0, %v4129
  %v4167 = vsel %vm4162, 0, %v4130
  %v4169 = vsel %vm4162, 0, %v4131
  %v4171 = vsel %vm4162, 0, %v4132
  %v4173 = vsel %vm4162, 0, %v4133
  %v4175 = vsel %vm4162, 0, %v4134
  %v4177 = vsel %vm4162, 0, %v4135
  %v4179 = vsel %vm4162, 0, %v4136
  %v4181 = vsel %vm4162, 0, %v4137
  %v4183 = vsel %vm4162, 0, %v4138
  %v4185 = vsel %vm4162, 0, %v4139
  %v4187 = vsel %vm4162, 0, %v4140
  %v4189 = vsel %vm4162, 0, %v4141
  %v4191 = vsel %vm4162, 0, %v4142
  %v4193 = vsel %vm4162, 0, %v4143
  %v4195 = vsel %vm4162, 0, %v4144
  %v4197 = vsel %vm4162, 0, %v4145
  %v4199 = vsel %vm4162, 0, %v4146
  %v4201 = vsel %vm4162, 0, %v4147
  %v4203 = vsel %vm4162, 0, %v4148
  %v4205 = vsel %vm4162, 0, %v4149
  %v4207 = vsel %vm4162, 0, %v4150
  %v4209 = vsel %vm4162, 0, %v4151
  %v4211 = vsel %vm4162, 0, %v4152
  %v4213 = vsel %vm4162, 0, %v4153
  %v4215 = vsel %vm4162, 0, %v4154
  %v4217 = vsel %vm4162, 0, %v4155
  %v4219 = vsel %vm4162, 0, %v4156
  %v4221 = vsel %vm4162, 0, %v4157
  %v4223 = vsel %vm4162, 0, %v4158
  %v4225 = vsel %vm4162, 0, %v4159
  %v4227 = vsel %vm4162, 0, %v4160
  %v4229 = vsel %vm4162, 0, %v4161
  %v4230 = vsel %vm4162, %v4129, 0
  %v4231 = vsel %vm4162, %v4130, 0
  %v4232 = vsel %vm4162, %v4131, 0
  %v4233 = vsel %vm4162, %v4132, 0
  %v4234 = vsel %vm4162, %v4133, 0
  %v4235 = vsel %vm4162, %v4134, 0
  %v4236 = vsel %vm4162, %v4135, 0
  %v4237 = vsel %vm4162, %v4136, 0
  %v4238 = vsel %vm4162, %v4137, 0
  %v4239 = vsel %vm4162, %v4138, 0
  %v4240 = vsel %vm4162, %v4139, 0
  %v4241 = vsel %vm4162, %v4140, 0
  %v4242 = vsel %vm4162, %v4141, 0
  %v4243 = vsel %vm4162, %v4142, 0
  %v4244 = vsel %vm4162, %v4143, 0
  %v4245 = vsel %vm4162, %v4144, 0
  %v4246 = vsel %vm4162, %v4145, 0
  %v4247 = vsel %vm4162, %v4146, 0
  %v4248 = vsel %vm4162, %v4147, 0
  %v4249 = vsel %vm4162, %v4148, 0
  %v4250 = vsel %vm4162, %v4149, 0
  %v4251 = vsel %vm4162, %v4150, 0
  %v4252 = vsel %vm4162, %v4151, 0
  %v4253 = vsel %vm4162, %v4152, 0
  %v4254 = vsel %vm4162, %v4153, 0
  %v4255 = vsel %vm4162, %v4154, 0
  %v4256 = vsel %vm4162, %v4155, 0
  %v4257 = vsel %vm4162, %v4156, 0
  %v4258 = vsel %vm4162, %v4157, 0
  %v4259 = vsel %vm4162, %v4158, 0
  %v4260 = vsel %vm4162, %v4159, 0
  %v4261 = vsel %vm4162, %v4160, 0
  %v4262 = vsel %vm4162, %v4161, 0
  %v4263 = vshrl.u32 %v4165, 16
  %v4265 = vshll.u32 %v4165, 16
  %v4267 = vrot.slane %v4265, 1
  %v4268 = vor.u32 %v4263, %v4267
  %v4269 = vshll.u32 %v4230, 16
  %v4271 = vrot.slane %v4269, 1
  %v4272 = vsel %vm393, %v4268, %v4271
  %v4273 = vshrl.u32 %v4230, 16
  %v4275 = vor.u32 %v4273, %v4271
  %v4276 = vshrl.u32 %v4167, 16
  %v4278 = vshll.u32 %v4167, 16
  %v4280 = vrot.slane %v4278, 1
  %v4281 = vor.u32 %v4276, %v4280
  %v4282 = vshll.u32 %v4231, 16
  %v4284 = vrot.slane %v4282, 1
  %v4285 = vsel %vm393, %v4281, %v4284
  %v4286 = vshrl.u32 %v4231, 16
  %v4288 = vor.u32 %v4286, %v4284
  %v4289 = vshrl.u32 %v4169, 16
  %v4291 = vshll.u32 %v4169, 16
  %v4293 = vrot.slane %v4291, 1
  %v4294 = vor.u32 %v4289, %v4293
  %v4295 = vshll.u32 %v4232, 16
  %v4297 = vrot.slane %v4295, 1
  %v4298 = vsel %vm393, %v4294, %v4297
  %v4299 = vshrl.u32 %v4232, 16
  %v4301 = vor.u32 %v4299, %v4297
  %v4302 = vshrl.u32 %v4171, 16
  %v4304 = vshll.u32 %v4171, 16
  %v4306 = vrot.slane %v4304, 1
  %v4307 = vor.u32 %v4302, %v4306
  %v4308 = vshll.u32 %v4233, 16
  %v4310 = vrot.slane %v4308, 1
  %v4311 = vsel %vm393, %v4307, %v4310
  %v4312 = vshrl.u32 %v4233, 16
  %v4314 = vor.u32 %v4312, %v4310
  %v4315 = vshrl.u32 %v4173, 16
  %v4317 = vshll.u32 %v4173, 16
  %v4319 = vrot.slane %v4317, 1
  %v4320 = vor.u32 %v4315, %v4319
  %v4321 = vshll.u32 %v4234, 16
  %v4323 = vrot.slane %v4321, 1
  %v4324 = vsel %vm393, %v4320, %v4323
  %v4325 = vshrl.u32 %v4234, 16
  %v4327 = vor.u32 %v4325, %v4323
  %v4328 = vshrl.u32 %v4175, 16
  %v4330 = vshll.u32 %v4175, 16
  %v4332 = vrot.slane %v4330, 1
  %v4333 = vor.u32 %v4328, %v4332
  %v4334 = vshll.u32 %v4235, 16
  %v4336 = vrot.slane %v4334, 1
  %v4337 = vsel %vm393, %v4333, %v4336
  %v4338 = vshrl.u32 %v4235, 16
  %v4340 = vor.u32 %v4338, %v4336
  %v4341 = vshrl.u32 %v4177, 16
  %v4343 = vshll.u32 %v4177, 16
  %v4345 = vrot.slane %v4343, 1
  %v4346 = vor.u32 %v4341, %v4345
  %v4347 = vshll.u32 %v4236, 16
  %v4349 = vrot.slane %v4347, 1
  %v4350 = vsel %vm393, %v4346, %v4349
  %v4351 = vshrl.u32 %v4236, 16
  %v4353 = vor.u32 %v4351, %v4349
  %v4354 = vshrl.u32 %v4179, 16
  %v4356 = vshll.u32 %v4179, 16
  %v4358 = vrot.slane %v4356, 1
  %v4359 = vor.u32 %v4354, %v4358
  %v4360 = vshll.u32 %v4237, 16
  %v4362 = vrot.slane %v4360, 1
  %v4363 = vsel %vm393, %v4359, %v4362
  %v4364 = vshrl.u32 %v4237, 16
  %v4366 = vor.u32 %v4364, %v4362
  %v4367 = vshrl.u32 %v4181, 16
  %v4369 = vshll.u32 %v4181, 16
  %v4371 = vrot.slane %v4369, 1
  %v4372 = vor.u32 %v4367, %v4371
  %v4373 = vshll.u32 %v4238, 16
  %v4375 = vrot.slane %v4373, 1
  %v4376 = vsel %vm393, %v4372, %v4375
  %v4377 = vshrl.u32 %v4238, 16
  %v4379 = vor.u32 %v4377, %v4375
  %v4380 = vshrl.u32 %v4183, 16
  %v4382 = vshll.u32 %v4183, 16
  %v4384 = vrot.slane %v4382, 1
  %v4385 = vor.u32 %v4380, %v4384
  %v4386 = vshll.u32 %v4239, 16
  %v4388 = vrot.slane %v4386, 1
  %v4389 = vsel %vm393, %v4385, %v4388
  %v4390 = vshrl.u32 %v4239, 16
  %v4392 = vor.u32 %v4390, %v4388
  %v4393 = vshrl.u32 %v4185, 16
  %v4395 = vshll.u32 %v4185, 16
  %v4397 = vrot.slane %v4395, 1
  %v4398 = vor.u32 %v4393, %v4397
  %v4399 = vshll.u32 %v4240, 16
  %v4401 = vrot.slane %v4399, 1
  %v4402 = vsel %vm393, %v4398, %v4401
  %v4403 = vshrl.u32 %v4240, 16
  %v4405 = vor.u32 %v4403, %v4401
  %v4406 = vshrl.u32 %v4187, 16
  %v4408 = vshll.u32 %v4187, 16
  %v4410 = vrot.slane %v4408, 1
  %v4411 = vor.u32 %v4406, %v4410
  %v4412 = vshll.u32 %v4241, 16
  %v4414 = vrot.slane %v4412, 1
  %v4415 = vsel %vm393, %v4411, %v4414
  %v4416 = vshrl.u32 %v4241, 16
  %v4418 = vor.u32 %v4416, %v4414
  %v4419 = vshrl.u32 %v4189, 16
  %v4421 = vshll.u32 %v4189, 16
  %v4423 = vrot.slane %v4421, 1
  %v4424 = vor.u32 %v4419, %v4423
  %v4425 = vshll.u32 %v4242, 16
  %v4427 = vrot.slane %v4425, 1
  %v4428 = vsel %vm393, %v4424, %v4427
  %v4429 = vshrl.u32 %v4242, 16
  %v4431 = vor.u32 %v4429, %v4427
  %v4432 = vshrl.u32 %v4191, 16
  %v4434 = vshll.u32 %v4191, 16
  %v4436 = vrot.slane %v4434, 1
  %v4437 = vor.u32 %v4432, %v4436
  %v4438 = vshll.u32 %v4243, 16
  %v4440 = vrot.slane %v4438, 1
  %v4441 = vsel %vm393, %v4437, %v4440
  %v4442 = vshrl.u32 %v4243, 16
  %v4444 = vor.u32 %v4442, %v4440
  %v4445 = vshrl.u32 %v4193, 16
  %v4447 = vshll.u32 %v4193, 16
  %v4449 = vrot.slane %v4447, 1
  %v4450 = vor.u32 %v4445, %v4449
  %v4451 = vshll.u32 %v4244, 16
  %v4453 = vrot.slane %v4451, 1
  %v4454 = vsel %vm393, %v4450, %v4453
  %v4455 = vshrl.u32 %v4244, 16
  %v4457 = vor.u32 %v4455, %v4453
  %v4458 = vshrl.u32 %v4195, 16
  %v4460 = vshll.u32 %v4195, 16
  %v4462 = vrot.slane %v4460, 1
  %v4463 = vor.u32 %v4458, %v4462
  %v4464 = vshll.u32 %v4245, 16
  %v4466 = vrot.slane %v4464, 1
  %v4467 = vsel %vm393, %v4463, %v4466
  %v4468 = vshrl.u32 %v4245, 16
  %v4470 = vor.u32 %v4468, %v4466
  %v4471 = vshrl.u32 %v4199, 16
  %v4473 = vshll.u32 %v4199, 16
  %v4475 = vrot.slane %v4473, 1
  %v4476 = vor.u32 %v4471, %v4475
  %v4477 = vshll.u32 %v4247, 16
  %v4479 = vrot.slane %v4477, 1
  %v4480 = vsel %vm393, %v4476, %v4479
  %v4481 = vshrl.u32 %v4247, 16
  %v4483 = vor.u32 %v4481, %v4479
  %v4484 = vshrl.u32 %v4201, 16
  %v4486 = vshll.u32 %v4201, 16
  %v4488 = vrot.slane %v4486, 1
  %v4489 = vor.u32 %v4484, %v4488
  %v4490 = vshll.u32 %v4248, 16
  %v4492 = vrot.slane %v4490, 1
  %v4493 = vsel %vm393, %v4489, %v4492
  %v4494 = vshrl.u32 %v4248, 16
  %v4496 = vor.u32 %v4494, %v4492
  %v4497 = vshrl.u32 %v4203, 16
  %v4499 = vshll.u32 %v4203, 16
  %v4501 = vrot.slane %v4499, 1
  %v4502 = vor.u32 %v4497, %v4501
  %v4503 = vshll.u32 %v4249, 16
  %v4505 = vrot.slane %v4503, 1
  %v4506 = vsel %vm393, %v4502, %v4505
  %v4507 = vshrl.u32 %v4249, 16
  %v4509 = vor.u32 %v4507, %v4505
  %v4510 = vshrl.u32 %v4205, 16
  %v4512 = vshll.u32 %v4205, 16
  %v4514 = vrot.slane %v4512, 1
  %v4515 = vor.u32 %v4510, %v4514
  %v4516 = vshll.u32 %v4250, 16
  %v4518 = vrot.slane %v4516, 1
  %v4519 = vsel %vm393, %v4515, %v4518
  %v4520 = vshrl.u32 %v4250, 16
  %v4522 = vor.u32 %v4520, %v4518
  %v4523 = vshrl.u32 %v4207, 16
  %v4525 = vshll.u32 %v4207, 16
  %v4527 = vrot.slane %v4525, 1
  %v4528 = vor.u32 %v4523, %v4527
  %v4529 = vshll.u32 %v4251, 16
  %v4531 = vrot.slane %v4529, 1
  %v4532 = vsel %vm393, %v4528, %v4531
  %v4533 = vshrl.u32 %v4251, 16
  %v4535 = vor.u32 %v4533, %v4531
  %v4536 = vshrl.u32 %v4209, 16
  %v4538 = vshll.u32 %v4209, 16
  %v4540 = vrot.slane %v4538, 1
  %v4541 = vor.u32 %v4536, %v4540
  %v4542 = vshll.u32 %v4252, 16
  %v4544 = vrot.slane %v4542, 1
  %v4545 = vsel %vm393, %v4541, %v4544
  %v4546 = vshrl.u32 %v4252, 16
  %v4548 = vor.u32 %v4546, %v4544
  %v4549 = vshrl.u32 %v4211, 16
  %v4551 = vshll.u32 %v4211, 16
  %v4553 = vrot.slane %v4551, 1
  %v4554 = vor.u32 %v4549, %v4553
  %v4555 = vshll.u32 %v4253, 16
  %v4557 = vrot.slane %v4555, 1
  %v4558 = vsel %vm393, %v4554, %v4557
  %v4559 = vshrl.u32 %v4253, 16
  %v4561 = vor.u32 %v4559, %v4557
  %v4562 = vshrl.u32 %v4213, 16
  %v4564 = vshll.u32 %v4213, 16
  %v4566 = vrot.slane %v4564, 1
  %v4567 = vor.u32 %v4562, %v4566
  %v4568 = vshll.u32 %v4254, 16
  %v4570 = vrot.slane %v4568, 1
  %v4571 = vsel %vm393, %v4567, %v4570
  %v4572 = vshrl.u32 %v4254, 16
  %v4574 = vor.u32 %v4572, %v4570
  %v4575 = vshrl.u32 %v4215, 16
  %v4577 = vshll.u32 %v4215, 16
  %v4579 = vrot.slane %v4577, 1
  %v4580 = vor.u32 %v4575, %v4579
  %v4581 = vshll.u32 %v4255, 16
  %v4583 = vrot.slane %v4581, 1
  %v4584 = vsel %vm393, %v4580, %v4583
  %v4585 = vshrl.u32 %v4255, 16
  %v4587 = vor.u32 %v4585, %v4583
  %v4588 = vshrl.u32 %v4217, 16
  %v4590 = vshll.u32 %v4217, 16
  %v4592 = vrot.slane %v4590, 1
  %v4593 = vor.u32 %v4588, %v4592
  %v4594 = vshll.u32 %v4256, 16
  %v4596 = vrot.slane %v4594, 1
  %v4597 = vsel %vm393, %v4593, %v4596
  %v4598 = vshrl.u32 %v4256, 16
  %v4600 = vor.u32 %v4598, %v4596
  %v4601 = vshrl.u32 %v4219, 16
  %v4603 = vshll.u32 %v4219, 16
  %v4605 = vrot.slane %v4603, 1
  %v4606 = vor.u32 %v4601, %v4605
  %v4607 = vshll.u32 %v4257, 16
  %v4609 = vrot.slane %v4607, 1
  %v4610 = vsel %vm393, %v4606, %v4609
  %v4611 = vshrl.u32 %v4257, 16
  %v4613 = vor.u32 %v4611, %v4609
  %v4614 = vshrl.u32 %v4221, 16
  %v4616 = vshll.u32 %v4221, 16
  %v4618 = vrot.slane %v4616, 1
  %v4619 = vor.u32 %v4614, %v4618
  %v4620 = vshll.u32 %v4258, 16
  %v4622 = vrot.slane %v4620, 1
  %v4623 = vsel %vm393, %v4619, %v4622
  %v4624 = vshrl.u32 %v4258, 16
  %v4626 = vor.u32 %v4624, %v4622
  %v4627 = vshrl.u32 %v4223, 16
  %v4629 = vshll.u32 %v4223, 16
  %v4631 = vrot.slane %v4629, 1
  %v4632 = vor.u32 %v4627, %v4631
  %v4633 = vshll.u32 %v4259, 16
  %v4635 = vrot.slane %v4633, 1
  %v4636 = vsel %vm393, %v4632, %v4635
  %v4637 = vshrl.u32 %v4259, 16
  %v4639 = vor.u32 %v4637, %v4635
  %v4640 = vshrl.u32 %v4225, 16
  %v4642 = vshll.u32 %v4225, 16
  %v4644 = vrot.slane %v4642, 1
  %v4645 = vor.u32 %v4640, %v4644
  %v4646 = vshll.u32 %v4260, 16
  %v4648 = vrot.slane %v4646, 1
  %v4649 = vsel %vm393, %v4645, %v4648
  %v4650 = vshrl.u32 %v4260, 16
  %v4652 = vor.u32 %v4650, %v4648
  %v4653 = vshrl.u32 %v4227, 16
  %v4655 = vshll.u32 %v4227, 16
  %v4657 = vrot.slane %v4655, 1
  %v4658 = vor.u32 %v4653, %v4657
  %v4659 = vshll.u32 %v4261, 16
  %v4661 = vrot.slane %v4659, 1
  %v4662 = vsel %vm393, %v4658, %v4661
  %v4663 = vshrl.u32 %v4261, 16
  %v4665 = vor.u32 %v4663, %v4661
  %4666 = vrot.lane.b32.xlu0 %v4272, 64
  %v4667 = vpop.permute.xlu0 %4666
  %4668 = vrot.lane.b32.xlu0 %v4275, 64
  %v4669 = vpop.permute.xlu0 %4668
  %4670 = vrot.lane.b32.xlu0 %v4285, 64
  %v4671 = vpop.permute.xlu0 %4670
  %4672 = vrot.lane.b32.xlu0 %v4288, 64
  %v4673 = vpop.permute.xlu0 %4672
  %4674 = vrot.lane.b32.xlu0 %v4298, 64
  %v4675 = vpop.permute.xlu0 %4674
  %4676 = vrot.lane.b32.xlu0 %v4301, 64
  %v4677 = vpop.permute.xlu0 %4676
  %4678 = vrot.lane.b32.xlu0 %v4311, 64
  %v4679 = vpop.permute.xlu0 %4678
  %4680 = vrot.lane.b32.xlu0 %v4314, 64
  %v4681 = vpop.permute.xlu0 %4680
  %4682 = vrot.lane.b32.xlu0 %v4324, 64
  %v4683 = vpop.permute.xlu0 %4682
  %4684 = vrot.lane.b32.xlu0 %v4327, 64
  %v4685 = vpop.permute.xlu0 %4684
  %4686 = vrot.lane.b32.xlu0 %v4337, 64
  %v4687 = vpop.permute.xlu0 %4686
  %4688 = vrot.lane.b32.xlu0 %v4340, 64
  %v4689 = vpop.permute.xlu0 %4688
  %4690 = vrot.lane.b32.xlu0 %v4350, 64
  %v4691 = vpop.permute.xlu0 %4690
  %4692 = vrot.lane.b32.xlu0 %v4353, 64
  %v4693 = vpop.permute.xlu0 %4692
  %4694 = vrot.lane.b32.xlu0 %v4363, 64
  %v4695 = vpop.permute.xlu0 %4694
  %4696 = vrot.lane.b32.xlu0 %v4366, 64
  %v4697 = vpop.permute.xlu0 %4696
  %4698 = vrot.lane.b32.xlu0 %v4376, 64
  %v4699 = vpop.permute.xlu0 %4698
  %4700 = vrot.lane.b32.xlu0 %v4379, 64
  %v4701 = vpop.permute.xlu0 %4700
  %4702 = vrot.lane.b32.xlu0 %v4389, 64
  %v4703 = vpop.permute.xlu0 %4702
  %4704 = vrot.lane.b32.xlu0 %v4392, 64
  %v4705 = vpop.permute.xlu0 %4704
  %4706 = vrot.lane.b32.xlu0 %v4402, 64
  %v4707 = vpop.permute.xlu0 %4706
  %4708 = vrot.lane.b32.xlu0 %v4405, 64
  %v4709 = vpop.permute.xlu0 %4708
  %4710 = vrot.lane.b32.xlu0 %v4415, 64
  %v4711 = vpop.permute.xlu0 %4710
  %4712 = vrot.lane.b32.xlu0 %v4418, 64
  %v4713 = vpop.permute.xlu0 %4712
  %4714 = vrot.lane.b32.xlu0 %v4428, 64
  %v4715 = vpop.permute.xlu0 %4714
  %4716 = vrot.lane.b32.xlu0 %v4431, 64
  %v4717 = vpop.permute.xlu0 %4716
  %4718 = vrot.lane.b32.xlu0 %v4441, 64
  %v4719 = vpop.permute.xlu0 %4718
  %4720 = vrot.lane.b32.xlu0 %v4444, 64
  %v4721 = vpop.permute.xlu0 %4720
  %4722 = vrot.lane.b32.xlu0 %v4454, 64
  %v4723 = vpop.permute.xlu0 %4722
  %4724 = vrot.lane.b32.xlu0 %v4457, 64
  %v4725 = vpop.permute.xlu0 %4724
  %4726 = vrot.lane.b32.xlu0 %v4467, 64
  %v4727 = vpop.permute.xlu0 %4726
  %4728 = vrot.lane.b32.xlu0 %v4470, 64
  %v4729 = vpop.permute.xlu0 %4728
  %4730 = vrot.lane.b32.xlu0 %v4480, 64
  %v4731 = vpop.permute.xlu0 %4730
  %4732 = vrot.lane.b32.xlu0 %v4483, 64
  %v4733 = vpop.permute.xlu0 %4732
  %4734 = vrot.lane.b32.xlu0 %v4493, 64
  %v4735 = vpop.permute.xlu0 %4734
  %4736 = vrot.lane.b32.xlu0 %v4496, 64
  %v4737 = vpop.permute.xlu0 %4736
  %4738 = vrot.lane.b32.xlu0 %v4506, 64
  %v4739 = vpop.permute.xlu0 %4738
  %4740 = vrot.lane.b32.xlu0 %v4509, 64
  %v4741 = vpop.permute.xlu0 %4740
  %4742 = vrot.lane.b32.xlu0 %v4519, 64
  %v4743 = vpop.permute.xlu0 %4742
  %4744 = vrot.lane.b32.xlu0 %v4522, 64
  %v4745 = vpop.permute.xlu0 %4744
  %4746 = vrot.lane.b32.xlu0 %v4532, 64
  %v4747 = vpop.permute.xlu0 %4746
  %4748 = vrot.lane.b32.xlu0 %v4535, 64
  %v4749 = vpop.permute.xlu0 %4748
  %4750 = vrot.lane.b32.xlu0 %v4545, 64
  %v4751 = vpop.permute.xlu0 %4750
  %4752 = vrot.lane.b32.xlu0 %v4548, 64
  %v4753 = vpop.permute.xlu0 %4752
  %4754 = vrot.lane.b32.xlu0 %v4558, 64
  %v4755 = vpop.permute.xlu0 %4754
  %4756 = vrot.lane.b32.xlu0 %v4561, 64
  %v4757 = vpop.permute.xlu0 %4756
  %4758 = vrot.lane.b32.xlu0 %v4571, 64
  %v4759 = vpop.permute.xlu0 %4758
  %4760 = vrot.lane.b32.xlu0 %v4574, 64
  %v4761 = vpop.permute.xlu0 %4760
  %4762 = vrot.lane.b32.xlu0 %v4584, 64
  %v4763 = vpop.permute.xlu0 %4762
  %4764 = vrot.lane.b32.xlu0 %v4587, 64
  %v4765 = vpop.permute.xlu0 %4764
  %4766 = vrot.lane.b32.xlu0 %v4597, 64
  %v4767 = vpop.permute.xlu0 %4766
  %4768 = vrot.lane.b32.xlu0 %v4600, 64
  %v4769 = vpop.permute.xlu0 %4768
  %4770 = vrot.lane.b32.xlu0 %v4610, 64
  %v4771 = vpop.permute.xlu0 %4770
  %4772 = vrot.lane.b32.xlu0 %v4613, 64
  %v4773 = vpop.permute.xlu0 %4772
  %4774 = vrot.lane.b32.xlu0 %v4623, 64
  %v4775 = vpop.permute.xlu0 %4774
  %4776 = vrot.lane.b32.xlu0 %v4626, 64
  %v4777 = vpop.permute.xlu0 %4776
  %4778 = vrot.lane.b32.xlu0 %v4636, 64
  %v4779 = vpop.permute.xlu0 %4778
  %4780 = vrot.lane.b32.xlu0 %v4639, 64
  %v4781 = vpop.permute.xlu0 %4780
  %4782 = vrot.lane.b32.xlu0 %v4649, 64
  %v4783 = vpop.permute.xlu0 %4782
  %4784 = vrot.lane.b32.xlu0 %v4652, 64
  %v4785 = vpop.permute.xlu0 %4784
  %4786 = vrot.lane.b32.xlu0 %v4662, 64
  %v4787 = vpop.permute.xlu0 %4786
  %4788 = vrot.lane.b32.xlu0 %v4665, 64
  %v4789 = vpop.permute.xlu0 %4788
  %v4852 = vrot.slane %v4165, 1
  %v4853 = vrot.slane %v4230, 1
  %v4854 = vsel %vm842, %v4852, %v4853
  %v4855 = vrot.slane %v4167, 1
  %v4856 = vrot.slane %v4231, 1
  %v4857 = vsel %vm842, %v4855, %v4856
  %v4858 = vrot.slane %v4169, 1
  %v4859 = vrot.slane %v4232, 1
  %v4860 = vsel %vm842, %v4858, %v4859
  %v4861 = vrot.slane %v4171, 1
  %v4862 = vrot.slane %v4233, 1
  %v4863 = vsel %vm842, %v4861, %v4862
  %v4864 = vrot.slane %v4173, 1
  %v4865 = vrot.slane %v4234, 1
  %v4866 = vsel %vm842, %v4864, %v4865
  %v4867 = vrot.slane %v4175, 1
  %v4868 = vrot.slane %v4235, 1
  %v4869 = vsel %vm842, %v4867, %v4868
  %v4870 = vrot.slane %v4177, 1
  %v4871 = vrot.slane %v4236, 1
  %v4872 = vsel %vm842, %v4870, %v4871
  %v4873 = vrot.slane %v4179, 1
  %v4874 = vrot.slane %v4237, 1
  %v4875 = vsel %vm842, %v4873, %v4874
  %v4876 = vrot.slane %v4181, 1
  %v4877 = vrot.slane %v4238, 1
  %v4878 = vsel %vm842, %v4876, %v4877
  %v4879 = vrot.slane %v4183, 1
  %v4880 = vrot.slane %v4239, 1
  %v4881 = vsel %vm842, %v4879, %v4880
  %v4882 = vrot.slane %v4185, 1
  %v4883 = vrot.slane %v4240, 1
  %v4884 = vsel %vm842, %v4882, %v4883
  %v4885 = vrot.slane %v4187, 1
  %v4886 = vrot.slane %v4241, 1
  %v4887 = vsel %vm842, %v4885, %v4886
  %v4888 = vrot.slane %v4189, 1
  %v4889 = vrot.slane %v4242, 1
  %v4890 = vsel %vm842, %v4888, %v4889
  %v4891 = vrot.slane %v4191, 1
  %v4892 = vrot.slane %v4243, 1
  %v4893 = vsel %vm842, %v4891, %v4892
  %v4894 = vrot.slane %v4193, 1
  %v4895 = vrot.slane %v4244, 1
  %v4896 = vsel %vm842, %v4894, %v4895
  %v4897 = vrot.slane %v4195, 1
  %v4898 = vrot.slane %v4245, 1
  %v4899 = vsel %vm842, %v4897, %v4898
  %v4900 = vrot.slane %v4199, 1
  %v4901 = vrot.slane %v4247, 1
  %v4902 = vsel %vm842, %v4900, %v4901
  %v4903 = vrot.slane %v4201, 1
  %v4904 = vrot.slane %v4248, 1
  %v4905 = vsel %vm842, %v4903, %v4904
  %v4906 = vrot.slane %v4203, 1
  %v4907 = vrot.slane %v4249, 1
  %v4908 = vsel %vm842, %v4906, %v4907
  %v4909 = vrot.slane %v4205, 1
  %v4910 = vrot.slane %v4250, 1
  %v4911 = vsel %vm842, %v4909, %v4910
  %v4912 = vrot.slane %v4207, 1
  %v4913 = vrot.slane %v4251, 1
  %v4914 = vsel %vm842, %v4912, %v4913
  %v4915 = vrot.slane %v4209, 1
  %v4916 = vrot.slane %v4252, 1
  %v4917 = vsel %vm842, %v4915, %v4916
  %v4918 = vrot.slane %v4211, 1
  %v4919 = vrot.slane %v4253, 1
  %v4920 = vsel %vm842, %v4918, %v4919
  %v4921 = vrot.slane %v4213, 1
  %v4922 = vrot.slane %v4254, 1
  %v4923 = vsel %vm842, %v4921, %v4922
  %v4924 = vrot.slane %v4215, 1
  %v4925 = vrot.slane %v4255, 1
  %v4926 = vsel %vm842, %v4924, %v4925
  %v4927 = vrot.slane %v4217, 1
  %v4928 = vrot.slane %v4256, 1
  %v4929 = vsel %vm842, %v4927, %v4928
  %v4930 = vrot.slane %v4219, 1
  %v4931 = vrot.slane %v4257, 1
  %v4932 = vsel %vm842, %v4930, %v4931
  %v4933 = vrot.slane %v4221, 1
  %v4934 = vrot.slane %v4258, 1
  %v4935 = vsel %vm842, %v4933, %v4934
  %v4936 = vrot.slane %v4223, 1
  %v4937 = vrot.slane %v4259, 1
  %v4938 = vsel %vm842, %v4936, %v4937
  %v4939 = vrot.slane %v4225, 1
  %v4940 = vrot.slane %v4260, 1
  %v4941 = vsel %vm842, %v4939, %v4940
  %v4942 = vrot.slane %v4227, 1
  %v4943 = vrot.slane %v4261, 1
  %v4944 = vsel %vm842, %v4942, %v4943
  %4949 = vrot.lane.b32.xlu0 %v4167, 64
  %v4950 = vpop.permute.xlu0 %4949
  %4951 = vrot.lane.b32.xlu0 %v4231, 64
  %v4952 = vpop.permute.xlu0 %4951
  %4953 = vrot.lane.b32.xlu0 %v4169, 64
  %v4954 = vpop.permute.xlu0 %4953
  %4955 = vrot.lane.b32.xlu0 %v4232, 64
  %v4956 = vpop.permute.xlu0 %4955
  %4957 = vrot.lane.b32.xlu0 %v4171, 64
  %v4958 = vpop.permute.xlu0 %4957
  %4959 = vrot.lane.b32.xlu0 %v4233, 64
  %v4960 = vpop.permute.xlu0 %4959
  %4961 = vrot.lane.b32.xlu0 %v4173, 64
  %v4962 = vpop.permute.xlu0 %4961
  %4963 = vrot.lane.b32.xlu0 %v4234, 64
  %v4964 = vpop.permute.xlu0 %4963
  %4965 = vrot.lane.b32.xlu0 %v4175, 64
  %v4966 = vpop.permute.xlu0 %4965
  %4967 = vrot.lane.b32.xlu0 %v4235, 64
  %v4968 = vpop.permute.xlu0 %4967
  %4969 = vrot.lane.b32.xlu0 %v4177, 64
  %v4970 = vpop.permute.xlu0 %4969
  %4971 = vrot.lane.b32.xlu0 %v4236, 64
  %v4972 = vpop.permute.xlu0 %4971
  %4973 = vrot.lane.b32.xlu0 %v4179, 64
  %v4974 = vpop.permute.xlu0 %4973
  %4975 = vrot.lane.b32.xlu0 %v4237, 64
  %v4976 = vpop.permute.xlu0 %4975
  %4977 = vrot.lane.b32.xlu0 %v4181, 64
  %v4978 = vpop.permute.xlu0 %4977
  %4979 = vrot.lane.b32.xlu0 %v4238, 64
  %v4980 = vpop.permute.xlu0 %4979
  %4981 = vrot.lane.b32.xlu0 %v4183, 64
  %v4982 = vpop.permute.xlu0 %4981
  %4983 = vrot.lane.b32.xlu0 %v4239, 64
  %v4984 = vpop.permute.xlu0 %4983
  %4985 = vrot.lane.b32.xlu0 %v4185, 64
  %v4986 = vpop.permute.xlu0 %4985
  %4987 = vrot.lane.b32.xlu0 %v4240, 64
  %v4988 = vpop.permute.xlu0 %4987
  %4989 = vrot.lane.b32.xlu0 %v4187, 64
  %v4990 = vpop.permute.xlu0 %4989
  %4991 = vrot.lane.b32.xlu0 %v4241, 64
  %v4992 = vpop.permute.xlu0 %4991
  %4993 = vrot.lane.b32.xlu0 %v4189, 64
  %v4994 = vpop.permute.xlu0 %4993
  %4995 = vrot.lane.b32.xlu0 %v4242, 64
  %v4996 = vpop.permute.xlu0 %4995
  %4997 = vrot.lane.b32.xlu0 %v4191, 64
  %v4998 = vpop.permute.xlu0 %4997
  %4999 = vrot.lane.b32.xlu0 %v4243, 64
  %v5000 = vpop.permute.xlu0 %4999
  %5001 = vrot.lane.b32.xlu0 %v4193, 64
  %v5002 = vpop.permute.xlu0 %5001
  %5003 = vrot.lane.b32.xlu0 %v4244, 64
  %v5004 = vpop.permute.xlu0 %5003
  %5005 = vrot.lane.b32.xlu0 %v4195, 64
  %v5006 = vpop.permute.xlu0 %5005
  %5007 = vrot.lane.b32.xlu0 %v4245, 64
  %v5008 = vpop.permute.xlu0 %5007
  %5009 = vrot.lane.b32.xlu0 %v4197, 64
  %v5010 = vpop.permute.xlu0 %5009
  %5011 = vrot.lane.b32.xlu0 %v4246, 64
  %v5012 = vpop.permute.xlu0 %5011
  %5013 = vrot.lane.b32.xlu0 %v4199, 64
  %v5014 = vpop.permute.xlu0 %5013
  %5015 = vrot.lane.b32.xlu0 %v4247, 64
  %v5016 = vpop.permute.xlu0 %5015
  %5017 = vrot.lane.b32.xlu0 %v4201, 64
  %v5018 = vpop.permute.xlu0 %5017
  %5019 = vrot.lane.b32.xlu0 %v4248, 64
  %v5020 = vpop.permute.xlu0 %5019
  %5021 = vrot.lane.b32.xlu0 %v4203, 64
  %v5022 = vpop.permute.xlu0 %5021
  %5023 = vrot.lane.b32.xlu0 %v4249, 64
  %v5024 = vpop.permute.xlu0 %5023
  %5025 = vrot.lane.b32.xlu0 %v4205, 64
  %v5026 = vpop.permute.xlu0 %5025
  %5027 = vrot.lane.b32.xlu0 %v4250, 64
  %v5028 = vpop.permute.xlu0 %5027
  %5029 = vrot.lane.b32.xlu0 %v4207, 64
  %v5030 = vpop.permute.xlu0 %5029
  %5031 = vrot.lane.b32.xlu0 %v4251, 64
  %v5032 = vpop.permute.xlu0 %5031
  %5033 = vrot.lane.b32.xlu0 %v4209, 64
  %v5034 = vpop.permute.xlu0 %5033
  %5035 = vrot.lane.b32.xlu0 %v4252, 64
  %v5036 = vpop.permute.xlu0 %5035
  %5037 = vrot.lane.b32.xlu0 %v4211, 64
  %v5038 = vpop.permute.xlu0 %5037
  %5039 = vrot.lane.b32.xlu0 %v4253, 64
  %v5040 = vpop.permute.xlu0 %5039
  %5041 = vrot.lane.b32.xlu0 %v4213, 64
  %v5042 = vpop.permute.xlu0 %5041
  %5043 = vrot.lane.b32.xlu0 %v4254, 64
  %v5044 = vpop.permute.xlu0 %5043
  %5045 = vrot.lane.b32.xlu0 %v4215, 64
  %v5046 = vpop.permute.xlu0 %5045
  %5047 = vrot.lane.b32.xlu0 %v4255, 64
  %v5048 = vpop.permute.xlu0 %5047
  %5049 = vrot.lane.b32.xlu0 %v4217, 64
  %v5050 = vpop.permute.xlu0 %5049
  %5051 = vrot.lane.b32.xlu0 %v4256, 64
  %v5052 = vpop.permute.xlu0 %5051
  %5053 = vrot.lane.b32.xlu0 %v4219, 64
  %v5054 = vpop.permute.xlu0 %5053
  %5055 = vrot.lane.b32.xlu0 %v4257, 64
  %v5056 = vpop.permute.xlu0 %5055
  %5057 = vrot.lane.b32.xlu0 %v4221, 64
  %v5058 = vpop.permute.xlu0 %5057
  %5059 = vrot.lane.b32.xlu0 %v4258, 64
  %v5060 = vpop.permute.xlu0 %5059
  %5061 = vrot.lane.b32.xlu0 %v4223, 64
  %v5062 = vpop.permute.xlu0 %5061
  %5063 = vrot.lane.b32.xlu0 %v4259, 64
  %v5064 = vpop.permute.xlu0 %5063
  %5065 = vrot.lane.b32.xlu0 %v4225, 64
  %v5066 = vpop.permute.xlu0 %5065
  %5067 = vrot.lane.b32.xlu0 %v4260, 64
  %v5068 = vpop.permute.xlu0 %5067
  %5069 = vrot.lane.b32.xlu0 %v4227, 64
  %v5070 = vpop.permute.xlu0 %5069
  %5071 = vrot.lane.b32.xlu0 %v4261, 64
  %v5072 = vpop.permute.xlu0 %5071
  %5073 = vrot.lane.b32.xlu0 %v4229, 64
  %v5074 = vpop.permute.xlu0 %5073
  %5075 = vrot.lane.b32.xlu0 %v4262, 64
  %v5076 = vpop.permute.xlu0 %5075
  %v5077 = vshrl.u32 %v4197, 16
  %v5079 = vshll.u32 %v4197, 16
  %v5081 = vrot.slane %v5079, 1
  %v5082 = vor.u32 %v5077, %v5081
  %v5083 = vshll.u32 %v4246, 16
  %v5085 = vrot.slane %v5083, 1
  %v5086 = vsel %vm393, %v5082, %v5085
  %v5087 = vshrl.u32 %v4246, 16
  %v5089 = vor.u32 %v5087, %v5085
  %v5090 = vshrl.u32 %v4229, 16
  %v5092 = vshll.u32 %v4229, 16
  %v5094 = vrot.slane %v5092, 1
  %v5095 = vor.u32 %v5090, %v5094
  %v5096 = vshll.u32 %v4262, 16
  %v5098 = vrot.slane %v5096, 1
  %v5099 = vsel %vm393, %v5095, %v5098
  %v5100 = vshrl.u32 %v4262, 16
  %v5102 = vor.u32 %v5100, %v5098
  %v5103 = vrot.slane %v4197, 1
  %v5104 = vrot.slane %v4246, 1
  %v5105 = vsel %vm842, %v5103, %v5104
  %v5106 = vrot.slane %v4229, 1
  %v5107 = vrot.slane %v4262, 1
  %v5108 = vsel %vm842, %v5106, %v5107
  %5109 = vrot.lane.b32.xlu0 %v4857, 64
  %v5110 = vpop.permute.xlu0 %5109
  %5111 = vrot.lane.b32.xlu0 %v4856, 64
  %v5112 = vpop.permute.xlu0 %5111
  %5113 = vrot.lane.b32.xlu0 %v4860, 64
  %v5114 = vpop.permute.xlu0 %5113
  %5115 = vrot.lane.b32.xlu0 %v4859, 64
  %v5116 = vpop.permute.xlu0 %5115
  %5117 = vrot.lane.b32.xlu0 %v4863, 64
  %v5118 = vpop.permute.xlu0 %5117
  %5119 = vrot.lane.b32.xlu0 %v4862, 64
  %v5120 = vpop.permute.xlu0 %5119
  %5121 = vrot.lane.b32.xlu0 %v4866, 64
  %v5122 = vpop.permute.xlu0 %5121
  %5123 = vrot.lane.b32.xlu0 %v4865, 64
  %v5124 = vpop.permute.xlu0 %5123
  %5125 = vrot.lane.b32.xlu0 %v4869, 64
  %v5126 = vpop.permute.xlu0 %5125
  %5127 = vrot.lane.b32.xlu0 %v4868, 64
  %v5128 = vpop.permute.xlu0 %5127
  %5129 = vrot.lane.b32.xlu0 %v4872, 64
  %v5130 = vpop.permute.xlu0 %5129
  %5131 = vrot.lane.b32.xlu0 %v4871, 64
  %v5132 = vpop.permute.xlu0 %5131
  %5133 = vrot.lane.b32.xlu0 %v4875, 64
  %v5134 = vpop.permute.xlu0 %5133
  %5135 = vrot.lane.b32.xlu0 %v4874, 64
  %v5136 = vpop.permute.xlu0 %5135
  %5137 = vrot.lane.b32.xlu0 %v4878, 64
  %v5138 = vpop.permute.xlu0 %5137
  %5139 = vrot.lane.b32.xlu0 %v4877, 64
  %v5140 = vpop.permute.xlu0 %5139
  %5141 = vrot.lane.b32.xlu0 %v4881, 64
  %v5142 = vpop.permute.xlu0 %5141
  %5143 = vrot.lane.b32.xlu0 %v4880, 64
  %v5144 = vpop.permute.xlu0 %5143
  %5145 = vrot.lane.b32.xlu0 %v4884, 64
  %v5146 = vpop.permute.xlu0 %5145
  %5147 = vrot.lane.b32.xlu0 %v4883, 64
  %v5148 = vpop.permute.xlu0 %5147
  %5149 = vrot.lane.b32.xlu0 %v4887, 64
  %v5150 = vpop.permute.xlu0 %5149
  %5151 = vrot.lane.b32.xlu0 %v4886, 64
  %v5152 = vpop.permute.xlu0 %5151
  %5153 = vrot.lane.b32.xlu0 %v4890, 64
  %v5154 = vpop.permute.xlu0 %5153
  %5155 = vrot.lane.b32.xlu0 %v4889, 64
  %v5156 = vpop.permute.xlu0 %5155
  %5157 = vrot.lane.b32.xlu0 %v4893, 64
  %v5158 = vpop.permute.xlu0 %5157
  %5159 = vrot.lane.b32.xlu0 %v4892, 64
  %v5160 = vpop.permute.xlu0 %5159
  %5161 = vrot.lane.b32.xlu0 %v4896, 64
  %v5162 = vpop.permute.xlu0 %5161
  %5163 = vrot.lane.b32.xlu0 %v4895, 64
  %v5164 = vpop.permute.xlu0 %5163
  %5165 = vrot.lane.b32.xlu0 %v4899, 64
  %v5166 = vpop.permute.xlu0 %5165
  %5167 = vrot.lane.b32.xlu0 %v4898, 64
  %v5168 = vpop.permute.xlu0 %5167
  %5169 = vrot.lane.b32.xlu0 %v5105, 64
  %v5170 = vpop.permute.xlu0 %5169
  %5171 = vrot.lane.b32.xlu0 %v5104, 64
  %v5172 = vpop.permute.xlu0 %5171
  %5173 = vrot.lane.b32.xlu0 %v4902, 64
  %v5174 = vpop.permute.xlu0 %5173
  %5175 = vrot.lane.b32.xlu0 %v4901, 64
  %v5176 = vpop.permute.xlu0 %5175
  %5177 = vrot.lane.b32.xlu0 %v4905, 64
  %v5178 = vpop.permute.xlu0 %5177
  %5179 = vrot.lane.b32.xlu0 %v4904, 64
  %v5180 = vpop.permute.xlu0 %5179
  %5181 = vrot.lane.b32.xlu0 %v4908, 64
  %v5182 = vpop.permute.xlu0 %5181
  %5183 = vrot.lane.b32.xlu0 %v4907, 64
  %v5184 = vpop.permute.xlu0 %5183
  %5185 = vrot.lane.b32.xlu0 %v4911, 64
  %v5186 = vpop.permute.xlu0 %5185
  %5187 = vrot.lane.b32.xlu0 %v4910, 64
  %v5188 = vpop.permute.xlu0 %5187
  %5189 = vrot.lane.b32.xlu0 %v4914, 64
  %v5190 = vpop.permute.xlu0 %5189
  %5191 = vrot.lane.b32.xlu0 %v4913, 64
  %v5192 = vpop.permute.xlu0 %5191
  %5193 = vrot.lane.b32.xlu0 %v4917, 64
  %v5194 = vpop.permute.xlu0 %5193
  %5195 = vrot.lane.b32.xlu0 %v4916, 64
  %v5196 = vpop.permute.xlu0 %5195
  %5197 = vrot.lane.b32.xlu0 %v4920, 64
  %v5198 = vpop.permute.xlu0 %5197
  %5199 = vrot.lane.b32.xlu0 %v4919, 64
  %v5200 = vpop.permute.xlu0 %5199
  %5201 = vrot.lane.b32.xlu0 %v4923, 64
  %v5202 = vpop.permute.xlu0 %5201
  %5203 = vrot.lane.b32.xlu0 %v4922, 64
  %v5204 = vpop.permute.xlu0 %5203
  %5205 = vrot.lane.b32.xlu0 %v4926, 64
  %v5206 = vpop.permute.xlu0 %5205
  %5207 = vrot.lane.b32.xlu0 %v4925, 64
  %v5208 = vpop.permute.xlu0 %5207
  %5209 = vrot.lane.b32.xlu0 %v4929, 64
  %v5210 = vpop.permute.xlu0 %5209
  %5211 = vrot.lane.b32.xlu0 %v4928, 64
  %v5212 = vpop.permute.xlu0 %5211
  %5213 = vrot.lane.b32.xlu0 %v4932, 64
  %v5214 = vpop.permute.xlu0 %5213
  %5215 = vrot.lane.b32.xlu0 %v4931, 64
  %v5216 = vpop.permute.xlu0 %5215
  %5217 = vrot.lane.b32.xlu0 %v4935, 64
  %v5218 = vpop.permute.xlu0 %5217
  %5219 = vrot.lane.b32.xlu0 %v4934, 64
  %v5220 = vpop.permute.xlu0 %5219
  %5221 = vrot.lane.b32.xlu0 %v4938, 64
  %v5222 = vpop.permute.xlu0 %5221
  %5223 = vrot.lane.b32.xlu0 %v4937, 64
  %v5224 = vpop.permute.xlu0 %5223
  %5225 = vrot.lane.b32.xlu0 %v4941, 64
  %v5226 = vpop.permute.xlu0 %5225
  %5227 = vrot.lane.b32.xlu0 %v4940, 64
  %v5228 = vpop.permute.xlu0 %5227
  %5229 = vrot.lane.b32.xlu0 %v4944, 64
  %v5230 = vpop.permute.xlu0 %5229
  %5231 = vrot.lane.b32.xlu0 %v4943, 64
  %v5232 = vpop.permute.xlu0 %5231
  %5233 = vrot.lane.b32.xlu0 %v5108, 64
  %v5234 = vpop.permute.xlu0 %5233
  %5235 = vrot.lane.b32.xlu0 %v5107, 64
  %v5236 = vpop.permute.xlu0 %5235
  %5237 = vrot.lane.b32.xlu0 %v5086, 64
  %v5238 = vpop.permute.xlu0 %5237
  %5239 = vrot.lane.b32.xlu0 %v5089, 64
  %v5240 = vpop.permute.xlu0 %5239
  %5241 = vrot.lane.b32.xlu0 %v5099, 64
  %v5242 = vpop.permute.xlu0 %5241
  %5243 = vrot.lane.b32.xlu0 %v5102, 64
  %v5244 = vpop.permute.xlu0 %5243
  %vm5245 = vcmask 1040384
  %v5246 = vrot.slane %v4165, 7
  %v5247 = vrot.slane %v4230, 7
  %v5248 = vsel %vm5245, %v5246, %v5247
  %v5249 = vrot.slane %v4167, 7
  %v5250 = vrot.slane %v4231, 7
  %v5251 = vsel %vm5245, %v5249, %v5250
  %v5252 = vrot.slane %v4169, 7
  %v5253 = vrot.slane %v4232, 7
  %v5254 = vsel %vm5245, %v5252, %v5253
  %v5255 = vrot.slane %v4171, 7
  %v5256 = vrot.slane %v4233, 7
  %v5257 = vsel %vm5245, %v5255, %v5256
  %v5258 = vrot.slane %v4173, 7
  %v5259 = vrot.slane %v4234, 7
  %v5260 = vsel %vm5245, %v5258, %v5259
  %v5261 = vrot.slane %v4175, 7
  %v5262 = vrot.slane %v4235, 7
  %v5263 = vsel %vm5245, %v5261, %v5262
  %v5264 = vrot.slane %v4177, 7
  %v5265 = vrot.slane %v4236, 7
  %v5266 = vsel %vm5245, %v5264, %v5265
  %v5267 = vrot.slane %v4179, 7
  %v5268 = vrot.slane %v4237, 7
  %v5269 = vsel %vm5245, %v5267, %v5268
  %v5270 = vrot.slane %v4181, 7
  %v5271 = vrot.slane %v4238, 7
  %v5272 = vsel %vm5245, %v5270, %v5271
  %v5273 = vrot.slane %v4183, 7
  %v5274 = vrot.slane %v4239, 7
  %v5275 = vsel %vm5245, %v5273, %v5274
  %v5276 = vrot.slane %v4185, 7
  %v5277 = vrot.slane %v4240, 7
  %v5278 = vsel %vm5245, %v5276, %v5277
  %v5279 = vrot.slane %v4187, 7
  %v5280 = vrot.slane %v4241, 7
  %v5281 = vsel %vm5245, %v5279, %v5280
  %v5282 = vrot.slane %v4189, 7
  %v5283 = vrot.slane %v4242, 7
  %v5284 = vsel %vm5245, %v5282, %v5283
  %v5285 = vrot.slane %v4191, 7
  %v5286 = vrot.slane %v4243, 7
  %v5287 = vsel %vm5245, %v5285, %v5286
  %v5288 = vrot.slane %v4199, 7
  %v5289 = vrot.slane %v4247, 7
  %v5290 = vsel %vm5245, %v5288, %v5289
  %v5291 = vrot.slane %v4201, 7
  %v5292 = vrot.slane %v4248, 7
  %v5293 = vsel %vm5245, %v5291, %v5292
  %v5294 = vrot.slane %v4203, 7
  %v5295 = vrot.slane %v4249, 7
  %v5296 = vsel %vm5245, %v5294, %v5295
  %v5297 = vrot.slane %v4205, 7
  %v5298 = vrot.slane %v4250, 7
  %v5299 = vsel %vm5245, %v5297, %v5298
  %v5300 = vrot.slane %v4207, 7
  %v5301 = vrot.slane %v4251, 7
  %v5302 = vsel %vm5245, %v5300, %v5301
  %v5303 = vrot.slane %v4209, 7
  %v5304 = vrot.slane %v4252, 7
  %v5305 = vsel %vm5245, %v5303, %v5304
  %v5306 = vrot.slane %v4211, 7
  %v5307 = vrot.slane %v4253, 7
  %v5308 = vsel %vm5245, %v5306, %v5307
  %v5309 = vrot.slane %v4213, 7
  %v5310 = vrot.slane %v4254, 7
  %v5311 = vsel %vm5245, %v5309, %v5310
  %v5312 = vrot.slane %v4215, 7
  %v5313 = vrot.slane %v4255, 7
  %v5314 = vsel %vm5245, %v5312, %v5313
  %v5315 = vrot.slane %v4217, 7
  %v5316 = vrot.slane %v4256, 7
  %v5317 = vsel %vm5245, %v5315, %v5316
  %v5318 = vrot.slane %v4219, 7
  %v5319 = vrot.slane %v4257, 7
  %v5320 = vsel %vm5245, %v5318, %v5319
  %v5321 = vrot.slane %v4221, 7
  %v5322 = vrot.slane %v4258, 7
  %v5323 = vsel %vm5245, %v5321, %v5322
  %v5324 = vrot.slane %v4223, 7
  %v5325 = vrot.slane %v4259, 7
  %v5326 = vsel %vm5245, %v5324, %v5325
  %vm5327 = vcmask 1045504
  %v5328 = vrot.slane %v4165, 2
  %v5329 = vrot.slane %v4230, 2
  %v5330 = vsel %vm5327, %v5328, %v5329
  %v5331 = vrot.slane %v4167, 2
  %v5332 = vrot.slane %v4231, 2
  %v5333 = vsel %vm5327, %v5331, %v5332
  %v5334 = vrot.slane %v4169, 2
  %v5335 = vrot.slane %v4232, 2
  %v5336 = vsel %vm5327, %v5334, %v5335
  %v5337 = vrot.slane %v4171, 2
  %v5338 = vrot.slane %v4233, 2
  %v5339 = vsel %vm5327, %v5337, %v5338
  %v5340 = vrot.slane %v4173, 2
  %v5341 = vrot.slane %v4234, 2
  %v5342 = vsel %vm5327, %v5340, %v5341
  %v5343 = vrot.slane %v4175, 2
  %v5344 = vrot.slane %v4235, 2
  %v5345 = vsel %vm5327, %v5343, %v5344
  %v5346 = vrot.slane %v4177, 2
  %v5347 = vrot.slane %v4236, 2
  %v5348 = vsel %vm5327, %v5346, %v5347
  %v5349 = vrot.slane %v4179, 2
  %v5350 = vrot.slane %v4237, 2
  %v5351 = vsel %vm5327, %v5349, %v5350
  %v5352 = vrot.slane %v4181, 2
  %v5353 = vrot.slane %v4238, 2
  %v5354 = vsel %vm5327, %v5352, %v5353
  %v5355 = vrot.slane %v4183, 2
  %v5356 = vrot.slane %v4239, 2
  %v5357 = vsel %vm5327, %v5355, %v5356
  %v5358 = vrot.slane %v4185, 2
  %v5359 = vrot.slane %v4240, 2
  %v5360 = vsel %vm5327, %v5358, %v5359
  %v5361 = vrot.slane %v4187, 2
  %v5362 = vrot.slane %v4241, 2
  %v5363 = vsel %vm5327, %v5361, %v5362
  %v5364 = vrot.slane %v4189, 2
  %v5365 = vrot.slane %v4242, 2
  %v5366 = vsel %vm5327, %v5364, %v5365
  %v5367 = vrot.slane %v4191, 2
  %v5368 = vrot.slane %v4243, 2
  %v5369 = vsel %vm5327, %v5367, %v5368
  %v5370 = vrot.slane %v4199, 2
  %v5371 = vrot.slane %v4247, 2
  %v5372 = vsel %vm5327, %v5370, %v5371
  %v5373 = vrot.slane %v4201, 2
  %v5374 = vrot.slane %v4248, 2
  %v5375 = vsel %vm5327, %v5373, %v5374
  %v5376 = vrot.slane %v4203, 2
  %v5377 = vrot.slane %v4249, 2
  %v5378 = vsel %vm5327, %v5376, %v5377
  %v5379 = vrot.slane %v4205, 2
  %v5380 = vrot.slane %v4250, 2
  %v5381 = vsel %vm5327, %v5379, %v5380
  %v5382 = vrot.slane %v4207, 2
  %v5383 = vrot.slane %v4251, 2
  %v5384 = vsel %vm5327, %v5382, %v5383
  %v5385 = vrot.slane %v4209, 2
  %v5386 = vrot.slane %v4252, 2
  %v5387 = vsel %vm5327, %v5385, %v5386
  %v5388 = vrot.slane %v4211, 2
  %v5389 = vrot.slane %v4253, 2
  %v5390 = vsel %vm5327, %v5388, %v5389
  %v5391 = vrot.slane %v4213, 2
  %v5392 = vrot.slane %v4254, 2
  %v5393 = vsel %vm5327, %v5391, %v5392
  %v5394 = vrot.slane %v4215, 2
  %v5395 = vrot.slane %v4255, 2
  %v5396 = vsel %vm5327, %v5394, %v5395
  %v5397 = vrot.slane %v4217, 2
  %v5398 = vrot.slane %v4256, 2
  %v5399 = vsel %vm5327, %v5397, %v5398
  %v5400 = vrot.slane %v4219, 2
  %v5401 = vrot.slane %v4257, 2
  %v5402 = vsel %vm5327, %v5400, %v5401
  %v5403 = vrot.slane %v4221, 2
  %v5404 = vrot.slane %v4258, 2
  %v5405 = vsel %vm5327, %v5403, %v5404
  %v5406 = vrot.slane %v4223, 2
  %v5407 = vrot.slane %v4259, 2
  %v5408 = vsel %vm5327, %v5406, %v5407
  %v5409 = vrot.slane %v4193, 7
  %v5410 = vrot.slane %v4244, 7
  %v5411 = vsel %vm5245, %v5409, %v5410
  %v5412 = vrot.slane %v4195, 7
  %v5413 = vrot.slane %v4245, 7
  %v5414 = vsel %vm5245, %v5412, %v5413
  %v5415 = vrot.slane %v4197, 7
  %v5416 = vrot.slane %v4246, 7
  %v5417 = vsel %vm5245, %v5415, %v5416
  %v5418 = vrot.slane %v4225, 7
  %v5419 = vrot.slane %v4260, 7
  %v5420 = vsel %vm5245, %v5418, %v5419
  %v5421 = vrot.slane %v4227, 7
  %v5422 = vrot.slane %v4261, 7
  %v5423 = vsel %vm5245, %v5421, %v5422
  %v5424 = vrot.slane %v4229, 7
  %v5425 = vrot.slane %v4262, 7
  %v5426 = vsel %vm5245, %v5424, %v5425
  %5427 = vrot.lane.b32.xlu0 %v5249, 64
  %v5428 = vpop.permute.xlu0 %5427
  %5429 = vrot.lane.b32.xlu0 %v5251, 64
  %v5430 = vpop.permute.xlu0 %5429
  %5431 = vrot.lane.b32.xlu0 %v5252, 64
  %v5432 = vpop.permute.xlu0 %5431
  %5433 = vrot.lane.b32.xlu0 %v5254, 64
  %v5434 = vpop.permute.xlu0 %5433
  %5435 = vrot.lane.b32.xlu0 %v5255, 64
  %v5436 = vpop.permute.xlu0 %5435
  %5437 = vrot.lane.b32.xlu0 %v5257, 64
  %v5438 = vpop.permute.xlu0 %5437
  %5439 = vrot.lane.b32.xlu0 %v5258, 64
  %v5440 = vpop.permute.xlu0 %5439
  %5441 = vrot.lane.b32.xlu0 %v5260, 64
  %v5442 = vpop.permute.xlu0 %5441
  %5443 = vrot.lane.b32.xlu0 %v5261, 64
  %v5444 = vpop.permute.xlu0 %5443
  %5445 = vrot.lane.b32.xlu0 %v5263, 64
  %v5446 = vpop.permute.xlu0 %5445
  %5447 = vrot.lane.b32.xlu0 %v5264, 64
  %v5448 = vpop.permute.xlu0 %5447
  %5449 = vrot.lane.b32.xlu0 %v5266, 64
  %v5450 = vpop.permute.xlu0 %5449
  %5451 = vrot.lane.b32.xlu0 %v5267, 64
  %v5452 = vpop.permute.xlu0 %5451
  %5453 = vrot.lane.b32.xlu0 %v5269, 64
  %v5454 = vpop.permute.xlu0 %5453
  %5455 = vrot.lane.b32.xlu0 %v5270, 64
  %v5456 = vpop.permute.xlu0 %5455
  %5457 = vrot.lane.b32.xlu0 %v5272, 64
  %v5458 = vpop.permute.xlu0 %5457
  %5459 = vrot.lane.b32.xlu0 %v5273, 64
  %v5460 = vpop.permute.xlu0 %5459
  %5461 = vrot.lane.b32.xlu0 %v5275, 64
  %v5462 = vpop.permute.xlu0 %5461
  %5463 = vrot.lane.b32.xlu0 %v5276, 64
  %v5464 = vpop.permute.xlu0 %5463
  %5465 = vrot.lane.b32.xlu0 %v5278, 64
  %v5466 = vpop.permute.xlu0 %5465
  %5467 = vrot.lane.b32.xlu0 %v5279, 64
  %v5468 = vpop.permute.xlu0 %5467
  %5469 = vrot.lane.b32.xlu0 %v5281, 64
  %v5470 = vpop.permute.xlu0 %5469
  %5471 = vrot.lane.b32.xlu0 %v5282, 64
  %v5472 = vpop.permute.xlu0 %5471
  %5473 = vrot.lane.b32.xlu0 %v5284, 64
  %v5474 = vpop.permute.xlu0 %5473
  %5475 = vrot.lane.b32.xlu0 %v5285, 64
  %v5476 = vpop.permute.xlu0 %5475
  %5477 = vrot.lane.b32.xlu0 %v5287, 64
  %v5478 = vpop.permute.xlu0 %5477
  %5479 = vrot.lane.b32.xlu0 %v5409, 64
  %v5480 = vpop.permute.xlu0 %5479
  %5481 = vrot.lane.b32.xlu0 %v5411, 64
  %v5482 = vpop.permute.xlu0 %5481
  %5483 = vrot.lane.b32.xlu0 %v5412, 64
  %v5484 = vpop.permute.xlu0 %5483
  %5485 = vrot.lane.b32.xlu0 %v5414, 64
  %v5486 = vpop.permute.xlu0 %5485
  %5487 = vrot.lane.b32.xlu0 %v5415, 64
  %v5488 = vpop.permute.xlu0 %5487
  %5489 = vrot.lane.b32.xlu0 %v5417, 64
  %v5490 = vpop.permute.xlu0 %5489
  %5491 = vrot.lane.b32.xlu0 %v5288, 64
  %v5492 = vpop.permute.xlu0 %5491
  %5493 = vrot.lane.b32.xlu0 %v5290, 64
  %v5494 = vpop.permute.xlu0 %5493
  %5495 = vrot.lane.b32.xlu0 %v5291, 64
  %v5496 = vpop.permute.xlu0 %5495
  %5497 = vrot.lane.b32.xlu0 %v5293, 64
  %v5498 = vpop.permute.xlu0 %5497
  %5499 = vrot.lane.b32.xlu0 %v5294, 64
  %v5500 = vpop.permute.xlu0 %5499
  %5501 = vrot.lane.b32.xlu0 %v5296, 64
  %v5502 = vpop.permute.xlu0 %5501
  %5503 = vrot.lane.b32.xlu0 %v5297, 64
  %v5504 = vpop.permute.xlu0 %5503
  %5505 = vrot.lane.b32.xlu0 %v5299, 64
  %v5506 = vpop.permute.xlu0 %5505
  %5507 = vrot.lane.b32.xlu0 %v5300, 64
  %v5508 = vpop.permute.xlu0 %5507
  %5509 = vrot.lane.b32.xlu0 %v5302, 64
  %v5510 = vpop.permute.xlu0 %5509
  %5511 = vrot.lane.b32.xlu0 %v5303, 64
  %v5512 = vpop.permute.xlu0 %5511
  %5513 = vrot.lane.b32.xlu0 %v5305, 64
  %v5514 = vpop.permute.xlu0 %5513
  %5515 = vrot.lane.b32.xlu0 %v5306, 64
  %v5516 = vpop.permute.xlu0 %5515
  %5517 = vrot.lane.b32.xlu0 %v5308, 64
  %v5518 = vpop.permute.xlu0 %5517
  %5519 = vrot.lane.b32.xlu0 %v5309, 64
  %v5520 = vpop.permute.xlu0 %5519
  %5521 = vrot.lane.b32.xlu0 %v5311, 64
  %v5522 = vpop.permute.xlu0 %5521
  %5523 = vrot.lane.b32.xlu0 %v5312, 64
  %v5524 = vpop.permute.xlu0 %5523
  %5525 = vrot.lane.b32.xlu0 %v5314, 64
  %v5526 = vpop.permute.xlu0 %5525
  %5527 = vrot.lane.b32.xlu0 %v5315, 64
  %v5528 = vpop.permute.xlu0 %5527
  %5529 = vrot.lane.b32.xlu0 %v5317, 64
  %v5530 = vpop.permute.xlu0 %5529
  %5531 = vrot.lane.b32.xlu0 %v5318, 64
  %v5532 = vpop.permute.xlu0 %5531
  %5533 = vrot.lane.b32.xlu0 %v5320, 64
  %v5534 = vpop.permute.xlu0 %5533
  %5535 = vrot.lane.b32.xlu0 %v5321, 64
  %v5536 = vpop.permute.xlu0 %5535
  %5537 = vrot.lane.b32.xlu0 %v5323, 64
  %v5538 = vpop.permute.xlu0 %5537
  %5539 = vrot.lane.b32.xlu0 %v5324, 64
  %v5540 = vpop.permute.xlu0 %5539
  %5541 = vrot.lane.b32.xlu0 %v5326, 64
  %v5542 = vpop.permute.xlu0 %5541
  %5543 = vrot.lane.b32.xlu0 %v5418, 64
  %v5544 = vpop.permute.xlu0 %5543
  %5545 = vrot.lane.b32.xlu0 %v5420, 64
  %v5546 = vpop.permute.xlu0 %5545
  %5547 = vrot.lane.b32.xlu0 %v5421, 64
  %v5548 = vpop.permute.xlu0 %5547
  %5549 = vrot.lane.b32.xlu0 %v5423, 64
  %v5550 = vpop.permute.xlu0 %5549
  %5551 = vrot.lane.b32.xlu0 %v5424, 64
  %v5552 = vpop.permute.xlu0 %5551
  %5553 = vrot.lane.b32.xlu0 %v5426, 64
  %v5554 = vpop.permute.xlu0 %5553
  %v5555 = vrot.slane %v4193, 2
  %v5556 = vrot.slane %v4244, 2
  %v5557 = vsel %vm5327, %v5555, %v5556
  %v5558 = vrot.slane %v4195, 2
  %v5559 = vrot.slane %v4245, 2
  %v5560 = vsel %vm5327, %v5558, %v5559
  %v5561 = vrot.slane %v4197, 2
  %v5562 = vrot.slane %v4246, 2
  %v5563 = vsel %vm5327, %v5561, %v5562
  %v5564 = vrot.slane %v4225, 2
  %v5565 = vrot.slane %v4260, 2
  %v5566 = vsel %vm5327, %v5564, %v5565
  %v5567 = vrot.slane %v4227, 2
  %v5568 = vrot.slane %v4261, 2
  %v5569 = vsel %vm5327, %v5567, %v5568
  %v5570 = vrot.slane %v4229, 2
  %v5571 = vrot.slane %v4262, 2
  %v5572 = vsel %vm5327, %v5570, %v5571
  %5573 = vrot.lane.b32.xlu0 %v5333, 64
  %v5574 = vpop.permute.xlu0 %5573
  %5575 = vrot.lane.b32.xlu0 %v5332, 64
  %v5576 = vpop.permute.xlu0 %5575
  %5577 = vrot.lane.b32.xlu0 %v5336, 64
  %v5578 = vpop.permute.xlu0 %5577
  %5579 = vrot.lane.b32.xlu0 %v5335, 64
  %v5580 = vpop.permute.xlu0 %5579
  %5581 = vrot.lane.b32.xlu0 %v5339, 64
  %v5582 = vpop.permute.xlu0 %5581
  %5583 = vrot.lane.b32.xlu0 %v5338, 64
  %v5584 = vpop.permute.xlu0 %5583
  %5585 = vrot.lane.b32.xlu0 %v5342, 64
  %v5586 = vpop.permute.xlu0 %5585
  %5587 = vrot.lane.b32.xlu0 %v5341, 64
  %v5588 = vpop.permute.xlu0 %5587
  %5589 = vrot.lane.b32.xlu0 %v5345, 64
  %v5590 = vpop.permute.xlu0 %5589
  %5591 = vrot.lane.b32.xlu0 %v5344, 64
  %v5592 = vpop.permute.xlu0 %5591
  %5593 = vrot.lane.b32.xlu0 %v5348, 64
  %v5594 = vpop.permute.xlu0 %5593
  %5595 = vrot.lane.b32.xlu0 %v5347, 64
  %v5596 = vpop.permute.xlu0 %5595
  %5597 = vrot.lane.b32.xlu0 %v5351, 64
  %v5598 = vpop.permute.xlu0 %5597
  %5599 = vrot.lane.b32.xlu0 %v5350, 64
  %v5600 = vpop.permute.xlu0 %5599
  %5601 = vrot.lane.b32.xlu0 %v5354, 64
  %v5602 = vpop.permute.xlu0 %5601
  %5603 = vrot.lane.b32.xlu0 %v5353, 64
  %v5604 = vpop.permute.xlu0 %5603
  %5605 = vrot.lane.b32.xlu0 %v5357, 64
  %v5606 = vpop.permute.xlu0 %5605
  %5607 = vrot.lane.b32.xlu0 %v5356, 64
  %v5608 = vpop.permute.xlu0 %5607
  %5609 = vrot.lane.b32.xlu0 %v5360, 64
  %v5610 = vpop.permute.xlu0 %5609
  %5611 = vrot.lane.b32.xlu0 %v5359, 64
  %v5612 = vpop.permute.xlu0 %5611
  %5613 = vrot.lane.b32.xlu0 %v5363, 64
  %v5614 = vpop.permute.xlu0 %5613
  %5615 = vrot.lane.b32.xlu0 %v5362, 64
  %v5616 = vpop.permute.xlu0 %5615
  %5617 = vrot.lane.b32.xlu0 %v5366, 64
  %v5618 = vpop.permute.xlu0 %5617
  %5619 = vrot.lane.b32.xlu0 %v5365, 64
  %v5620 = vpop.permute.xlu0 %5619
  %5621 = vrot.lane.b32.xlu0 %v5369, 64
  %v5622 = vpop.permute.xlu0 %5621
  %5623 = vrot.lane.b32.xlu0 %v5368, 64
  %v5624 = vpop.permute.xlu0 %5623
  %5625 = vrot.lane.b32.xlu0 %v5557, 64
  %v5626 = vpop.permute.xlu0 %5625
  %5627 = vrot.lane.b32.xlu0 %v5556, 64
  %v5628 = vpop.permute.xlu0 %5627
  %5629 = vrot.lane.b32.xlu0 %v5560, 64
  %v5630 = vpop.permute.xlu0 %5629
  %5631 = vrot.lane.b32.xlu0 %v5559, 64
  %v5632 = vpop.permute.xlu0 %5631
  %5633 = vrot.lane.b32.xlu0 %v5563, 64
  %v5634 = vpop.permute.xlu0 %5633
  %5635 = vrot.lane.b32.xlu0 %v5562, 64
  %v5636 = vpop.permute.xlu0 %5635
  %5637 = vrot.lane.b32.xlu0 %v5372, 64
  %v5638 = vpop.permute.xlu0 %5637
  %5639 = vrot.lane.b32.xlu0 %v5371, 64
  %v5640 = vpop.permute.xlu0 %5639
  %5641 = vrot.lane.b32.xlu0 %v5375, 64
  %v5642 = vpop.permute.xlu0 %5641
  %5643 = vrot.lane.b32.xlu0 %v5374, 64
  %v5644 = vpop.permute.xlu0 %5643
  %5645 = vrot.lane.b32.xlu0 %v5378, 64
  %v5646 = vpop.permute.xlu0 %5645
  %5647 = vrot.lane.b32.xlu0 %v5377, 64
  %v5648 = vpop.permute.xlu0 %5647
  %5649 = vrot.lane.b32.xlu0 %v5381, 64
  %v5650 = vpop.permute.xlu0 %5649
  %5651 = vrot.lane.b32.xlu0 %v5380, 64
  %v5652 = vpop.permute.xlu0 %5651
  %5653 = vrot.lane.b32.xlu0 %v5384, 64
  %v5654 = vpop.permute.xlu0 %5653
  %5655 = vrot.lane.b32.xlu0 %v5383, 64
  %v5656 = vpop.permute.xlu0 %5655
  %5657 = vrot.lane.b32.xlu0 %v5387, 64
  %v5658 = vpop.permute.xlu0 %5657
  %5659 = vrot.lane.b32.xlu0 %v5386, 64
  %v5660 = vpop.permute.xlu0 %5659
  %5661 = vrot.lane.b32.xlu0 %v5390, 64
  %v5662 = vpop.permute.xlu0 %5661
  %5663 = vrot.lane.b32.xlu0 %v5389, 64
  %v5664 = vpop.permute.xlu0 %5663
  %5665 = vrot.lane.b32.xlu0 %v5393, 64
  %v5666 = vpop.permute.xlu0 %5665
  %5667 = vrot.lane.b32.xlu0 %v5392, 64
  %v5668 = vpop.permute.xlu0 %5667
  %5669 = vrot.lane.b32.xlu0 %v5396, 64
  %v5670 = vpop.permute.xlu0 %5669
  %5671 = vrot.lane.b32.xlu0 %v5395, 64
  %v5672 = vpop.permute.xlu0 %5671
  %5673 = vrot.lane.b32.xlu0 %v5399, 64
  %v5674 = vpop.permute.xlu0 %5673
  %5675 = vrot.lane.b32.xlu0 %v5398, 64
  %v5676 = vpop.permute.xlu0 %5675
  %5677 = vrot.lane.b32.xlu0 %v5402, 64
  %v5678 = vpop.permute.xlu0 %5677
  %5679 = vrot.lane.b32.xlu0 %v5401, 64
  %v5680 = vpop.permute.xlu0 %5679
  %5681 = vrot.lane.b32.xlu0 %v5405, 64
  %v5682 = vpop.permute.xlu0 %5681
  %5683 = vrot.lane.b32.xlu0 %v5404, 64
  %v5684 = vpop.permute.xlu0 %5683
  %5685 = vrot.lane.b32.xlu0 %v5408, 64
  %v5686 = vpop.permute.xlu0 %5685
  %5687 = vrot.lane.b32.xlu0 %v5407, 64
  %v5688 = vpop.permute.xlu0 %5687
  %5689 = vrot.lane.b32.xlu0 %v5566, 64
  %v5690 = vpop.permute.xlu0 %5689
  %5691 = vrot.lane.b32.xlu0 %v5565, 64
  %v5692 = vpop.permute.xlu0 %5691
  %5693 = vrot.lane.b32.xlu0 %v5569, 64
  %v5694 = vpop.permute.xlu0 %5693
  %5695 = vrot.lane.b32.xlu0 %v5568, 64
  %v5696 = vpop.permute.xlu0 %5695
  %5697 = vrot.lane.b32.xlu0 %v5572, 64
  %v5698 = vpop.permute.xlu0 %5697
  %5699 = vrot.lane.b32.xlu0 %v5571, 64
  %v5700 = vpop.permute.xlu0 %5699
  %v5702 = vsel %vm1167, %v4165, %v4667
  %v5704 = vsel %vm1167, %v4230, %v4669
  %v5706 = vsel %vm1167, %v4167, %v4671
  %v5708 = vsel %vm1167, %v4231, %v4673
  %v5710 = vsel %vm1167, %v4169, %v4675
  %v5712 = vsel %vm1167, %v4232, %v4677
  %v5714 = vsel %vm1167, %v4171, %v4679
  %v5716 = vsel %vm1167, %v4233, %v4681
  %v5718 = vsel %vm1167, %v4173, %v4683
  %v5720 = vsel %vm1167, %v4234, %v4685
  %v5722 = vsel %vm1167, %v4175, %v4687
  %v5724 = vsel %vm1167, %v4235, %v4689
  %v5726 = vsel %vm1167, %v4177, %v4691
  %v5728 = vsel %vm1167, %v4236, %v4693
  %v5730 = vsel %vm1167, %v4179, %v4695
  %v5732 = vsel %vm1167, %v4237, %v4697
  %v5734 = vsel %vm1167, %v4181, %v4699
  %v5736 = vsel %vm1167, %v4238, %v4701
  %v5738 = vsel %vm1167, %v4183, %v4703
  %v5740 = vsel %vm1167, %v4239, %v4705
  %v5742 = vsel %vm1167, %v4185, %v4707
  %v5744 = vsel %vm1167, %v4240, %v4709
  %v5746 = vsel %vm1167, %v4187, %v4711
  %v5748 = vsel %vm1167, %v4241, %v4713
  %v5750 = vsel %vm1167, %v4189, %v4715
  %v5752 = vsel %vm1167, %v4242, %v4717
  %v5754 = vsel %vm1167, %v4191, %v4719
  %v5756 = vsel %vm1167, %v4243, %v4721
  %v5758 = vsel %vm1167, %v4193, %v4723
  %v5760 = vsel %vm1167, %v4244, %v4725
  %v5762 = vsel %vm1167, %v4195, %v4727
  %v5764 = vsel %vm1167, %v4245, %v4729
  %v5766 = vsel %vm1167, %v4199, %v4731
  %v5768 = vsel %vm1167, %v4247, %v4733
  %v5770 = vsel %vm1167, %v4201, %v4735
  %v5772 = vsel %vm1167, %v4248, %v4737
  %v5774 = vsel %vm1167, %v4203, %v4739
  %v5776 = vsel %vm1167, %v4249, %v4741
  %v5778 = vsel %vm1167, %v4205, %v4743
  %v5780 = vsel %vm1167, %v4250, %v4745
  %v5782 = vsel %vm1167, %v4207, %v4747
  %v5784 = vsel %vm1167, %v4251, %v4749
  %v5786 = vsel %vm1167, %v4209, %v4751
  %v5788 = vsel %vm1167, %v4252, %v4753
  %v5790 = vsel %vm1167, %v4211, %v4755
  %v5792 = vsel %vm1167, %v4253, %v4757
  %v5794 = vsel %vm1167, %v4213, %v4759
  %v5796 = vsel %vm1167, %v4254, %v4761
  %v5798 = vsel %vm1167, %v4215, %v4763
  %v5800 = vsel %vm1167, %v4255, %v4765
  %v5802 = vsel %vm1167, %v4217, %v4767
  %v5804 = vsel %vm1167, %v4256, %v4769
  %v5806 = vsel %vm1167, %v4219, %v4771
  %v5808 = vsel %vm1167, %v4257, %v4773
  %v5810 = vsel %vm1167, %v4221, %v4775
  %v5812 = vsel %vm1167, %v4258, %v4777
  %v5814 = vsel %vm1167, %v4223, %v4779
  %v5816 = vsel %vm1167, %v4259, %v4781
  %v5818 = vsel %vm1167, %v4225, %v4783
  %v5820 = vsel %vm1167, %v4260, %v4785
  %v5822 = vsel %vm1167, %v4227, %v4787
  %v5824 = vsel %vm1167, %v4261, %v4789
  %v5827 = vsel %vm1167, %v4854, %v4950
  %v5830 = vsel %vm1167, %v4853, %v4952
  %v5833 = vsel %vm1167, %v4857, %v4954
  %v5836 = vsel %vm1167, %v4856, %v4956
  %v5839 = vsel %vm1167, %v4860, %v4958
  %v5842 = vsel %vm1167, %v4859, %v4960
  %v5845 = vsel %vm1167, %v4863, %v4962
  %v5848 = vsel %vm1167, %v4862, %v4964
  %v5851 = vsel %vm1167, %v4866, %v4966
  %v5854 = vsel %vm1167, %v4865, %v4968
  %v5857 = vsel %vm1167, %v4869, %v4970
  %v5860 = vsel %vm1167, %v4868, %v4972
  %v5863 = vsel %vm1167, %v4872, %v4974
  %v5866 = vsel %vm1167, %v4871, %v4976
  %v5869 = vsel %vm1167, %v4875, %v4978
  %v5872 = vsel %vm1167, %v4874, %v4980
  %v5875 = vsel %vm1167, %v4878, %v4982
  %v5878 = vsel %vm1167, %v4877, %v4984
  %v5881 = vsel %vm1167, %v4881, %v4986
  %v5884 = vsel %vm1167, %v4880, %v4988
  %v5887 = vsel %vm1167, %v4884, %v4990
  %v5890 = vsel %vm1167, %v4883, %v4992
  %v5893 = vsel %vm1167, %v4887, %v4994
  %v5896 = vsel %vm1167, %v4886, %v4996
  %v5899 = vsel %vm1167, %v4890, %v4998
  %v5902 = vsel %vm1167, %v4889, %v5000
  %v5905 = vsel %vm1167, %v4893, %v5002
  %v5908 = vsel %vm1167, %v4892, %v5004
  %v5911 = vsel %vm1167, %v4896, %v5006
  %v5914 = vsel %vm1167, %v4895, %v5008
  %v5917 = vsel %vm1167, %v4899, %v5010
  %v5920 = vsel %vm1167, %v4898, %v5012
  %v5922 = vsel %vm1167, %v4854, %v5014
  %v5924 = vsel %vm1167, %v4853, %v5016
  %v5927 = vsel %vm1167, %v4902, %v5018
  %v5930 = vsel %vm1167, %v4901, %v5020
  %v5933 = vsel %vm1167, %v4905, %v5022
  %v5936 = vsel %vm1167, %v4904, %v5024
  %v5939 = vsel %vm1167, %v4908, %v5026
  %v5942 = vsel %vm1167, %v4907, %v5028
  %v5945 = vsel %vm1167, %v4911, %v5030
  %v5948 = vsel %vm1167, %v4910, %v5032
  %v5951 = vsel %vm1167, %v4914, %v5034
  %v5954 = vsel %vm1167, %v4913, %v5036
  %v5957 = vsel %vm1167, %v4917, %v5038
  %v5960 = vsel %vm1167, %v4916, %v5040
  %v5963 = vsel %vm1167, %v4920, %v5042
  %v5966 = vsel %vm1167, %v4919, %v5044
  %v5969 = vsel %vm1167, %v4923, %v5046
  %v5972 = vsel %vm1167, %v4922, %v5048
  %v5975 = vsel %vm1167, %v4926, %v5050
  %v5978 = vsel %vm1167, %v4925, %v5052
  %v5981 = vsel %vm1167, %v4929, %v5054
  %v5984 = vsel %vm1167, %v4928, %v5056
  %v5987 = vsel %vm1167, %v4932, %v5058
  %v5990 = vsel %vm1167, %v4931, %v5060
  %v5993 = vsel %vm1167, %v4935, %v5062
  %v5996 = vsel %vm1167, %v4934, %v5064
  %v5999 = vsel %vm1167, %v4938, %v5066
  %v6002 = vsel %vm1167, %v4937, %v5068
  %v6005 = vsel %vm1167, %v4941, %v5070
  %v6008 = vsel %vm1167, %v4940, %v5072
  %v6011 = vsel %vm1167, %v4944, %v5074
  %v6014 = vsel %vm1167, %v4943, %v5076
  %v6017 = vsel %vm1167, %v4285, %v5110
  %v6020 = vsel %vm1167, %v4288, %v5112
  %v6023 = vsel %vm1167, %v4298, %v5114
  %v6026 = vsel %vm1167, %v4301, %v5116
  %v6029 = vsel %vm1167, %v4311, %v5118
  %v6032 = vsel %vm1167, %v4314, %v5120
  %v6035 = vsel %vm1167, %v4324, %v5122
  %v6038 = vsel %vm1167, %v4327, %v5124
  %v6041 = vsel %vm1167, %v4337, %v5126
  %v6044 = vsel %vm1167, %v4340, %v5128
  %v6047 = vsel %vm1167, %v4350, %v5130
  %v6050 = vsel %vm1167, %v4353, %v5132
  %v6053 = vsel %vm1167, %v4363, %v5134
  %v6056 = vsel %vm1167, %v4366, %v5136
  %v6059 = vsel %vm1167, %v4376, %v5138
  %v6062 = vsel %vm1167, %v4379, %v5140
  %v6065 = vsel %vm1167, %v4389, %v5142
  %v6068 = vsel %vm1167, %v4392, %v5144
  %v6071 = vsel %vm1167, %v4402, %v5146
  %v6074 = vsel %vm1167, %v4405, %v5148
  %v6077 = vsel %vm1167, %v4415, %v5150
  %v6080 = vsel %vm1167, %v4418, %v5152
  %v6083 = vsel %vm1167, %v4428, %v5154
  %v6086 = vsel %vm1167, %v4431, %v5156
  %v6089 = vsel %vm1167, %v4441, %v5158
  %v6092 = vsel %vm1167, %v4444, %v5160
  %v6095 = vsel %vm1167, %v4454, %v5162
  %v6098 = vsel %vm1167, %v4457, %v5164
  %v6101 = vsel %vm1167, %v4467, %v5166
  %v6104 = vsel %vm1167, %v4470, %v5168
  %v6107 = vsel %vm1167, %v5086, %v5170
  %v6110 = vsel %vm1167, %v5089, %v5172
  %v6113 = vsel %vm1167, %v4480, %v5174
  %v6116 = vsel %vm1167, %v4483, %v5176
  %v6119 = vsel %vm1167, %v4493, %v5178
  %v6122 = vsel %vm1167, %v4496, %v5180
  %v6125 = vsel %vm1167, %v4506, %v5182
  %v6128 = vsel %vm1167, %v4509, %v5184
  %v6131 = vsel %vm1167, %v4519, %v5186
  %v6134 = vsel %vm1167, %v4522, %v5188
  %v6137 = vsel %vm1167, %v4532, %v5190
  %v6140 = vsel %vm1167, %v4535, %v5192
  %v6143 = vsel %vm1167, %v4545, %v5194
  %v6146 = vsel %vm1167, %v4548, %v5196
  %v6149 = vsel %vm1167, %v4558, %v5198
  %v6152 = vsel %vm1167, %v4561, %v5200
  %v6155 = vsel %vm1167, %v4571, %v5202
  %v6158 = vsel %vm1167, %v4574, %v5204
  %v6161 = vsel %vm1167, %v4584, %v5206
  %v6164 = vsel %vm1167, %v4587, %v5208
  %v6167 = vsel %vm1167, %v4597, %v5210
  %v6170 = vsel %vm1167, %v4600, %v5212
  %v6173 = vsel %vm1167, %v4610, %v5214
  %v6176 = vsel %vm1167, %v4613, %v5216
  %v6179 = vsel %vm1167, %v4623, %v5218
  %v6182 = vsel %vm1167, %v4626, %v5220
  %v6185 = vsel %vm1167, %v4636, %v5222
  %v6188 = vsel %vm1167, %v4639, %v5224
  %v6191 = vsel %vm1167, %v4649, %v5226
  %v6194 = vsel %vm1167, %v4652, %v5228
  %v6197 = vsel %vm1167, %v4662, %v5230
  %v6200 = vsel %vm1167, %v4665, %v5232
  %v6203 = vsel %vm1167, %v5099, %v5234
  %v6206 = vsel %vm1167, %v5102, %v5236
  %v6208 = vsel %vm1167, %v4197, %v5238
  %v6210 = vsel %vm1167, %v4246, %v5240
  %v6212 = vsel %vm1167, %v4229, %v5242
  %v6214 = vsel %vm1167, %v4262, %v5244
  %v6216 = vsel %vm1167, %v4860, %v5246
  %v6218 = vsel %vm1167, %v4859, %v5248
  %v6219 = vsel %vm1167, %v4863, %v5246
  %v6220 = vsel %vm1167, %v4862, %v5248
  %v6221 = vsel %vm1167, %v4866, %v5246
  %v6222 = vsel %vm1167, %v4865, %v5248
  %v6224 = vsel %vm1167, %v4869, %v5249
  %v6226 = vsel %vm1167, %v4868, %v5251
  %v6228 = vsel %vm1167, %v4872, %v5252
  %v6230 = vsel %vm1167, %v4871, %v5254
  %v6232 = vsel %vm1167, %v4875, %v5255
  %v6234 = vsel %vm1167, %v4874, %v5257
  %v6236 = vsel %vm1167, %v4878, %v5258
  %v6238 = vsel %vm1167, %v4877, %v5260
  %v6240 = vsel %vm1167, %v4881, %v5261
  %v6242 = vsel %vm1167, %v4880, %v5263
  %v6244 = vsel %vm1167, %v4884, %v5264
  %v6246 = vsel %vm1167, %v4883, %v5266
  %v6248 = vsel %vm1167, %v4887, %v5267
  %v6250 = vsel %vm1167, %v4886, %v5269
  %v6252 = vsel %vm1167, %v4890, %v5270
  %v6254 = vsel %vm1167, %v4889, %v5272
  %v6256 = vsel %vm1167, %v4893, %v5273
  %v6258 = vsel %vm1167, %v4892, %v5275
  %v6260 = vsel %vm1167, %v4896, %v5276
  %v6262 = vsel %vm1167, %v4895, %v5278
  %v6264 = vsel %vm1167, %v4899, %v5279
  %v6266 = vsel %vm1167, %v4898, %v5281
  %v6269 = vsel %vm1167, %v5105, %v5282
  %v6272 = vsel %vm1167, %v5104, %v5284
  %v6274 = vsel %vm1167, %v4854, %v5285
  %v6276 = vsel %vm1167, %v4853, %v5287
  %v6277 = vsel %vm1167, %v4905, %v5246
  %v6278 = vsel %vm1167, %v4904, %v5248
  %v6279 = vsel %vm1167, %v4908, %v5246
  %v6280 = vsel %vm1167, %v4907, %v5248
  %v6281 = vsel %vm1167, %v4911, %v5246
  %v6282 = vsel %vm1167, %v4910, %v5248
  %v6284 = vsel %vm1167, %v4914, %v5288
  %v6286 = vsel %vm1167, %v4913, %v5290
  %v6288 = vsel %vm1167, %v4917, %v5291
  %v6290 = vsel %vm1167, %v4916, %v5293
  %v6292 = vsel %vm1167, %v4920, %v5294
  %v6294 = vsel %vm1167, %v4919, %v5296
  %v6296 = vsel %vm1167, %v4923, %v5297
  %v6298 = vsel %vm1167, %v4922, %v5299
  %v6300 = vsel %vm1167, %v4926, %v5300
  %v6302 = vsel %vm1167, %v4925, %v5302
  %v6304 = vsel %vm1167, %v4929, %v5303
  %v6306 = vsel %vm1167, %v4928, %v5305
  %v6308 = vsel %vm1167, %v4932, %v5306
  %v6310 = vsel %vm1167, %v4931, %v5308
  %v6312 = vsel %vm1167, %v4935, %v5309
  %v6314 = vsel %vm1167, %v4934, %v5311
  %v6316 = vsel %vm1167, %v4938, %v5312
  %v6318 = vsel %vm1167, %v4937, %v5314
  %v6320 = vsel %vm1167, %v4941, %v5315
  %v6322 = vsel %vm1167, %v4940, %v5317
  %v6324 = vsel %vm1167, %v4944, %v5318
  %v6326 = vsel %vm1167, %v4943, %v5320
  %v6329 = vsel %vm1167, %v5108, %v5321
  %v6332 = vsel %vm1167, %v5107, %v5323
  %v6334 = vsel %vm1167, %v4854, %v5324
  %v6336 = vsel %vm1167, %v4853, %v5326
  %v6338 = vsel %vm1167, %v4667, %v5330
  %v6340 = vsel %vm1167, %v4669, %v5329
  %v6342 = vsel %vm1167, %v4671, %v5333
  %v6344 = vsel %vm1167, %v4673, %v5332
  %v6346 = vsel %vm1167, %v4675, %v5336
  %v6348 = vsel %vm1167, %v4677, %v5335
  %v6350 = vsel %vm1167, %v4679, %v5339
  %v6352 = vsel %vm1167, %v4681, %v5338
  %v6354 = vsel %vm1167, %v4683, %v5342
  %v6356 = vsel %vm1167, %v4685, %v5341
  %v6358 = vsel %vm1167, %v4687, %v5345
  %v6360 = vsel %vm1167, %v4689, %v5344
  %v6362 = vsel %vm1167, %v4691, %v5348
  %v6364 = vsel %vm1167, %v4693, %v5347
  %v6366 = vsel %vm1167, %v4695, %v5351
  %v6368 = vsel %vm1167, %v4697, %v5350
  %v6370 = vsel %vm1167, %v4699, %v5354
  %v6372 = vsel %vm1167, %v4701, %v5353
  %v6374 = vsel %vm1167, %v4703, %v5357
  %v6376 = vsel %vm1167, %v4705, %v5356
  %v6378 = vsel %vm1167, %v4707, %v5360
  %v6380 = vsel %vm1167, %v4709, %v5359
  %v6382 = vsel %vm1167, %v4711, %v5363
  %v6384 = vsel %vm1167, %v4713, %v5362
  %v6386 = vsel %vm1167, %v4715, %v5366
  %v6388 = vsel %vm1167, %v4717, %v5365
  %v6390 = vsel %vm1167, %v4719, %v5369
  %v6392 = vsel %vm1167, %v4721, %v5368
  %v6394 = vsel %vm1167, %v4731, %v5372
  %v6396 = vsel %vm1167, %v4733, %v5371
  %v6398 = vsel %vm1167, %v4735, %v5375
  %v6400 = vsel %vm1167, %v4737, %v5374
  %v6402 = vsel %vm1167, %v4739, %v5378
  %v6404 = vsel %vm1167, %v4741, %v5377
  %v6406 = vsel %vm1167, %v4743, %v5381
  %v6408 = vsel %vm1167, %v4745, %v5380
  %v6410 = vsel %vm1167, %v4747, %v5384
  %v6412 = vsel %vm1167, %v4749, %v5383
  %v6414 = vsel %vm1167, %v4751, %v5387
  %v6416 = vsel %vm1167, %v4753, %v5386
  %v6418 = vsel %vm1167, %v4755, %v5390
  %v6420 = vsel %vm1167, %v4757, %v5389
  %v6422 = vsel %vm1167, %v4759, %v5393
  %v6424 = vsel %vm1167, %v4761, %v5392
  %v6426 = vsel %vm1167, %v4763, %v5396
  %v6428 = vsel %vm1167, %v4765, %v5395
  %v6430 = vsel %vm1167, %v4767, %v5399
  %v6432 = vsel %vm1167, %v4769, %v5398
  %v6434 = vsel %vm1167, %v4771, %v5402
  %v6436 = vsel %vm1167, %v4773, %v5401
  %v6438 = vsel %vm1167, %v4775, %v5405
  %v6440 = vsel %vm1167, %v4777, %v5404
  %v6442 = vsel %vm1167, %v4779, %v5408
  %v6444 = vsel %vm1167, %v4781, %v5407
  %v6446 = vsel %vm1167, %v5428, %v4285
  %v6448 = vsel %vm1167, %v5430, %v4288
  %v6450 = vsel %vm1167, %v5432, %v4298
  %v6452 = vsel %vm1167, %v5434, %v4301
  %v6454 = vsel %vm1167, %v5436, %v4311
  %v6456 = vsel %vm1167, %v5438, %v4314
  %v6458 = vsel %vm1167, %v5440, %v4324
  %v6460 = vsel %vm1167, %v5442, %v4327
  %v6462 = vsel %vm1167, %v5444, %v4337
  %v6464 = vsel %vm1167, %v5446, %v4340
  %v6466 = vsel %vm1167, %v5448, %v4350
  %v6468 = vsel %vm1167, %v5450, %v4353
  %v6470 = vsel %vm1167, %v5452, %v4363
  %v6472 = vsel %vm1167, %v5454, %v4366
  %v6474 = vsel %vm1167, %v5456, %v4376
  %v6476 = vsel %vm1167, %v5458, %v4379
  %v6478 = vsel %vm1167, %v5460, %v4389
  %v6480 = vsel %vm1167, %v5462, %v4392
  %v6482 = vsel %vm1167, %v5464, %v4402
  %v6484 = vsel %vm1167, %v5466, %v4405
  %v6486 = vsel %vm1167, %v5468, %v4415
  %v6488 = vsel %vm1167, %v5470, %v4418
  %v6490 = vsel %vm1167, %v5472, %v4428
  %v6492 = vsel %vm1167, %v5474, %v4431
  %v6494 = vsel %vm1167, %v5476, %v4441
  %v6496 = vsel %vm1167, %v5478, %v4444
  %v6498 = vsel %vm1167, %v5480, %v4454
  %v6500 = vsel %vm1167, %v5482, %v4457
  %v6502 = vsel %vm1167, %v5484, %v4467
  %v6504 = vsel %vm1167, %v5486, %v4470
  %v6506 = vsel %vm1167, %v5488, %v5086
  %v6508 = vsel %vm1167, %v5490, %v5089
  %v6510 = vsel %vm1167, %v5492, %v4480
  %v6512 = vsel %vm1167, %v5494, %v4483
  %v6514 = vsel %vm1167, %v5496, %v4493
  %v6516 = vsel %vm1167, %v5498, %v4496
  %v6518 = vsel %vm1167, %v5500, %v4506
  %v6520 = vsel %vm1167, %v5502, %v4509
  %v6522 = vsel %vm1167, %v5504, %v4519
  %v6524 = vsel %vm1167, %v5506, %v4522
  %v6526 = vsel %vm1167, %v5508, %v4532
  %v6528 = vsel %vm1167, %v5510, %v4535
  %v6530 = vsel %vm1167, %v5512, %v4545
  %v6532 = vsel %vm1167, %v5514, %v4548
  %v6534 = vsel %vm1167, %v5516, %v4558
  %v6536 = vsel %vm1167, %v5518, %v4561
  %v6538 = vsel %vm1167, %v5520, %v4571
  %v6540 = vsel %vm1167, %v5522, %v4574
  %v6542 = vsel %vm1167, %v5524, %v4584
  %v6544 = vsel %vm1167, %v5526, %v4587
  %v6546 = vsel %vm1167, %v5528, %v4597
  %v6548 = vsel %vm1167, %v5530, %v4600
  %v6550 = vsel %vm1167, %v5532, %v4610
  %v6552 = vsel %vm1167, %v5534, %v4613
  %v6554 = vsel %vm1167, %v5536, %v4623
  %v6556 = vsel %vm1167, %v5538, %v4626
  %v6558 = vsel %vm1167, %v5540, %v4636
  %v6560 = vsel %vm1167, %v5542, %v4639
  %v6562 = vsel %vm1167, %v5544, %v4649
  %v6564 = vsel %vm1167, %v5546, %v4652
  %v6566 = vsel %vm1167, %v5548, %v4662
  %v6568 = vsel %vm1167, %v5550, %v4665
  %v6570 = vsel %vm1167, %v5552, %v5099
  %v6572 = vsel %vm1167, %v5554, %v5102
  %v6574 = vsel %vm1167, %v5574, %v5258
  %v6576 = vsel %vm1167, %v5576, %v5260
  %v6578 = vsel %vm1167, %v5578, %v5261
  %v6580 = vsel %vm1167, %v5580, %v5263
  %v6582 = vsel %vm1167, %v5582, %v5264
  %v6584 = vsel %vm1167, %v5584, %v5266
  %v6586 = vsel %vm1167, %v5586, %v5267
  %v6588 = vsel %vm1167, %v5588, %v5269
  %v6590 = vsel %vm1167, %v5590, %v5270
  %v6592 = vsel %vm1167, %v5592, %v5272
  %v6594 = vsel %vm1167, %v5594, %v5273
  %v6596 = vsel %vm1167, %v5596, %v5275
  %v6598 = vsel %vm1167, %v5598, %v5276
  %v6600 = vsel %vm1167, %v5600, %v5278
  %v6602 = vsel %vm1167, %v5602, %v5279
  %v6604 = vsel %vm1167, %v5604, %v5281
  %v6606 = vsel %vm1167, %v5606, %v5282
  %v6608 = vsel %vm1167, %v5608, %v5284
  %v6610 = vsel %vm1167, %v5610, %v5285
  %v6612 = vsel %vm1167, %v5612, %v5287
  %v6615 = vsel %vm1167, %v5614, %v5409
  %v6618 = vsel %vm1167, %v5616, %v5411
  %v6621 = vsel %vm1167, %v5618, %v5412
  %v6624 = vsel %vm1167, %v5620, %v5414
  %v6627 = vsel %vm1167, %v5622, %v5415
  %v6630 = vsel %vm1167, %v5624, %v5417
  %v6632 = vsel %vm1167, %v5626, %v5246
  %v6634 = vsel %vm1167, %v5628, %v5248
  %v6636 = vsel %vm1167, %v5630, %v5246
  %v6638 = vsel %vm1167, %v5632, %v5248
  %v6640 = vsel %vm1167, %v5634, %v5246
  %v6642 = vsel %vm1167, %v5636, %v5248
  %v6644 = vsel %vm1167, %v5638, %v5297
  %v6646 = vsel %vm1167, %v5640, %v5299
  %v6648 = vsel %vm1167, %v5642, %v5300
  %v6650 = vsel %vm1167, %v5644, %v5302
  %v6652 = vsel %vm1167, %v5646, %v5303
  %v6654 = vsel %vm1167, %v5648, %v5305
  %v6656 = vsel %vm1167, %v5650, %v5306
  %v6658 = vsel %vm1167, %v5652, %v5308
  %v6660 = vsel %vm1167, %v5654, %v5309
  %v6662 = vsel %vm1167, %v5656, %v5311
  %v6664 = vsel %vm1167, %v5658, %v5312
  %v6666 = vsel %vm1167, %v5660, %v5314
  %v6668 = vsel %vm1167, %v5662, %v5315
  %v6670 = vsel %vm1167, %v5664, %v5317
  %v6672 = vsel %vm1167, %v5666, %v5318
  %v6674 = vsel %vm1167, %v5668, %v5320
  %v6676 = vsel %vm1167, %v5670, %v5321
  %v6678 = vsel %vm1167, %v5672, %v5323
  %v6680 = vsel %vm1167, %v5674, %v5324
  %v6682 = vsel %vm1167, %v5676, %v5326
  %v6685 = vsel %vm1167, %v5678, %v5418
  %v6688 = vsel %vm1167, %v5680, %v5420
  %v6691 = vsel %vm1167, %v5682, %v5421
  %v6694 = vsel %vm1167, %v5684, %v5423
  %v6697 = vsel %vm1167, %v5686, %v5424
  %v6700 = vsel %vm1167, %v5688, %v5426
  %v6702 = vsel %vm1167, %v5690, %v5246
  %v6704 = vsel %vm1167, %v5692, %v5248
  %v6706 = vsel %vm1167, %v5694, %v5246
  %v6708 = vsel %vm1167, %v5696, %v5248
  %v6710 = vsel %vm1167, %v5698, %v5246
  %v6712 = vsel %vm1167, %v5700, %v5248
  %6713 = vrot.lane.b32.xlu0 %v4165, 64
  %v6714 = vpop.permute.xlu0 %6713
  %6715 = vrot.lane.b32.xlu0 %v4230, 64
  %v6716 = vpop.permute.xlu0 %6715
  %vm6717 = vsmask.f32 6400
  %v6718 = vrot.slane %v4315, 1
  %v6719 = vrot.slane %v4317, 2
  %v6720 = vor.u32 %v6718, %v6719
  %v6721 = vrot.slane %v4325, 1
  %v6722 = vrot.slane %v4321, 2
  %v6723 = vor.u32 %v6721, %v6722
  %v6724 = vsel %vm6717, %v6720, %v6723
  %v6725 = vrot.slane %v4328, 1
  %v6726 = vrot.slane %v4330, 2
  %v6727 = vor.u32 %v6725, %v6726
  %v6728 = vrot.slane %v4338, 1
  %v6729 = vrot.slane %v4334, 2
  %v6730 = vor.u32 %v6728, %v6729
  %v6731 = vsel %vm6717, %v6727, %v6730
  %v6732 = vrot.slane %v4341, 1
  %v6733 = vrot.slane %v4343, 2
  %v6734 = vor.u32 %v6732, %v6733
  %v6735 = vrot.slane %v4351, 1
  %v6736 = vrot.slane %v4347, 2
  %v6737 = vor.u32 %v6735, %v6736
  %v6738 = vsel %vm6717, %v6734, %v6737
  %v6739 = vrot.slane %v4354, 1
  %v6740 = vrot.slane %v4356, 2
  %v6741 = vor.u32 %v6739, %v6740
  %v6742 = vrot.slane %v4364, 1
  %v6743 = vrot.slane %v4360, 2
  %v6744 = vor.u32 %v6742, %v6743
  %v6745 = vsel %vm6717, %v6741, %v6744
  %v6746 = vrot.slane %v4367, 1
  %v6747 = vrot.slane %v4369, 2
  %v6748 = vor.u32 %v6746, %v6747
  %v6749 = vrot.slane %v4377, 1
  %v6750 = vrot.slane %v4373, 2
  %v6751 = vor.u32 %v6749, %v6750
  %v6752 = vsel %vm6717, %v6748, %v6751
  %v6753 = vrot.slane %v4380, 1
  %v6754 = vrot.slane %v4382, 2
  %v6755 = vor.u32 %v6753, %v6754
  %v6756 = vrot.slane %v4390, 1
  %v6757 = vrot.slane %v4386, 2
  %v6758 = vor.u32 %v6756, %v6757
  %v6759 = vsel %vm6717, %v6755, %v6758
  %v6760 = vrot.slane %v4393, 1
  %v6761 = vrot.slane %v4395, 2
  %v6762 = vor.u32 %v6760, %v6761
  %v6763 = vrot.slane %v4403, 1
  %v6764 = vrot.slane %v4399, 2
  %v6765 = vor.u32 %v6763, %v6764
  %v6766 = vsel %vm6717, %v6762, %v6765
  %v6767 = vrot.slane %v4406, 1
  %v6768 = vrot.slane %v4408, 2
  %v6769 = vor.u32 %v6767, %v6768
  %v6770 = vrot.slane %v4416, 1
  %v6771 = vrot.slane %v4412, 2
  %v6772 = vor.u32 %v6770, %v6771
  %v6773 = vsel %vm6717, %v6769, %v6772
  %v6774 = vrot.slane %v4419, 1
  %v6775 = vrot.slane %v4421, 2
  %v6776 = vor.u32 %v6774, %v6775
  %v6777 = vrot.slane %v4429, 1
  %v6778 = vrot.slane %v4425, 2
  %v6779 = vor.u32 %v6777, %v6778
  %v6780 = vsel %vm6717, %v6776, %v6779
  %v6781 = vrot.slane %v4432, 1
  %v6782 = vrot.slane %v4434, 2
  %v6783 = vor.u32 %v6781, %v6782
  %v6784 = vrot.slane %v4442, 1
  %v6785 = vrot.slane %v4438, 2
  %v6786 = vor.u32 %v6784, %v6785
  %v6787 = vsel %vm6717, %v6783, %v6786
  %v6788 = vrot.slane %v4445, 1
  %v6789 = vrot.slane %v4447, 2
  %v6790 = vor.u32 %v6788, %v6789
  %v6791 = vrot.slane %v4455, 1
  %v6792 = vrot.slane %v4451, 2
  %v6793 = vor.u32 %v6791, %v6792
  %v6794 = vsel %vm6717, %v6790, %v6793
  %v6795 = vrot.slane %v4458, 1
  %v6796 = vrot.slane %v4460, 2
  %v6797 = vor.u32 %v6795, %v6796
  %v6798 = vrot.slane %v4468, 1
  %v6799 = vrot.slane %v4464, 2
  %v6800 = vor.u32 %v6798, %v6799
  %v6801 = vsel %vm6717, %v6797, %v6800
  %v6802 = vrot.slane %v5077, 1
  %v6803 = vrot.slane %v5079, 2
  %v6804 = vor.u32 %v6802, %v6803
  %v6805 = vrot.slane %v5087, 1
  %v6806 = vrot.slane %v5083, 2
  %v6807 = vor.u32 %v6805, %v6806
  %v6808 = vsel %vm6717, %v6804, %v6807
  %v6809 = vrot.slane %v4263, 1
  %v6810 = vrot.slane %v4265, 2
  %v6811 = vor.u32 %v6809, %v6810
  %v6812 = vrot.slane %v4273, 1
  %v6813 = vrot.slane %v4269, 2
  %v6814 = vor.u32 %v6812, %v6813
  %v6815 = vsel %vm6717, %v6811, %v6814
  %v6816 = vrot.slane %v4510, 1
  %v6817 = vrot.slane %v4512, 2
  %v6818 = vor.u32 %v6816, %v6817
  %v6819 = vrot.slane %v4520, 1
  %v6820 = vrot.slane %v4516, 2
  %v6821 = vor.u32 %v6819, %v6820
  %v6822 = vsel %vm6717, %v6818, %v6821
  %v6823 = vrot.slane %v4523, 1
  %v6824 = vrot.slane %v4525, 2
  %v6825 = vor.u32 %v6823, %v6824
  %v6826 = vrot.slane %v4533, 1
  %v6827 = vrot.slane %v4529, 2
  %v6828 = vor.u32 %v6826, %v6827
  %v6829 = vsel %vm6717, %v6825, %v6828
  %v6830 = vrot.slane %v4536, 1
  %v6831 = vrot.slane %v4538, 2
  %v6832 = vor.u32 %v6830, %v6831
  %v6833 = vrot.slane %v4546, 1
  %v6834 = vrot.slane %v4542, 2
  %v6835 = vor.u32 %v6833, %v6834
  %v6836 = vsel %vm6717, %v6832, %v6835
  %v6837 = vrot.slane %v4549, 1
  %v6838 = vrot.slane %v4551, 2
  %v6839 = vor.u32 %v6837, %v6838
  %v6840 = vrot.slane %v4559, 1
  %v6841 = vrot.slane %v4555, 2
  %v6842 = vor.u32 %v6840, %v6841
  %v6843 = vsel %vm6717, %v6839, %v6842
  %v6844 = vrot.slane %v4562, 1
  %v6845 = vrot.slane %v4564, 2
  %v6846 = vor.u32 %v6844, %v6845
  %v6847 = vrot.slane %v4572, 1
  %v6848 = vrot.slane %v4568, 2
  %v6849 = vor.u32 %v6847, %v6848
  %v6850 = vsel %vm6717, %v6846, %v6849
  %v6851 = vrot.slane %v4575, 1
  %v6852 = vrot.slane %v4577, 2
  %v6853 = vor.u32 %v6851, %v6852
  %v6854 = vrot.slane %v4585, 1
  %v6855 = vrot.slane %v4581, 2
  %v6856 = vor.u32 %v6854, %v6855
  %v6857 = vsel %vm6717, %v6853, %v6856
  %v6858 = vrot.slane %v4588, 1
  %v6859 = vrot.slane %v4590, 2
  %v6860 = vor.u32 %v6858, %v6859
  %v6861 = vrot.slane %v4598, 1
  %v6862 = vrot.slane %v4594, 2
  %v6863 = vor.u32 %v6861, %v6862
  %v6864 = vsel %vm6717, %v6860, %v6863
  %v6865 = vrot.slane %v4601, 1
  %v6866 = vrot.slane %v4603, 2
  %v6867 = vor.u32 %v6865, %v6866
  %v6868 = vrot.slane %v4611, 1
  %v6869 = vrot.slane %v4607, 2
  %v6870 = vor.u32 %v6868, %v6869
  %v6871 = vsel %vm6717, %v6867, %v6870
  %v6872 = vrot.slane %v4614, 1
  %v6873 = vrot.slane %v4616, 2
  %v6874 = vor.u32 %v6872, %v6873
  %v6875 = vrot.slane %v4624, 1
  %v6876 = vrot.slane %v4620, 2
  %v6877 = vor.u32 %v6875, %v6876
  %v6878 = vsel %vm6717, %v6874, %v6877
  %v6879 = vrot.slane %v4627, 1
  %v6880 = vrot.slane %v4629, 2
  %v6881 = vor.u32 %v6879, %v6880
  %v6882 = vrot.slane %v4637, 1
  %v6883 = vrot.slane %v4633, 2
  %v6884 = vor.u32 %v6882, %v6883
  %v6885 = vsel %vm6717, %v6881, %v6884
  %v6886 = vrot.slane %v4640, 1
  %v6887 = vrot.slane %v4642, 2
  %v6888 = vor.u32 %v6886, %v6887
  %v6889 = vrot.slane %v4650, 1
  %v6890 = vrot.slane %v4646, 2
  %v6891 = vor.u32 %v6889, %v6890
  %v6892 = vsel %vm6717, %v6888, %v6891
  %v6893 = vrot.slane %v4653, 1
  %v6894 = vrot.slane %v4655, 2
  %v6895 = vor.u32 %v6893, %v6894
  %v6896 = vrot.slane %v4663, 1
  %v6897 = vrot.slane %v4659, 2
  %v6898 = vor.u32 %v6896, %v6897
  %v6899 = vsel %vm6717, %v6895, %v6898
  %v6900 = vrot.slane %v5090, 1
  %v6901 = vrot.slane %v5092, 2
  %v6902 = vor.u32 %v6900, %v6901
  %v6903 = vrot.slane %v5100, 1
  %v6904 = vrot.slane %v5096, 2
  %v6905 = vor.u32 %v6903, %v6904
  %v6906 = vsel %vm6717, %v6902, %v6905
  %v6908 = vsel %vm1167, %v4962, %v6724
  %v6910 = vsel %vm1167, %v4964, %v6723
  %v6912 = vsel %vm1167, %v4966, %v6731
  %v6914 = vsel %vm1167, %v4968, %v6730
  %v6916 = vsel %vm1167, %v4970, %v6738
  %v6918 = vsel %vm1167, %v4972, %v6737
  %v6920 = vsel %vm1167, %v4974, %v6745
  %v6922 = vsel %vm1167, %v4976, %v6744
  %v6924 = vsel %vm1167, %v4978, %v6752
  %v6926 = vsel %vm1167, %v4980, %v6751
  %v6928 = vsel %vm1167, %v4982, %v6759
  %v6930 = vsel %vm1167, %v4984, %v6758
  %v6932 = vsel %vm1167, %v4986, %v6766
  %v6934 = vsel %vm1167, %v4988, %v6765
  %v6936 = vsel %vm1167, %v4990, %v6773
  %v6938 = vsel %vm1167, %v4992, %v6772
  %v6940 = vsel %vm1167, %v4994, %v6780
  %v6942 = vsel %vm1167, %v4996, %v6779
  %v6944 = vsel %vm1167, %v4998, %v6787
  %v6946 = vsel %vm1167, %v5000, %v6786
  %v6948 = vsel %vm1167, %v5002, %v6794
  %v6950 = vsel %vm1167, %v5004, %v6793
  %v6952 = vsel %vm1167, %v5006, %v6801
  %v6954 = vsel %vm1167, %v5008, %v6800
  %v6956 = vsel %vm1167, %v5010, %v6808
  %v6958 = vsel %vm1167, %v5012, %v6807
  %v6961 = vsel %vm1167, %v6714, %v6815
  %v6964 = vsel %vm1167, %v6716, %v6814
  %v6966 = vsel %vm1167, %v5026, %v6822
  %v6968 = vsel %vm1167, %v5028, %v6821
  %v6970 = vsel %vm1167, %v5030, %v6829
  %v6972 = vsel %vm1167, %v5032, %v6828
  %v6974 = vsel %vm1167, %v5034, %v6836
  %v6976 = vsel %vm1167, %v5036, %v6835
  %v6978 = vsel %vm1167, %v5038, %v6843
  %v6980 = vsel %vm1167, %v5040, %v6842
  %v6982 = vsel %vm1167, %v5042, %v6850
  %v6984 = vsel %vm1167, %v5044, %v6849
  %v6986 = vsel %vm1167, %v5046, %v6857
  %v6988 = vsel %vm1167, %v5048, %v6856
  %v6990 = vsel %vm1167, %v5050, %v6864
  %v6992 = vsel %vm1167, %v5052, %v6863
  %v6994 = vsel %vm1167, %v5054, %v6871
  %v6996 = vsel %vm1167, %v5056, %v6870
  %v6998 = vsel %vm1167, %v5058, %v6878
  %v7000 = vsel %vm1167, %v5060, %v6877
  %v7002 = vsel %vm1167, %v5062, %v6885
  %v7004 = vsel %vm1167, %v5064, %v6884
  %v7006 = vsel %vm1167, %v5066, %v6892
  %v7008 = vsel %vm1167, %v5068, %v6891
  %v7010 = vsel %vm1167, %v5070, %v6899
  %v7012 = vsel %vm1167, %v5072, %v6898
  %v7014 = vsel %vm1167, %v5074, %v6906
  %v7016 = vsel %vm1167, %v5076, %v6905
  %v7017 = vshrl.u32 %v6908, 16
  %v7019 = vshll.u32 %v6908, 16
  %v7021 = vrot.slane %v7019, 1
  %v7022 = vor.u32 %v7017, %v7021
  %v7023 = vshll.u32 %v6910, 16
  %v7025 = vrot.slane %v7023, 1
  %v7026 = vsel %vm393, %v7022, %v7025
  %v7027 = vshrl.u32 %v6910, 16
  %v7029 = vor.u32 %v7027, %v7025
  %v7030 = vshrl.u32 %v6912, 16
  %v7032 = vshll.u32 %v6912, 16
  %v7034 = vrot.slane %v7032, 1
  %v7035 = vor.u32 %v7030, %v7034
  %v7036 = vshll.u32 %v6914, 16
  %v7038 = vrot.slane %v7036, 1
  %v7039 = vsel %vm393, %v7035, %v7038
  %v7040 = vshrl.u32 %v6914, 16
  %v7042 = vor.u32 %v7040, %v7038
  %v7043 = vshrl.u32 %v6916, 16
  %v7045 = vshll.u32 %v6916, 16
  %v7047 = vrot.slane %v7045, 1
  %v7048 = vor.u32 %v7043, %v7047
  %v7049 = vshll.u32 %v6918, 16
  %v7051 = vrot.slane %v7049, 1
  %v7052 = vsel %vm393, %v7048, %v7051
  %v7053 = vshrl.u32 %v6918, 16
  %v7055 = vor.u32 %v7053, %v7051
  %v7056 = vshrl.u32 %v6920, 16
  %v7058 = vshll.u32 %v6920, 16
  %v7060 = vrot.slane %v7058, 1
  %v7061 = vor.u32 %v7056, %v7060
  %v7062 = vshll.u32 %v6922, 16
  %v7064 = vrot.slane %v7062, 1
  %v7065 = vsel %vm393, %v7061, %v7064
  %v7066 = vshrl.u32 %v6922, 16
  %v7068 = vor.u32 %v7066, %v7064
  %v7069 = vshrl.u32 %v6924, 16
  %v7071 = vshll.u32 %v6924, 16
  %v7073 = vrot.slane %v7071, 1
  %v7074 = vor.u32 %v7069, %v7073
  %v7075 = vshll.u32 %v6926, 16
  %v7077 = vrot.slane %v7075, 1
  %v7078 = vsel %vm393, %v7074, %v7077
  %v7079 = vshrl.u32 %v6926, 16
  %v7081 = vor.u32 %v7079, %v7077
  %v7082 = vshrl.u32 %v6928, 16
  %v7084 = vshll.u32 %v6928, 16
  %v7086 = vrot.slane %v7084, 1
  %v7087 = vor.u32 %v7082, %v7086
  %v7088 = vshll.u32 %v6930, 16
  %v7090 = vrot.slane %v7088, 1
  %v7091 = vsel %vm393, %v7087, %v7090
  %v7092 = vshrl.u32 %v6930, 16
  %v7094 = vor.u32 %v7092, %v7090
  %v7095 = vshrl.u32 %v6932, 16
  %v7097 = vshll.u32 %v6932, 16
  %v7099 = vrot.slane %v7097, 1
  %v7100 = vor.u32 %v7095, %v7099
  %v7101 = vshll.u32 %v6934, 16
  %v7103 = vrot.slane %v7101, 1
  %v7104 = vsel %vm393, %v7100, %v7103
  %v7105 = vshrl.u32 %v6934, 16
  %v7107 = vor.u32 %v7105, %v7103
  %v7108 = vshrl.u32 %v6936, 16
  %v7110 = vshll.u32 %v6936, 16
  %v7112 = vrot.slane %v7110, 1
  %v7113 = vor.u32 %v7108, %v7112
  %v7114 = vshll.u32 %v6938, 16
  %v7116 = vrot.slane %v7114, 1
  %v7117 = vsel %vm393, %v7113, %v7116
  %v7118 = vshrl.u32 %v6938, 16
  %v7120 = vor.u32 %v7118, %v7116
  %v7121 = vshrl.u32 %v6940, 16
  %v7123 = vshll.u32 %v6940, 16
  %v7125 = vrot.slane %v7123, 1
  %v7126 = vor.u32 %v7121, %v7125
  %v7127 = vshll.u32 %v6942, 16
  %v7129 = vrot.slane %v7127, 1
  %v7130 = vsel %vm393, %v7126, %v7129
  %v7131 = vshrl.u32 %v6942, 16
  %v7133 = vor.u32 %v7131, %v7129
  %v7134 = vshrl.u32 %v6944, 16
  %v7136 = vshll.u32 %v6944, 16
  %v7138 = vrot.slane %v7136, 1
  %v7139 = vor.u32 %v7134, %v7138
  %v7140 = vshll.u32 %v6946, 16
  %v7142 = vrot.slane %v7140, 1
  %v7143 = vsel %vm393, %v7139, %v7142
  %v7144 = vshrl.u32 %v6946, 16
  %v7146 = vor.u32 %v7144, %v7142
  %v7147 = vshrl.u32 %v6948, 16
  %v7149 = vshll.u32 %v6948, 16
  %v7151 = vrot.slane %v7149, 1
  %v7152 = vor.u32 %v7147, %v7151
  %v7153 = vshll.u32 %v6950, 16
  %v7155 = vrot.slane %v7153, 1
  %v7156 = vsel %vm393, %v7152, %v7155
  %v7157 = vshrl.u32 %v6950, 16
  %v7159 = vor.u32 %v7157, %v7155
  %v7160 = vshrl.u32 %v6952, 16
  %v7162 = vshll.u32 %v6952, 16
  %v7164 = vrot.slane %v7162, 1
  %v7165 = vor.u32 %v7160, %v7164
  %v7166 = vshll.u32 %v6954, 16
  %v7168 = vrot.slane %v7166, 1
  %v7169 = vsel %vm393, %v7165, %v7168
  %v7170 = vshrl.u32 %v6954, 16
  %v7172 = vor.u32 %v7170, %v7168
  %v7173 = vshrl.u32 %v6956, 16
  %v7175 = vshll.u32 %v6956, 16
  %v7177 = vrot.slane %v7175, 1
  %v7178 = vor.u32 %v7173, %v7177
  %v7179 = vshll.u32 %v6958, 16
  %v7181 = vrot.slane %v7179, 1
  %v7182 = vsel %vm393, %v7178, %v7181
  %v7183 = vshrl.u32 %v6958, 16
  %v7185 = vor.u32 %v7183, %v7181
  %v7186 = vshrl.u32 %v6961, 16
  %v7188 = vshll.u32 %v6961, 16
  %v7190 = vrot.slane %v7188, 1
  %v7191 = vor.u32 %v7186, %v7190
  %v7192 = vshll.u32 %v6964, 16
  %v7194 = vrot.slane %v7192, 1
  %v7195 = vsel %vm393, %v7191, %v7194
  %v7196 = vshrl.u32 %v6964, 16
  %v7198 = vor.u32 %v7196, %v7194
  %v7199 = vshrl.u32 %v6966, 16
  %v7201 = vshll.u32 %v6966, 16
  %v7203 = vrot.slane %v7201, 1
  %v7204 = vor.u32 %v7199, %v7203
  %v7205 = vshll.u32 %v6968, 16
  %v7207 = vrot.slane %v7205, 1
  %v7208 = vsel %vm393, %v7204, %v7207
  %v7209 = vshrl.u32 %v6968, 16
  %v7211 = vor.u32 %v7209, %v7207
  %v7212 = vshrl.u32 %v6970, 16
  %v7214 = vshll.u32 %v6970, 16
  %v7216 = vrot.slane %v7214, 1
  %v7217 = vor.u32 %v7212, %v7216
  %v7218 = vshll.u32 %v6972, 16
  %v7220 = vrot.slane %v7218, 1
  %v7221 = vsel %vm393, %v7217, %v7220
  %v7222 = vshrl.u32 %v6972, 16
  %v7224 = vor.u32 %v7222, %v7220
  %v7225 = vshrl.u32 %v6974, 16
  %v7227 = vshll.u32 %v6974, 16
  %v7229 = vrot.slane %v7227, 1
  %v7230 = vor.u32 %v7225, %v7229
  %v7231 = vshll.u32 %v6976, 16
  %v7233 = vrot.slane %v7231, 1
  %v7234 = vsel %vm393, %v7230, %v7233
  %v7235 = vshrl.u32 %v6976, 16
  %v7237 = vor.u32 %v7235, %v7233
  %v7238 = vshrl.u32 %v6978, 16
  %v7240 = vshll.u32 %v6978, 16
  %v7242 = vrot.slane %v7240, 1
  %v7243 = vor.u32 %v7238, %v7242
  %v7244 = vshll.u32 %v6980, 16
  %v7246 = vrot.slane %v7244, 1
  %v7247 = vsel %vm393, %v7243, %v7246
  %v7248 = vshrl.u32 %v6980, 16
  %v7250 = vor.u32 %v7248, %v7246
  %v7251 = vshrl.u32 %v6982, 16
  %v7253 = vshll.u32 %v6982, 16
  %v7255 = vrot.slane %v7253, 1
  %v7256 = vor.u32 %v7251, %v7255
  %v7257 = vshll.u32 %v6984, 16
  %v7259 = vrot.slane %v7257, 1
  %v7260 = vsel %vm393, %v7256, %v7259
  %v7261 = vshrl.u32 %v6984, 16
  %v7263 = vor.u32 %v7261, %v7259
  %v7264 = vshrl.u32 %v6986, 16
  %v7266 = vshll.u32 %v6986, 16
  %v7268 = vrot.slane %v7266, 1
  %v7269 = vor.u32 %v7264, %v7268
  %v7270 = vshll.u32 %v6988, 16
  %v7272 = vrot.slane %v7270, 1
  %v7273 = vsel %vm393, %v7269, %v7272
  %v7274 = vshrl.u32 %v6988, 16
  %v7276 = vor.u32 %v7274, %v7272
  %v7277 = vshrl.u32 %v6990, 16
  %v7279 = vshll.u32 %v6990, 16
  %v7281 = vrot.slane %v7279, 1
  %v7282 = vor.u32 %v7277, %v7281
  %v7283 = vshll.u32 %v6992, 16
  %v7285 = vrot.slane %v7283, 1
  %v7286 = vsel %vm393, %v7282, %v7285
  %v7287 = vshrl.u32 %v6992, 16
  %v7289 = vor.u32 %v7287, %v7285
  %v7290 = vshrl.u32 %v6994, 16
  %v7292 = vshll.u32 %v6994, 16
  %v7294 = vrot.slane %v7292, 1
  %v7295 = vor.u32 %v7290, %v7294
  %v7296 = vshll.u32 %v6996, 16
  %v7298 = vrot.slane %v7296, 1
  %v7299 = vsel %vm393, %v7295, %v7298
  %v7300 = vshrl.u32 %v6996, 16
  %v7302 = vor.u32 %v7300, %v7298
  %v7303 = vshrl.u32 %v6998, 16
  %v7305 = vshll.u32 %v6998, 16
  %v7307 = vrot.slane %v7305, 1
  %v7308 = vor.u32 %v7303, %v7307
  %v7309 = vshll.u32 %v7000, 16
  %v7311 = vrot.slane %v7309, 1
  %v7312 = vsel %vm393, %v7308, %v7311
  %v7313 = vshrl.u32 %v7000, 16
  %v7315 = vor.u32 %v7313, %v7311
  %v7316 = vshrl.u32 %v7002, 16
  %v7318 = vshll.u32 %v7002, 16
  %v7320 = vrot.slane %v7318, 1
  %v7321 = vor.u32 %v7316, %v7320
  %v7322 = vshll.u32 %v7004, 16
  %v7324 = vrot.slane %v7322, 1
  %v7325 = vsel %vm393, %v7321, %v7324
  %v7326 = vshrl.u32 %v7004, 16
  %v7328 = vor.u32 %v7326, %v7324
  %v7329 = vshrl.u32 %v7006, 16
  %v7331 = vshll.u32 %v7006, 16
  %v7333 = vrot.slane %v7331, 1
  %v7334 = vor.u32 %v7329, %v7333
  %v7335 = vshll.u32 %v7008, 16
  %v7337 = vrot.slane %v7335, 1
  %v7338 = vsel %vm393, %v7334, %v7337
  %v7339 = vshrl.u32 %v7008, 16
  %v7341 = vor.u32 %v7339, %v7337
  %v7342 = vshrl.u32 %v7010, 16
  %v7344 = vshll.u32 %v7010, 16
  %v7346 = vrot.slane %v7344, 1
  %v7347 = vor.u32 %v7342, %v7346
  %v7348 = vshll.u32 %v7012, 16
  %v7350 = vrot.slane %v7348, 1
  %v7351 = vsel %vm393, %v7347, %v7350
  %v7352 = vshrl.u32 %v7012, 16
  %v7354 = vor.u32 %v7352, %v7350
  %v7355 = vshrl.u32 %v7014, 16
  %v7357 = vshll.u32 %v7014, 16
  %v7359 = vrot.slane %v7357, 1
  %v7360 = vor.u32 %v7355, %v7359
  %v7361 = vshll.u32 %v7016, 16
  %v7363 = vrot.slane %v7361, 1
  %v7364 = vsel %vm393, %v7360, %v7363
  %v7365 = vshrl.u32 %v7016, 16
  %v7367 = vor.u32 %v7365, %v7363
  %v7368 = vshrl.u32 %v5702, 16
  %v7370 = vrot.slane %v7368, 1
  %v7371 = vshll.u32 %v5702, 16
  %v7373 = vrot.slane %v7371, 2
  %v7374 = vor.u32 %v7370, %v7373
  %v7375 = vshrl.u32 %v5704, 16
  %v7377 = vrot.slane %v7375, 1
  %v7378 = vshll.u32 %v5704, 16
  %v7380 = vrot.slane %v7378, 2
  %v7381 = vor.u32 %v7377, %v7380
  %v7382 = vsel %vm6717, %v7374, %v7381
  %v7383 = vshrl.u32 %v5827, 16
  %v7385 = vrot.slane %v7383, 1
  %v7386 = vshll.u32 %v5827, 16
  %v7388 = vrot.slane %v7386, 2
  %v7389 = vor.u32 %v7385, %v7388
  %v7390 = vshrl.u32 %v5830, 16
  %v7392 = vrot.slane %v7390, 1
  %v7393 = vshll.u32 %v5830, 16
  %v7395 = vrot.slane %v7393, 2
  %v7396 = vor.u32 %v7392, %v7395
  %v7397 = vsel %vm6717, %v7389, %v7396
  %v7398 = vshrl.u32 %v6017, 16
  %v7400 = vrot.slane %v7398, 1
  %v7401 = vshll.u32 %v6017, 16
  %v7403 = vrot.slane %v7401, 2
  %v7404 = vor.u32 %v7400, %v7403
  %v7405 = vshrl.u32 %v6020, 16
  %v7407 = vrot.slane %v7405, 1
  %v7408 = vshll.u32 %v6020, 16
  %v7410 = vrot.slane %v7408, 2
  %v7411 = vor.u32 %v7407, %v7410
  %v7412 = vsel %vm6717, %v7404, %v7411
  %v7413 = vshrl.u32 %v5710, 16
  %v7415 = vrot.slane %v7413, 1
  %v7416 = vshll.u32 %v5710, 16
  %v7418 = vrot.slane %v7416, 2
  %v7419 = vor.u32 %v7415, %v7418
  %v7420 = vshrl.u32 %v5712, 16
  %v7422 = vrot.slane %v7420, 1
  %v7423 = vshll.u32 %v5712, 16
  %v7425 = vrot.slane %v7423, 2
  %v7426 = vor.u32 %v7422, %v7425
  %v7427 = vsel %vm6717, %v7419, %v7426
  %v7428 = vshrl.u32 %v6216, 16
  %v7430 = vrot.slane %v7428, 1
  %v7431 = vshll.u32 %v6216, 16
  %v7433 = vrot.slane %v7431, 2
  %v7434 = vor.u32 %v7430, %v7433
  %v7435 = vshrl.u32 %v6218, 16
  %v7437 = vrot.slane %v7435, 1
  %v7438 = vshll.u32 %v6218, 16
  %v7440 = vrot.slane %v7438, 2
  %v7441 = vor.u32 %v7437, %v7440
  %v7442 = vsel %vm6717, %v7434, %v7441
  %v7443 = vshrl.u32 %v6338, 16
  %v7445 = vrot.slane %v7443, 1
  %v7446 = vshll.u32 %v6338, 16
  %v7448 = vrot.slane %v7446, 2
  %v7449 = vor.u32 %v7445, %v7448
  %v7450 = vshrl.u32 %v6340, 16
  %v7452 = vrot.slane %v7450, 1
  %v7453 = vshll.u32 %v6340, 16
  %v7455 = vrot.slane %v7453, 2
  %v7456 = vor.u32 %v7452, %v7455
  %v7457 = vsel %vm6717, %v7449, %v7456
  %v7458 = vshrl.u32 %v6446, 16
  %v7460 = vrot.slane %v7458, 1
  %v7461 = vshll.u32 %v6446, 16
  %v7463 = vrot.slane %v7461, 2
  %v7464 = vor.u32 %v7460, %v7463
  %v7465 = vshrl.u32 %v6448, 16
  %v7467 = vrot.slane %v7465, 1
  %v7468 = vshll.u32 %v6448, 16
  %v7470 = vrot.slane %v7468, 2
  %v7471 = vor.u32 %v7467, %v7470
  %v7472 = vsel %vm6717, %v7464, %v7471
  %v7473 = vshrl.u32 %v6574, 16
  %v7475 = vrot.slane %v7473, 1
  %v7476 = vshll.u32 %v6574, 16
  %v7478 = vrot.slane %v7476, 2
  %v7479 = vor.u32 %v7475, %v7478
  %v7480 = vshrl.u32 %v6576, 16
  %v7482 = vrot.slane %v7480, 1
  %v7483 = vshll.u32 %v6576, 16
  %v7485 = vrot.slane %v7483, 2
  %v7486 = vor.u32 %v7482, %v7485
  %v7487 = vsel %vm6717, %v7479, %v7486
  %v7489 = vshrl.u32 %v7026, 16
  %v7491 = vrot.slane %v7489, 1
  %v7492 = vshll.u32 %v7026, 16
  %v7494 = vrot.slane %v7492, 2
  %v7495 = vor.u32 %v7491, %v7494
  %v7497 = vshrl.u32 %v7029, 16
  %v7499 = vrot.slane %v7497, 1
  %v7500 = vshll.u32 %v7029, 16
  %v7502 = vrot.slane %v7500, 2
  %v7503 = vor.u32 %v7499, %v7502
  %v7504 = vsel %vm6717, %v7495, %v7503
  %v7505 = vshrl.u32 %v5706, 16
  %v7507 = vrot.slane %v7505, 1
  %v7508 = vshll.u32 %v5706, 16
  %v7510 = vrot.slane %v7508, 2
  %v7511 = vor.u32 %v7507, %v7510
  %v7512 = vshrl.u32 %v5708, 16
  %v7514 = vrot.slane %v7512, 1
  %v7515 = vshll.u32 %v5708, 16
  %v7517 = vrot.slane %v7515, 2
  %v7518 = vor.u32 %v7514, %v7517
  %v7519 = vsel %vm6717, %v7511, %v7518
  %v7520 = vshrl.u32 %v5833, 16
  %v7522 = vrot.slane %v7520, 1
  %v7523 = vshll.u32 %v5833, 16
  %v7525 = vrot.slane %v7523, 2
  %v7526 = vor.u32 %v7522, %v7525
  %v7527 = vshrl.u32 %v5836, 16
  %v7529 = vrot.slane %v7527, 1
  %v7530 = vshll.u32 %v5836, 16
  %v7532 = vrot.slane %v7530, 2
  %v7533 = vor.u32 %v7529, %v7532
  %v7534 = vsel %vm6717, %v7526, %v7533
  %v7535 = vshrl.u32 %v6023, 16
  %v7537 = vrot.slane %v7535, 1
  %v7538 = vshll.u32 %v6023, 16
  %v7540 = vrot.slane %v7538, 2
  %v7541 = vor.u32 %v7537, %v7540
  %v7542 = vshrl.u32 %v6026, 16
  %v7544 = vrot.slane %v7542, 1
  %v7545 = vshll.u32 %v6026, 16
  %v7547 = vrot.slane %v7545, 2
  %v7548 = vor.u32 %v7544, %v7547
  %v7549 = vsel %vm6717, %v7541, %v7548
  %v7550 = vshrl.u32 %v5714, 16
  %v7552 = vrot.slane %v7550, 1
  %v7553 = vshll.u32 %v5714, 16
  %v7555 = vrot.slane %v7553, 2
  %v7556 = vor.u32 %v7552, %v7555
  %v7557 = vshrl.u32 %v5716, 16
  %v7559 = vrot.slane %v7557, 1
  %v7560 = vshll.u32 %v5716, 16
  %v7562 = vrot.slane %v7560, 2
  %v7563 = vor.u32 %v7559, %v7562
  %v7564 = vsel %vm6717, %v7556, %v7563
  %v7565 = vshrl.u32 %v6219, 16
  %v7567 = vrot.slane %v7565, 1
  %v7568 = vshll.u32 %v6219, 16
  %v7570 = vrot.slane %v7568, 2
  %v7571 = vor.u32 %v7567, %v7570
  %v7572 = vshrl.u32 %v6220, 16
  %v7574 = vrot.slane %v7572, 1
  %v7575 = vshll.u32 %v6220, 16
  %v7577 = vrot.slane %v7575, 2
  %v7578 = vor.u32 %v7574, %v7577
  %v7579 = vsel %vm6717, %v7571, %v7578
  %v7580 = vshrl.u32 %v6450, 16
  %v7582 = vrot.slane %v7580, 1
  %v7583 = vshll.u32 %v6450, 16
  %v7585 = vrot.slane %v7583, 2
  %v7586 = vor.u32 %v7582, %v7585
  %v7587 = vshrl.u32 %v6452, 16
  %v7589 = vrot.slane %v7587, 1
  %v7590 = vshll.u32 %v6452, 16
  %v7592 = vrot.slane %v7590, 2
  %v7593 = vor.u32 %v7589, %v7592
  %v7594 = vsel %vm6717, %v7586, %v7593
  %v7595 = vshrl.u32 %v6578, 16
  %v7597 = vrot.slane %v7595, 1
  %v7598 = vshll.u32 %v6578, 16
  %v7600 = vrot.slane %v7598, 2
  %v7601 = vor.u32 %v7597, %v7600
  %v7602 = vshrl.u32 %v6580, 16
  %v7604 = vrot.slane %v7602, 1
  %v7605 = vshll.u32 %v6580, 16
  %v7607 = vrot.slane %v7605, 2
  %v7608 = vor.u32 %v7604, %v7607
  %v7609 = vsel %vm6717, %v7601, %v7608
  %v7611 = vshrl.u32 %v7039, 16
  %v7613 = vrot.slane %v7611, 1
  %v7614 = vshll.u32 %v7039, 16
  %v7616 = vrot.slane %v7614, 2
  %v7617 = vor.u32 %v7613, %v7616
  %v7619 = vshrl.u32 %v7042, 16
  %v7621 = vrot.slane %v7619, 1
  %v7622 = vshll.u32 %v7042, 16
  %v7624 = vrot.slane %v7622, 2
  %v7625 = vor.u32 %v7621, %v7624
  %v7626 = vsel %vm6717, %v7617, %v7625
  %v7627 = vshrl.u32 %v5839, 16
  %v7629 = vrot.slane %v7627, 1
  %v7630 = vshll.u32 %v5839, 16
  %v7632 = vrot.slane %v7630, 2
  %v7633 = vor.u32 %v7629, %v7632
  %v7634 = vshrl.u32 %v5842, 16
  %v7636 = vrot.slane %v7634, 1
  %v7637 = vshll.u32 %v5842, 16
  %v7639 = vrot.slane %v7637, 2
  %v7640 = vor.u32 %v7636, %v7639
  %v7641 = vsel %vm6717, %v7633, %v7640
  %v7642 = vshrl.u32 %v6029, 16
  %v7644 = vrot.slane %v7642, 1
  %v7645 = vshll.u32 %v6029, 16
  %v7647 = vrot.slane %v7645, 2
  %v7648 = vor.u32 %v7644, %v7647
  %v7649 = vshrl.u32 %v6032, 16
  %v7651 = vrot.slane %v7649, 1
  %v7652 = vshll.u32 %v6032, 16
  %v7654 = vrot.slane %v7652, 2
  %v7655 = vor.u32 %v7651, %v7654
  %v7656 = vsel %vm6717, %v7648, %v7655
  %v7657 = vshrl.u32 %v5718, 16
  %v7659 = vrot.slane %v7657, 1
  %v7660 = vshll.u32 %v5718, 16
  %v7662 = vrot.slane %v7660, 2
  %v7663 = vor.u32 %v7659, %v7662
  %v7664 = vshrl.u32 %v5720, 16
  %v7666 = vrot.slane %v7664, 1
  %v7667 = vshll.u32 %v5720, 16
  %v7669 = vrot.slane %v7667, 2
  %v7670 = vor.u32 %v7666, %v7669
  %v7671 = vsel %vm6717, %v7663, %v7670
  %v7672 = vshrl.u32 %v6221, 16
  %v7674 = vrot.slane %v7672, 1
  %v7675 = vshll.u32 %v6221, 16
  %v7677 = vrot.slane %v7675, 2
  %v7678 = vor.u32 %v7674, %v7677
  %v7679 = vshrl.u32 %v6222, 16
  %v7681 = vrot.slane %v7679, 1
  %v7682 = vshll.u32 %v6222, 16
  %v7684 = vrot.slane %v7682, 2
  %v7685 = vor.u32 %v7681, %v7684
  %v7686 = vsel %vm6717, %v7678, %v7685
  %v7687 = vshrl.u32 %v6454, 16
  %v7689 = vrot.slane %v7687, 1
  %v7690 = vshll.u32 %v6454, 16
  %v7692 = vrot.slane %v7690, 2
  %v7693 = vor.u32 %v7689, %v7692
  %v7694 = vshrl.u32 %v6456, 16
  %v7696 = vrot.slane %v7694, 1
  %v7697 = vshll.u32 %v6456, 16
  %v7699 = vrot.slane %v7697, 2
  %v7700 = vor.u32 %v7696, %v7699
  %v7701 = vsel %vm6717, %v7693, %v7700
  %v7702 = vshrl.u32 %v6582, 16
  %v7704 = vrot.slane %v7702, 1
  %v7705 = vshll.u32 %v6582, 16
  %v7707 = vrot.slane %v7705, 2
  %v7708 = vor.u32 %v7704, %v7707
  %v7709 = vshrl.u32 %v6584, 16
  %v7711 = vrot.slane %v7709, 1
  %v7712 = vshll.u32 %v6584, 16
  %v7714 = vrot.slane %v7712, 2
  %v7715 = vor.u32 %v7711, %v7714
  %v7716 = vsel %vm6717, %v7708, %v7715
  %v7718 = vshrl.u32 %v7052, 16
  %v7720 = vrot.slane %v7718, 1
  %v7721 = vshll.u32 %v7052, 16
  %v7723 = vrot.slane %v7721, 2
  %v7724 = vor.u32 %v7720, %v7723
  %v7726 = vshrl.u32 %v7055, 16
  %v7728 = vrot.slane %v7726, 1
  %v7729 = vshll.u32 %v7055, 16
  %v7731 = vrot.slane %v7729, 2
  %v7732 = vor.u32 %v7728, %v7731
  %v7733 = vsel %vm6717, %v7724, %v7732
  %v7734 = vshrl.u32 %v5845, 16
  %v7736 = vrot.slane %v7734, 1
  %v7737 = vshll.u32 %v5845, 16
  %v7739 = vrot.slane %v7737, 2
  %v7740 = vor.u32 %v7736, %v7739
  %v7741 = vshrl.u32 %v5848, 16
  %v7743 = vrot.slane %v7741, 1
  %v7744 = vshll.u32 %v5848, 16
  %v7746 = vrot.slane %v7744, 2
  %v7747 = vor.u32 %v7743, %v7746
  %v7748 = vsel %vm6717, %v7740, %v7747
  %v7749 = vshrl.u32 %v6035, 16
  %v7751 = vrot.slane %v7749, 1
  %v7752 = vshll.u32 %v6035, 16
  %v7754 = vrot.slane %v7752, 2
  %v7755 = vor.u32 %v7751, %v7754
  %v7756 = vshrl.u32 %v6038, 16
  %v7758 = vrot.slane %v7756, 1
  %v7759 = vshll.u32 %v6038, 16
  %v7761 = vrot.slane %v7759, 2
  %v7762 = vor.u32 %v7758, %v7761
  %v7763 = vsel %vm6717, %v7755, %v7762
  %v7764 = vshrl.u32 %v5722, 16
  %v7766 = vrot.slane %v7764, 1
  %v7767 = vshll.u32 %v5722, 16
  %v7769 = vrot.slane %v7767, 2
  %v7770 = vor.u32 %v7766, %v7769
  %v7771 = vshrl.u32 %v5724, 16
  %v7773 = vrot.slane %v7771, 1
  %v7774 = vshll.u32 %v5724, 16
  %v7776 = vrot.slane %v7774, 2
  %v7777 = vor.u32 %v7773, %v7776
  %v7778 = vsel %vm6717, %v7770, %v7777
  %v7779 = vshrl.u32 %v6224, 16
  %v7781 = vrot.slane %v7779, 1
  %v7782 = vshll.u32 %v6224, 16
  %v7784 = vrot.slane %v7782, 2
  %v7785 = vor.u32 %v7781, %v7784
  %v7786 = vshrl.u32 %v6226, 16
  %v7788 = vrot.slane %v7786, 1
  %v7789 = vshll.u32 %v6226, 16
  %v7791 = vrot.slane %v7789, 2
  %v7792 = vor.u32 %v7788, %v7791
  %v7793 = vsel %vm6717, %v7785, %v7792
  %v7794 = vshrl.u32 %v6342, 16
  %v7796 = vrot.slane %v7794, 1
  %v7797 = vshll.u32 %v6342, 16
  %v7799 = vrot.slane %v7797, 2
  %v7800 = vor.u32 %v7796, %v7799
  %v7801 = vshrl.u32 %v6344, 16
  %v7803 = vrot.slane %v7801, 1
  %v7804 = vshll.u32 %v6344, 16
  %v7806 = vrot.slane %v7804, 2
  %v7807 = vor.u32 %v7803, %v7806
  %v7808 = vsel %vm6717, %v7800, %v7807
  %v7809 = vshrl.u32 %v6458, 16
  %v7811 = vrot.slane %v7809, 1
  %v7812 = vshll.u32 %v6458, 16
  %v7814 = vrot.slane %v7812, 2
  %v7815 = vor.u32 %v7811, %v7814
  %v7816 = vshrl.u32 %v6460, 16
  %v7818 = vrot.slane %v7816, 1
  %v7819 = vshll.u32 %v6460, 16
  %v7821 = vrot.slane %v7819, 2
  %v7822 = vor.u32 %v7818, %v7821
  %v7823 = vsel %vm6717, %v7815, %v7822
  %v7824 = vshrl.u32 %v6586, 16
  %v7826 = vrot.slane %v7824, 1
  %v7827 = vshll.u32 %v6586, 16
  %v7829 = vrot.slane %v7827, 2
  %v7830 = vor.u32 %v7826, %v7829
  %v7831 = vshrl.u32 %v6588, 16
  %v7833 = vrot.slane %v7831, 1
  %v7834 = vshll.u32 %v6588, 16
  %v7836 = vrot.slane %v7834, 2
  %v7837 = vor.u32 %v7833, %v7836
  %v7838 = vsel %vm6717, %v7830, %v7837
  %v7840 = vshrl.u32 %v7065, 16
  %v7842 = vrot.slane %v7840, 1
  %v7843 = vshll.u32 %v7065, 16
  %v7845 = vrot.slane %v7843, 2
  %v7846 = vor.u32 %v7842, %v7845
  %v7848 = vshrl.u32 %v7068, 16
  %v7850 = vrot.slane %v7848, 1
  %v7851 = vshll.u32 %v7068, 16
  %v7853 = vrot.slane %v7851, 2
  %v7854 = vor.u32 %v7850, %v7853
  %v7855 = vsel %vm6717, %v7846, %v7854
  %v7856 = vshrl.u32 %v5851, 16
  %v7858 = vrot.slane %v7856, 1
  %v7859 = vshll.u32 %v5851, 16
  %v7861 = vrot.slane %v7859, 2
  %v7862 = vor.u32 %v7858, %v7861
  %v7863 = vshrl.u32 %v5854, 16
  %v7865 = vrot.slane %v7863, 1
  %v7866 = vshll.u32 %v5854, 16
  %v7868 = vrot.slane %v7866, 2
  %v7869 = vor.u32 %v7865, %v7868
  %v7870 = vsel %vm6717, %v7862, %v7869
  %v7871 = vshrl.u32 %v6041, 16
  %v7873 = vrot.slane %v7871, 1
  %v7874 = vshll.u32 %v6041, 16
  %v7876 = vrot.slane %v7874, 2
  %v7877 = vor.u32 %v7873, %v7876
  %v7878 = vshrl.u32 %v6044, 16
  %v7880 = vrot.slane %v7878, 1
  %v7881 = vshll.u32 %v6044, 16
  %v7883 = vrot.slane %v7881, 2
  %v7884 = vor.u32 %v7880, %v7883
  %v7885 = vsel %vm6717, %v7877, %v7884
  %v7886 = vshrl.u32 %v5726, 16
  %v7888 = vrot.slane %v7886, 1
  %v7889 = vshll.u32 %v5726, 16
  %v7891 = vrot.slane %v7889, 2
  %v7892 = vor.u32 %v7888, %v7891
  %v7893 = vshrl.u32 %v5728, 16
  %v7895 = vrot.slane %v7893, 1
  %v7896 = vshll.u32 %v5728, 16
  %v7898 = vrot.slane %v7896, 2
  %v7899 = vor.u32 %v7895, %v7898
  %v7900 = vsel %vm6717, %v7892, %v7899
  %v7901 = vshrl.u32 %v6228, 16
  %v7903 = vrot.slane %v7901, 1
  %v7904 = vshll.u32 %v6228, 16
  %v7906 = vrot.slane %v7904, 2
  %v7907 = vor.u32 %v7903, %v7906
  %v7908 = vshrl.u32 %v6230, 16
  %v7910 = vrot.slane %v7908, 1
  %v7911 = vshll.u32 %v6230, 16
  %v7913 = vrot.slane %v7911, 2
  %v7914 = vor.u32 %v7910, %v7913
  %v7915 = vsel %vm6717, %v7907, %v7914
  %v7916 = vshrl.u32 %v6346, 16
  %v7918 = vrot.slane %v7916, 1
  %v7919 = vshll.u32 %v6346, 16
  %v7921 = vrot.slane %v7919, 2
  %v7922 = vor.u32 %v7918, %v7921
  %v7923 = vshrl.u32 %v6348, 16
  %v7925 = vrot.slane %v7923, 1
  %v7926 = vshll.u32 %v6348, 16
  %v7928 = vrot.slane %v7926, 2
  %v7929 = vor.u32 %v7925, %v7928
  %v7930 = vsel %vm6717, %v7922, %v7929
  %v7931 = vshrl.u32 %v6462, 16
  %v7933 = vrot.slane %v7931, 1
  %v7934 = vshll.u32 %v6462, 16
  %v7936 = vrot.slane %v7934, 2
  %v7937 = vor.u32 %v7933, %v7936
  %v7938 = vshrl.u32 %v6464, 16
  %v7940 = vrot.slane %v7938, 1
  %v7941 = vshll.u32 %v6464, 16
  %v7943 = vrot.slane %v7941, 2
  %v7944 = vor.u32 %v7940, %v7943
  %v7945 = vsel %vm6717, %v7937, %v7944
  %v7946 = vshrl.u32 %v6590, 16
  %v7948 = vrot.slane %v7946, 1
  %v7949 = vshll.u32 %v6590, 16
  %v7951 = vrot.slane %v7949, 2
  %v7952 = vor.u32 %v7948, %v7951
  %v7953 = vshrl.u32 %v6592, 16
  %v7955 = vrot.slane %v7953, 1
  %v7956 = vshll.u32 %v6592, 16
  %v7958 = vrot.slane %v7956, 2
  %v7959 = vor.u32 %v7955, %v7958
  %v7960 = vsel %vm6717, %v7952, %v7959
  %v7962 = vshrl.u32 %v7078, 16
  %v7964 = vrot.slane %v7962, 1
  %v7965 = vshll.u32 %v7078, 16
  %v7967 = vrot.slane %v7965, 2
  %v7968 = vor.u32 %v7964, %v7967
  %v7970 = vshrl.u32 %v7081, 16
  %v7972 = vrot.slane %v7970, 1
  %v7973 = vshll.u32 %v7081, 16
  %v7975 = vrot.slane %v7973, 2
  %v7976 = vor.u32 %v7972, %v7975
  %v7977 = vsel %vm6717, %v7968, %v7976
  %v7978 = vshrl.u32 %v5857, 16
  %v7980 = vrot.slane %v7978, 1
  %v7981 = vshll.u32 %v5857, 16
  %v7983 = vrot.slane %v7981, 2
  %v7984 = vor.u32 %v7980, %v7983
  %v7985 = vshrl.u32 %v5860, 16
  %v7987 = vrot.slane %v7985, 1
  %v7988 = vshll.u32 %v5860, 16
  %v7990 = vrot.slane %v7988, 2
  %v7991 = vor.u32 %v7987, %v7990
  %v7992 = vsel %vm6717, %v7984, %v7991
  %v7993 = vshrl.u32 %v6047, 16
  %v7995 = vrot.slane %v7993, 1
  %v7996 = vshll.u32 %v6047, 16
  %v7998 = vrot.slane %v7996, 2
  %v7999 = vor.u32 %v7995, %v7998
  %v8000 = vshrl.u32 %v6050, 16
  %v8002 = vrot.slane %v8000, 1
  %v8003 = vshll.u32 %v6050, 16
  %v8005 = vrot.slane %v8003, 2
  %v8006 = vor.u32 %v8002, %v8005
  %v8007 = vsel %vm6717, %v7999, %v8006
  %v8008 = vshrl.u32 %v5730, 16
  %v8010 = vrot.slane %v8008, 1
  %v8011 = vshll.u32 %v5730, 16
  %v8013 = vrot.slane %v8011, 2
  %v8014 = vor.u32 %v8010, %v8013
  %v8015 = vshrl.u32 %v5732, 16
  %v8017 = vrot.slane %v8015, 1
  %v8018 = vshll.u32 %v5732, 16
  %v8020 = vrot.slane %v8018, 2
  %v8021 = vor.u32 %v8017, %v8020
  %v8022 = vsel %vm6717, %v8014, %v8021
  %v8023 = vshrl.u32 %v6232, 16
  %v8025 = vrot.slane %v8023, 1
  %v8026 = vshll.u32 %v6232, 16
  %v8028 = vrot.slane %v8026, 2
  %v8029 = vor.u32 %v8025, %v8028
  %v8030 = vshrl.u32 %v6234, 16
  %v8032 = vrot.slane %v8030, 1
  %v8033 = vshll.u32 %v6234, 16
  %v8035 = vrot.slane %v8033, 2
  %v8036 = vor.u32 %v8032, %v8035
  %v8037 = vsel %vm6717, %v8029, %v8036
  %v8038 = vshrl.u32 %v6350, 16
  %v8040 = vrot.slane %v8038, 1
  %v8041 = vshll.u32 %v6350, 16
  %v8043 = vrot.slane %v8041, 2
  %v8044 = vor.u32 %v8040, %v8043
  %v8045 = vshrl.u32 %v6352, 16
  %v8047 = vrot.slane %v8045, 1
  %v8048 = vshll.u32 %v6352, 16
  %v8050 = vrot.slane %v8048, 2
  %v8051 = vor.u32 %v8047, %v8050
  %v8052 = vsel %vm6717, %v8044, %v8051
  %v8053 = vshrl.u32 %v6466, 16
  %v8055 = vrot.slane %v8053, 1
  %v8056 = vshll.u32 %v6466, 16
  %v8058 = vrot.slane %v8056, 2
  %v8059 = vor.u32 %v8055, %v8058
  %v8060 = vshrl.u32 %v6468, 16
  %v8062 = vrot.slane %v8060, 1
  %v8063 = vshll.u32 %v6468, 16
  %v8065 = vrot.slane %v8063, 2
  %v8066 = vor.u32 %v8062, %v8065
  %v8067 = vsel %vm6717, %v8059, %v8066
  %v8068 = vshrl.u32 %v6594, 16
  %v8070 = vrot.slane %v8068, 1
  %v8071 = vshll.u32 %v6594, 16
  %v8073 = vrot.slane %v8071, 2
  %v8074 = vor.u32 %v8070, %v8073
  %v8075 = vshrl.u32 %v6596, 16
  %v8077 = vrot.slane %v8075, 1
  %v8078 = vshll.u32 %v6596, 16
  %v8080 = vrot.slane %v8078, 2
  %v8081 = vor.u32 %v8077, %v8080
  %v8082 = vsel %vm6717, %v8074, %v8081
  %v8084 = vshrl.u32 %v7091, 16
  %v8086 = vrot.slane %v8084, 1
  %v8087 = vshll.u32 %v7091, 16
  %v8089 = vrot.slane %v8087, 2
  %v8090 = vor.u32 %v8086, %v8089
  %v8092 = vshrl.u32 %v7094, 16
  %v8094 = vrot.slane %v8092, 1
  %v8095 = vshll.u32 %v7094, 16
  %v8097 = vrot.slane %v8095, 2
  %v8098 = vor.u32 %v8094, %v8097
  %v8099 = vsel %vm6717, %v8090, %v8098
  %v8100 = vshrl.u32 %v5863, 16
  %v8102 = vrot.slane %v8100, 1
  %v8103 = vshll.u32 %v5863, 16
  %v8105 = vrot.slane %v8103, 2
  %v8106 = vor.u32 %v8102, %v8105
  %v8107 = vshrl.u32 %v5866, 16
  %v8109 = vrot.slane %v8107, 1
  %v8110 = vshll.u32 %v5866, 16
  %v8112 = vrot.slane %v8110, 2
  %v8113 = vor.u32 %v8109, %v8112
  %v8114 = vsel %vm6717, %v8106, %v8113
  %v8115 = vshrl.u32 %v6053, 16
  %v8117 = vrot.slane %v8115, 1
  %v8118 = vshll.u32 %v6053, 16
  %v8120 = vrot.slane %v8118, 2
  %v8121 = vor.u32 %v8117, %v8120
  %v8122 = vshrl.u32 %v6056, 16
  %v8124 = vrot.slane %v8122, 1
  %v8125 = vshll.u32 %v6056, 16
  %v8127 = vrot.slane %v8125, 2
  %v8128 = vor.u32 %v8124, %v8127
  %v8129 = vsel %vm6717, %v8121, %v8128
  %v8130 = vshrl.u32 %v5734, 16
  %v8132 = vrot.slane %v8130, 1
  %v8133 = vshll.u32 %v5734, 16
  %v8135 = vrot.slane %v8133, 2
  %v8136 = vor.u32 %v8132, %v8135
  %v8137 = vshrl.u32 %v5736, 16
  %v8139 = vrot.slane %v8137, 1
  %v8140 = vshll.u32 %v5736, 16
  %v8142 = vrot.slane %v8140, 2
  %v8143 = vor.u32 %v8139, %v8142
  %v8144 = vsel %vm6717, %v8136, %v8143
  %v8145 = vshrl.u32 %v6236, 16
  %v8147 = vrot.slane %v8145, 1
  %v8148 = vshll.u32 %v6236, 16
  %v8150 = vrot.slane %v8148, 2
  %v8151 = vor.u32 %v8147, %v8150
  %v8152 = vshrl.u32 %v6238, 16
  %v8154 = vrot.slane %v8152, 1
  %v8155 = vshll.u32 %v6238, 16
  %v8157 = vrot.slane %v8155, 2
  %v8158 = vor.u32 %v8154, %v8157
  %v8159 = vsel %vm6717, %v8151, %v8158
  %v8160 = vshrl.u32 %v6354, 16
  %v8162 = vrot.slane %v8160, 1
  %v8163 = vshll.u32 %v6354, 16
  %v8165 = vrot.slane %v8163, 2
  %v8166 = vor.u32 %v8162, %v8165
  %v8167 = vshrl.u32 %v6356, 16
  %v8169 = vrot.slane %v8167, 1
  %v8170 = vshll.u32 %v6356, 16
  %v8172 = vrot.slane %v8170, 2
  %v8173 = vor.u32 %v8169, %v8172
  %v8174 = vsel %vm6717, %v8166, %v8173
  %v8175 = vshrl.u32 %v6470, 16
  %v8177 = vrot.slane %v8175, 1
  %v8178 = vshll.u32 %v6470, 16
  %v8180 = vrot.slane %v8178, 2
  %v8181 = vor.u32 %v8177, %v8180
  %v8182 = vshrl.u32 %v6472, 16
  %v8184 = vrot.slane %v8182, 1
  %v8185 = vshll.u32 %v6472, 16
  %v8187 = vrot.slane %v8185, 2
  %v8188 = vor.u32 %v8184, %v8187
  %v8189 = vsel %vm6717, %v8181, %v8188
  %v8190 = vshrl.u32 %v6598, 16
  %v8192 = vrot.slane %v8190, 1
  %v8193 = vshll.u32 %v6598, 16
  %v8195 = vrot.slane %v8193, 2
  %v8196 = vor.u32 %v8192, %v8195
  %v8197 = vshrl.u32 %v6600, 16
  %v8199 = vrot.slane %v8197, 1
  %v8200 = vshll.u32 %v6600, 16
  %v8202 = vrot.slane %v8200, 2
  %v8203 = vor.u32 %v8199, %v8202
  %v8204 = vsel %vm6717, %v8196, %v8203
  %v8206 = vshrl.u32 %v7104, 16
  %v8208 = vrot.slane %v8206, 1
  %v8209 = vshll.u32 %v7104, 16
  %v8211 = vrot.slane %v8209, 2
  %v8212 = vor.u32 %v8208, %v8211
  %v8214 = vshrl.u32 %v7107, 16
  %v8216 = vrot.slane %v8214, 1
  %v8217 = vshll.u32 %v7107, 16
  %v8219 = vrot.slane %v8217, 2
  %v8220 = vor.u32 %v8216, %v8219
  %v8221 = vsel %vm6717, %v8212, %v8220
  %v8222 = vshrl.u32 %v5869, 16
  %v8224 = vrot.slane %v8222, 1
  %v8225 = vshll.u32 %v5869, 16
  %v8227 = vrot.slane %v8225, 2
  %v8228 = vor.u32 %v8224, %v8227
  %v8229 = vshrl.u32 %v5872, 16
  %v8231 = vrot.slane %v8229, 1
  %v8232 = vshll.u32 %v5872, 16
  %v8234 = vrot.slane %v8232, 2
  %v8235 = vor.u32 %v8231, %v8234
  %v8236 = vsel %vm6717, %v8228, %v8235
  %v8237 = vshrl.u32 %v6059, 16
  %v8239 = vrot.slane %v8237, 1
  %v8240 = vshll.u32 %v6059, 16
  %v8242 = vrot.slane %v8240, 2
  %v8243 = vor.u32 %v8239, %v8242
  %v8244 = vshrl.u32 %v6062, 16
  %v8246 = vrot.slane %v8244, 1
  %v8247 = vshll.u32 %v6062, 16
  %v8249 = vrot.slane %v8247, 2
  %v8250 = vor.u32 %v8246, %v8249
  %v8251 = vsel %vm6717, %v8243, %v8250
  %v8252 = vshrl.u32 %v5738, 16
  %v8254 = vrot.slane %v8252, 1
  %v8255 = vshll.u32 %v5738, 16
  %v8257 = vrot.slane %v8255, 2
  %v8258 = vor.u32 %v8254, %v8257
  %v8259 = vshrl.u32 %v5740, 16
  %v8261 = vrot.slane %v8259, 1
  %v8262 = vshll.u32 %v5740, 16
  %v8264 = vrot.slane %v8262, 2
  %v8265 = vor.u32 %v8261, %v8264
  %v8266 = vsel %vm6717, %v8258, %v8265
  %v8267 = vshrl.u32 %v6240, 16
  %v8269 = vrot.slane %v8267, 1
  %v8270 = vshll.u32 %v6240, 16
  %v8272 = vrot.slane %v8270, 2
  %v8273 = vor.u32 %v8269, %v8272
  %v8274 = vshrl.u32 %v6242, 16
  %v8276 = vrot.slane %v8274, 1
  %v8277 = vshll.u32 %v6242, 16
  %v8279 = vrot.slane %v8277, 2
  %v8280 = vor.u32 %v8276, %v8279
  %v8281 = vsel %vm6717, %v8273, %v8280
  %v8282 = vshrl.u32 %v6358, 16
  %v8284 = vrot.slane %v8282, 1
  %v8285 = vshll.u32 %v6358, 16
  %v8287 = vrot.slane %v8285, 2
  %v8288 = vor.u32 %v8284, %v8287
  %v8289 = vshrl.u32 %v6360, 16
  %v8291 = vrot.slane %v8289, 1
  %v8292 = vshll.u32 %v6360, 16
  %v8294 = vrot.slane %v8292, 2
  %v8295 = vor.u32 %v8291, %v8294
  %v8296 = vsel %vm6717, %v8288, %v8295
  %v8297 = vshrl.u32 %v6474, 16
  %v8299 = vrot.slane %v8297, 1
  %v8300 = vshll.u32 %v6474, 16
  %v8302 = vrot.slane %v8300, 2
  %v8303 = vor.u32 %v8299, %v8302
  %v8304 = vshrl.u32 %v6476, 16
  %v8306 = vrot.slane %v8304, 1
  %v8307 = vshll.u32 %v6476, 16
  %v8309 = vrot.slane %v8307, 2
  %v8310 = vor.u32 %v8306, %v8309
  %v8311 = vsel %vm6717, %v8303, %v8310
  %v8312 = vshrl.u32 %v6602, 16
  %v8314 = vrot.slane %v8312, 1
  %v8315 = vshll.u32 %v6602, 16
  %v8317 = vrot.slane %v8315, 2
  %v8318 = vor.u32 %v8314, %v8317
  %v8319 = vshrl.u32 %v6604, 16
  %v8321 = vrot.slane %v8319, 1
  %v8322 = vshll.u32 %v6604, 16
  %v8324 = vrot.slane %v8322, 2
  %v8325 = vor.u32 %v8321, %v8324
  %v8326 = vsel %vm6717, %v8318, %v8325
  %v8328 = vshrl.u32 %v7117, 16
  %v8330 = vrot.slane %v8328, 1
  %v8331 = vshll.u32 %v7117, 16
  %v8333 = vrot.slane %v8331, 2
  %v8334 = vor.u32 %v8330, %v8333
  %v8336 = vshrl.u32 %v7120, 16
  %v8338 = vrot.slane %v8336, 1
  %v8339 = vshll.u32 %v7120, 16
  %v8341 = vrot.slane %v8339, 2
  %v8342 = vor.u32 %v8338, %v8341
  %v8343 = vsel %vm6717, %v8334, %v8342
  %v8344 = vshrl.u32 %v5875, 16
  %v8346 = vrot.slane %v8344, 1
  %v8347 = vshll.u32 %v5875, 16
  %v8349 = vrot.slane %v8347, 2
  %v8350 = vor.u32 %v8346, %v8349
  %v8351 = vshrl.u32 %v5878, 16
  %v8353 = vrot.slane %v8351, 1
  %v8354 = vshll.u32 %v5878, 16
  %v8356 = vrot.slane %v8354, 2
  %v8357 = vor.u32 %v8353, %v8356
  %v8358 = vsel %vm6717, %v8350, %v8357
  %v8359 = vshrl.u32 %v6065, 16
  %v8361 = vrot.slane %v8359, 1
  %v8362 = vshll.u32 %v6065, 16
  %v8364 = vrot.slane %v8362, 2
  %v8365 = vor.u32 %v8361, %v8364
  %v8366 = vshrl.u32 %v6068, 16
  %v8368 = vrot.slane %v8366, 1
  %v8369 = vshll.u32 %v6068, 16
  %v8371 = vrot.slane %v8369, 2
  %v8372 = vor.u32 %v8368, %v8371
  %v8373 = vsel %vm6717, %v8365, %v8372
  %v8374 = vshrl.u32 %v5742, 16
  %v8376 = vrot.slane %v8374, 1
  %v8377 = vshll.u32 %v5742, 16
  %v8379 = vrot.slane %v8377, 2
  %v8380 = vor.u32 %v8376, %v8379
  %v8381 = vshrl.u32 %v5744, 16
  %v8383 = vrot.slane %v8381, 1
  %v8384 = vshll.u32 %v5744, 16
  %v8386 = vrot.slane %v8384, 2
  %v8387 = vor.u32 %v8383, %v8386
  %v8388 = vsel %vm6717, %v8380, %v8387
  %v8389 = vshrl.u32 %v6244, 16
  %v8391 = vrot.slane %v8389, 1
  %v8392 = vshll.u32 %v6244, 16
  %v8394 = vrot.slane %v8392, 2
  %v8395 = vor.u32 %v8391, %v8394
  %v8396 = vshrl.u32 %v6246, 16
  %v8398 = vrot.slane %v8396, 1
  %v8399 = vshll.u32 %v6246, 16
  %v8401 = vrot.slane %v8399, 2
  %v8402 = vor.u32 %v8398, %v8401
  %v8403 = vsel %vm6717, %v8395, %v8402
  %v8404 = vshrl.u32 %v6362, 16
  %v8406 = vrot.slane %v8404, 1
  %v8407 = vshll.u32 %v6362, 16
  %v8409 = vrot.slane %v8407, 2
  %v8410 = vor.u32 %v8406, %v8409
  %v8411 = vshrl.u32 %v6364, 16
  %v8413 = vrot.slane %v8411, 1
  %v8414 = vshll.u32 %v6364, 16
  %v8416 = vrot.slane %v8414, 2
  %v8417 = vor.u32 %v8413, %v8416
  %v8418 = vsel %vm6717, %v8410, %v8417
  %v8419 = vshrl.u32 %v6478, 16
  %v8421 = vrot.slane %v8419, 1
  %v8422 = vshll.u32 %v6478, 16
  %v8424 = vrot.slane %v8422, 2
  %v8425 = vor.u32 %v8421, %v8424
  %v8426 = vshrl.u32 %v6480, 16
  %v8428 = vrot.slane %v8426, 1
  %v8429 = vshll.u32 %v6480, 16
  %v8431 = vrot.slane %v8429, 2
  %v8432 = vor.u32 %v8428, %v8431
  %v8433 = vsel %vm6717, %v8425, %v8432
  %v8434 = vshrl.u32 %v6606, 16
  %v8436 = vrot.slane %v8434, 1
  %v8437 = vshll.u32 %v6606, 16
  %v8439 = vrot.slane %v8437, 2
  %v8440 = vor.u32 %v8436, %v8439
  %v8441 = vshrl.u32 %v6608, 16
  %v8443 = vrot.slane %v8441, 1
  %v8444 = vshll.u32 %v6608, 16
  %v8446 = vrot.slane %v8444, 2
  %v8447 = vor.u32 %v8443, %v8446
  %v8448 = vsel %vm6717, %v8440, %v8447
  %v8450 = vshrl.u32 %v7130, 16
  %v8452 = vrot.slane %v8450, 1
  %v8453 = vshll.u32 %v7130, 16
  %v8455 = vrot.slane %v8453, 2
  %v8456 = vor.u32 %v8452, %v8455
  %v8458 = vshrl.u32 %v7133, 16
  %v8460 = vrot.slane %v8458, 1
  %v8461 = vshll.u32 %v7133, 16
  %v8463 = vrot.slane %v8461, 2
  %v8464 = vor.u32 %v8460, %v8463
  %v8465 = vsel %vm6717, %v8456, %v8464
  %v8466 = vshrl.u32 %v5881, 16
  %v8468 = vrot.slane %v8466, 1
  %v8469 = vshll.u32 %v5881, 16
  %v8471 = vrot.slane %v8469, 2
  %v8472 = vor.u32 %v8468, %v8471
  %v8473 = vshrl.u32 %v5884, 16
  %v8475 = vrot.slane %v8473, 1
  %v8476 = vshll.u32 %v5884, 16
  %v8478 = vrot.slane %v8476, 2
  %v8479 = vor.u32 %v8475, %v8478
  %v8480 = vsel %vm6717, %v8472, %v8479
  %v8481 = vshrl.u32 %v6071, 16
  %v8483 = vrot.slane %v8481, 1
  %v8484 = vshll.u32 %v6071, 16
  %v8486 = vrot.slane %v8484, 2
  %v8487 = vor.u32 %v8483, %v8486
  %v8488 = vshrl.u32 %v6074, 16
  %v8490 = vrot.slane %v8488, 1
  %v8491 = vshll.u32 %v6074, 16
  %v8493 = vrot.slane %v8491, 2
  %v8494 = vor.u32 %v8490, %v8493
  %v8495 = vsel %vm6717, %v8487, %v8494
  %v8496 = vshrl.u32 %v5746, 16
  %v8498 = vrot.slane %v8496, 1
  %v8499 = vshll.u32 %v5746, 16
  %v8501 = vrot.slane %v8499, 2
  %v8502 = vor.u32 %v8498, %v8501
  %v8503 = vshrl.u32 %v5748, 16
  %v8505 = vrot.slane %v8503, 1
  %v8506 = vshll.u32 %v5748, 16
  %v8508 = vrot.slane %v8506, 2
  %v8509 = vor.u32 %v8505, %v8508
  %v8510 = vsel %vm6717, %v8502, %v8509
  %v8511 = vshrl.u32 %v6248, 16
  %v8513 = vrot.slane %v8511, 1
  %v8514 = vshll.u32 %v6248, 16
  %v8516 = vrot.slane %v8514, 2
  %v8517 = vor.u32 %v8513, %v8516
  %v8518 = vshrl.u32 %v6250, 16
  %v8520 = vrot.slane %v8518, 1
  %v8521 = vshll.u32 %v6250, 16
  %v8523 = vrot.slane %v8521, 2
  %v8524 = vor.u32 %v8520, %v8523
  %v8525 = vsel %vm6717, %v8517, %v8524
  %v8526 = vshrl.u32 %v6366, 16
  %v8528 = vrot.slane %v8526, 1
  %v8529 = vshll.u32 %v6366, 16
  %v8531 = vrot.slane %v8529, 2
  %v8532 = vor.u32 %v8528, %v8531
  %v8533 = vshrl.u32 %v6368, 16
  %v8535 = vrot.slane %v8533, 1
  %v8536 = vshll.u32 %v6368, 16
  %v8538 = vrot.slane %v8536, 2
  %v8539 = vor.u32 %v8535, %v8538
  %v8540 = vsel %vm6717, %v8532, %v8539
  %v8541 = vshrl.u32 %v6482, 16
  %v8543 = vrot.slane %v8541, 1
  %v8544 = vshll.u32 %v6482, 16
  %v8546 = vrot.slane %v8544, 2
  %v8547 = vor.u32 %v8543, %v8546
  %v8548 = vshrl.u32 %v6484, 16
  %v8550 = vrot.slane %v8548, 1
  %v8551 = vshll.u32 %v6484, 16
  %v8553 = vrot.slane %v8551, 2
  %v8554 = vor.u32 %v8550, %v8553
  %v8555 = vsel %vm6717, %v8547, %v8554
  %v8556 = vshrl.u32 %v6610, 16
  %v8558 = vrot.slane %v8556, 1
  %v8559 = vshll.u32 %v6610, 16
  %v8561 = vrot.slane %v8559, 2
  %v8562 = vor.u32 %v8558, %v8561
  %v8563 = vshrl.u32 %v6612, 16
  %v8565 = vrot.slane %v8563, 1
  %v8566 = vshll.u32 %v6612, 16
  %v8568 = vrot.slane %v8566, 2
  %v8569 = vor.u32 %v8565, %v8568
  %v8570 = vsel %vm6717, %v8562, %v8569
  %v8572 = vshrl.u32 %v7143, 16
  %v8574 = vrot.slane %v8572, 1
  %v8575 = vshll.u32 %v7143, 16
  %v8577 = vrot.slane %v8575, 2
  %v8578 = vor.u32 %v8574, %v8577
  %v8580 = vshrl.u32 %v7146, 16
  %v8582 = vrot.slane %v8580, 1
  %v8583 = vshll.u32 %v7146, 16
  %v8585 = vrot.slane %v8583, 2
  %v8586 = vor.u32 %v8582, %v8585
  %v8587 = vsel %vm6717, %v8578, %v8586
  %v8588 = vshrl.u32 %v5887, 16
  %v8590 = vrot.slane %v8588, 1
  %v8591 = vshll.u32 %v5887, 16
  %v8593 = vrot.slane %v8591, 2
  %v8594 = vor.u32 %v8590, %v8593
  %v8595 = vshrl.u32 %v5890, 16
  %v8597 = vrot.slane %v8595, 1
  %v8598 = vshll.u32 %v5890, 16
  %v8600 = vrot.slane %v8598, 2
  %v8601 = vor.u32 %v8597, %v8600
  %v8602 = vsel %vm6717, %v8594, %v8601
  %v8603 = vshrl.u32 %v6077, 16
  %v8605 = vrot.slane %v8603, 1
  %v8606 = vshll.u32 %v6077, 16
  %v8608 = vrot.slane %v8606, 2
  %v8609 = vor.u32 %v8605, %v8608
  %v8610 = vshrl.u32 %v6080, 16
  %v8612 = vrot.slane %v8610, 1
  %v8613 = vshll.u32 %v6080, 16
  %v8615 = vrot.slane %v8613, 2
  %v8616 = vor.u32 %v8612, %v8615
  %v8617 = vsel %vm6717, %v8609, %v8616
  %v8618 = vshrl.u32 %v5750, 16
  %v8620 = vrot.slane %v8618, 1
  %v8621 = vshll.u32 %v5750, 16
  %v8623 = vrot.slane %v8621, 2
  %v8624 = vor.u32 %v8620, %v8623
  %v8625 = vshrl.u32 %v5752, 16
  %v8627 = vrot.slane %v8625, 1
  %v8628 = vshll.u32 %v5752, 16
  %v8630 = vrot.slane %v8628, 2
  %v8631 = vor.u32 %v8627, %v8630
  %v8632 = vsel %vm6717, %v8624, %v8631
  %v8633 = vshrl.u32 %v6252, 16
  %v8635 = vrot.slane %v8633, 1
  %v8636 = vshll.u32 %v6252, 16
  %v8638 = vrot.slane %v8636, 2
  %v8639 = vor.u32 %v8635, %v8638
  %v8640 = vshrl.u32 %v6254, 16
  %v8642 = vrot.slane %v8640, 1
  %v8643 = vshll.u32 %v6254, 16
  %v8645 = vrot.slane %v8643, 2
  %v8646 = vor.u32 %v8642, %v8645
  %v8647 = vsel %vm6717, %v8639, %v8646
  %v8648 = vshrl.u32 %v6370, 16
  %v8650 = vrot.slane %v8648, 1
  %v8651 = vshll.u32 %v6370, 16
  %v8653 = vrot.slane %v8651, 2
  %v8654 = vor.u32 %v8650, %v8653
  %v8655 = vshrl.u32 %v6372, 16
  %v8657 = vrot.slane %v8655, 1
  %v8658 = vshll.u32 %v6372, 16
  %v8660 = vrot.slane %v8658, 2
  %v8661 = vor.u32 %v8657, %v8660
  %v8662 = vsel %vm6717, %v8654, %v8661
  %v8663 = vshrl.u32 %v6486, 16
  %v8665 = vrot.slane %v8663, 1
  %v8666 = vshll.u32 %v6486, 16
  %v8668 = vrot.slane %v8666, 2
  %v8669 = vor.u32 %v8665, %v8668
  %v8670 = vshrl.u32 %v6488, 16
  %v8672 = vrot.slane %v8670, 1
  %v8673 = vshll.u32 %v6488, 16
  %v8675 = vrot.slane %v8673, 2
  %v8676 = vor.u32 %v8672, %v8675
  %v8677 = vsel %vm6717, %v8669, %v8676
  %v8678 = vshrl.u32 %v6615, 16
  %v8680 = vrot.slane %v8678, 1
  %v8681 = vshll.u32 %v6615, 16
  %v8683 = vrot.slane %v8681, 2
  %v8684 = vor.u32 %v8680, %v8683
  %v8685 = vshrl.u32 %v6618, 16
  %v8687 = vrot.slane %v8685, 1
  %v8688 = vshll.u32 %v6618, 16
  %v8690 = vrot.slane %v8688, 2
  %v8691 = vor.u32 %v8687, %v8690
  %v8692 = vsel %vm6717, %v8684, %v8691
  %v8694 = vshrl.u32 %v7156, 16
  %v8696 = vrot.slane %v8694, 1
  %v8697 = vshll.u32 %v7156, 16
  %v8699 = vrot.slane %v8697, 2
  %v8700 = vor.u32 %v8696, %v8699
  %v8702 = vshrl.u32 %v7159, 16
  %v8704 = vrot.slane %v8702, 1
  %v8705 = vshll.u32 %v7159, 16
  %v8707 = vrot.slane %v8705, 2
  %v8708 = vor.u32 %v8704, %v8707
  %v8709 = vsel %vm6717, %v8700, %v8708
  %v8710 = vshrl.u32 %v5893, 16
  %v8712 = vrot.slane %v8710, 1
  %v8713 = vshll.u32 %v5893, 16
  %v8715 = vrot.slane %v8713, 2
  %v8716 = vor.u32 %v8712, %v8715
  %v8717 = vshrl.u32 %v5896, 16
  %v8719 = vrot.slane %v8717, 1
  %v8720 = vshll.u32 %v5896, 16
  %v8722 = vrot.slane %v8720, 2
  %v8723 = vor.u32 %v8719, %v8722
  %v8724 = vsel %vm6717, %v8716, %v8723
  %v8725 = vshrl.u32 %v6083, 16
  %v8727 = vrot.slane %v8725, 1
  %v8728 = vshll.u32 %v6083, 16
  %v8730 = vrot.slane %v8728, 2
  %v8731 = vor.u32 %v8727, %v8730
  %v8732 = vshrl.u32 %v6086, 16
  %v8734 = vrot.slane %v8732, 1
  %v8735 = vshll.u32 %v6086, 16
  %v8737 = vrot.slane %v8735, 2
  %v8738 = vor.u32 %v8734, %v8737
  %v8739 = vsel %vm6717, %v8731, %v8738
  %v8740 = vshrl.u32 %v5754, 16
  %v8742 = vrot.slane %v8740, 1
  %v8743 = vshll.u32 %v5754, 16
  %v8745 = vrot.slane %v8743, 2
  %v8746 = vor.u32 %v8742, %v8745
  %v8747 = vshrl.u32 %v5756, 16
  %v8749 = vrot.slane %v8747, 1
  %v8750 = vshll.u32 %v5756, 16
  %v8752 = vrot.slane %v8750, 2
  %v8753 = vor.u32 %v8749, %v8752
  %v8754 = vsel %vm6717, %v8746, %v8753
  %v8755 = vshrl.u32 %v6256, 16
  %v8757 = vrot.slane %v8755, 1
  %v8758 = vshll.u32 %v6256, 16
  %v8760 = vrot.slane %v8758, 2
  %v8761 = vor.u32 %v8757, %v8760
  %v8762 = vshrl.u32 %v6258, 16
  %v8764 = vrot.slane %v8762, 1
  %v8765 = vshll.u32 %v6258, 16
  %v8767 = vrot.slane %v8765, 2
  %v8768 = vor.u32 %v8764, %v8767
  %v8769 = vsel %vm6717, %v8761, %v8768
  %v8770 = vshrl.u32 %v6374, 16
  %v8772 = vrot.slane %v8770, 1
  %v8773 = vshll.u32 %v6374, 16
  %v8775 = vrot.slane %v8773, 2
  %v8776 = vor.u32 %v8772, %v8775
  %v8777 = vshrl.u32 %v6376, 16
  %v8779 = vrot.slane %v8777, 1
  %v8780 = vshll.u32 %v6376, 16
  %v8782 = vrot.slane %v8780, 2
  %v8783 = vor.u32 %v8779, %v8782
  %v8784 = vsel %vm6717, %v8776, %v8783
  %v8785 = vshrl.u32 %v6490, 16
  %v8787 = vrot.slane %v8785, 1
  %v8788 = vshll.u32 %v6490, 16
  %v8790 = vrot.slane %v8788, 2
  %v8791 = vor.u32 %v8787, %v8790
  %v8792 = vshrl.u32 %v6492, 16
  %v8794 = vrot.slane %v8792, 1
  %v8795 = vshll.u32 %v6492, 16
  %v8797 = vrot.slane %v8795, 2
  %v8798 = vor.u32 %v8794, %v8797
  %v8799 = vsel %vm6717, %v8791, %v8798
  %v8800 = vshrl.u32 %v6621, 16
  %v8802 = vrot.slane %v8800, 1
  %v8803 = vshll.u32 %v6621, 16
  %v8805 = vrot.slane %v8803, 2
  %v8806 = vor.u32 %v8802, %v8805
  %v8807 = vshrl.u32 %v6624, 16
  %v8809 = vrot.slane %v8807, 1
  %v8810 = vshll.u32 %v6624, 16
  %v8812 = vrot.slane %v8810, 2
  %v8813 = vor.u32 %v8809, %v8812
  %v8814 = vsel %vm6717, %v8806, %v8813
  %v8816 = vshrl.u32 %v7169, 16
  %v8818 = vrot.slane %v8816, 1
  %v8819 = vshll.u32 %v7169, 16
  %v8821 = vrot.slane %v8819, 2
  %v8822 = vor.u32 %v8818, %v8821
  %v8824 = vshrl.u32 %v7172, 16
  %v8826 = vrot.slane %v8824, 1
  %v8827 = vshll.u32 %v7172, 16
  %v8829 = vrot.slane %v8827, 2
  %v8830 = vor.u32 %v8826, %v8829
  %v8831 = vsel %vm6717, %v8822, %v8830
  %v8832 = vshrl.u32 %v5899, 16
  %v8834 = vrot.slane %v8832, 1
  %v8835 = vshll.u32 %v5899, 16
  %v8837 = vrot.slane %v8835, 2
  %v8838 = vor.u32 %v8834, %v8837
  %v8839 = vshrl.u32 %v5902, 16
  %v8841 = vrot.slane %v8839, 1
  %v8842 = vshll.u32 %v5902, 16
  %v8844 = vrot.slane %v8842, 2
  %v8845 = vor.u32 %v8841, %v8844
  %v8846 = vsel %vm6717, %v8838, %v8845
  %v8847 = vshrl.u32 %v6089, 16
  %v8849 = vrot.slane %v8847, 1
  %v8850 = vshll.u32 %v6089, 16
  %v8852 = vrot.slane %v8850, 2
  %v8853 = vor.u32 %v8849, %v8852
  %v8854 = vshrl.u32 %v6092, 16
  %v8856 = vrot.slane %v8854, 1
  %v8857 = vshll.u32 %v6092, 16
  %v8859 = vrot.slane %v8857, 2
  %v8860 = vor.u32 %v8856, %v8859
  %v8861 = vsel %vm6717, %v8853, %v8860
  %v8862 = vshrl.u32 %v5758, 16
  %v8864 = vrot.slane %v8862, 1
  %v8865 = vshll.u32 %v5758, 16
  %v8867 = vrot.slane %v8865, 2
  %v8868 = vor.u32 %v8864, %v8867
  %v8869 = vshrl.u32 %v5760, 16
  %v8871 = vrot.slane %v8869, 1
  %v8872 = vshll.u32 %v5760, 16
  %v8874 = vrot.slane %v8872, 2
  %v8875 = vor.u32 %v8871, %v8874
  %v8876 = vsel %vm6717, %v8868, %v8875
  %v8877 = vshrl.u32 %v6260, 16
  %v8879 = vrot.slane %v8877, 1
  %v8880 = vshll.u32 %v6260, 16
  %v8882 = vrot.slane %v8880, 2
  %v8883 = vor.u32 %v8879, %v8882
  %v8884 = vshrl.u32 %v6262, 16
  %v8886 = vrot.slane %v8884, 1
  %v8887 = vshll.u32 %v6262, 16
  %v8889 = vrot.slane %v8887, 2
  %v8890 = vor.u32 %v8886, %v8889
  %v8891 = vsel %vm6717, %v8883, %v8890
  %v8892 = vshrl.u32 %v6378, 16
  %v8894 = vrot.slane %v8892, 1
  %v8895 = vshll.u32 %v6378, 16
  %v8897 = vrot.slane %v8895, 2
  %v8898 = vor.u32 %v8894, %v8897
  %v8899 = vshrl.u32 %v6380, 16
  %v8901 = vrot.slane %v8899, 1
  %v8902 = vshll.u32 %v6380, 16
  %v8904 = vrot.slane %v8902, 2
  %v8905 = vor.u32 %v8901, %v8904
  %v8906 = vsel %vm6717, %v8898, %v8905
  %v8907 = vshrl.u32 %v6494, 16
  %v8909 = vrot.slane %v8907, 1
  %v8910 = vshll.u32 %v6494, 16
  %v8912 = vrot.slane %v8910, 2
  %v8913 = vor.u32 %v8909, %v8912
  %v8914 = vshrl.u32 %v6496, 16
  %v8916 = vrot.slane %v8914, 1
  %v8917 = vshll.u32 %v6496, 16
  %v8919 = vrot.slane %v8917, 2
  %v8920 = vor.u32 %v8916, %v8919
  %v8921 = vsel %vm6717, %v8913, %v8920
  %v8922 = vshrl.u32 %v6627, 16
  %v8924 = vrot.slane %v8922, 1
  %v8925 = vshll.u32 %v6627, 16
  %v8927 = vrot.slane %v8925, 2
  %v8928 = vor.u32 %v8924, %v8927
  %v8929 = vshrl.u32 %v6630, 16
  %v8931 = vrot.slane %v8929, 1
  %v8932 = vshll.u32 %v6630, 16
  %v8934 = vrot.slane %v8932, 2
  %v8935 = vor.u32 %v8931, %v8934
  %v8936 = vsel %vm6717, %v8928, %v8935
  %v8938 = vshrl.u32 %v7182, 16
  %v8940 = vrot.slane %v8938, 1
  %v8941 = vshll.u32 %v7182, 16
  %v8943 = vrot.slane %v8941, 2
  %v8944 = vor.u32 %v8940, %v8943
  %v8946 = vshrl.u32 %v7185, 16
  %v8948 = vrot.slane %v8946, 1
  %v8949 = vshll.u32 %v7185, 16
  %v8951 = vrot.slane %v8949, 2
  %v8952 = vor.u32 %v8948, %v8951
  %v8953 = vsel %vm6717, %v8944, %v8952
  %v8954 = vshrl.u32 %v5905, 16
  %v8956 = vrot.slane %v8954, 1
  %v8957 = vshll.u32 %v5905, 16
  %v8959 = vrot.slane %v8957, 2
  %v8960 = vor.u32 %v8956, %v8959
  %v8961 = vshrl.u32 %v5908, 16
  %v8963 = vrot.slane %v8961, 1
  %v8964 = vshll.u32 %v5908, 16
  %v8966 = vrot.slane %v8964, 2
  %v8967 = vor.u32 %v8963, %v8966
  %v8968 = vsel %vm6717, %v8960, %v8967
  %v8969 = vshrl.u32 %v6095, 16
  %v8971 = vrot.slane %v8969, 1
  %v8972 = vshll.u32 %v6095, 16
  %v8974 = vrot.slane %v8972, 2
  %v8975 = vor.u32 %v8971, %v8974
  %v8976 = vshrl.u32 %v6098, 16
  %v8978 = vrot.slane %v8976, 1
  %v8979 = vshll.u32 %v6098, 16
  %v8981 = vrot.slane %v8979, 2
  %v8982 = vor.u32 %v8978, %v8981
  %v8983 = vsel %vm6717, %v8975, %v8982
  %v8984 = vshrl.u32 %v5762, 16
  %v8986 = vrot.slane %v8984, 1
  %v8987 = vshll.u32 %v5762, 16
  %v8989 = vrot.slane %v8987, 2
  %v8990 = vor.u32 %v8986, %v8989
  %v8991 = vshrl.u32 %v5764, 16
  %v8993 = vrot.slane %v8991, 1
  %v8994 = vshll.u32 %v5764, 16
  %v8996 = vrot.slane %v8994, 2
  %v8997 = vor.u32 %v8993, %v8996
  %v8998 = vsel %vm6717, %v8990, %v8997
  %v8999 = vshrl.u32 %v6264, 16
  %v9001 = vrot.slane %v8999, 1
  %v9002 = vshll.u32 %v6264, 16
  %v9004 = vrot.slane %v9002, 2
  %v9005 = vor.u32 %v9001, %v9004
  %v9006 = vshrl.u32 %v6266, 16
  %v9008 = vrot.slane %v9006, 1
  %v9009 = vshll.u32 %v6266, 16
  %v9011 = vrot.slane %v9009, 2
  %v9012 = vor.u32 %v9008, %v9011
  %v9013 = vsel %vm6717, %v9005, %v9012
  %v9014 = vshrl.u32 %v6382, 16
  %v9016 = vrot.slane %v9014, 1
  %v9017 = vshll.u32 %v6382, 16
  %v9019 = vrot.slane %v9017, 2
  %v9020 = vor.u32 %v9016, %v9019
  %v9021 = vshrl.u32 %v6384, 16
  %v9023 = vrot.slane %v9021, 1
  %v9024 = vshll.u32 %v6384, 16
  %v9026 = vrot.slane %v9024, 2
  %v9027 = vor.u32 %v9023, %v9026
  %v9028 = vsel %vm6717, %v9020, %v9027
  %v9029 = vshrl.u32 %v6498, 16
  %v9031 = vrot.slane %v9029, 1
  %v9032 = vshll.u32 %v6498, 16
  %v9034 = vrot.slane %v9032, 2
  %v9035 = vor.u32 %v9031, %v9034
  %v9036 = vshrl.u32 %v6500, 16
  %v9038 = vrot.slane %v9036, 1
  %v9039 = vshll.u32 %v6500, 16
  %v9041 = vrot.slane %v9039, 2
  %v9042 = vor.u32 %v9038, %v9041
  %v9043 = vsel %vm6717, %v9035, %v9042
  %v9044 = vshrl.u32 %v6632, 16
  %v9046 = vrot.slane %v9044, 1
  %v9047 = vshll.u32 %v6632, 16
  %v9049 = vrot.slane %v9047, 2
  %v9050 = vor.u32 %v9046, %v9049
  %v9051 = vshrl.u32 %v6634, 16
  %v9053 = vrot.slane %v9051, 1
  %v9054 = vshll.u32 %v6634, 16
  %v9056 = vrot.slane %v9054, 2
  %v9057 = vor.u32 %v9053, %v9056
  %v9058 = vsel %vm6717, %v9050, %v9057
  %v9060 = vshrl.u32 %v7195, 16
  %v9062 = vrot.slane %v9060, 1
  %v9063 = vshll.u32 %v7195, 16
  %v9065 = vrot.slane %v9063, 2
  %v9066 = vor.u32 %v9062, %v9065
  %v9068 = vshrl.u32 %v7198, 16
  %v9070 = vrot.slane %v9068, 1
  %v9071 = vshll.u32 %v7198, 16
  %v9073 = vrot.slane %v9071, 2
  %v9074 = vor.u32 %v9070, %v9073
  %v9075 = vsel %vm6717, %v9066, %v9074
  %v9076 = vshrl.u32 %v5911, 16
  %v9078 = vrot.slane %v9076, 1
  %v9079 = vshll.u32 %v5911, 16
  %v9081 = vrot.slane %v9079, 2
  %v9082 = vor.u32 %v9078, %v9081
  %v9083 = vshrl.u32 %v5914, 16
  %v9085 = vrot.slane %v9083, 1
  %v9086 = vshll.u32 %v5914, 16
  %v9088 = vrot.slane %v9086, 2
  %v9089 = vor.u32 %v9085, %v9088
  %v9090 = vsel %vm6717, %v9082, %v9089
  %v9091 = vshrl.u32 %v6101, 16
  %v9093 = vrot.slane %v9091, 1
  %v9094 = vshll.u32 %v6101, 16
  %v9096 = vrot.slane %v9094, 2
  %v9097 = vor.u32 %v9093, %v9096
  %v9098 = vshrl.u32 %v6104, 16
  %v9100 = vrot.slane %v9098, 1
  %v9101 = vshll.u32 %v6104, 16
  %v9103 = vrot.slane %v9101, 2
  %v9104 = vor.u32 %v9100, %v9103
  %v9105 = vsel %vm6717, %v9097, %v9104
  %v9106 = vshrl.u32 %v6208, 16
  %v9108 = vrot.slane %v9106, 1
  %v9109 = vshll.u32 %v6208, 16
  %v9111 = vrot.slane %v9109, 2
  %v9112 = vor.u32 %v9108, %v9111
  %v9113 = vshrl.u32 %v6210, 16
  %v9115 = vrot.slane %v9113, 1
  %v9116 = vshll.u32 %v6210, 16
  %v9118 = vrot.slane %v9116, 2
  %v9119 = vor.u32 %v9115, %v9118
  %v9120 = vsel %vm6717, %v9112, %v9119
  %v9121 = vshrl.u32 %v6269, 16
  %v9123 = vrot.slane %v9121, 1
  %v9124 = vshll.u32 %v6269, 16
  %v9126 = vrot.slane %v9124, 2
  %v9127 = vor.u32 %v9123, %v9126
  %v9128 = vshrl.u32 %v6272, 16
  %v9130 = vrot.slane %v9128, 1
  %v9131 = vshll.u32 %v6272, 16
  %v9133 = vrot.slane %v9131, 2
  %v9134 = vor.u32 %v9130, %v9133
  %v9135 = vsel %vm6717, %v9127, %v9134
  %v9136 = vshrl.u32 %v6386, 16
  %v9138 = vrot.slane %v9136, 1
  %v9139 = vshll.u32 %v6386, 16
  %v9141 = vrot.slane %v9139, 2
  %v9142 = vor.u32 %v9138, %v9141
  %v9143 = vshrl.u32 %v6388, 16
  %v9145 = vrot.slane %v9143, 1
  %v9146 = vshll.u32 %v6388, 16
  %v9148 = vrot.slane %v9146, 2
  %v9149 = vor.u32 %v9145, %v9148
  %v9150 = vsel %vm6717, %v9142, %v9149
  %v9151 = vshrl.u32 %v6502, 16
  %v9153 = vrot.slane %v9151, 1
  %v9154 = vshll.u32 %v6502, 16
  %v9156 = vrot.slane %v9154, 2
  %v9157 = vor.u32 %v9153, %v9156
  %v9158 = vshrl.u32 %v6504, 16
  %v9160 = vrot.slane %v9158, 1
  %v9161 = vshll.u32 %v6504, 16
  %v9163 = vrot.slane %v9161, 2
  %v9164 = vor.u32 %v9160, %v9163
  %v9165 = vsel %vm6717, %v9157, %v9164
  %v9166 = vshrl.u32 %v6636, 16
  %v9168 = vrot.slane %v9166, 1
  %v9169 = vshll.u32 %v6636, 16
  %v9171 = vrot.slane %v9169, 2
  %v9172 = vor.u32 %v9168, %v9171
  %v9173 = vshrl.u32 %v6638, 16
  %v9175 = vrot.slane %v9173, 1
  %v9176 = vshll.u32 %v6638, 16
  %v9178 = vrot.slane %v9176, 2
  %v9179 = vor.u32 %v9175, %v9178
  %v9180 = vsel %vm6717, %v9172, %v9179
  %v9181 = vshrl.u32 %v5917, 16
  %v9183 = vrot.slane %v9181, 1
  %v9184 = vshll.u32 %v5917, 16
  %v9186 = vrot.slane %v9184, 2
  %v9187 = vor.u32 %v9183, %v9186
  %v9188 = vshrl.u32 %v5920, 16
  %v9190 = vrot.slane %v9188, 1
  %v9191 = vshll.u32 %v5920, 16
  %v9193 = vrot.slane %v9191, 2
  %v9194 = vor.u32 %v9190, %v9193
  %v9195 = vsel %vm6717, %v9187, %v9194
  %v9196 = vshrl.u32 %v6107, 16
  %v9198 = vrot.slane %v9196, 1
  %v9199 = vshll.u32 %v6107, 16
  %v9201 = vrot.slane %v9199, 2
  %v9202 = vor.u32 %v9198, %v9201
  %v9203 = vshrl.u32 %v6110, 16
  %v9205 = vrot.slane %v9203, 1
  %v9206 = vshll.u32 %v6110, 16
  %v9208 = vrot.slane %v9206, 2
  %v9209 = vor.u32 %v9205, %v9208
  %v9210 = vsel %vm6717, %v9202, %v9209
  %v9211 = vshrl.u32 %v6274, 16
  %v9213 = vrot.slane %v9211, 1
  %v9214 = vshll.u32 %v6274, 16
  %v9216 = vrot.slane %v9214, 2
  %v9217 = vor.u32 %v9213, %v9216
  %v9218 = vshrl.u32 %v6276, 16
  %v9220 = vrot.slane %v9218, 1
  %v9221 = vshll.u32 %v6276, 16
  %v9223 = vrot.slane %v9221, 2
  %v9224 = vor.u32 %v9220, %v9223
  %v9225 = vsel %vm6717, %v9217, %v9224
  %v9226 = vshrl.u32 %v6390, 16
  %v9228 = vrot.slane %v9226, 1
  %v9229 = vshll.u32 %v6390, 16
  %v9231 = vrot.slane %v9229, 2
  %v9232 = vor.u32 %v9228, %v9231
  %v9233 = vshrl.u32 %v6392, 16
  %v9235 = vrot.slane %v9233, 1
  %v9236 = vshll.u32 %v6392, 16
  %v9238 = vrot.slane %v9236, 2
  %v9239 = vor.u32 %v9235, %v9238
  %v9240 = vsel %vm6717, %v9232, %v9239
  %v9241 = vshrl.u32 %v6506, 16
  %v9243 = vrot.slane %v9241, 1
  %v9244 = vshll.u32 %v6506, 16
  %v9246 = vrot.slane %v9244, 2
  %v9247 = vor.u32 %v9243, %v9246
  %v9248 = vshrl.u32 %v6508, 16
  %v9250 = vrot.slane %v9248, 1
  %v9251 = vshll.u32 %v6508, 16
  %v9253 = vrot.slane %v9251, 2
  %v9254 = vor.u32 %v9250, %v9253
  %v9255 = vsel %vm6717, %v9247, %v9254
  %v9256 = vshrl.u32 %v6640, 16
  %v9258 = vrot.slane %v9256, 1
  %v9259 = vshll.u32 %v6640, 16
  %v9261 = vrot.slane %v9259, 2
  %v9262 = vor.u32 %v9258, %v9261
  %v9263 = vshrl.u32 %v6642, 16
  %v9265 = vrot.slane %v9263, 1
  %v9266 = vshll.u32 %v6642, 16
  %v9268 = vrot.slane %v9266, 2
  %v9269 = vor.u32 %v9265, %v9268
  %v9270 = vsel %vm6717, %v9262, %v9269
  %v9271 = vshrl.u32 %v5922, 16
  %v9273 = vrot.slane %v9271, 1
  %v9274 = vshll.u32 %v5922, 16
  %v9276 = vrot.slane %v9274, 2
  %v9277 = vor.u32 %v9273, %v9276
  %v9278 = vshrl.u32 %v5924, 16
  %v9280 = vrot.slane %v9278, 1
  %v9281 = vshll.u32 %v5924, 16
  %v9283 = vrot.slane %v9281, 2
  %v9284 = vor.u32 %v9280, %v9283
  %v9285 = vsel %vm6717, %v9277, %v9284
  %v9286 = vshrl.u32 %v6113, 16
  %v9288 = vrot.slane %v9286, 1
  %v9289 = vshll.u32 %v6113, 16
  %v9291 = vrot.slane %v9289, 2
  %v9292 = vor.u32 %v9288, %v9291
  %v9293 = vshrl.u32 %v6116, 16
  %v9295 = vrot.slane %v9293, 1
  %v9296 = vshll.u32 %v6116, 16
  %v9298 = vrot.slane %v9296, 2
  %v9299 = vor.u32 %v9295, %v9298
  %v9300 = vsel %vm6717, %v9292, %v9299
  %v9301 = vshrl.u32 %v5770, 16
  %v9303 = vrot.slane %v9301, 1
  %v9304 = vshll.u32 %v5770, 16
  %v9306 = vrot.slane %v9304, 2
  %v9307 = vor.u32 %v9303, %v9306
  %v9308 = vshrl.u32 %v5772, 16
  %v9310 = vrot.slane %v9308, 1
  %v9311 = vshll.u32 %v5772, 16
  %v9313 = vrot.slane %v9311, 2
  %v9314 = vor.u32 %v9310, %v9313
  %v9315 = vsel %vm6717, %v9307, %v9314
  %v9316 = vshrl.u32 %v6277, 16
  %v9318 = vrot.slane %v9316, 1
  %v9319 = vshll.u32 %v6277, 16
  %v9321 = vrot.slane %v9319, 2
  %v9322 = vor.u32 %v9318, %v9321
  %v9323 = vshrl.u32 %v6278, 16
  %v9325 = vrot.slane %v9323, 1
  %v9326 = vshll.u32 %v6278, 16
  %v9328 = vrot.slane %v9326, 2
  %v9329 = vor.u32 %v9325, %v9328
  %v9330 = vsel %vm6717, %v9322, %v9329
  %v9331 = vshrl.u32 %v6510, 16
  %v9333 = vrot.slane %v9331, 1
  %v9334 = vshll.u32 %v6510, 16
  %v9336 = vrot.slane %v9334, 2
  %v9337 = vor.u32 %v9333, %v9336
  %v9338 = vshrl.u32 %v6512, 16
  %v9340 = vrot.slane %v9338, 1
  %v9341 = vshll.u32 %v6512, 16
  %v9343 = vrot.slane %v9341, 2
  %v9344 = vor.u32 %v9340, %v9343
  %v9345 = vsel %vm6717, %v9337, %v9344
  %v9346 = vshrl.u32 %v6644, 16
  %v9348 = vrot.slane %v9346, 1
  %v9349 = vshll.u32 %v6644, 16
  %v9351 = vrot.slane %v9349, 2
  %v9352 = vor.u32 %v9348, %v9351
  %v9353 = vshrl.u32 %v6646, 16
  %v9355 = vrot.slane %v9353, 1
  %v9356 = vshll.u32 %v6646, 16
  %v9358 = vrot.slane %v9356, 2
  %v9359 = vor.u32 %v9355, %v9358
  %v9360 = vsel %vm6717, %v9352, %v9359
  %v9362 = vshrl.u32 %v7208, 16
  %v9364 = vrot.slane %v9362, 1
  %v9365 = vshll.u32 %v7208, 16
  %v9367 = vrot.slane %v9365, 2
  %v9368 = vor.u32 %v9364, %v9367
  %v9370 = vshrl.u32 %v7211, 16
  %v9372 = vrot.slane %v9370, 1
  %v9373 = vshll.u32 %v7211, 16
  %v9375 = vrot.slane %v9373, 2
  %v9376 = vor.u32 %v9372, %v9375
  %v9377 = vsel %vm6717, %v9368, %v9376
  %v9378 = vshrl.u32 %v5766, 16
  %v9380 = vrot.slane %v9378, 1
  %v9381 = vshll.u32 %v5766, 16
  %v9383 = vrot.slane %v9381, 2
  %v9384 = vor.u32 %v9380, %v9383
  %v9385 = vshrl.u32 %v5768, 16
  %v9387 = vrot.slane %v9385, 1
  %v9388 = vshll.u32 %v5768, 16
  %v9390 = vrot.slane %v9388, 2
  %v9391 = vor.u32 %v9387, %v9390
  %v9392 = vsel %vm6717, %v9384, %v9391
  %v9393 = vshrl.u32 %v5927, 16
  %v9395 = vrot.slane %v9393, 1
  %v9396 = vshll.u32 %v5927, 16
  %v9398 = vrot.slane %v9396, 2
  %v9399 = vor.u32 %v9395, %v9398
  %v9400 = vshrl.u32 %v5930, 16
  %v9402 = vrot.slane %v9400, 1
  %v9403 = vshll.u32 %v5930, 16
  %v9405 = vrot.slane %v9403, 2
  %v9406 = vor.u32 %v9402, %v9405
  %v9407 = vsel %vm6717, %v9399, %v9406
  %v9408 = vshrl.u32 %v6119, 16
  %v9410 = vrot.slane %v9408, 1
  %v9411 = vshll.u32 %v6119, 16
  %v9413 = vrot.slane %v9411, 2
  %v9414 = vor.u32 %v9410, %v9413
  %v9415 = vshrl.u32 %v6122, 16
  %v9417 = vrot.slane %v9415, 1
  %v9418 = vshll.u32 %v6122, 16
  %v9420 = vrot.slane %v9418, 2
  %v9421 = vor.u32 %v9417, %v9420
  %v9422 = vsel %vm6717, %v9414, %v9421
  %v9423 = vshrl.u32 %v5774, 16
  %v9425 = vrot.slane %v9423, 1
  %v9426 = vshll.u32 %v5774, 16
  %v9428 = vrot.slane %v9426, 2
  %v9429 = vor.u32 %v9425, %v9428
  %v9430 = vshrl.u32 %v5776, 16
  %v9432 = vrot.slane %v9430, 1
  %v9433 = vshll.u32 %v5776, 16
  %v9435 = vrot.slane %v9433, 2
  %v9436 = vor.u32 %v9432, %v9435
  %v9437 = vsel %vm6717, %v9429, %v9436
  %v9438 = vshrl.u32 %v6279, 16
  %v9440 = vrot.slane %v9438, 1
  %v9441 = vshll.u32 %v6279, 16
  %v9443 = vrot.slane %v9441, 2
  %v9444 = vor.u32 %v9440, %v9443
  %v9445 = vshrl.u32 %v6280, 16
  %v9447 = vrot.slane %v9445, 1
  %v9448 = vshll.u32 %v6280, 16
  %v9450 = vrot.slane %v9448, 2
  %v9451 = vor.u32 %v9447, %v9450
  %v9452 = vsel %vm6717, %v9444, %v9451
  %v9453 = vshrl.u32 %v6514, 16
  %v9455 = vrot.slane %v9453, 1
  %v9456 = vshll.u32 %v6514, 16
  %v9458 = vrot.slane %v9456, 2
  %v9459 = vor.u32 %v9455, %v9458
  %v9460 = vshrl.u32 %v6516, 16
  %v9462 = vrot.slane %v9460, 1
  %v9463 = vshll.u32 %v6516, 16
  %v9465 = vrot.slane %v9463, 2
  %v9466 = vor.u32 %v9462, %v9465
  %v9467 = vsel %vm6717, %v9459, %v9466
  %v9468 = vshrl.u32 %v6648, 16
  %v9470 = vrot.slane %v9468, 1
  %v9471 = vshll.u32 %v6648, 16
  %v9473 = vrot.slane %v9471, 2
  %v9474 = vor.u32 %v9470, %v9473
  %v9475 = vshrl.u32 %v6650, 16
  %v9477 = vrot.slane %v9475, 1
  %v9478 = vshll.u32 %v6650, 16
  %v9480 = vrot.slane %v9478, 2
  %v9481 = vor.u32 %v9477, %v9480
  %v9482 = vsel %vm6717, %v9474, %v9481
  %v9484 = vshrl.u32 %v7221, 16
  %v9486 = vrot.slane %v9484, 1
  %v9487 = vshll.u32 %v7221, 16
  %v9489 = vrot.slane %v9487, 2
  %v9490 = vor.u32 %v9486, %v9489
  %v9492 = vshrl.u32 %v7224, 16
  %v9494 = vrot.slane %v9492, 1
  %v9495 = vshll.u32 %v7224, 16
  %v9497 = vrot.slane %v9495, 2
  %v9498 = vor.u32 %v9494, %v9497
  %v9499 = vsel %vm6717, %v9490, %v9498
  %v9500 = vshrl.u32 %v5933, 16
  %v9502 = vrot.slane %v9500, 1
  %v9503 = vshll.u32 %v5933, 16
  %v9505 = vrot.slane %v9503, 2
  %v9506 = vor.u32 %v9502, %v9505
  %v9507 = vshrl.u32 %v5936, 16
  %v9509 = vrot.slane %v9507, 1
  %v9510 = vshll.u32 %v5936, 16
  %v9512 = vrot.slane %v9510, 2
  %v9513 = vor.u32 %v9509, %v9512
  %v9514 = vsel %vm6717, %v9506, %v9513
  %v9515 = vshrl.u32 %v6125, 16
  %v9517 = vrot.slane %v9515, 1
  %v9518 = vshll.u32 %v6125, 16
  %v9520 = vrot.slane %v9518, 2
  %v9521 = vor.u32 %v9517, %v9520
  %v9522 = vshrl.u32 %v6128, 16
  %v9524 = vrot.slane %v9522, 1
  %v9525 = vshll.u32 %v6128, 16
  %v9527 = vrot.slane %v9525, 2
  %v9528 = vor.u32 %v9524, %v9527
  %v9529 = vsel %vm6717, %v9521, %v9528
  %v9530 = vshrl.u32 %v5778, 16
  %v9532 = vrot.slane %v9530, 1
  %v9533 = vshll.u32 %v5778, 16
  %v9535 = vrot.slane %v9533, 2
  %v9536 = vor.u32 %v9532, %v9535
  %v9537 = vshrl.u32 %v5780, 16
  %v9539 = vrot.slane %v9537, 1
  %v9540 = vshll.u32 %v5780, 16
  %v9542 = vrot.slane %v9540, 2
  %v9543 = vor.u32 %v9539, %v9542
  %v9544 = vsel %vm6717, %v9536, %v9543
  %v9545 = vshrl.u32 %v6281, 16
  %v9547 = vrot.slane %v9545, 1
  %v9548 = vshll.u32 %v6281, 16
  %v9550 = vrot.slane %v9548, 2
  %v9551 = vor.u32 %v9547, %v9550
  %v9552 = vshrl.u32 %v6282, 16
  %v9554 = vrot.slane %v9552, 1
  %v9555 = vshll.u32 %v6282, 16
  %v9557 = vrot.slane %v9555, 2
  %v9558 = vor.u32 %v9554, %v9557
  %v9559 = vsel %vm6717, %v9551, %v9558
  %v9560 = vshrl.u32 %v6518, 16
  %v9562 = vrot.slane %v9560, 1
  %v9563 = vshll.u32 %v6518, 16
  %v9565 = vrot.slane %v9563, 2
  %v9566 = vor.u32 %v9562, %v9565
  %v9567 = vshrl.u32 %v6520, 16
  %v9569 = vrot.slane %v9567, 1
  %v9570 = vshll.u32 %v6520, 16
  %v9572 = vrot.slane %v9570, 2
  %v9573 = vor.u32 %v9569, %v9572
  %v9574 = vsel %vm6717, %v9566, %v9573
  %v9575 = vshrl.u32 %v6652, 16
  %v9577 = vrot.slane %v9575, 1
  %v9578 = vshll.u32 %v6652, 16
  %v9580 = vrot.slane %v9578, 2
  %v9581 = vor.u32 %v9577, %v9580
  %v9582 = vshrl.u32 %v6654, 16
  %v9584 = vrot.slane %v9582, 1
  %v9585 = vshll.u32 %v6654, 16
  %v9587 = vrot.slane %v9585, 2
  %v9588 = vor.u32 %v9584, %v9587
  %v9589 = vsel %vm6717, %v9581, %v9588
  %v9591 = vshrl.u32 %v7234, 16
  %v9593 = vrot.slane %v9591, 1
  %v9594 = vshll.u32 %v7234, 16
  %v9596 = vrot.slane %v9594, 2
  %v9597 = vor.u32 %v9593, %v9596
  %v9599 = vshrl.u32 %v7237, 16
  %v9601 = vrot.slane %v9599, 1
  %v9602 = vshll.u32 %v7237, 16
  %v9604 = vrot.slane %v9602, 2
  %v9605 = vor.u32 %v9601, %v9604
  %v9606 = vsel %vm6717, %v9597, %v9605
  %v9607 = vshrl.u32 %v5939, 16
  %v9609 = vrot.slane %v9607, 1
  %v9610 = vshll.u32 %v5939, 16
  %v9612 = vrot.slane %v9610, 2
  %v9613 = vor.u32 %v9609, %v9612
  %v9614 = vshrl.u32 %v5942, 16
  %v9616 = vrot.slane %v9614, 1
  %v9617 = vshll.u32 %v5942, 16
  %v9619 = vrot.slane %v9617, 2
  %v9620 = vor.u32 %v9616, %v9619
  %v9621 = vsel %vm6717, %v9613, %v9620
  %v9622 = vshrl.u32 %v6131, 16
  %v9624 = vrot.slane %v9622, 1
  %v9625 = vshll.u32 %v6131, 16
  %v9627 = vrot.slane %v9625, 2
  %v9628 = vor.u32 %v9624, %v9627
  %v9629 = vshrl.u32 %v6134, 16
  %v9631 = vrot.slane %v9629, 1
  %v9632 = vshll.u32 %v6134, 16
  %v9634 = vrot.slane %v9632, 2
  %v9635 = vor.u32 %v9631, %v9634
  %v9636 = vsel %vm6717, %v9628, %v9635
  %v9637 = vshrl.u32 %v5782, 16
  %v9639 = vrot.slane %v9637, 1
  %v9640 = vshll.u32 %v5782, 16
  %v9642 = vrot.slane %v9640, 2
  %v9643 = vor.u32 %v9639, %v9642
  %v9644 = vshrl.u32 %v5784, 16
  %v9646 = vrot.slane %v9644, 1
  %v9647 = vshll.u32 %v5784, 16
  %v9649 = vrot.slane %v9647, 2
  %v9650 = vor.u32 %v9646, %v9649
  %v9651 = vsel %vm6717, %v9643, %v9650
  %v9652 = vshrl.u32 %v6284, 16
  %v9654 = vrot.slane %v9652, 1
  %v9655 = vshll.u32 %v6284, 16
  %v9657 = vrot.slane %v9655, 2
  %v9658 = vor.u32 %v9654, %v9657
  %v9659 = vshrl.u32 %v6286, 16
  %v9661 = vrot.slane %v9659, 1
  %v9662 = vshll.u32 %v6286, 16
  %v9664 = vrot.slane %v9662, 2
  %v9665 = vor.u32 %v9661, %v9664
  %v9666 = vsel %vm6717, %v9658, %v9665
  %v9667 = vshrl.u32 %v6394, 16
  %v9669 = vrot.slane %v9667, 1
  %v9670 = vshll.u32 %v6394, 16
  %v9672 = vrot.slane %v9670, 2
  %v9673 = vor.u32 %v9669, %v9672
  %v9674 = vshrl.u32 %v6396, 16
  %v9676 = vrot.slane %v9674, 1
  %v9677 = vshll.u32 %v6396, 16
  %v9679 = vrot.slane %v9677, 2
  %v9680 = vor.u32 %v9676, %v9679
  %v9681 = vsel %vm6717, %v9673, %v9680
  %v9682 = vshrl.u32 %v6522, 16
  %v9684 = vrot.slane %v9682, 1
  %v9685 = vshll.u32 %v6522, 16
  %v9687 = vrot.slane %v9685, 2
  %v9688 = vor.u32 %v9684, %v9687
  %v9689 = vshrl.u32 %v6524, 16
  %v9691 = vrot.slane %v9689, 1
  %v9692 = vshll.u32 %v6524, 16
  %v9694 = vrot.slane %v9692, 2
  %v9695 = vor.u32 %v9691, %v9694
  %v9696 = vsel %vm6717, %v9688, %v9695
  %v9697 = vshrl.u32 %v6656, 16
  %v9699 = vrot.slane %v9697, 1
  %v9700 = vshll.u32 %v6656, 16
  %v9702 = vrot.slane %v9700, 2
  %v9703 = vor.u32 %v9699, %v9702
  %v9704 = vshrl.u32 %v6658, 16
  %v9706 = vrot.slane %v9704, 1
  %v9707 = vshll.u32 %v6658, 16
  %v9709 = vrot.slane %v9707, 2
  %v9710 = vor.u32 %v9706, %v9709
  %v9711 = vsel %vm6717, %v9703, %v9710
  %v9713 = vshrl.u32 %v7247, 16
  %v9715 = vrot.slane %v9713, 1
  %v9716 = vshll.u32 %v7247, 16
  %v9718 = vrot.slane %v9716, 2
  %v9719 = vor.u32 %v9715, %v9718
  %v9721 = vshrl.u32 %v7250, 16
  %v9723 = vrot.slane %v9721, 1
  %v9724 = vshll.u32 %v7250, 16
  %v9726 = vrot.slane %v9724, 2
  %v9727 = vor.u32 %v9723, %v9726
  %v9728 = vsel %vm6717, %v9719, %v9727
  %v9729 = vshrl.u32 %v5945, 16
  %v9731 = vrot.slane %v9729, 1
  %v9732 = vshll.u32 %v5945, 16
  %v9734 = vrot.slane %v9732, 2
  %v9735 = vor.u32 %v9731, %v9734
  %v9736 = vshrl.u32 %v5948, 16
  %v9738 = vrot.slane %v9736, 1
  %v9739 = vshll.u32 %v5948, 16
  %v9741 = vrot.slane %v9739, 2
  %v9742 = vor.u32 %v9738, %v9741
  %v9743 = vsel %vm6717, %v9735, %v9742
  %v9744 = vshrl.u32 %v6137, 16
  %v9746 = vrot.slane %v9744, 1
  %v9747 = vshll.u32 %v6137, 16
  %v9749 = vrot.slane %v9747, 2
  %v9750 = vor.u32 %v9746, %v9749
  %v9751 = vshrl.u32 %v6140, 16
  %v9753 = vrot.slane %v9751, 1
  %v9754 = vshll.u32 %v6140, 16
  %v9756 = vrot.slane %v9754, 2
  %v9757 = vor.u32 %v9753, %v9756
  %v9758 = vsel %vm6717, %v9750, %v9757
  %v9759 = vshrl.u32 %v5786, 16
  %v9761 = vrot.slane %v9759, 1
  %v9762 = vshll.u32 %v5786, 16
  %v9764 = vrot.slane %v9762, 2
  %v9765 = vor.u32 %v9761, %v9764
  %v9766 = vshrl.u32 %v5788, 16
  %v9768 = vrot.slane %v9766, 1
  %v9769 = vshll.u32 %v5788, 16
  %v9771 = vrot.slane %v9769, 2
  %v9772 = vor.u32 %v9768, %v9771
  %v9773 = vsel %vm6717, %v9765, %v9772
  %v9774 = vshrl.u32 %v6288, 16
  %v9776 = vrot.slane %v9774, 1
  %v9777 = vshll.u32 %v6288, 16
  %v9779 = vrot.slane %v9777, 2
  %v9780 = vor.u32 %v9776, %v9779
  %v9781 = vshrl.u32 %v6290, 16
  %v9783 = vrot.slane %v9781, 1
  %v9784 = vshll.u32 %v6290, 16
  %v9786 = vrot.slane %v9784, 2
  %v9787 = vor.u32 %v9783, %v9786
  %v9788 = vsel %vm6717, %v9780, %v9787
  %v9789 = vshrl.u32 %v6398, 16
  %v9791 = vrot.slane %v9789, 1
  %v9792 = vshll.u32 %v6398, 16
  %v9794 = vrot.slane %v9792, 2
  %v9795 = vor.u32 %v9791, %v9794
  %v9796 = vshrl.u32 %v6400, 16
  %v9798 = vrot.slane %v9796, 1
  %v9799 = vshll.u32 %v6400, 16
  %v9801 = vrot.slane %v9799, 2
  %v9802 = vor.u32 %v9798, %v9801
  %v9803 = vsel %vm6717, %v9795, %v9802
  %v9804 = vshrl.u32 %v6526, 16
  %v9806 = vrot.slane %v9804, 1
  %v9807 = vshll.u32 %v6526, 16
  %v9809 = vrot.slane %v9807, 2
  %v9810 = vor.u32 %v9806, %v9809
  %v9811 = vshrl.u32 %v6528, 16
  %v9813 = vrot.slane %v9811, 1
  %v9814 = vshll.u32 %v6528, 16
  %v9816 = vrot.slane %v9814, 2
  %v9817 = vor.u32 %v9813, %v9816
  %v9818 = vsel %vm6717, %v9810, %v9817
  %v9819 = vshrl.u32 %v6660, 16
  %v9821 = vrot.slane %v9819, 1
  %v9822 = vshll.u32 %v6660, 16
  %v9824 = vrot.slane %v9822, 2
  %v9825 = vor.u32 %v9821, %v9824
  %v9826 = vshrl.u32 %v6662, 16
  %v9828 = vrot.slane %v9826, 1
  %v9829 = vshll.u32 %v6662, 16
  %v9831 = vrot.slane %v9829, 2
  %v9832 = vor.u32 %v9828, %v9831
  %v9833 = vsel %vm6717, %v9825, %v9832
  %v9835 = vshrl.u32 %v7260, 16
  %v9837 = vrot.slane %v9835, 1
  %v9838 = vshll.u32 %v7260, 16
  %v9840 = vrot.slane %v9838, 2
  %v9841 = vor.u32 %v9837, %v9840
  %v9843 = vshrl.u32 %v7263, 16
  %v9845 = vrot.slane %v9843, 1
  %v9846 = vshll.u32 %v7263, 16
  %v9848 = vrot.slane %v9846, 2
  %v9849 = vor.u32 %v9845, %v9848
  %v9850 = vsel %vm6717, %v9841, %v9849
  %v9851 = vshrl.u32 %v5951, 16
  %v9853 = vrot.slane %v9851, 1
  %v9854 = vshll.u32 %v5951, 16
  %v9856 = vrot.slane %v9854, 2
  %v9857 = vor.u32 %v9853, %v9856
  %v9858 = vshrl.u32 %v5954, 16
  %v9860 = vrot.slane %v9858, 1
  %v9861 = vshll.u32 %v5954, 16
  %v9863 = vrot.slane %v9861, 2
  %v9864 = vor.u32 %v9860, %v9863
  %v9865 = vsel %vm6717, %v9857, %v9864
  %v9866 = vshrl.u32 %v6143, 16
  %v9868 = vrot.slane %v9866, 1
  %v9869 = vshll.u32 %v6143, 16
  %v9871 = vrot.slane %v9869, 2
  %v9872 = vor.u32 %v9868, %v9871
  %v9873 = vshrl.u32 %v6146, 16
  %v9875 = vrot.slane %v9873, 1
  %v9876 = vshll.u32 %v6146, 16
  %v9878 = vrot.slane %v9876, 2
  %v9879 = vor.u32 %v9875, %v9878
  %v9880 = vsel %vm6717, %v9872, %v9879
  %v9881 = vshrl.u32 %v5790, 16
  %v9883 = vrot.slane %v9881, 1
  %v9884 = vshll.u32 %v5790, 16
  %v9886 = vrot.slane %v9884, 2
  %v9887 = vor.u32 %v9883, %v9886
  %v9888 = vshrl.u32 %v5792, 16
  %v9890 = vrot.slane %v9888, 1
  %v9891 = vshll.u32 %v5792, 16
  %v9893 = vrot.slane %v9891, 2
  %v9894 = vor.u32 %v9890, %v9893
  %v9895 = vsel %vm6717, %v9887, %v9894
  %v9896 = vshrl.u32 %v6292, 16
  %v9898 = vrot.slane %v9896, 1
  %v9899 = vshll.u32 %v6292, 16
  %v9901 = vrot.slane %v9899, 2
  %v9902 = vor.u32 %v9898, %v9901
  %v9903 = vshrl.u32 %v6294, 16
  %v9905 = vrot.slane %v9903, 1
  %v9906 = vshll.u32 %v6294, 16
  %v9908 = vrot.slane %v9906, 2
  %v9909 = vor.u32 %v9905, %v9908
  %v9910 = vsel %vm6717, %v9902, %v9909
  %v9911 = vshrl.u32 %v6402, 16
  %v9913 = vrot.slane %v9911, 1
  %v9914 = vshll.u32 %v6402, 16
  %v9916 = vrot.slane %v9914, 2
  %v9917 = vor.u32 %v9913, %v9916
  %v9918 = vshrl.u32 %v6404, 16
  %v9920 = vrot.slane %v9918, 1
  %v9921 = vshll.u32 %v6404, 16
  %v9923 = vrot.slane %v9921, 2
  %v9924 = vor.u32 %v9920, %v9923
  %v9925 = vsel %vm6717, %v9917, %v9924
  %v9926 = vshrl.u32 %v6530, 16
  %v9928 = vrot.slane %v9926, 1
  %v9929 = vshll.u32 %v6530, 16
  %v9931 = vrot.slane %v9929, 2
  %v9932 = vor.u32 %v9928, %v9931
  %v9933 = vshrl.u32 %v6532, 16
  %v9935 = vrot.slane %v9933, 1
  %v9936 = vshll.u32 %v6532, 16
  %v9938 = vrot.slane %v9936, 2
  %v9939 = vor.u32 %v9935, %v9938
  %v9940 = vsel %vm6717, %v9932, %v9939
  %v9941 = vshrl.u32 %v6664, 16
  %v9943 = vrot.slane %v9941, 1
  %v9944 = vshll.u32 %v6664, 16
  %v9946 = vrot.slane %v9944, 2
  %v9947 = vor.u32 %v9943, %v9946
  %v9948 = vshrl.u32 %v6666, 16
  %v9950 = vrot.slane %v9948, 1
  %v9951 = vshll.u32 %v6666, 16
  %v9953 = vrot.slane %v9951, 2
  %v9954 = vor.u32 %v9950, %v9953
  %v9955 = vsel %vm6717, %v9947, %v9954
  %v9957 = vshrl.u32 %v7273, 16
  %v9959 = vrot.slane %v9957, 1
  %v9960 = vshll.u32 %v7273, 16
  %v9962 = vrot.slane %v9960, 2
  %v9963 = vor.u32 %v9959, %v9962
  %v9965 = vshrl.u32 %v7276, 16
  %v9967 = vrot.slane %v9965, 1
  %v9968 = vshll.u32 %v7276, 16
  %v9970 = vrot.slane %v9968, 2
  %v9971 = vor.u32 %v9967, %v9970
  %v9972 = vsel %vm6717, %v9963, %v9971
  %v9973 = vshrl.u32 %v5957, 16
  %v9975 = vrot.slane %v9973, 1
  %v9976 = vshll.u32 %v5957, 16
  %v9978 = vrot.slane %v9976, 2
  %v9979 = vor.u32 %v9975, %v9978
  %v9980 = vshrl.u32 %v5960, 16
  %v9982 = vrot.slane %v9980, 1
  %v9983 = vshll.u32 %v5960, 16
  %v9985 = vrot.slane %v9983, 2
  %v9986 = vor.u32 %v9982, %v9985
  %v9987 = vsel %vm6717, %v9979, %v9986
  %v9988 = vshrl.u32 %v6149, 16
  %v9990 = vrot.slane %v9988, 1
  %v9991 = vshll.u32 %v6149, 16
  %v9993 = vrot.slane %v9991, 2
  %v9994 = vor.u32 %v9990, %v9993
  %v9995 = vshrl.u32 %v6152, 16
  %v9997 = vrot.slane %v9995, 1
  %v9998 = vshll.u32 %v6152, 16
  %v10000 = vrot.slane %v9998, 2
  %v10001 = vor.u32 %v9997, %v10000
  %v10002 = vsel %vm6717, %v9994, %v10001
  %v10003 = vshrl.u32 %v5794, 16
  %v10005 = vrot.slane %v10003, 1
  %v10006 = vshll.u32 %v5794, 16
  %v10008 = vrot.slane %v10006, 2
  %v10009 = vor.u32 %v10005, %v10008
  %v10010 = vshrl.u32 %v5796, 16
  %v10012 = vrot.slane %v10010, 1
  %v10013 = vshll.u32 %v5796, 16
  %v10015 = vrot.slane %v10013, 2
  %v10016 = vor.u32 %v10012, %v10015
  %v10017 = vsel %vm6717, %v10009, %v10016
  %v10018 = vshrl.u32 %v6296, 16
  %v10020 = vrot.slane %v10018, 1
  %v10021 = vshll.u32 %v6296, 16
  %v10023 = vrot.slane %v10021, 2
  %v10024 = vor.u32 %v10020, %v10023
  %v10025 = vshrl.u32 %v6298, 16
  %v10027 = vrot.slane %v10025, 1
  %v10028 = vshll.u32 %v6298, 16
  %v10030 = vrot.slane %v10028, 2
  %v10031 = vor.u32 %v10027, %v10030
  %v10032 = vsel %vm6717, %v10024, %v10031
  %v10033 = vshrl.u32 %v6406, 16
  %v10035 = vrot.slane %v10033, 1
  %v10036 = vshll.u32 %v6406, 16
  %v10038 = vrot.slane %v10036, 2
  %v10039 = vor.u32 %v10035, %v10038
  %v10040 = vshrl.u32 %v6408, 16
  %v10042 = vrot.slane %v10040, 1
  %v10043 = vshll.u32 %v6408, 16
  %v10045 = vrot.slane %v10043, 2
  %v10046 = vor.u32 %v10042, %v10045
  %v10047 = vsel %vm6717, %v10039, %v10046
  %v10048 = vshrl.u32 %v6534, 16
  %v10050 = vrot.slane %v10048, 1
  %v10051 = vshll.u32 %v6534, 16
  %v10053 = vrot.slane %v10051, 2
  %v10054 = vor.u32 %v10050, %v10053
  %v10055 = vshrl.u32 %v6536, 16
  %v10057 = vrot.slane %v10055, 1
  %v10058 = vshll.u32 %v6536, 16
  %v10060 = vrot.slane %v10058, 2
  %v10061 = vor.u32 %v10057, %v10060
  %v10062 = vsel %vm6717, %v10054, %v10061
  %v10063 = vshrl.u32 %v6668, 16
  %v10065 = vrot.slane %v10063, 1
  %v10066 = vshll.u32 %v6668, 16
  %v10068 = vrot.slane %v10066, 2
  %v10069 = vor.u32 %v10065, %v10068
  %v10070 = vshrl.u32 %v6670, 16
  %v10072 = vrot.slane %v10070, 1
  %v10073 = vshll.u32 %v6670, 16
  %v10075 = vrot.slane %v10073, 2
  %v10076 = vor.u32 %v10072, %v10075
  %v10077 = vsel %vm6717, %v10069, %v10076
  %v10079 = vshrl.u32 %v7286, 16
  %v10081 = vrot.slane %v10079, 1
  %v10082 = vshll.u32 %v7286, 16
  %v10084 = vrot.slane %v10082, 2
  %v10085 = vor.u32 %v10081, %v10084
  %v10087 = vshrl.u32 %v7289, 16
  %v10089 = vrot.slane %v10087, 1
  %v10090 = vshll.u32 %v7289, 16
  %v10092 = vrot.slane %v10090, 2
  %v10093 = vor.u32 %v10089, %v10092
  %v10094 = vsel %vm6717, %v10085, %v10093
  %v10095 = vshrl.u32 %v5963, 16
  %v10097 = vrot.slane %v10095, 1
  %v10098 = vshll.u32 %v5963, 16
  %v10100 = vrot.slane %v10098, 2
  %v10101 = vor.u32 %v10097, %v10100
  %v10102 = vshrl.u32 %v5966, 16
  %v10104 = vrot.slane %v10102, 1
  %v10105 = vshll.u32 %v5966, 16
  %v10107 = vrot.slane %v10105, 2
  %v10108 = vor.u32 %v10104, %v10107
  %v10109 = vsel %vm6717, %v10101, %v10108
  %v10110 = vshrl.u32 %v6155, 16
  %v10112 = vrot.slane %v10110, 1
  %v10113 = vshll.u32 %v6155, 16
  %v10115 = vrot.slane %v10113, 2
  %v10116 = vor.u32 %v10112, %v10115
  %v10117 = vshrl.u32 %v6158, 16
  %v10119 = vrot.slane %v10117, 1
  %v10120 = vshll.u32 %v6158, 16
  %v10122 = vrot.slane %v10120, 2
  %v10123 = vor.u32 %v10119, %v10122
  %v10124 = vsel %vm6717, %v10116, %v10123
  %v10125 = vshrl.u32 %v5798, 16
  %v10127 = vrot.slane %v10125, 1
  %v10128 = vshll.u32 %v5798, 16
  %v10130 = vrot.slane %v10128, 2
  %v10131 = vor.u32 %v10127, %v10130
  %v10132 = vshrl.u32 %v5800, 16
  %v10134 = vrot.slane %v10132, 1
  %v10135 = vshll.u32 %v5800, 16
  %v10137 = vrot.slane %v10135, 2
  %v10138 = vor.u32 %v10134, %v10137
  %v10139 = vsel %vm6717, %v10131, %v10138
  %v10140 = vshrl.u32 %v6300, 16
  %v10142 = vrot.slane %v10140, 1
  %v10143 = vshll.u32 %v6300, 16
  %v10145 = vrot.slane %v10143, 2
  %v10146 = vor.u32 %v10142, %v10145
  %v10147 = vshrl.u32 %v6302, 16
  %v10149 = vrot.slane %v10147, 1
  %v10150 = vshll.u32 %v6302, 16
  %v10152 = vrot.slane %v10150, 2
  %v10153 = vor.u32 %v10149, %v10152
  %v10154 = vsel %vm6717, %v10146, %v10153
  %v10155 = vshrl.u32 %v6410, 16
  %v10157 = vrot.slane %v10155, 1
  %v10158 = vshll.u32 %v6410, 16
  %v10160 = vrot.slane %v10158, 2
  %v10161 = vor.u32 %v10157, %v10160
  %v10162 = vshrl.u32 %v6412, 16
  %v10164 = vrot.slane %v10162, 1
  %v10165 = vshll.u32 %v6412, 16
  %v10167 = vrot.slane %v10165, 2
  %v10168 = vor.u32 %v10164, %v10167
  %v10169 = vsel %vm6717, %v10161, %v10168
  %v10170 = vshrl.u32 %v6538, 16
  %v10172 = vrot.slane %v10170, 1
  %v10173 = vshll.u32 %v6538, 16
  %v10175 = vrot.slane %v10173, 2
  %v10176 = vor.u32 %v10172, %v10175
  %v10177 = vshrl.u32 %v6540, 16
  %v10179 = vrot.slane %v10177, 1
  %v10180 = vshll.u32 %v6540, 16
  %v10182 = vrot.slane %v10180, 2
  %v10183 = vor.u32 %v10179, %v10182
  %v10184 = vsel %vm6717, %v10176, %v10183
  %v10185 = vshrl.u32 %v6672, 16
  %v10187 = vrot.slane %v10185, 1
  %v10188 = vshll.u32 %v6672, 16
  %v10190 = vrot.slane %v10188, 2
  %v10191 = vor.u32 %v10187, %v10190
  %v10192 = vshrl.u32 %v6674, 16
  %v10194 = vrot.slane %v10192, 1
  %v10195 = vshll.u32 %v6674, 16
  %v10197 = vrot.slane %v10195, 2
  %v10198 = vor.u32 %v10194, %v10197
  %v10199 = vsel %vm6717, %v10191, %v10198
  %v10201 = vshrl.u32 %v7299, 16
  %v10203 = vrot.slane %v10201, 1
  %v10204 = vshll.u32 %v7299, 16
  %v10206 = vrot.slane %v10204, 2
  %v10207 = vor.u32 %v10203, %v10206
  %v10209 = vshrl.u32 %v7302, 16
  %v10211 = vrot.slane %v10209, 1
  %v10212 = vshll.u32 %v7302, 16
  %v10214 = vrot.slane %v10212, 2
  %v10215 = vor.u32 %v10211, %v10214
  %v10216 = vsel %vm6717, %v10207, %v10215
  %v10217 = vshrl.u32 %v5969, 16
  %v10219 = vrot.slane %v10217, 1
  %v10220 = vshll.u32 %v5969, 16
  %v10222 = vrot.slane %v10220, 2
  %v10223 = vor.u32 %v10219, %v10222
  %v10224 = vshrl.u32 %v5972, 16
  %v10226 = vrot.slane %v10224, 1
  %v10227 = vshll.u32 %v5972, 16
  %v10229 = vrot.slane %v10227, 2
  %v10230 = vor.u32 %v10226, %v10229
  %v10231 = vsel %vm6717, %v10223, %v10230
  %v10232 = vshrl.u32 %v6161, 16
  %v10234 = vrot.slane %v10232, 1
  %v10235 = vshll.u32 %v6161, 16
  %v10237 = vrot.slane %v10235, 2
  %v10238 = vor.u32 %v10234, %v10237
  %v10239 = vshrl.u32 %v6164, 16
  %v10241 = vrot.slane %v10239, 1
  %v10242 = vshll.u32 %v6164, 16
  %v10244 = vrot.slane %v10242, 2
  %v10245 = vor.u32 %v10241, %v10244
  %v10246 = vsel %vm6717, %v10238, %v10245
  %v10247 = vshrl.u32 %v5802, 16
  %v10249 = vrot.slane %v10247, 1
  %v10250 = vshll.u32 %v5802, 16
  %v10252 = vrot.slane %v10250, 2
  %v10253 = vor.u32 %v10249, %v10252
  %v10254 = vshrl.u32 %v5804, 16
  %v10256 = vrot.slane %v10254, 1
  %v10257 = vshll.u32 %v5804, 16
  %v10259 = vrot.slane %v10257, 2
  %v10260 = vor.u32 %v10256, %v10259
  %v10261 = vsel %vm6717, %v10253, %v10260
  %v10262 = vshrl.u32 %v6304, 16
  %v10264 = vrot.slane %v10262, 1
  %v10265 = vshll.u32 %v6304, 16
  %v10267 = vrot.slane %v10265, 2
  %v10268 = vor.u32 %v10264, %v10267
  %v10269 = vshrl.u32 %v6306, 16
  %v10271 = vrot.slane %v10269, 1
  %v10272 = vshll.u32 %v6306, 16
  %v10274 = vrot.slane %v10272, 2
  %v10275 = vor.u32 %v10271, %v10274
  %v10276 = vsel %vm6717, %v10268, %v10275
  %v10277 = vshrl.u32 %v6414, 16
  %v10279 = vrot.slane %v10277, 1
  %v10280 = vshll.u32 %v6414, 16
  %v10282 = vrot.slane %v10280, 2
  %v10283 = vor.u32 %v10279, %v10282
  %v10284 = vshrl.u32 %v6416, 16
  %v10286 = vrot.slane %v10284, 1
  %v10287 = vshll.u32 %v6416, 16
  %v10289 = vrot.slane %v10287, 2
  %v10290 = vor.u32 %v10286, %v10289
  %v10291 = vsel %vm6717, %v10283, %v10290
  %v10292 = vshrl.u32 %v6542, 16
  %v10294 = vrot.slane %v10292, 1
  %v10295 = vshll.u32 %v6542, 16
  %v10297 = vrot.slane %v10295, 2
  %v10298 = vor.u32 %v10294, %v10297
  %v10299 = vshrl.u32 %v6544, 16
  %v10301 = vrot.slane %v10299, 1
  %v10302 = vshll.u32 %v6544, 16
  %v10304 = vrot.slane %v10302, 2
  %v10305 = vor.u32 %v10301, %v10304
  %v10306 = vsel %vm6717, %v10298, %v10305
  %v10307 = vshrl.u32 %v6676, 16
  %v10309 = vrot.slane %v10307, 1
  %v10310 = vshll.u32 %v6676, 16
  %v10312 = vrot.slane %v10310, 2
  %v10313 = vor.u32 %v10309, %v10312
  %v10314 = vshrl.u32 %v6678, 16
  %v10316 = vrot.slane %v10314, 1
  %v10317 = vshll.u32 %v6678, 16
  %v10319 = vrot.slane %v10317, 2
  %v10320 = vor.u32 %v10316, %v10319
  %v10321 = vsel %vm6717, %v10313, %v10320
  %v10323 = vshrl.u32 %v7312, 16
  %v10325 = vrot.slane %v10323, 1
  %v10326 = vshll.u32 %v7312, 16
  %v10328 = vrot.slane %v10326, 2
  %v10329 = vor.u32 %v10325, %v10328
  %v10331 = vshrl.u32 %v7315, 16
  %v10333 = vrot.slane %v10331, 1
  %v10334 = vshll.u32 %v7315, 16
  %v10336 = vrot.slane %v10334, 2
  %v10337 = vor.u32 %v10333, %v10336
  %v10338 = vsel %vm6717, %v10329, %v10337
  %v10339 = vshrl.u32 %v5975, 16
  %v10341 = vrot.slane %v10339, 1
  %v10342 = vshll.u32 %v5975, 16
  %v10344 = vrot.slane %v10342, 2
  %v10345 = vor.u32 %v10341, %v10344
  %v10346 = vshrl.u32 %v5978, 16
  %v10348 = vrot.slane %v10346, 1
  %v10349 = vshll.u32 %v5978, 16
  %v10351 = vrot.slane %v10349, 2
  %v10352 = vor.u32 %v10348, %v10351
  %v10353 = vsel %vm6717, %v10345, %v10352
  %v10354 = vshrl.u32 %v6167, 16
  %v10356 = vrot.slane %v10354, 1
  %v10357 = vshll.u32 %v6167, 16
  %v10359 = vrot.slane %v10357, 2
  %v10360 = vor.u32 %v10356, %v10359
  %v10361 = vshrl.u32 %v6170, 16
  %v10363 = vrot.slane %v10361, 1
  %v10364 = vshll.u32 %v6170, 16
  %v10366 = vrot.slane %v10364, 2
  %v10367 = vor.u32 %v10363, %v10366
  %v10368 = vsel %vm6717, %v10360, %v10367
  %v10369 = vshrl.u32 %v5806, 16
  %v10371 = vrot.slane %v10369, 1
  %v10372 = vshll.u32 %v5806, 16
  %v10374 = vrot.slane %v10372, 2
  %v10375 = vor.u32 %v10371, %v10374
  %v10376 = vshrl.u32 %v5808, 16
  %v10378 = vrot.slane %v10376, 1
  %v10379 = vshll.u32 %v5808, 16
  %v10381 = vrot.slane %v10379, 2
  %v10382 = vor.u32 %v10378, %v10381
  %v10383 = vsel %vm6717, %v10375, %v10382
  %v10384 = vshrl.u32 %v6308, 16
  %v10386 = vrot.slane %v10384, 1
  %v10387 = vshll.u32 %v6308, 16
  %v10389 = vrot.slane %v10387, 2
  %v10390 = vor.u32 %v10386, %v10389
  %v10391 = vshrl.u32 %v6310, 16
  %v10393 = vrot.slane %v10391, 1
  %v10394 = vshll.u32 %v6310, 16
  %v10396 = vrot.slane %v10394, 2
  %v10397 = vor.u32 %v10393, %v10396
  %v10398 = vsel %vm6717, %v10390, %v10397
  %v10399 = vshrl.u32 %v6418, 16
  %v10401 = vrot.slane %v10399, 1
  %v10402 = vshll.u32 %v6418, 16
  %v10404 = vrot.slane %v10402, 2
  %v10405 = vor.u32 %v10401, %v10404
  %v10406 = vshrl.u32 %v6420, 16
  %v10408 = vrot.slane %v10406, 1
  %v10409 = vshll.u32 %v6420, 16
  %v10411 = vrot.slane %v10409, 2
  %v10412 = vor.u32 %v10408, %v10411
  %v10413 = vsel %vm6717, %v10405, %v10412
  %v10414 = vshrl.u32 %v6546, 16
  %v10416 = vrot.slane %v10414, 1
  %v10417 = vshll.u32 %v6546, 16
  %v10419 = vrot.slane %v10417, 2
  %v10420 = vor.u32 %v10416, %v10419
  %v10421 = vshrl.u32 %v6548, 16
  %v10423 = vrot.slane %v10421, 1
  %v10424 = vshll.u32 %v6548, 16
  %v10426 = vrot.slane %v10424, 2
  %v10427 = vor.u32 %v10423, %v10426
  %v10428 = vsel %vm6717, %v10420, %v10427
  %v10429 = vshrl.u32 %v6680, 16
  %v10431 = vrot.slane %v10429, 1
  %v10432 = vshll.u32 %v6680, 16
  %v10434 = vrot.slane %v10432, 2
  %v10435 = vor.u32 %v10431, %v10434
  %v10436 = vshrl.u32 %v6682, 16
  %v10438 = vrot.slane %v10436, 1
  %v10439 = vshll.u32 %v6682, 16
  %v10441 = vrot.slane %v10439, 2
  %v10442 = vor.u32 %v10438, %v10441
  %v10443 = vsel %vm6717, %v10435, %v10442
  %v10445 = vshrl.u32 %v7325, 16
  %v10447 = vrot.slane %v10445, 1
  %v10448 = vshll.u32 %v7325, 16
  %v10450 = vrot.slane %v10448, 2
  %v10451 = vor.u32 %v10447, %v10450
  %v10453 = vshrl.u32 %v7328, 16
  %v10455 = vrot.slane %v10453, 1
  %v10456 = vshll.u32 %v7328, 16
  %v10458 = vrot.slane %v10456, 2
  %v10459 = vor.u32 %v10455, %v10458
  %v10460 = vsel %vm6717, %v10451, %v10459
  %v10461 = vshrl.u32 %v5981, 16
  %v10463 = vrot.slane %v10461, 1
  %v10464 = vshll.u32 %v5981, 16
  %v10466 = vrot.slane %v10464, 2
  %v10467 = vor.u32 %v10463, %v10466
  %v10468 = vshrl.u32 %v5984, 16
  %v10470 = vrot.slane %v10468, 1
  %v10471 = vshll.u32 %v5984, 16
  %v10473 = vrot.slane %v10471, 2
  %v10474 = vor.u32 %v10470, %v10473
  %v10475 = vsel %vm6717, %v10467, %v10474
  %v10476 = vshrl.u32 %v6173, 16
  %v10478 = vrot.slane %v10476, 1
  %v10479 = vshll.u32 %v6173, 16
  %v10481 = vrot.slane %v10479, 2
  %v10482 = vor.u32 %v10478, %v10481
  %v10483 = vshrl.u32 %v6176, 16
  %v10485 = vrot.slane %v10483, 1
  %v10486 = vshll.u32 %v6176, 16
  %v10488 = vrot.slane %v10486, 2
  %v10489 = vor.u32 %v10485, %v10488
  %v10490 = vsel %vm6717, %v10482, %v10489
  %v10491 = vshrl.u32 %v5810, 16
  %v10493 = vrot.slane %v10491, 1
  %v10494 = vshll.u32 %v5810, 16
  %v10496 = vrot.slane %v10494, 2
  %v10497 = vor.u32 %v10493, %v10496
  %v10498 = vshrl.u32 %v5812, 16
  %v10500 = vrot.slane %v10498, 1
  %v10501 = vshll.u32 %v5812, 16
  %v10503 = vrot.slane %v10501, 2
  %v10504 = vor.u32 %v10500, %v10503
  %v10505 = vsel %vm6717, %v10497, %v10504
  %v10506 = vshrl.u32 %v6312, 16
  %v10508 = vrot.slane %v10506, 1
  %v10509 = vshll.u32 %v6312, 16
  %v10511 = vrot.slane %v10509, 2
  %v10512 = vor.u32 %v10508, %v10511
  %v10513 = vshrl.u32 %v6314, 16
  %v10515 = vrot.slane %v10513, 1
  %v10516 = vshll.u32 %v6314, 16
  %v10518 = vrot.slane %v10516, 2
  %v10519 = vor.u32 %v10515, %v10518
  %v10520 = vsel %vm6717, %v10512, %v10519
  %v10521 = vshrl.u32 %v6422, 16
  %v10523 = vrot.slane %v10521, 1
  %v10524 = vshll.u32 %v6422, 16
  %v10526 = vrot.slane %v10524, 2
  %v10527 = vor.u32 %v10523, %v10526
  %v10528 = vshrl.u32 %v6424, 16
  %v10530 = vrot.slane %v10528, 1
  %v10531 = vshll.u32 %v6424, 16
  %v10533 = vrot.slane %v10531, 2
  %v10534 = vor.u32 %v10530, %v10533
  %v10535 = vsel %vm6717, %v10527, %v10534
  %v10536 = vshrl.u32 %v6550, 16
  %v10538 = vrot.slane %v10536, 1
  %v10539 = vshll.u32 %v6550, 16
  %v10541 = vrot.slane %v10539, 2
  %v10542 = vor.u32 %v10538, %v10541
  %v10543 = vshrl.u32 %v6552, 16
  %v10545 = vrot.slane %v10543, 1
  %v10546 = vshll.u32 %v6552, 16
  %v10548 = vrot.slane %v10546, 2
  %v10549 = vor.u32 %v10545, %v10548
  %v10550 = vsel %vm6717, %v10542, %v10549
  %v10551 = vshrl.u32 %v6685, 16
  %v10553 = vrot.slane %v10551, 1
  %v10554 = vshll.u32 %v6685, 16
  %v10556 = vrot.slane %v10554, 2
  %v10557 = vor.u32 %v10553, %v10556
  %v10558 = vshrl.u32 %v6688, 16
  %v10560 = vrot.slane %v10558, 1
  %v10561 = vshll.u32 %v6688, 16
  %v10563 = vrot.slane %v10561, 2
  %v10564 = vor.u32 %v10560, %v10563
  %v10565 = vsel %vm6717, %v10557, %v10564
  %v10567 = vshrl.u32 %v7338, 16
  %v10569 = vrot.slane %v10567, 1
  %v10570 = vshll.u32 %v7338, 16
  %v10572 = vrot.slane %v10570, 2
  %v10573 = vor.u32 %v10569, %v10572
  %v10575 = vshrl.u32 %v7341, 16
  %v10577 = vrot.slane %v10575, 1
  %v10578 = vshll.u32 %v7341, 16
  %v10580 = vrot.slane %v10578, 2
  %v10581 = vor.u32 %v10577, %v10580
  %v10582 = vsel %vm6717, %v10573, %v10581
  %v10583 = vshrl.u32 %v5987, 16
  %v10585 = vrot.slane %v10583, 1
  %v10586 = vshll.u32 %v5987, 16
  %v10588 = vrot.slane %v10586, 2
  %v10589 = vor.u32 %v10585, %v10588
  %v10590 = vshrl.u32 %v5990, 16
  %v10592 = vrot.slane %v10590, 1
  %v10593 = vshll.u32 %v5990, 16
  %v10595 = vrot.slane %v10593, 2
  %v10596 = vor.u32 %v10592, %v10595
  %v10597 = vsel %vm6717, %v10589, %v10596
  %v10598 = vshrl.u32 %v6179, 16
  %v10600 = vrot.slane %v10598, 1
  %v10601 = vshll.u32 %v6179, 16
  %v10603 = vrot.slane %v10601, 2
  %v10604 = vor.u32 %v10600, %v10603
  %v10605 = vshrl.u32 %v6182, 16
  %v10607 = vrot.slane %v10605, 1
  %v10608 = vshll.u32 %v6182, 16
  %v10610 = vrot.slane %v10608, 2
  %v10611 = vor.u32 %v10607, %v10610
  %v10612 = vsel %vm6717, %v10604, %v10611
  %v10613 = vshrl.u32 %v5814, 16
  %v10615 = vrot.slane %v10613, 1
  %v10616 = vshll.u32 %v5814, 16
  %v10618 = vrot.slane %v10616, 2
  %v10619 = vor.u32 %v10615, %v10618
  %v10620 = vshrl.u32 %v5816, 16
  %v10622 = vrot.slane %v10620, 1
  %v10623 = vshll.u32 %v5816, 16
  %v10625 = vrot.slane %v10623, 2
  %v10626 = vor.u32 %v10622, %v10625
  %v10627 = vsel %vm6717, %v10619, %v10626
  %v10628 = vshrl.u32 %v6316, 16
  %v10630 = vrot.slane %v10628, 1
  %v10631 = vshll.u32 %v6316, 16
  %v10633 = vrot.slane %v10631, 2
  %v10634 = vor.u32 %v10630, %v10633
  %v10635 = vshrl.u32 %v6318, 16
  %v10637 = vrot.slane %v10635, 1
  %v10638 = vshll.u32 %v6318, 16
  %v10640 = vrot.slane %v10638, 2
  %v10641 = vor.u32 %v10637, %v10640
  %v10642 = vsel %vm6717, %v10634, %v10641
  %v10643 = vshrl.u32 %v6426, 16
  %v10645 = vrot.slane %v10643, 1
  %v10646 = vshll.u32 %v6426, 16
  %v10648 = vrot.slane %v10646, 2
  %v10649 = vor.u32 %v10645, %v10648
  %v10650 = vshrl.u32 %v6428, 16
  %v10652 = vrot.slane %v10650, 1
  %v10653 = vshll.u32 %v6428, 16
  %v10655 = vrot.slane %v10653, 2
  %v10656 = vor.u32 %v10652, %v10655
  %v10657 = vsel %vm6717, %v10649, %v10656
  %v10658 = vshrl.u32 %v6554, 16
  %v10660 = vrot.slane %v10658, 1
  %v10661 = vshll.u32 %v6554, 16
  %v10663 = vrot.slane %v10661, 2
  %v10664 = vor.u32 %v10660, %v10663
  %v10665 = vshrl.u32 %v6556, 16
  %v10667 = vrot.slane %v10665, 1
  %v10668 = vshll.u32 %v6556, 16
  %v10670 = vrot.slane %v10668, 2
  %v10671 = vor.u32 %v10667, %v10670
  %v10672 = vsel %vm6717, %v10664, %v10671
  %v10673 = vshrl.u32 %v6691, 16
  %v10675 = vrot.slane %v10673, 1
  %v10676 = vshll.u32 %v6691, 16
  %v10678 = vrot.slane %v10676, 2
  %v10679 = vor.u32 %v10675, %v10678
  %v10680 = vshrl.u32 %v6694, 16
  %v10682 = vrot.slane %v10680, 1
  %v10683 = vshll.u32 %v6694, 16
  %v10685 = vrot.slane %v10683, 2
  %v10686 = vor.u32 %v10682, %v10685
  %v10687 = vsel %vm6717, %v10679, %v10686
  %v10689 = vshrl.u32 %v7351, 16
  %v10691 = vrot.slane %v10689, 1
  %v10692 = vshll.u32 %v7351, 16
  %v10694 = vrot.slane %v10692, 2
  %v10695 = vor.u32 %v10691, %v10694
  %v10697 = vshrl.u32 %v7354, 16
  %v10699 = vrot.slane %v10697, 1
  %v10700 = vshll.u32 %v7354, 16
  %v10702 = vrot.slane %v10700, 2
  %v10703 = vor.u32 %v10699, %v10702
  %v10704 = vsel %vm6717, %v10695, %v10703
  %v10705 = vshrl.u32 %v5993, 16
  %v10707 = vrot.slane %v10705, 1
  %v10708 = vshll.u32 %v5993, 16
  %v10710 = vrot.slane %v10708, 2
  %v10711 = vor.u32 %v10707, %v10710
  %v10712 = vshrl.u32 %v5996, 16
  %v10714 = vrot.slane %v10712, 1
  %v10715 = vshll.u32 %v5996, 16
  %v10717 = vrot.slane %v10715, 2
  %v10718 = vor.u32 %v10714, %v10717
  %v10719 = vsel %vm6717, %v10711, %v10718
  %v10720 = vshrl.u32 %v6185, 16
  %v10722 = vrot.slane %v10720, 1
  %v10723 = vshll.u32 %v6185, 16
  %v10725 = vrot.slane %v10723, 2
  %v10726 = vor.u32 %v10722, %v10725
  %v10727 = vshrl.u32 %v6188, 16
  %v10729 = vrot.slane %v10727, 1
  %v10730 = vshll.u32 %v6188, 16
  %v10732 = vrot.slane %v10730, 2
  %v10733 = vor.u32 %v10729, %v10732
  %v10734 = vsel %vm6717, %v10726, %v10733
  %v10735 = vshrl.u32 %v5818, 16
  %v10737 = vrot.slane %v10735, 1
  %v10738 = vshll.u32 %v5818, 16
  %v10740 = vrot.slane %v10738, 2
  %v10741 = vor.u32 %v10737, %v10740
  %v10742 = vshrl.u32 %v5820, 16
  %v10744 = vrot.slane %v10742, 1
  %v10745 = vshll.u32 %v5820, 16
  %v10747 = vrot.slane %v10745, 2
  %v10748 = vor.u32 %v10744, %v10747
  %v10749 = vsel %vm6717, %v10741, %v10748
  %v10750 = vshrl.u32 %v6320, 16
  %v10752 = vrot.slane %v10750, 1
  %v10753 = vshll.u32 %v6320, 16
  %v10755 = vrot.slane %v10753, 2
  %v10756 = vor.u32 %v10752, %v10755
  %v10757 = vshrl.u32 %v6322, 16
  %v10759 = vrot.slane %v10757, 1
  %v10760 = vshll.u32 %v6322, 16
  %v10762 = vrot.slane %v10760, 2
  %v10763 = vor.u32 %v10759, %v10762
  %v10764 = vsel %vm6717, %v10756, %v10763
  %v10765 = vshrl.u32 %v6430, 16
  %v10767 = vrot.slane %v10765, 1
  %v10768 = vshll.u32 %v6430, 16
  %v10770 = vrot.slane %v10768, 2
  %v10771 = vor.u32 %v10767, %v10770
  %v10772 = vshrl.u32 %v6432, 16
  %v10774 = vrot.slane %v10772, 1
  %v10775 = vshll.u32 %v6432, 16
  %v10777 = vrot.slane %v10775, 2
  %v10778 = vor.u32 %v10774, %v10777
  %v10779 = vsel %vm6717, %v10771, %v10778
  %v10780 = vshrl.u32 %v6558, 16
  %v10782 = vrot.slane %v10780, 1
  %v10783 = vshll.u32 %v6558, 16
  %v10785 = vrot.slane %v10783, 2
  %v10786 = vor.u32 %v10782, %v10785
  %v10787 = vshrl.u32 %v6560, 16
  %v10789 = vrot.slane %v10787, 1
  %v10790 = vshll.u32 %v6560, 16
  %v10792 = vrot.slane %v10790, 2
  %v10793 = vor.u32 %v10789, %v10792
  %v10794 = vsel %vm6717, %v10786, %v10793
  %v10795 = vshrl.u32 %v6697, 16
  %v10797 = vrot.slane %v10795, 1
  %v10798 = vshll.u32 %v6697, 16
  %v10800 = vrot.slane %v10798, 2
  %v10801 = vor.u32 %v10797, %v10800
  %v10802 = vshrl.u32 %v6700, 16
  %v10804 = vrot.slane %v10802, 1
  %v10805 = vshll.u32 %v6700, 16
  %v10807 = vrot.slane %v10805, 2
  %v10808 = vor.u32 %v10804, %v10807
  %v10809 = vsel %vm6717, %v10801, %v10808
  %v10811 = vshrl.u32 %v7364, 16
  %v10813 = vrot.slane %v10811, 1
  %v10814 = vshll.u32 %v7364, 16
  %v10816 = vrot.slane %v10814, 2
  %v10817 = vor.u32 %v10813, %v10816
  %v10819 = vshrl.u32 %v7367, 16
  %v10821 = vrot.slane %v10819, 1
  %v10822 = vshll.u32 %v7367, 16
  %v10824 = vrot.slane %v10822, 2
  %v10825 = vor.u32 %v10821, %v10824
  %v10826 = vsel %vm6717, %v10817, %v10825
  %v10827 = vshrl.u32 %v5999, 16
  %v10829 = vrot.slane %v10827, 1
  %v10830 = vshll.u32 %v5999, 16
  %v10832 = vrot.slane %v10830, 2
  %v10833 = vor.u32 %v10829, %v10832
  %v10834 = vshrl.u32 %v6002, 16
  %v10836 = vrot.slane %v10834, 1
  %v10837 = vshll.u32 %v6002, 16
  %v10839 = vrot.slane %v10837, 2
  %v10840 = vor.u32 %v10836, %v10839
  %v10841 = vsel %vm6717, %v10833, %v10840
  %v10842 = vshrl.u32 %v6191, 16
  %v10844 = vrot.slane %v10842, 1
  %v10845 = vshll.u32 %v6191, 16
  %v10847 = vrot.slane %v10845, 2
  %v10848 = vor.u32 %v10844, %v10847
  %v10849 = vshrl.u32 %v6194, 16
  %v10851 = vrot.slane %v10849, 1
  %v10852 = vshll.u32 %v6194, 16
  %v10854 = vrot.slane %v10852, 2
  %v10855 = vor.u32 %v10851, %v10854
  %v10856 = vsel %vm6717, %v10848, %v10855
  %v10857 = vshrl.u32 %v5822, 16
  %v10859 = vrot.slane %v10857, 1
  %v10860 = vshll.u32 %v5822, 16
  %v10862 = vrot.slane %v10860, 2
  %v10863 = vor.u32 %v10859, %v10862
  %v10864 = vshrl.u32 %v5824, 16
  %v10866 = vrot.slane %v10864, 1
  %v10867 = vshll.u32 %v5824, 16
  %v10869 = vrot.slane %v10867, 2
  %v10870 = vor.u32 %v10866, %v10869
  %v10871 = vsel %vm6717, %v10863, %v10870
  %v10872 = vshrl.u32 %v6324, 16
  %v10874 = vrot.slane %v10872, 1
  %v10875 = vshll.u32 %v6324, 16
  %v10877 = vrot.slane %v10875, 2
  %v10878 = vor.u32 %v10874, %v10877
  %v10879 = vshrl.u32 %v6326, 16
  %v10881 = vrot.slane %v10879, 1
  %v10882 = vshll.u32 %v6326, 16
  %v10884 = vrot.slane %v10882, 2
  %v10885 = vor.u32 %v10881, %v10884
  %v10886 = vsel %vm6717, %v10878, %v10885
  %v10887 = vshrl.u32 %v6434, 16
  %v10889 = vrot.slane %v10887, 1
  %v10890 = vshll.u32 %v6434, 16
  %v10892 = vrot.slane %v10890, 2
  %v10893 = vor.u32 %v10889, %v10892
  %v10894 = vshrl.u32 %v6436, 16
  %v10896 = vrot.slane %v10894, 1
  %v10897 = vshll.u32 %v6436, 16
  %v10899 = vrot.slane %v10897, 2
  %v10900 = vor.u32 %v10896, %v10899
  %v10901 = vsel %vm6717, %v10893, %v10900
  %v10902 = vshrl.u32 %v6562, 16
  %v10904 = vrot.slane %v10902, 1
  %v10905 = vshll.u32 %v6562, 16
  %v10907 = vrot.slane %v10905, 2
  %v10908 = vor.u32 %v10904, %v10907
  %v10909 = vshrl.u32 %v6564, 16
  %v10911 = vrot.slane %v10909, 1
  %v10912 = vshll.u32 %v6564, 16
  %v10914 = vrot.slane %v10912, 2
  %v10915 = vor.u32 %v10911, %v10914
  %v10916 = vsel %vm6717, %v10908, %v10915
  %v10917 = vshrl.u32 %v6702, 16
  %v10919 = vrot.slane %v10917, 1
  %v10920 = vshll.u32 %v6702, 16
  %v10922 = vrot.slane %v10920, 2
  %v10923 = vor.u32 %v10919, %v10922
  %v10924 = vshrl.u32 %v6704, 16
  %v10926 = vrot.slane %v10924, 1
  %v10927 = vshll.u32 %v6704, 16
  %v10929 = vrot.slane %v10927, 2
  %v10930 = vor.u32 %v10926, %v10929
  %v10931 = vsel %vm6717, %v10923, %v10930
  %v10932 = vshrl.u32 %v6005, 16
  %v10934 = vrot.slane %v10932, 1
  %v10935 = vshll.u32 %v6005, 16
  %v10937 = vrot.slane %v10935, 2
  %v10938 = vor.u32 %v10934, %v10937
  %v10939 = vshrl.u32 %v6008, 16
  %v10941 = vrot.slane %v10939, 1
  %v10942 = vshll.u32 %v6008, 16
  %v10944 = vrot.slane %v10942, 2
  %v10945 = vor.u32 %v10941, %v10944
  %v10946 = vsel %vm6717, %v10938, %v10945
  %v10947 = vshrl.u32 %v6197, 16
  %v10949 = vrot.slane %v10947, 1
  %v10950 = vshll.u32 %v6197, 16
  %v10952 = vrot.slane %v10950, 2
  %v10953 = vor.u32 %v10949, %v10952
  %v10954 = vshrl.u32 %v6200, 16
  %v10956 = vrot.slane %v10954, 1
  %v10957 = vshll.u32 %v6200, 16
  %v10959 = vrot.slane %v10957, 2
  %v10960 = vor.u32 %v10956, %v10959
  %v10961 = vsel %vm6717, %v10953, %v10960
  %v10962 = vshrl.u32 %v6212, 16
  %v10964 = vrot.slane %v10962, 1
  %v10965 = vshll.u32 %v6212, 16
  %v10967 = vrot.slane %v10965, 2
  %v10968 = vor.u32 %v10964, %v10967
  %v10969 = vshrl.u32 %v6214, 16
  %v10971 = vrot.slane %v10969, 1
  %v10972 = vshll.u32 %v6214, 16
  %v10974 = vrot.slane %v10972, 2
  %v10975 = vor.u32 %v10971, %v10974
  %v10976 = vsel %vm6717, %v10968, %v10975
  %v10977 = vshrl.u32 %v6329, 16
  %v10979 = vrot.slane %v10977, 1
  %v10980 = vshll.u32 %v6329, 16
  %v10982 = vrot.slane %v10980, 2
  %v10983 = vor.u32 %v10979, %v10982
  %v10984 = vshrl.u32 %v6332, 16
  %v10986 = vrot.slane %v10984, 1
  %v10987 = vshll.u32 %v6332, 16
  %v10989 = vrot.slane %v10987, 2
  %v10990 = vor.u32 %v10986, %v10989
  %v10991 = vsel %vm6717, %v10983, %v10990
  %v10992 = vshrl.u32 %v6438, 16
  %v10994 = vrot.slane %v10992, 1
  %v10995 = vshll.u32 %v6438, 16
  %v10997 = vrot.slane %v10995, 2
  %v10998 = vor.u32 %v10994, %v10997
  %v10999 = vshrl.u32 %v6440, 16
  %v11001 = vrot.slane %v10999, 1
  %v11002 = vshll.u32 %v6440, 16
  %v11004 = vrot.slane %v11002, 2
  %v11005 = vor.u32 %v11001, %v11004
  %v11006 = vsel %vm6717, %v10998, %v11005
  %v11007 = vshrl.u32 %v6566, 16
  %v11009 = vrot.slane %v11007, 1
  %v11010 = vshll.u32 %v6566, 16
  %v11012 = vrot.slane %v11010, 2
  %v11013 = vor.u32 %v11009, %v11012
  %v11014 = vshrl.u32 %v6568, 16
  %v11016 = vrot.slane %v11014, 1
  %v11017 = vshll.u32 %v6568, 16
  %v11019 = vrot.slane %v11017, 2
  %v11020 = vor.u32 %v11016, %v11019
  %v11021 = vsel %vm6717, %v11013, %v11020
  %v11022 = vshrl.u32 %v6706, 16
  %v11024 = vrot.slane %v11022, 1
  %v11025 = vshll.u32 %v6706, 16
  %v11027 = vrot.slane %v11025, 2
  %v11028 = vor.u32 %v11024, %v11027
  %v11029 = vshrl.u32 %v6708, 16
  %v11031 = vrot.slane %v11029, 1
  %v11032 = vshll.u32 %v6708, 16
  %v11034 = vrot.slane %v11032, 2
  %v11035 = vor.u32 %v11031, %v11034
  %v11036 = vsel %vm6717, %v11028, %v11035
  %v11037 = vshrl.u32 %v6011, 16
  %v11039 = vrot.slane %v11037, 1
  %v11040 = vshll.u32 %v6011, 16
  %v11042 = vrot.slane %v11040, 2
  %v11043 = vor.u32 %v11039, %v11042
  %v11044 = vshrl.u32 %v6014, 16
  %v11046 = vrot.slane %v11044, 1
  %v11047 = vshll.u32 %v6014, 16
  %v11049 = vrot.slane %v11047, 2
  %v11050 = vor.u32 %v11046, %v11049
  %v11051 = vsel %vm6717, %v11043, %v11050
  %v11052 = vshrl.u32 %v6203, 16
  %v11054 = vrot.slane %v11052, 1
  %v11055 = vshll.u32 %v6203, 16
  %v11057 = vrot.slane %v11055, 2
  %v11058 = vor.u32 %v11054, %v11057
  %v11059 = vshrl.u32 %v6206, 16
  %v11061 = vrot.slane %v11059, 1
  %v11062 = vshll.u32 %v6206, 16
  %v11064 = vrot.slane %v11062, 2
  %v11065 = vor.u32 %v11061, %v11064
  %v11066 = vsel %vm6717, %v11058, %v11065
  %v11067 = vshrl.u32 %v6334, 16
  %v11069 = vrot.slane %v11067, 1
  %v11070 = vshll.u32 %v6334, 16
  %v11072 = vrot.slane %v11070, 2
  %v11073 = vor.u32 %v11069, %v11072
  %v11074 = vshrl.u32 %v6336, 16
  %v11076 = vrot.slane %v11074, 1
  %v11077 = vshll.u32 %v6336, 16
  %v11079 = vrot.slane %v11077, 2
  %v11080 = vor.u32 %v11076, %v11079
  %v11081 = vsel %vm6717, %v11073, %v11080
  %v11082 = vshrl.u32 %v6442, 16
  %v11084 = vrot.slane %v11082, 1
  %v11085 = vshll.u32 %v6442, 16
  %v11087 = vrot.slane %v11085, 2
  %v11088 = vor.u32 %v11084, %v11087
  %v11089 = vshrl.u32 %v6444, 16
  %v11091 = vrot.slane %v11089, 1
  %v11092 = vshll.u32 %v6444, 16
  %v11094 = vrot.slane %v11092, 2
  %v11095 = vor.u32 %v11091, %v11094
  %v11096 = vsel %vm6717, %v11088, %v11095
  %v11097 = vshrl.u32 %v6570, 16
  %v11099 = vrot.slane %v11097, 1
  %v11100 = vshll.u32 %v6570, 16
  %v11102 = vrot.slane %v11100, 2
  %v11103 = vor.u32 %v11099, %v11102
  %v11104 = vshrl.u32 %v6572, 16
  %v11106 = vrot.slane %v11104, 1
  %v11107 = vshll.u32 %v6572, 16
  %v11109 = vrot.slane %v11107, 2
  %v11110 = vor.u32 %v11106, %v11109
  %v11111 = vsel %vm6717, %v11103, %v11110
  %v11112 = vshrl.u32 %v6710, 16
  %v11114 = vrot.slane %v11112, 1
  %v11115 = vshll.u32 %v6710, 16
  %v11117 = vrot.slane %v11115, 2
  %v11118 = vor.u32 %v11114, %v11117
  %v11119 = vshrl.u32 %v6712, 16
  %v11121 = vrot.slane %v11119, 1
  %v11122 = vshll.u32 %v6712, 16
  %v11124 = vrot.slane %v11122, 2
  %v11125 = vor.u32 %v11121, %v11124
  %v11126 = vsel %vm6717, %v11118, %v11125
  %v11374 = vld [vmem:[%s3] sm:$0xf]
  %v11375 = vld [vmem:[%s3 + $0x4] sm:$0xf]
  %v11376 = vld [vmem:[%s3 + $0x8] sm:$0xf]
  %v11377 = vld [vmem:[%s3 + $0xc] sm:$0xf]
  %v11378 = vld [vmem:[%s3 + $0x10] sm:$0xf]
  %v11379 = vld [vmem:[%s3 + $0x14] sm:$0xf]
  %v11380 = vld [vmem:[%s3 + $0x18] sm:$0xf]
  %v11381 = vld [vmem:[%s3 + $0x1c] sm:$0xf]
  %v11382 = vld [vmem:[%s3 + $0x20] sm:$0xf]
  %v11383 = vld [vmem:[%s3 + $0x24] sm:$0xf]
  %v11384 = vld [vmem:[%s3 + $0x28] sm:$0xf]
  %v11385 = vld [vmem:[%s3 + $0x2c] sm:$0xf]
  %v11386 = vld [vmem:[%s3 + $0x30] sm:$0xf]
  %v11387 = vld [vmem:[%s3 + $0x34] sm:$0xf]
  %v11388 = vld [vmem:[%s3 + $0x38] sm:$0xf]
  %v11389 = vld [vmem:[%s3 + $0x3c] sm:$0xf]
  %v11390 = vld [vmem:[%s3 + $0x40] sm:$0xf]
  %v11391 = vld [vmem:[%s3 + $0x44] sm:$0xf]
  %v11392 = vld [vmem:[%s3 + $0x48] sm:$0xf]
  %v11393 = vld [vmem:[%s3 + $0x4c] sm:$0xf]
  %v11394 = vld [vmem:[%s3 + $0x50] sm:$0xf]
  %v11395 = vld [vmem:[%s3 + $0x54] sm:$0xf]
  %v11396 = vld [vmem:[%s3 + $0x58] sm:$0xf]
  %v11397 = vld [vmem:[%s3 + $0x5c] sm:$0xf]
  %v11398 = vld [vmem:[%s3 + $0x60] sm:$0xf]
  %v11399 = vld [vmem:[%s3 + $0x64] sm:$0xf]
  %v11400 = vld [vmem:[%s3 + $0x68] sm:$0xf]
  %v11401 = vld [vmem:[%s3 + $0x6c] sm:$0xf]
  %v11402 = vld [vmem:[%s3 + $0x70] sm:$0xf]
  %v11403 = vld [vmem:[%s3 + $0x74] sm:$0xf]
  %v11404 = vld [vmem:[%s3 + $0x78] sm:$0xf]
  %v11405 = vld [vmem:[%s3 + $0x7c] sm:$0xf]
  %v11406 = vld [vmem:[%s3 + $0x80] sm:$0xf]
  %v11407 = vld [vmem:[%s3 + $0x84] sm:$0xf]
  %v11408 = vld [vmem:[%s3 + $0x88] sm:$0xf]
  %v11409 = vld [vmem:[%s3 + $0x8c] sm:$0xf]
  %v11410 = vld [vmem:[%s3 + $0x90] sm:$0xf]
  %v11411 = vld [vmem:[%s3 + $0x94] sm:$0xf]
  %v11412 = vld [vmem:[%s3 + $0x98] sm:$0xf]
  %v11413 = vld [vmem:[%s3 + $0x9c] sm:$0xf]
  %v11414 = vld [vmem:[%s3 + $0xa0] sm:$0xf]
  %v11415 = vld [vmem:[%s3 + $0xa4] sm:$0xf]
  %v11416 = vld [vmem:[%s3 + $0xa8] sm:$0xf]
  %v11417 = vld [vmem:[%s3 + $0xac] sm:$0xf]
  %v11418 = vld [vmem:[%s3 + $0xb0] sm:$0xf]
  %v11419 = vld [vmem:[%s3 + $0xb4] sm:$0xf]
  %v11420 = vld [vmem:[%s3 + $0xb8] sm:$0xf]
  %v11421 = vld [vmem:[%s3 + $0xbc] sm:$0xf]
  %v11422 = vld [vmem:[%s3 + $0xc0] sm:$0xf]
  %v11423 = vld [vmem:[%s3 + $0xc4] sm:$0xf]
  %v11424 = vld [vmem:[%s3 + $0xc8] sm:$0xf]
  %v11425 = vld [vmem:[%s3 + $0xcc] sm:$0xf]
  %v11426 = vld [vmem:[%s3 + $0xd0] sm:$0xf]
  %v11427 = vld [vmem:[%s3 + $0xd4] sm:$0xf]
  %v11428 = vld [vmem:[%s3 + $0xd8] sm:$0xf]
  %v11429 = vld [vmem:[%s3 + $0xdc] sm:$0xf]
  %v11430 = vld [vmem:[%s3 + $0xe0] sm:$0xf]
  %v11431 = vld [vmem:[%s3 + $0xe4] sm:$0xf]
  %v11432 = vld [vmem:[%s3 + $0xe8] sm:$0xf]
  %v11433 = vld [vmem:[%s3 + $0xec] sm:$0xf]
  %v11434 = vld [vmem:[%s3 + $0xf0] sm:$0xf]
  %v11435 = vld [vmem:[%s3 + $0xf4] sm:$0xf]
  %v11436 = vld [vmem:[%s3 + $0xf8] sm:$0xf]
  %v11437 = vld [vmem:[%s3 + $0xfc] sm:$0xf]
  %v11438 = vld [vmem:[%s3 + $0x100] sm:$0xf]
  %v11439 = vld [vmem:[%s3 + $0x104] sm:$0xf]
  %v11440 = vld [vmem:[%s3 + $0x108] sm:$0xf]
  %v11441 = vld [vmem:[%s3 + $0x10c] sm:$0xf]
  %v11442 = vld [vmem:[%s3 + $0x110] sm:$0xf]
  %v11443 = vld [vmem:[%s3 + $0x114] sm:$0xf]
  %v11444 = vld [vmem:[%s3 + $0x118] sm:$0xf]
  %v11445 = vld [vmem:[%s3 + $0x11c] sm:$0xf]
  %v11446 = vld [vmem:[%s3 + $0x120] sm:$0xf]
  %v11447 = vld [vmem:[%s3 + $0x124] sm:$0xf]
  %v11448 = vld [vmem:[%s3 + $0x128] sm:$0xf]
  %v11449 = vld [vmem:[%s3 + $0x12c] sm:$0xf]
  %v11450 = vld [vmem:[%s3 + $0x130] sm:$0xf]
  %v11451 = vld [vmem:[%s3 + $0x134] sm:$0xf]
  %v11452 = vld [vmem:[%s3 + $0x138] sm:$0xf]
  %v11453 = vld [vmem:[%s3 + $0x13c] sm:$0xf]
  %v11454 = vld [vmem:[%s3 + $0x140] sm:$0xf]
  %v11455 = vld [vmem:[%s3 + $0x144] sm:$0xf]
  %v11456 = vld [vmem:[%s3 + $0x148] sm:$0xf]
  %v11457 = vld [vmem:[%s3 + $0x14c] sm:$0xf]
  %v11458 = vld [vmem:[%s3 + $0x150] sm:$0xf]
  %v11459 = vld [vmem:[%s3 + $0x154] sm:$0xf]
  %v11460 = vld [vmem:[%s3 + $0x158] sm:$0xf]
  %v11461 = vld [vmem:[%s3 + $0x15c] sm:$0xf]
  %v11462 = vld [vmem:[%s3 + $0x160] sm:$0xf]
  %v11463 = vld [vmem:[%s3 + $0x164] sm:$0xf]
  %v11464 = vld [vmem:[%s3 + $0x168] sm:$0xf]
  %v11465 = vld [vmem:[%s3 + $0x16c] sm:$0xf]
  %v11466 = vld [vmem:[%s3 + $0x170] sm:$0xf]
  %v11467 = vld [vmem:[%s3 + $0x174] sm:$0xf]
  %v11468 = vld [vmem:[%s3 + $0x178] sm:$0xf]
  %v11469 = vld [vmem:[%s3 + $0x17c] sm:$0xf]
  %v11470 = vld [vmem:[%s3 + $0x180] sm:$0xf]
  %v11471 = vld [vmem:[%s3 + $0x184] sm:$0xf]
  %v11472 = vld [vmem:[%s3 + $0x188] sm:$0xf]
  %v11473 = vld [vmem:[%s3 + $0x18c] sm:$0xf]
  %v11474 = vld [vmem:[%s3 + $0x190] sm:$0xf]
  %v11475 = vld [vmem:[%s3 + $0x194] sm:$0xf]
  %v11476 = vld [vmem:[%s3 + $0x198] sm:$0xf]
  %v11477 = vld [vmem:[%s3 + $0x19c] sm:$0xf]
  %v11478 = vld [vmem:[%s3 + $0x1a0] sm:$0xf]
  %v11479 = vld [vmem:[%s3 + $0x1a4] sm:$0xf]
  %v11480 = vld [vmem:[%s3 + $0x1a8] sm:$0xf]
  %v11481 = vld [vmem:[%s3 + $0x1ac] sm:$0xf]
  %v11482 = vld [vmem:[%s3 + $0x1b0] sm:$0xf]
  %v11483 = vld [vmem:[%s3 + $0x1b4] sm:$0xf]
  %v11484 = vld [vmem:[%s3 + $0x1b8] sm:$0xf]
  %v11485 = vld [vmem:[%s3 + $0x1bc] sm:$0xf]
  %v11486 = vld [vmem:[%s3 + $0x1c0] sm:$0xf]
  %v11487 = vld [vmem:[%s3 + $0x1c4] sm:$0xf]
  %v11488 = vld [vmem:[%s3 + $0x1c8] sm:$0xf]
  %v11489 = vld [vmem:[%s3 + $0x1cc] sm:$0xf]
  %v11490 = vld [vmem:[%s3 + $0x1d0] sm:$0xf]
  %v11491 = vld [vmem:[%s3 + $0x1d4] sm:$0xf]
  %v11492 = vld [vmem:[%s3 + $0x1d8] sm:$0xf]
  %v11493 = vld [vmem:[%s3 + $0x1dc] sm:$0xf]
  %v11494 = vld [vmem:[%s3 + $0x1e0] sm:$0xf]
  %v11495 = vld [vmem:[%s3 + $0x1e4] sm:$0xf]
  %v11496 = vld [vmem:[%s3 + $0x1e8] sm:$0xf]
  %v11497 = vld [vmem:[%s3 + $0x1ec] sm:$0xf]
  %v11498 = vld [vmem:[%s3 + $0x1f0] sm:$0xf]
  %v11499 = vld [vmem:[%s3 + $0x1f4] sm:$0xf]
  %v11500 = vld [vmem:[%s3 + $0x1f8] sm:$0xf]
  %v11501 = vld [vmem:[%s3 + $0x1fc] sm:$0xf]
  %v11502 = vld [vmem:[%s3 + $0x200] sm:$0xf]
  %v11503 = vld [vmem:[%s3 + $0x204] sm:$0xf]
  %v11504 = vld [vmem:[%s3 + $0x208] sm:$0xf]
  %v11505 = vld [vmem:[%s3 + $0x20c] sm:$0xf]
  %v11506 = vld [vmem:[%s3 + $0x210] sm:$0xf]
  %v11507 = vld [vmem:[%s3 + $0x214] sm:$0xf]
  %v11508 = vld [vmem:[%s3 + $0x218] sm:$0xf]
  %v11509 = vld [vmem:[%s3 + $0x21c] sm:$0xf]
  %v11510 = vld [vmem:[%s3 + $0x220] sm:$0xf]
  %v11511 = vld [vmem:[%s3 + $0x224] sm:$0xf]
  %v11512 = vld [vmem:[%s3 + $0x228] sm:$0xf]
  %v11513 = vld [vmem:[%s3 + $0x22c] sm:$0xf]
  %v11514 = vld [vmem:[%s3 + $0x230] sm:$0xf]
  %v11515 = vld [vmem:[%s3 + $0x234] sm:$0xf]
  %v11516 = vld [vmem:[%s3 + $0x238] sm:$0xf]
  %v11517 = vld [vmem:[%s3 + $0x23c] sm:$0xf]
  %v11518 = vlaneseq
  %v11519 = vshrl.u32 %v11518, 7
  %v11520 = vsub.s32 2, %v11519
  %v11521 = vrot.slane %v135, %v11520
  %v11666 = vunpack.c.l.b16 %v11374
  %v11667 = vunpack.c.l.b16 %v11375
  %v11668 = vunpack.c.l.b16 %v11376
  %v11669 = vunpack.c.l.b16 %v11377
  %v11670 = vunpack.c.l.b16 %v11378
  %v11671 = vunpack.c.l.b16 %v11379
  %v11672 = vunpack.c.l.b16 %v11380
  %v11673 = vunpack.c.l.b16 %v11381
  %v11674 = vunpack.c.l.b16 %v11382
  %v11675 = vunpack.c.l.b16 %v11383
  %v11676 = vunpack.c.l.b16 %v11384
  %v11677 = vunpack.c.l.b16 %v11385
  %v11678 = vunpack.c.l.b16 %v11386
  %v11679 = vunpack.c.l.b16 %v11387
  %v11680 = vunpack.c.l.b16 %v11388
  %v11681 = vunpack.c.l.b16 %v11389
  %v11682 = vunpack.c.l.b16 %v11390
  %v11683 = vunpack.c.l.b16 %v11391
  %v11684 = vunpack.c.l.b16 %v11392
  %v11685 = vunpack.c.l.b16 %v11393
  %v11686 = vunpack.c.l.b16 %v11394
  %v11687 = vunpack.c.l.b16 %v11395
  %v11688 = vunpack.c.l.b16 %v11396
  %v11689 = vunpack.c.l.b16 %v11397
  %v11690 = vunpack.c.l.b16 %v11398
  %v11691 = vunpack.c.l.b16 %v11399
  %v11692 = vunpack.c.l.b16 %v11400
  %v11693 = vunpack.c.l.b16 %v11401
  %v11694 = vunpack.c.l.b16 %v11402
  %v11695 = vunpack.c.l.b16 %v11403
  %v11696 = vunpack.c.l.b16 %v11404
  %v11697 = vunpack.c.l.b16 %v11405
  %v11698 = vunpack.c.l.b16 %v11406
  %v11699 = vunpack.c.l.b16 %v11407
  %v11700 = vunpack.c.l.b16 %v11408
  %v11701 = vunpack.c.l.b16 %v11409
  %v11702 = vunpack.c.l.b16 %v11410
  %v11703 = vunpack.c.l.b16 %v11411
  %v11704 = vunpack.c.l.b16 %v11412
  %v11705 = vunpack.c.l.b16 %v11413
  %v11706 = vunpack.c.l.b16 %v11414
  %v11707 = vunpack.c.l.b16 %v11415
  %v11708 = vunpack.c.l.b16 %v11416
  %v11709 = vunpack.c.l.b16 %v11417
  %v11710 = vunpack.c.l.b16 %v11418
  %v11711 = vunpack.c.l.b16 %v11419
  %v11712 = vunpack.c.l.b16 %v11420
  %v11713 = vunpack.c.l.b16 %v11421
  %v11714 = vunpack.c.l.b16 %v11422
  %v11715 = vunpack.c.l.b16 %v11423
  %v11716 = vunpack.c.l.b16 %v11424
  %v11717 = vunpack.c.l.b16 %v11425
  %v11718 = vunpack.c.l.b16 %v11426
  %v11719 = vunpack.c.l.b16 %v11427
  %v11720 = vunpack.c.l.b16 %v11428
  %v11721 = vunpack.c.l.b16 %v11429
  %v11722 = vunpack.c.l.b16 %v11430
  %v11723 = vunpack.c.l.b16 %v11431
  %v11724 = vunpack.c.l.b16 %v11432
  %v11725 = vunpack.c.l.b16 %v11433
  %v11726 = vunpack.c.l.b16 %v11434
  %v11727 = vunpack.c.l.b16 %v11435
  %v11728 = vunpack.c.l.b16 %v11436
  %v11729 = vunpack.c.l.b16 %v11437
  %v11730 = vunpack.c.l.b16 %v11438
  %v11731 = vunpack.c.l.b16 %v11439
  %v11732 = vunpack.c.l.b16 %v11440
  %v11733 = vunpack.c.l.b16 %v11441
  %v11734 = vunpack.c.l.b16 %v11442
  %v11735 = vunpack.c.l.b16 %v11443
  %v11736 = vunpack.c.l.b16 %v11444
  %v11737 = vunpack.c.l.b16 %v11445
  %v11738 = vunpack.c.l.b16 %v11446
  %v11739 = vunpack.c.l.b16 %v11447
  %v11740 = vunpack.c.l.b16 %v11448
  %v11741 = vunpack.c.l.b16 %v11449
  %v11742 = vunpack.c.l.b16 %v11450
  %v11743 = vunpack.c.l.b16 %v11451
  %v11744 = vunpack.c.l.b16 %v11452
  %v11745 = vunpack.c.l.b16 %v11453
  %v11746 = vunpack.c.l.b16 %v11454
  %v11747 = vunpack.c.l.b16 %v11455
  %v11748 = vunpack.c.l.b16 %v11456
  %v11749 = vunpack.c.l.b16 %v11457
  %v11750 = vunpack.c.l.b16 %v11458
  %v11751 = vunpack.c.l.b16 %v11459
  %v11752 = vunpack.c.l.b16 %v11460
  %v11753 = vunpack.c.l.b16 %v11461
  %v11754 = vunpack.c.l.b16 %v11462
  %v11755 = vunpack.c.l.b16 %v11463
  %v11756 = vunpack.c.l.b16 %v11464
  %v11757 = vunpack.c.l.b16 %v11465
  %v11758 = vunpack.c.l.b16 %v11466
  %v11759 = vunpack.c.l.b16 %v11467
  %v11760 = vunpack.c.l.b16 %v11468
  %v11761 = vunpack.c.l.b16 %v11469
  %v11762 = vunpack.c.l.b16 %v11470
  %v11763 = vunpack.c.l.b16 %v11471
  %v11764 = vunpack.c.l.b16 %v11472
  %v11765 = vunpack.c.l.b16 %v11473
  %v11766 = vunpack.c.l.b16 %v11474
  %v11767 = vunpack.c.l.b16 %v11475
  %v11768 = vunpack.c.l.b16 %v11476
  %v11769 = vunpack.c.l.b16 %v11477
  %v11770 = vunpack.c.l.b16 %v11478
  %v11771 = vunpack.c.l.b16 %v11479
  %v11772 = vunpack.c.l.b16 %v11480
  %v11773 = vunpack.c.l.b16 %v11481
  %v11774 = vunpack.c.l.b16 %v11482
  %v11775 = vunpack.c.l.b16 %v11483
  %v11776 = vunpack.c.l.b16 %v11484
  %v11777 = vunpack.c.l.b16 %v11485
  %v11778 = vunpack.c.l.b16 %v11486
  %v11779 = vunpack.c.l.b16 %v11487
  %v11780 = vunpack.c.l.b16 %v11488
  %v11781 = vunpack.c.l.b16 %v11489
  %v11782 = vunpack.c.l.b16 %v11490
  %v11783 = vunpack.c.l.b16 %v11491
  %v11784 = vunpack.c.l.b16 %v11492
  %v11785 = vunpack.c.l.b16 %v11493
  %v11786 = vunpack.c.l.b16 %v11494
  %v11787 = vunpack.c.l.b16 %v11495
  %v11788 = vunpack.c.l.b16 %v11496
  %v11789 = vunpack.c.l.b16 %v11497
  %v11790 = vunpack.c.l.b16 %v11498
  %v11791 = vunpack.c.l.b16 %v11499
  %v11792 = vunpack.c.l.b16 %v11500
  %v11793 = vunpack.c.l.b16 %v11501
  %v11794 = vunpack.c.l.b16 %v11502
  %v11795 = vunpack.c.l.b16 %v11503
  %v11796 = vunpack.c.l.b16 %v11504
  %v11797 = vunpack.c.l.b16 %v11505
  %v11798 = vunpack.c.l.b16 %v11506
  %v11799 = vunpack.c.l.b16 %v11507
  %v11800 = vunpack.c.l.b16 %v11508
  %v11801 = vunpack.c.l.b16 %v11509
  %v11802 = vunpack.c.l.b16 %v11510
  %v11803 = vunpack.c.l.b16 %v11511
  %v11804 = vunpack.c.l.b16 %v11512
  %v11805 = vunpack.c.l.b16 %v11513
  %v11806 = vunpack.c.l.b16 %v11514
  %v11807 = vunpack.c.l.b16 %v11515
  %v11808 = vunpack.c.l.b16 %v11516
  %v11809 = vunpack.c.l.b16 %v11517
  %v11810 = vpack.c.b16 %v11667, %v11666
  %v11811 = vpack.c.b16 %v11669, %v11668
  %v11812 = vpack.c.b16 %v11671, %v11670
  %v11813 = vpack.c.b16 %v11673, %v11672
  %v11814 = vpack.c.b16 %v11675, %v11674
  %v11815 = vpack.c.b16 %v11677, %v11676
  %v11816 = vpack.c.b16 %v11679, %v11678
  %v11817 = vpack.c.b16 %v11681, %v11680
  %v11818 = vpack.c.b16 %v11683, %v11682
  %v11819 = vpack.c.b16 %v11685, %v11684
  %v11820 = vpack.c.b16 %v11687, %v11686
  %v11821 = vpack.c.b16 %v11689, %v11688
  %v11822 = vpack.c.b16 %v11691, %v11690
  %v11823 = vpack.c.b16 %v11693, %v11692
  %v11824 = vpack.c.b16 %v11695, %v11694
  %v11825 = vpack.c.b16 %v11697, %v11696
  %v11826 = vpack.c.b16 %v11699, %v11698
  %v11827 = vpack.c.b16 %v11701, %v11700
  %v11828 = vpack.c.b16 %v11703, %v11702
  %v11829 = vpack.c.b16 %v11705, %v11704
  %v11830 = vpack.c.b16 %v11707, %v11706
  %v11831 = vpack.c.b16 %v11709, %v11708
  %v11832 = vpack.c.b16 %v11711, %v11710
  %v11833 = vpack.c.b16 %v11713, %v11712
  %v11834 = vpack.c.b16 %v11715, %v11714
  %v11835 = vpack.c.b16 %v11717, %v11716
  %v11836 = vpack.c.b16 %v11719, %v11718
  %v11837 = vpack.c.b16 %v11721, %v11720
  %v11838 = vpack.c.b16 %v11723, %v11722
  %v11839 = vpack.c.b16 %v11725, %v11724
  %v11840 = vpack.c.b16 %v11727, %v11726
  %v11841 = vpack.c.b16 %v11729, %v11728
  %v11842 = vpack.c.b16 %v11731, %v11730
  %v11843 = vpack.c.b16 %v11733, %v11732
  %v11844 = vpack.c.b16 %v11735, %v11734
  %v11845 = vpack.c.b16 %v11737, %v11736
  %v11846 = vpack.c.b16 %v11739, %v11738
  %v11847 = vpack.c.b16 %v11741, %v11740
  %v11848 = vpack.c.b16 %v11743, %v11742
  %v11849 = vpack.c.b16 %v11745, %v11744
  %v11850 = vpack.c.b16 %v11747, %v11746
  %v11851 = vpack.c.b16 %v11749, %v11748
  %v11852 = vpack.c.b16 %v11751, %v11750
  %v11853 = vpack.c.b16 %v11753, %v11752
  %v11854 = vpack.c.b16 %v11755, %v11754
  %v11855 = vpack.c.b16 %v11757, %v11756
  %v11856 = vpack.c.b16 %v11759, %v11758
  %v11857 = vpack.c.b16 %v11761, %v11760
  %v11858 = vpack.c.b16 %v11763, %v11762
  %v11859 = vpack.c.b16 %v11765, %v11764
  %v11860 = vpack.c.b16 %v11767, %v11766
  %v11861 = vpack.c.b16 %v11769, %v11768
  %v11862 = vpack.c.b16 %v11771, %v11770
  %v11863 = vpack.c.b16 %v11773, %v11772
  %v11864 = vpack.c.b16 %v11775, %v11774
  %v11865 = vpack.c.b16 %v11777, %v11776
  %v11866 = vpack.c.b16 %v11779, %v11778
  %v11867 = vpack.c.b16 %v11781, %v11780
  %v11868 = vpack.c.b16 %v11783, %v11782
  %v11869 = vpack.c.b16 %v11785, %v11784
  %v11870 = vpack.c.b16 %v11787, %v11786
  %v11871 = vpack.c.b16 %v11789, %v11788
  %v11872 = vpack.c.b16 %v11791, %v11790
  %v11873 = vpack.c.b16 %v11793, %v11792
  %v11874 = vpack.c.b16 %v11795, %v11794
  %v11875 = vpack.c.b16 %v11797, %v11796
  %v11876 = vpack.c.b16 %v11799, %v11798
  %v11877 = vpack.c.b16 %v11801, %v11800
  %v11878 = vpack.c.b16 %v11803, %v11802
  %v11879 = vpack.c.b16 %v11805, %v11804
  %v11880 = vpack.c.b16 %v11807, %v11806
  %v11881 = vpack.c.b16 %v11809, %v11808
  %11954 = vmatprep.subr.bf16.mxu0 0
  %11955 = vmatpush1.bf16.msra.mxu0 %v11810
  %11956 = vmatprep.subr.bf16.mxu0 0
  %11957 = vmatpush1.bf16.msra.mxu0 %v11811
  %11958 = vmatprep.subr.bf16.mxu0 0
  %11959 = vmatpush1.bf16.msra.mxu0 %v11812
  %11960 = vmatprep.subr.bf16.mxu0 0
  %11961 = vmatpush1.bf16.msra.mxu0 %v11813
  %11962 = vmatprep.subr.bf16.mxu0 0
  %11963 = vmatpush1.bf16.msra.mxu0 %v11814
  %11964 = vmatprep.subr.bf16.mxu0 0
  %11965 = vmatpush1.bf16.msra.mxu0 %v11815
  %11966 = vmatprep.subr.bf16.mxu0 0
  %11967 = vmatpush1.bf16.msra.mxu0 %v11816
  %11968 = vmatprep.subr.bf16.mxu0 0
  %11969 = vmatpush1.bf16.msra.mxu0 %v11817
  %11970 = vmatprep.subr.bf16.mxu0 0
  %11971 = vmatpush1.bf16.msra.mxu0 %v11818
  %11972 = vmatprep.subr.bf16.mxu0 0
  %11973 = vmatpush1.bf16.msra.mxu0 %v11819
  %11974 = vmatprep.subr.bf16.mxu0 0
  %11975 = vmatpush1.bf16.msra.mxu0 %v11820
  %11976 = vmatprep.subr.bf16.mxu0 0
  %11977 = vmatpush1.bf16.msra.mxu0 %v11821
  %11978 = vmatprep.subr.bf16.mxu0 0
  %11979 = vmatpush1.bf16.msra.mxu0 %v11822
  %11980 = vmatprep.subr.bf16.mxu0 0
  %11981 = vmatpush1.bf16.msra.mxu0 %v11823
  %11982 = vmatprep.subr.bf16.mxu0 0
  %11983 = vmatpush1.bf16.msra.mxu0 %v11824
  %11984 = vmatprep.subr.bf16.mxu0 0
  %11985 = vmatpush1.bf16.msra.mxu0 %v11825
  %11986 = vmatprep.mubr.bf16.mxu0 %v7397
  %11987 = vmatmul.mubr.bf16.gmra.mrb[0].mxu0 %v7382
  %v11988 = vpop.f32.mrb[0].mxu0
  %v11989 = vadd.f32 %v11521, %v11988
  %v11990 = vpop.f32.mrb[0].mxu0
  %v11991 = vpop.f32.mrb[0].mxu0
  %v11992 = vadd.f32 %v11521, %v11991
  %v11993 = vpop.f32.mrb[0].mxu0
  %11994 = vmatprep.mubr.bf16.mxu0 %v7534
  %11995 = vmatmul.mubr.bf16.gmra.mrb[0].mxu0 %v7519
  %v11996 = vpop.f32.mrb[0].mxu0
  %v11997 = vadd.f32 %v11521, %v11996
  %v11998 = vpop.f32.mrb[0].mxu0
  %v11999 = vpop.f32.mrb[0].mxu0
  %v12000 = vadd.f32 %v11521, %v11999
  %v12001 = vpop.f32.mrb[0].mxu0
  %12002 = vmatprep.mubr.bf16.mxu0 %v7641
  %12003 = vmatmul.mubr.bf16.gmra.mrb[0].mxu0 %v7427
  %v12004 = vpop.f32.mrb[0].mxu0
  %v12005 = vadd.f32 %v11521, %v12004
  %v12006 = vpop.f32.mrb[0].mxu0
  %v12007 = vpop.f32.mrb[0].mxu0
  %v12008 = vadd.f32 %v11521, %v12007
  %v12009 = vpop.f32.mrb[0].mxu0
  %12010 = vmatprep.mubr.bf16.mxu0 %v7748
  %12011 = vmatmul.mubr.bf16.gmra.mrb[0].mxu0 %v7564
  %v12012 = vpop.f32.mrb[0].mxu0
  %v12013 = vadd.f32 %v11521, %v12012
  %v12014 = vpop.f32.mrb[0].mxu0
  %v12015 = vpop.f32.mrb[0].mxu0
  %v12016 = vadd.f32 %v11521, %v12015
  %v12017 = vpop.f32.mrb[0].mxu0
  %12018 = vmatprep.mubr.bf16.mxu0 %v7870
  %12019 = vmatmul.mubr.bf16.gmra.mrb[0].mxu0 %v7671
  %v12020 = vpop.f32.mrb[0].mxu0
  %v12021 = vadd.f32 %v11521, %v12020
  %v12022 = vpop.f32.mrb[0].mxu0
  %v12023 = vpop.f32.mrb[0].mxu0
  %v12024 = vadd.f32 %v11521, %v12023
  %v12025 = vpop.f32.mrb[0].mxu0
  %12026 = vmatprep.mubr.bf16.mxu0 %v7992
  %12027 = vmatmul.mubr.bf16.gmra.mrb[0].mxu0 %v7778
  %v12028 = vpop.f32.mrb[0].mxu0
  %v12029 = vadd.f32 %v11521, %v12028
  %v12030 = vpop.f32.mrb[0].mxu0
  %v12031 = vpop.f32.mrb[0].mxu0
  %v12032 = vadd.f32 %v11521, %v12031
  %v12033 = vpop.f32.mrb[0].mxu0
  %12034 = vmatprep.mubr.bf16.mxu0 %v8114
  %12035 = vmatmul.mubr.bf16.gmra.mrb[0].mxu0 %v7900
  %v12036 = vpop.f32.mrb[0].mxu0
  %v12037 = vadd.f32 %v11521, %v12036
  %v12038 = vpop.f32.mrb[0].mxu0
  %v12039 = vpop.f32.mrb[0].mxu0
  %v12040 = vadd.f32 %v11521, %v12039
  %v12041 = vpop.f32.mrb[0].mxu0
  %12042 = vmatprep.mubr.bf16.mxu0 %v8236
  %12043 = vmatmul.mubr.bf16.gmra.mrb[0].mxu0 %v8022
  %v12044 = vpop.f32.mrb[0].mxu0
  %v12045 = vadd.f32 %v11521, %v12044
  %v12046 = vpop.f32.mrb[0].mxu0
  %v12047 = vpop.f32.mrb[0].mxu0
  %v12048 = vadd.f32 %v11521, %v12047
  %v12049 = vpop.f32.mrb[0].mxu0
  %12050 = vmatprep.mubr.bf16.mxu0 %v8358
  %12051 = vmatmul.mubr.bf16.gmra.mrb[0].mxu0 %v8144
  %v12052 = vpop.f32.mrb[0].mxu0
  %v12053 = vadd.f32 %v11521, %v12052
  %v12054 = vpop.f32.mrb[0].mxu0
  %v12055 = vpop.f32.mrb[0].mxu0
  %v12056 = vadd.f32 %v11521, %v12055
  %v12057 = vpop.f32.mrb[0].mxu0
  %12058 = vmatprep.mubr.bf16.mxu0 %v8480
  %12059 = vmatmul.mubr.bf16.gmra.mrb[0].mxu0 %v8266
  %v12060 = vpop.f32.mrb[0].mxu0
  %v12061 = vadd.f32 %v11521, %v12060
  %v12062 = vpop.f32.mrb[0].mxu0
  %v12063 = vpop.f32.mrb[0].mxu0
  %v12064 = vadd.f32 %v11521, %v12063
  %v12065 = vpop.f32.mrb[0].mxu0
  %12066 = vmatprep.mubr.bf16.mxu0 %v8602
  %12067 = vmatmul.mubr.bf16.gmra.mrb[0].mxu0 %v8388
  %v12068 = vpop.f32.mrb[0].mxu0
  %v12069 = vadd.f32 %v11521, %v12068
  %v12070 = vpop.f32.mrb[0].mxu0
  %v12071 = vpop.f32.mrb[0].mxu0
  %v12072 = vadd.f32 %v11521, %v12071
  %v12073 = vpop.f32.mrb[0].mxu0
  %12074 = vmatprep.mubr.bf16.mxu0 %v8724
  %12075 = vmatmul.mubr.bf16.gmra.mrb[0].mxu0 %v8510
  %v12076 = vpop.f32.mrb[0].mxu0
  %v12077 = vadd.f32 %v11521, %v12076
  %v12078 = vpop.f32.mrb[0].mxu0
  %v12079 = vpop.f32.mrb[0].mxu0
  %v12080 = vadd.f32 %v11521, %v12079
  %v12081 = vpop.f32.mrb[0].mxu0
  %12082 = vmatprep.mubr.bf16.mxu0 %v8846
  %12083 = vmatmul.mubr.bf16.gmra.mrb[0].mxu0 %v8632
  %v12084 = vpop.f32.mrb[0].mxu0
  %v12085 = vadd.f32 %v11521, %v12084
  %v12086 = vpop.f32.mrb[0].mxu0
  %v12087 = vpop.f32.mrb[0].mxu0
  %v12088 = vadd.f32 %v11521, %v12087
  %v12089 = vpop.f32.mrb[0].mxu0
  %12090 = vmatprep.mubr.bf16.mxu0 %v8968
  %12091 = vmatmul.mubr.bf16.gmra.mrb[0].mxu0 %v8754
  %v12092 = vpop.f32.mrb[0].mxu0
  %v12093 = vadd.f32 %v11521, %v12092
  %v12094 = vpop.f32.mrb[0].mxu0
  %v12095 = vpop.f32.mrb[0].mxu0
  %v12096 = vadd.f32 %v11521, %v12095
  %v12097 = vpop.f32.mrb[0].mxu0
  %12098 = vmatprep.mubr.bf16.mxu0 %v9090
  %12099 = vmatmul.mubr.bf16.gmra.mrb[0].mxu0 %v8876
  %v12100 = vpop.f32.mrb[0].mxu0
  %v12101 = vadd.f32 %v11521, %v12100
  %v12102 = vpop.f32.mrb[0].mxu0
  %v12103 = vpop.f32.mrb[0].mxu0
  %v12104 = vadd.f32 %v11521, %v12103
  %v12105 = vpop.f32.mrb[0].mxu0
  %12106 = vmatprep.mubr.bf16.mxu0 %v9195
  %12107 = vmatmul.mubr.bf16.gmra.mrb[0].mxu0 %v8998
  %v12108 = vpop.f32.mrb[0].mxu0
  %v12109 = vadd.f32 %v11521, %v12108
  %v12110 = vpop.f32.mrb[0].mxu0
  %v12111 = vpop.f32.mrb[0].mxu0
  %v12112 = vadd.f32 %v11521, %v12111
  %v12113 = vpop.f32.mrb[0].mxu0
  %12114 = vmatprep.mubr.bf16.mxu0 %v9285
  %12115 = vmatmul.mubr.bf16.gmra.mrb[0].mxu0 %v7382
  %v12116 = vpop.f32.mrb[0].mxu0
  %v12117 = vadd.f32 %v11521, %v12116
  %v12118 = vpop.f32.mrb[0].mxu0
  %v12119 = vpop.f32.mrb[0].mxu0
  %v12120 = vadd.f32 %v11521, %v12119
  %v12121 = vpop.f32.mrb[0].mxu0
  %12122 = vmatprep.mubr.bf16.mxu0 %v9407
  %12123 = vmatmul.mubr.bf16.gmra.mrb[0].mxu0 %v9392
  %v12124 = vpop.f32.mrb[0].mxu0
  %v12125 = vadd.f32 %v11521, %v12124
  %v12126 = vpop.f32.mrb[0].mxu0
  %v12127 = vpop.f32.mrb[0].mxu0
  %v12128 = vadd.f32 %v11521, %v12127
  %v12129 = vpop.f32.mrb[0].mxu0
  %12130 = vmatprep.mubr.bf16.mxu0 %v9514
  %12131 = vmatmul.mubr.bf16.gmra.mrb[0].mxu0 %v9315
  %v12132 = vpop.f32.mrb[0].mxu0
  %v12133 = vadd.f32 %v11521, %v12132
  %v12134 = vpop.f32.mrb[0].mxu0
  %v12135 = vpop.f32.mrb[0].mxu0
  %v12136 = vadd.f32 %v11521, %v12135
  %v12137 = vpop.f32.mrb[0].mxu0
  %12138 = vmatprep.mubr.bf16.mxu0 %v9621
  %12139 = vmatmul.mubr.bf16.gmra.mrb[0].mxu0 %v9437
  %v12140 = vpop.f32.mrb[0].mxu0
  %v12141 = vadd.f32 %v11521, %v12140
  %v12142 = vpop.f32.mrb[0].mxu0
  %v12143 = vpop.f32.mrb[0].mxu0
  %v12144 = vadd.f32 %v11521, %v12143
  %v12145 = vpop.f32.mrb[0].mxu0
  %12146 = vmatprep.mubr.bf16.mxu0 %v9743
  %12147 = vmatmul.mubr.bf16.gmra.mrb[0].mxu0 %v9544
  %v12148 = vpop.f32.mrb[0].mxu0
  %v12149 = vadd.f32 %v11521, %v12148
  %v12150 = vpop.f32.mrb[0].mxu0
  %v12151 = vpop.f32.mrb[0].mxu0
  %v12152 = vadd.f32 %v11521, %v12151
  %v12153 = vpop.f32.mrb[0].mxu0
  %12154 = vmatprep.mubr.bf16.mxu0 %v9865
  %12155 = vmatmul.mubr.bf16.gmra.mrb[0].mxu0 %v9651
  %v12156 = vpop.f32.mrb[0].mxu0
  %v12157 = vadd.f32 %v11521, %v12156
  %v12158 = vpop.f32.mrb[0].mxu0
  %v12159 = vpop.f32.mrb[0].mxu0
  %v12160 = vadd.f32 %v11521, %v12159
  %v12161 = vpop.f32.mrb[0].mxu0
  %12162 = vmatprep.mubr.bf16.mxu0 %v9987
  %12163 = vmatmul.mubr.bf16.gmra.mrb[0].mxu0 %v9773
  %v12164 = vpop.f32.mrb[0].mxu0
  %v12165 = vadd.f32 %v11521, %v12164
  %v12166 = vpop.f32.mrb[0].mxu0
  %v12167 = vpop.f32.mrb[0].mxu0
  %v12168 = vadd.f32 %v11521, %v12167
  %v12169 = vpop.f32.mrb[0].mxu0
  %12170 = vmatprep.mubr.bf16.mxu0 %v10109
  %12171 = vmatmul.mubr.bf16.gmra.mrb[0].mxu0 %v9895
  %v12172 = vpop.f32.mrb[0].mxu0
  %v12173 = vadd.f32 %v11521, %v12172
  %v12174 = vpop.f32.mrb[0].mxu0
  %v12175 = vpop.f32.mrb[0].mxu0
  %v12176 = vadd.f32 %v11521, %v12175
  %v12177 = vpop.f32.mrb[0].mxu0
  %12178 = vmatprep.mubr.bf16.mxu0 %v10231
  %12179 = vmatmul.mubr.bf16.gmra.mrb[0].mxu0 %v10017
  %v12180 = vpop.f32.mrb[0].mxu0
  %v12181 = vadd.f32 %v11521, %v12180
  %v12182 = vpop.f32.mrb[0].mxu0
  %v12183 = vpop.f32.mrb[0].mxu0
  %v12184 = vadd.f32 %v11521, %v12183
  %v12185 = vpop.f32.mrb[0].mxu0
  %12186 = vmatprep.mubr.bf16.mxu0 %v10353
  %12187 = vmatmul.mubr.bf16.gmra.mrb[0].mxu0 %v10139
  %v12188 = vpop.f32.mrb[0].mxu0
  %v12189 = vadd.f32 %v11521, %v12188
  %v12190 = vpop.f32.mrb[0].mxu0
  %v12191 = vpop.f32.mrb[0].mxu0
  %v12192 = vadd.f32 %v11521, %v12191
  %v12193 = vpop.f32.mrb[0].mxu0
  %12194 = vmatprep.mubr.bf16.mxu0 %v10475
  %12195 = vmatmul.mubr.bf16.gmra.mrb[0].mxu0 %v10261
  %v12196 = vpop.f32.mrb[0].mxu0
  %v12197 = vadd.f32 %v11521, %v12196
  %v12198 = vpop.f32.mrb[0].mxu0
  %v12199 = vpop.f32.mrb[0].mxu0
  %v12200 = vadd.f32 %v11521, %v12199
  %v12201 = vpop.f32.mrb[0].mxu0
  %12202 = vmatprep.mubr.bf16.mxu0 %v10597
  %12203 = vmatmul.mubr.bf16.gmra.mrb[0].mxu0 %v10383
  %v12204 = vpop.f32.mrb[0].mxu0
  %v12205 = vadd.f32 %v11521, %v12204
  %v12206 = vpop.f32.mrb[0].mxu0
  %v12207 = vpop.f32.mrb[0].mxu0
  %v12208 = vadd.f32 %v11521, %v12207
  %v12209 = vpop.f32.mrb[0].mxu0
  %12210 = vmatprep.mubr.bf16.mxu0 %v10719
  %12211 = vmatmul.mubr.bf16.gmra.mrb[0].mxu0 %v10505
  %v12212 = vpop.f32.mrb[0].mxu0
  %v12213 = vadd.f32 %v11521, %v12212
  %v12214 = vpop.f32.mrb[0].mxu0
  %v12215 = vpop.f32.mrb[0].mxu0
  %v12216 = vadd.f32 %v11521, %v12215
  %v12217 = vpop.f32.mrb[0].mxu0
  %12218 = vmatprep.mubr.bf16.mxu0 %v10841
  %12219 = vmatmul.mubr.bf16.gmra.mrb[0].mxu0 %v10627
  %v12220 = vpop.f32.mrb[0].mxu0
  %v12221 = vadd.f32 %v11521, %v12220
  %v12222 = vpop.f32.mrb[0].mxu0
  %v12223 = vpop.f32.mrb[0].mxu0
  %v12224 = vadd.f32 %v11521, %v12223
  %v12225 = vpop.f32.mrb[0].mxu0
  %12226 = vmatprep.mubr.bf16.mxu0 %v10946
  %12227 = vmatmul.mubr.bf16.gmra.mrb[0].mxu0 %v10749
  %v12228 = vpop.f32.mrb[0].mxu0
  %v12229 = vadd.f32 %v11521, %v12228
  %v12230 = vpop.f32.mrb[0].mxu0
  %v12231 = vpop.f32.mrb[0].mxu0
  %v12232 = vadd.f32 %v11521, %v12231
  %v12233 = vpop.f32.mrb[0].mxu0
  %12234 = vmatprep.mubr.bf16.mxu0 %v11051
  %12235 = vmatmul.mubr.bf16.gmra.mrb[0].mxu0 %v10871
  %v12236 = vpop.f32.mrb[0].mxu0
  %v12237 = vadd.f32 %v11521, %v12236
  %v12238 = vpop.f32.mrb[0].mxu0
  %v12239 = vpop.f32.mrb[0].mxu0
  %v12240 = vadd.f32 %v11521, %v12239
  %v12241 = vpop.f32.mrb[0].mxu0
  %12242 = vdwg.mxu0
  %12243 = vmatprep.subr.bf16.mxu0 0
  %12244 = vmatpush1.bf16.msra.mxu0 %v11826
  %12245 = vmatprep.subr.bf16.mxu0 0
  %12246 = vmatpush1.bf16.msra.mxu0 %v11827
  %12247 = vmatprep.subr.bf16.mxu0 0
  %12248 = vmatpush1.bf16.msra.mxu0 %v11828
  %12249 = vmatprep.subr.bf16.mxu0 0
  %12250 = vmatpush1.bf16.msra.mxu0 %v11829
  %12251 = vmatprep.subr.bf16.mxu0 0
  %12252 = vmatpush1.bf16.msra.mxu0 %v11830
  %12253 = vmatprep.subr.bf16.mxu0 0
  %12254 = vmatpush1.bf16.msra.mxu0 %v11831
  %12255 = vmatprep.subr.bf16.mxu0 0
  %12256 = vmatpush1.bf16.msra.mxu0 %v11832
  %12257 = vmatprep.subr.bf16.mxu0 0
  %12258 = vmatpush1.bf16.msra.mxu0 %v11833
  %12259 = vmatprep.subr.bf16.mxu0 0
  %12260 = vmatpush1.bf16.msra.mxu0 %v11834
  %12261 = vmatprep.subr.bf16.mxu0 0
  %12262 = vmatpush1.bf16.msra.mxu0 %v11835
  %12263 = vmatprep.subr.bf16.mxu0 0
  %12264 = vmatpush1.bf16.msra.mxu0 %v11836
  %12265 = vmatprep.subr.bf16.mxu0 0
  %12266 = vmatpush1.bf16.msra.mxu0 %v11837
  %12267 = vmatprep.subr.bf16.mxu0 0
  %12268 = vmatpush1.bf16.msra.mxu0 %v11838
  %12269 = vmatprep.subr.bf16.mxu0 0
  %12270 = vmatpush1.bf16.msra.mxu0 %v11839
  %12271 = vmatprep.subr.bf16.mxu0 0
  %12272 = vmatpush1.bf16.msra.mxu0 %v11840
  %12273 = vmatprep.subr.bf16.mxu0 0
  %12274 = vmatpush1.bf16.msra.mxu0 %v11841
  %12275 = vmatprep.mubr.bf16.mxu0 %v7427
  %12276 = vmatmul.mubr.bf16.gmra.mrb[0].mxu0 %v7412
  %v12277 = vpop.f32.mrb[0].mxu0
  %v12278 = vadd.f32 %v11989, %v12277
  %v12279 = vpop.f32.mrb[0].mxu0
  %v12280 = vpop.f32.mrb[0].mxu0
  %v12281 = vadd.f32 %v11992, %v12280
  %v12282 = vpop.f32.mrb[0].mxu0
  %12283 = vmatprep.mubr.bf16.mxu0 %v7564
  %12284 = vmatmul.mubr.bf16.gmra.mrb[0].mxu0 %v7549
  %v12285 = vpop.f32.mrb[0].mxu0
  %v12286 = vadd.f32 %v11997, %v12285
  %v12287 = vpop.f32.mrb[0].mxu0
  %v12288 = vpop.f32.mrb[0].mxu0
  %v12289 = vadd.f32 %v12000, %v12288
  %v12290 = vpop.f32.mrb[0].mxu0
  %12291 = vmatprep.mubr.bf16.mxu0 %v7671
  %12292 = vmatmul.mubr.bf16.gmra.mrb[0].mxu0 %v7656
  %v12293 = vpop.f32.mrb[0].mxu0
  %v12294 = vadd.f32 %v12005, %v12293
  %v12295 = vpop.f32.mrb[0].mxu0
  %v12296 = vpop.f32.mrb[0].mxu0
  %v12297 = vadd.f32 %v12008, %v12296
  %v12298 = vpop.f32.mrb[0].mxu0
  %12299 = vmatprep.mubr.bf16.mxu0 %v7778
  %12300 = vmatmul.mubr.bf16.gmra.mrb[0].mxu0 %v7763
  %v12301 = vpop.f32.mrb[0].mxu0
  %v12302 = vadd.f32 %v12013, %v12301
  %v12303 = vpop.f32.mrb[0].mxu0
  %v12304 = vpop.f32.mrb[0].mxu0
  %v12305 = vadd.f32 %v12016, %v12304
  %v12306 = vpop.f32.mrb[0].mxu0
  %12307 = vmatprep.mubr.bf16.mxu0 %v7900
  %12308 = vmatmul.mubr.bf16.gmra.mrb[0].mxu0 %v7885
  %v12309 = vpop.f32.mrb[0].mxu0
  %v12310 = vadd.f32 %v12021, %v12309
  %v12311 = vpop.f32.mrb[0].mxu0
  %v12312 = vpop.f32.mrb[0].mxu0
  %v12313 = vadd.f32 %v12024, %v12312
  %v12314 = vpop.f32.mrb[0].mxu0
  %12315 = vmatprep.mubr.bf16.mxu0 %v8022
  %12316 = vmatmul.mubr.bf16.gmra.mrb[0].mxu0 %v8007
  %v12317 = vpop.f32.mrb[0].mxu0
  %v12318 = vadd.f32 %v12029, %v12317
  %v12319 = vpop.f32.mrb[0].mxu0
  %v12320 = vpop.f32.mrb[0].mxu0
  %v12321 = vadd.f32 %v12032, %v12320
  %v12322 = vpop.f32.mrb[0].mxu0
  %12323 = vmatprep.mubr.bf16.mxu0 %v8144
  %12324 = vmatmul.mubr.bf16.gmra.mrb[0].mxu0 %v8129
  %v12325 = vpop.f32.mrb[0].mxu0
  %v12326 = vadd.f32 %v12037, %v12325
  %v12327 = vpop.f32.mrb[0].mxu0
  %v12328 = vpop.f32.mrb[0].mxu0
  %v12329 = vadd.f32 %v12040, %v12328
  %v12330 = vpop.f32.mrb[0].mxu0
  %12331 = vmatprep.mubr.bf16.mxu0 %v8266
  %12332 = vmatmul.mubr.bf16.gmra.mrb[0].mxu0 %v8251
  %v12333 = vpop.f32.mrb[0].mxu0
  %v12334 = vadd.f32 %v12045, %v12333
  %v12335 = vpop.f32.mrb[0].mxu0
  %v12336 = vpop.f32.mrb[0].mxu0
  %v12337 = vadd.f32 %v12048, %v12336
  %v12338 = vpop.f32.mrb[0].mxu0
  %12339 = vmatprep.mubr.bf16.mxu0 %v8388
  %12340 = vmatmul.mubr.bf16.gmra.mrb[0].mxu0 %v8373
  %v12341 = vpop.f32.mrb[0].mxu0
  %v12342 = vadd.f32 %v12053, %v12341
  %v12343 = vpop.f32.mrb[0].mxu0
  %v12344 = vpop.f32.mrb[0].mxu0
  %v12345 = vadd.f32 %v12056, %v12344
  %v12346 = vpop.f32.mrb[0].mxu0
  %12347 = vmatprep.mubr.bf16.mxu0 %v8510
  %12348 = vmatmul.mubr.bf16.gmra.mrb[0].mxu0 %v8495
  %v12349 = vpop.f32.mrb[0].mxu0
  %v12350 = vadd.f32 %v12061, %v12349
  %v12351 = vpop.f32.mrb[0].mxu0
  %v12352 = vpop.f32.mrb[0].mxu0
  %v12353 = vadd.f32 %v12064, %v12352
  %v12354 = vpop.f32.mrb[0].mxu0
  %12355 = vmatprep.mubr.bf16.mxu0 %v8632
  %12356 = vmatmul.mubr.bf16.gmra.mrb[0].mxu0 %v8617
  %v12357 = vpop.f32.mrb[0].mxu0
  %v12358 = vadd.f32 %v12069, %v12357
  %v12359 = vpop.f32.mrb[0].mxu0
  %v12360 = vpop.f32.mrb[0].mxu0
  %v12361 = vadd.f32 %v12072, %v12360
  %v12362 = vpop.f32.mrb[0].mxu0
  %12363 = vmatprep.mubr.bf16.mxu0 %v8754
  %12364 = vmatmul.mubr.bf16.gmra.mrb[0].mxu0 %v8739
  %v12365 = vpop.f32.mrb[0].mxu0
  %v12366 = vadd.f32 %v12077, %v12365
  %v12367 = vpop.f32.mrb[0].mxu0
  %v12368 = vpop.f32.mrb[0].mxu0
  %v12369 = vadd.f32 %v12080, %v12368
  %v12370 = vpop.f32.mrb[0].mxu0
  %12371 = vmatprep.mubr.bf16.mxu0 %v8876
  %12372 = vmatmul.mubr.bf16.gmra.mrb[0].mxu0 %v8861
  %v12373 = vpop.f32.mrb[0].mxu0
  %v12374 = vadd.f32 %v12085, %v12373
  %v12375 = vpop.f32.mrb[0].mxu0
  %v12376 = vpop.f32.mrb[0].mxu0
  %v12377 = vadd.f32 %v12088, %v12376
  %v12378 = vpop.f32.mrb[0].mxu0
  %12379 = vmatprep.mubr.bf16.mxu0 %v8998
  %12380 = vmatmul.mubr.bf16.gmra.mrb[0].mxu0 %v8983
  %v12381 = vpop.f32.mrb[0].mxu0
  %v12382 = vadd.f32 %v12093, %v12381
  %v12383 = vpop.f32.mrb[0].mxu0
  %v12384 = vpop.f32.mrb[0].mxu0
  %v12385 = vadd.f32 %v12096, %v12384
  %v12386 = vpop.f32.mrb[0].mxu0
  %12387 = vmatprep.mubr.bf16.mxu0 %v9120
  %12388 = vmatmul.mubr.bf16.gmra.mrb[0].mxu0 %v9105
  %v12389 = vpop.f32.mrb[0].mxu0
  %v12390 = vadd.f32 %v12101, %v12389
  %v12391 = vpop.f32.mrb[0].mxu0
  %v12392 = vpop.f32.mrb[0].mxu0
  %v12393 = vadd.f32 %v12104, %v12392
  %v12394 = vpop.f32.mrb[0].mxu0
  %12395 = vmatprep.mubr.bf16.mxu0 %v7382
  %12396 = vmatmul.mubr.bf16.gmra.mrb[0].mxu0 %v9210
  %v12397 = vpop.f32.mrb[0].mxu0
  %v12398 = vadd.f32 %v12109, %v12397
  %v12399 = vpop.f32.mrb[0].mxu0
  %v12400 = vpop.f32.mrb[0].mxu0
  %v12401 = vadd.f32 %v12112, %v12400
  %v12402 = vpop.f32.mrb[0].mxu0
  %12403 = vmatprep.mubr.bf16.mxu0 %v9315
  %12404 = vmatmul.mubr.bf16.gmra.mrb[0].mxu0 %v9300
  %v12405 = vpop.f32.mrb[0].mxu0
  %v12406 = vadd.f32 %v12117, %v12405
  %v12407 = vpop.f32.mrb[0].mxu0
  %v12408 = vpop.f32.mrb[0].mxu0
  %v12409 = vadd.f32 %v12120, %v12408
  %v12410 = vpop.f32.mrb[0].mxu0
  %12411 = vmatprep.mubr.bf16.mxu0 %v9437
  %12412 = vmatmul.mubr.bf16.gmra.mrb[0].mxu0 %v9422
  %v12413 = vpop.f32.mrb[0].mxu0
  %v12414 = vadd.f32 %v12125, %v12413
  %v12415 = vpop.f32.mrb[0].mxu0
  %v12416 = vpop.f32.mrb[0].mxu0
  %v12417 = vadd.f32 %v12128, %v12416
  %v12418 = vpop.f32.mrb[0].mxu0
  %12419 = vmatprep.mubr.bf16.mxu0 %v9544
  %12420 = vmatmul.mubr.bf16.gmra.mrb[0].mxu0 %v9529
  %v12421 = vpop.f32.mrb[0].mxu0
  %v12422 = vadd.f32 %v12133, %v12421
  %v12423 = vpop.f32.mrb[0].mxu0
  %v12424 = vpop.f32.mrb[0].mxu0
  %v12425 = vadd.f32 %v12136, %v12424
  %v12426 = vpop.f32.mrb[0].mxu0
  %12427 = vmatprep.mubr.bf16.mxu0 %v9651
  %12428 = vmatmul.mubr.bf16.gmra.mrb[0].mxu0 %v9636
  %v12429 = vpop.f32.mrb[0].mxu0
  %v12430 = vadd.f32 %v12141, %v12429
  %v12431 = vpop.f32.mrb[0].mxu0
  %v12432 = vpop.f32.mrb[0].mxu0
  %v12433 = vadd.f32 %v12144, %v12432
  %v12434 = vpop.f32.mrb[0].mxu0
  %12435 = vmatprep.mubr.bf16.mxu0 %v9773
  %12436 = vmatmul.mubr.bf16.gmra.mrb[0].mxu0 %v9758
  %v12437 = vpop.f32.mrb[0].mxu0
  %v12438 = vadd.f32 %v12149, %v12437
  %v12439 = vpop.f32.mrb[0].mxu0
  %v12440 = vpop.f32.mrb[0].mxu0
  %v12441 = vadd.f32 %v12152, %v12440
  %v12442 = vpop.f32.mrb[0].mxu0
  %12443 = vmatprep.mubr.bf16.mxu0 %v9895
  %12444 = vmatmul.mubr.bf16.gmra.mrb[0].mxu0 %v9880
  %v12445 = vpop.f32.mrb[0].mxu0
  %v12446 = vadd.f32 %v12157, %v12445
  %v12447 = vpop.f32.mrb[0].mxu0
  %v12448 = vpop.f32.mrb[0].mxu0
  %v12449 = vadd.f32 %v12160, %v12448
  %v12450 = vpop.f32.mrb[0].mxu0
  %12451 = vmatprep.mubr.bf16.mxu0 %v10017
  %12452 = vmatmul.mubr.bf16.gmra.mrb[0].mxu0 %v10002
  %v12453 = vpop.f32.mrb[0].mxu0
  %v12454 = vadd.f32 %v12165, %v12453
  %v12455 = vpop.f32.mrb[0].mxu0
  %v12456 = vpop.f32.mrb[0].mxu0
  %v12457 = vadd.f32 %v12168, %v12456
  %v12458 = vpop.f32.mrb[0].mxu0
  %12459 = vmatprep.mubr.bf16.mxu0 %v10139
  %12460 = vmatmul.mubr.bf16.gmra.mrb[0].mxu0 %v10124
  %v12461 = vpop.f32.mrb[0].mxu0
  %v12462 = vadd.f32 %v12173, %v12461
  %v12463 = vpop.f32.mrb[0].mxu0
  %v12464 = vpop.f32.mrb[0].mxu0
  %v12465 = vadd.f32 %v12176, %v12464
  %v12466 = vpop.f32.mrb[0].mxu0
  %12467 = vmatprep.mubr.bf16.mxu0 %v10261
  %12468 = vmatmul.mubr.bf16.gmra.mrb[0].mxu0 %v10246
  %v12469 = vpop.f32.mrb[0].mxu0
  %v12470 = vadd.f32 %v12181, %v12469
  %v12471 = vpop.f32.mrb[0].mxu0
  %v12472 = vpop.f32.mrb[0].mxu0
  %v12473 = vadd.f32 %v12184, %v12472
  %v12474 = vpop.f32.mrb[0].mxu0
  %12475 = vmatprep.mubr.bf16.mxu0 %v10383
  %12476 = vmatmul.mubr.bf16.gmra.mrb[0].mxu0 %v10368
  %v12477 = vpop.f32.mrb[0].mxu0
  %v12478 = vadd.f32 %v12189, %v12477
  %v12479 = vpop.f32.mrb[0].mxu0
  %v12480 = vpop.f32.mrb[0].mxu0
  %v12481 = vadd.f32 %v12192, %v12480
  %v12482 = vpop.f32.mrb[0].mxu0
  %12483 = vmatprep.mubr.bf16.mxu0 %v10505
  %12484 = vmatmul.mubr.bf16.gmra.mrb[0].mxu0 %v10490
  %v12485 = vpop.f32.mrb[0].mxu0
  %v12486 = vadd.f32 %v12197, %v12485
  %v12487 = vpop.f32.mrb[0].mxu0
  %v12488 = vpop.f32.mrb[0].mxu0
  %v12489 = vadd.f32 %v12200, %v12488
  %v12490 = vpop.f32.mrb[0].mxu0
  %12491 = vmatprep.mubr.bf16.mxu0 %v10627
  %12492 = vmatmul.mubr.bf16.gmra.mrb[0].mxu0 %v10612
  %v12493 = vpop.f32.mrb[0].mxu0
  %v12494 = vadd.f32 %v12205, %v12493
  %v12495 = vpop.f32.mrb[0].mxu0
  %v12496 = vpop.f32.mrb[0].mxu0
  %v12497 = vadd.f32 %v12208, %v12496
  %v12498 = vpop.f32.mrb[0].mxu0
  %12499 = vmatprep.mubr.bf16.mxu0 %v10749
  %12500 = vmatmul.mubr.bf16.gmra.mrb[0].mxu0 %v10734
  %v12501 = vpop.f32.mrb[0].mxu0
  %v12502 = vadd.f32 %v12213, %v12501
  %v12503 = vpop.f32.mrb[0].mxu0
  %v12504 = vpop.f32.mrb[0].mxu0
  %v12505 = vadd.f32 %v12216, %v12504
  %v12506 = vpop.f32.mrb[0].mxu0
  %12507 = vmatprep.mubr.bf16.mxu0 %v10871
  %12508 = vmatmul.mubr.bf16.gmra.mrb[0].mxu0 %v10856
  %v12509 = vpop.f32.mrb[0].mxu0
  %v12510 = vadd.f32 %v12221, %v12509
  %v12511 = vpop.f32.mrb[0].mxu0
  %v12512 = vpop.f32.mrb[0].mxu0
  %v12513 = vadd.f32 %v12224, %v12512
  %v12514 = vpop.f32.mrb[0].mxu0
  %12515 = vmatprep.mubr.bf16.mxu0 %v10976
  %12516 = vmatmul.mubr.bf16.gmra.mrb[0].mxu0 %v10961
  %v12517 = vpop.f32.mrb[0].mxu0
  %v12518 = vadd.f32 %v12229, %v12517
  %v12519 = vpop.f32.mrb[0].mxu0
  %v12520 = vpop.f32.mrb[0].mxu0
  %v12521 = vadd.f32 %v12232, %v12520
  %v12522 = vpop.f32.mrb[0].mxu0
  %12523 = vmatprep.mubr.bf16.mxu0 %v7382
  %12524 = vmatmul.mubr.bf16.gmra.mrb[0].mxu0 %v11066
  %v12525 = vpop.f32.mrb[0].mxu0
  %v12526 = vadd.f32 %v12237, %v12525
  %v12527 = vpop.f32.mrb[0].mxu0
  %v12528 = vpop.f32.mrb[0].mxu0
  %v12529 = vadd.f32 %v12240, %v12528
  %v12530 = vpop.f32.mrb[0].mxu0
  %12531 = vdwg.mxu0
  %12532 = vmatprep.subr.bf16.mxu0 0
  %12533 = vmatpush1.bf16.msra.mxu0 %v11842
  %12534 = vmatprep.subr.bf16.mxu0 0
  %12535 = vmatpush1.bf16.msra.mxu0 %v11843
  %12536 = vmatprep.subr.bf16.mxu0 0
  %12537 = vmatpush1.bf16.msra.mxu0 %v11844
  %12538 = vmatprep.subr.bf16.mxu0 0
  %12539 = vmatpush1.bf16.msra.mxu0 %v11845
  %12540 = vmatprep.subr.bf16.mxu0 0
  %12541 = vmatpush1.bf16.msra.mxu0 %v11846
  %12542 = vmatprep.subr.bf16.mxu0 0
  %12543 = vmatpush1.bf16.msra.mxu0 %v11847
  %12544 = vmatprep.subr.bf16.mxu0 0
  %12545 = vmatpush1.bf16.msra.mxu0 %v11848
  %12546 = vmatprep.subr.bf16.mxu0 0
  %12547 = vmatpush1.bf16.msra.mxu0 %v11849
  %12548 = vmatprep.subr.bf16.mxu0 0
  %12549 = vmatpush1.bf16.msra.mxu0 %v11850
  %12550 = vmatprep.subr.bf16.mxu0 0
  %12551 = vmatpush1.bf16.msra.mxu0 %v11851
  %12552 = vmatprep.subr.bf16.mxu0 0
  %12553 = vmatpush1.bf16.msra.mxu0 %v11852
  %12554 = vmatprep.subr.bf16.mxu0 0
  %12555 = vmatpush1.bf16.msra.mxu0 %v11853
  %12556 = vmatprep.subr.bf16.mxu0 0
  %12557 = vmatpush1.bf16.msra.mxu0 %v11854
  %12558 = vmatprep.subr.bf16.mxu0 0
  %12559 = vmatpush1.bf16.msra.mxu0 %v11855
  %12560 = vmatprep.subr.bf16.mxu0 0
  %12561 = vmatpush1.bf16.msra.mxu0 %v11856
  %12562 = vmatprep.subr.bf16.mxu0 0
  %12563 = vmatpush1.bf16.msra.mxu0 %v11857
  %12564 = vmatprep.mubr.bf16.mxu0 %v7457
  %12565 = vmatmul.mubr.bf16.gmra.mrb[0].mxu0 %v7442
  %v12566 = vpop.f32.mrb[0].mxu0
  %v12567 = vadd.f32 %v12278, %v12566
  %v12568 = vpop.f32.mrb[0].mxu0
  %v12569 = vpop.f32.mrb[0].mxu0
  %v12570 = vadd.f32 %v12281, %v12569
  %v12571 = vpop.f32.mrb[0].mxu0
  %12572 = vmatprep.mubr.bf16.mxu0 %v7457
  %12573 = vmatmul.mubr.bf16.gmra.mrb[0].mxu0 %v7579
  %v12574 = vpop.f32.mrb[0].mxu0
  %v12575 = vadd.f32 %v12286, %v12574
  %v12576 = vpop.f32.mrb[0].mxu0
  %v12577 = vpop.f32.mrb[0].mxu0
  %v12578 = vadd.f32 %v12289, %v12577
  %v12579 = vpop.f32.mrb[0].mxu0
  %12580 = vmatprep.mubr.bf16.mxu0 %v7457
  %12581 = vmatmul.mubr.bf16.gmra.mrb[0].mxu0 %v7686
  %v12582 = vpop.f32.mrb[0].mxu0
  %v12583 = vadd.f32 %v12294, %v12582
  %v12584 = vpop.f32.mrb[0].mxu0
  %v12585 = vpop.f32.mrb[0].mxu0
  %v12586 = vadd.f32 %v12297, %v12585
  %v12587 = vpop.f32.mrb[0].mxu0
  %12588 = vmatprep.mubr.bf16.mxu0 %v7808
  %12589 = vmatmul.mubr.bf16.gmra.mrb[0].mxu0 %v7793
  %v12590 = vpop.f32.mrb[0].mxu0
  %v12591 = vadd.f32 %v12302, %v12590
  %v12592 = vpop.f32.mrb[0].mxu0
  %v12593 = vpop.f32.mrb[0].mxu0
  %v12594 = vadd.f32 %v12305, %v12593
  %v12595 = vpop.f32.mrb[0].mxu0
  %12596 = vmatprep.mubr.bf16.mxu0 %v7930
  %12597 = vmatmul.mubr.bf16.gmra.mrb[0].mxu0 %v7915
  %v12598 = vpop.f32.mrb[0].mxu0
  %v12599 = vadd.f32 %v12310, %v12598
  %v12600 = vpop.f32.mrb[0].mxu0
  %v12601 = vpop.f32.mrb[0].mxu0
  %v12602 = vadd.f32 %v12313, %v12601
  %v12603 = vpop.f32.mrb[0].mxu0
  %12604 = vmatprep.mubr.bf16.mxu0 %v8052
  %12605 = vmatmul.mubr.bf16.gmra.mrb[0].mxu0 %v8037
  %v12606 = vpop.f32.mrb[0].mxu0
  %v12607 = vadd.f32 %v12318, %v12606
  %v12608 = vpop.f32.mrb[0].mxu0
  %v12609 = vpop.f32.mrb[0].mxu0
  %v12610 = vadd.f32 %v12321, %v12609
  %v12611 = vpop.f32.mrb[0].mxu0
  %12612 = vmatprep.mubr.bf16.mxu0 %v8174
  %12613 = vmatmul.mubr.bf16.gmra.mrb[0].mxu0 %v8159
  %v12614 = vpop.f32.mrb[0].mxu0
  %v12615 = vadd.f32 %v12326, %v12614
  %v12616 = vpop.f32.mrb[0].mxu0
  %v12617 = vpop.f32.mrb[0].mxu0
  %v12618 = vadd.f32 %v12329, %v12617
  %v12619 = vpop.f32.mrb[0].mxu0
  %12620 = vmatprep.mubr.bf16.mxu0 %v8296
  %12621 = vmatmul.mubr.bf16.gmra.mrb[0].mxu0 %v8281
  %v12622 = vpop.f32.mrb[0].mxu0
  %v12623 = vadd.f32 %v12334, %v12622
  %v12624 = vpop.f32.mrb[0].mxu0
  %v12625 = vpop.f32.mrb[0].mxu0
  %v12626 = vadd.f32 %v12337, %v12625
  %v12627 = vpop.f32.mrb[0].mxu0
  %12628 = vmatprep.mubr.bf16.mxu0 %v8418
  %12629 = vmatmul.mubr.bf16.gmra.mrb[0].mxu0 %v8403
  %v12630 = vpop.f32.mrb[0].mxu0
  %v12631 = vadd.f32 %v12342, %v12630
  %v12632 = vpop.f32.mrb[0].mxu0
  %v12633 = vpop.f32.mrb[0].mxu0
  %v12634 = vadd.f32 %v12345, %v12633
  %v12635 = vpop.f32.mrb[0].mxu0
  %12636 = vmatprep.mubr.bf16.mxu0 %v8540
  %12637 = vmatmul.mubr.bf16.gmra.mrb[0].mxu0 %v8525
  %v12638 = vpop.f32.mrb[0].mxu0
  %v12639 = vadd.f32 %v12350, %v12638
  %v12640 = vpop.f32.mrb[0].mxu0
  %v12641 = vpop.f32.mrb[0].mxu0
  %v12642 = vadd.f32 %v12353, %v12641
  %v12643 = vpop.f32.mrb[0].mxu0
  %12644 = vmatprep.mubr.bf16.mxu0 %v8662
  %12645 = vmatmul.mubr.bf16.gmra.mrb[0].mxu0 %v8647
  %v12646 = vpop.f32.mrb[0].mxu0
  %v12647 = vadd.f32 %v12358, %v12646
  %v12648 = vpop.f32.mrb[0].mxu0
  %v12649 = vpop.f32.mrb[0].mxu0
  %v12650 = vadd.f32 %v12361, %v12649
  %v12651 = vpop.f32.mrb[0].mxu0
  %12652 = vmatprep.mubr.bf16.mxu0 %v8784
  %12653 = vmatmul.mubr.bf16.gmra.mrb[0].mxu0 %v8769
  %v12654 = vpop.f32.mrb[0].mxu0
  %v12655 = vadd.f32 %v12366, %v12654
  %v12656 = vpop.f32.mrb[0].mxu0
  %v12657 = vpop.f32.mrb[0].mxu0
  %v12658 = vadd.f32 %v12369, %v12657
  %v12659 = vpop.f32.mrb[0].mxu0
  %12660 = vmatprep.mubr.bf16.mxu0 %v8906
  %12661 = vmatmul.mubr.bf16.gmra.mrb[0].mxu0 %v8891
  %v12662 = vpop.f32.mrb[0].mxu0
  %v12663 = vadd.f32 %v12374, %v12662
  %v12664 = vpop.f32.mrb[0].mxu0
  %v12665 = vpop.f32.mrb[0].mxu0
  %v12666 = vadd.f32 %v12377, %v12665
  %v12667 = vpop.f32.mrb[0].mxu0
  %12668 = vmatprep.mubr.bf16.mxu0 %v9028
  %12669 = vmatmul.mubr.bf16.gmra.mrb[0].mxu0 %v9013
  %v12670 = vpop.f32.mrb[0].mxu0
  %v12671 = vadd.f32 %v12382, %v12670
  %v12672 = vpop.f32.mrb[0].mxu0
  %v12673 = vpop.f32.mrb[0].mxu0
  %v12674 = vadd.f32 %v12385, %v12673
  %v12675 = vpop.f32.mrb[0].mxu0
  %12676 = vmatprep.mubr.bf16.mxu0 %v9150
  %12677 = vmatmul.mubr.bf16.gmra.mrb[0].mxu0 %v9135
  %v12678 = vpop.f32.mrb[0].mxu0
  %v12679 = vadd.f32 %v12390, %v12678
  %v12680 = vpop.f32.mrb[0].mxu0
  %v12681 = vpop.f32.mrb[0].mxu0
  %v12682 = vadd.f32 %v12393, %v12681
  %v12683 = vpop.f32.mrb[0].mxu0
  %12684 = vmatprep.mubr.bf16.mxu0 %v9240
  %12685 = vmatmul.mubr.bf16.gmra.mrb[0].mxu0 %v9225
  %v12686 = vpop.f32.mrb[0].mxu0
  %v12687 = vadd.f32 %v12398, %v12686
  %v12688 = vpop.f32.mrb[0].mxu0
  %v12689 = vpop.f32.mrb[0].mxu0
  %v12690 = vadd.f32 %v12401, %v12689
  %v12691 = vpop.f32.mrb[0].mxu0
  %12692 = vmatprep.mubr.bf16.mxu0 %v7457
  %12693 = vmatmul.mubr.bf16.gmra.mrb[0].mxu0 %v9330
  %v12694 = vpop.f32.mrb[0].mxu0
  %v12695 = vadd.f32 %v12406, %v12694
  %v12696 = vpop.f32.mrb[0].mxu0
  %v12697 = vpop.f32.mrb[0].mxu0
  %v12698 = vadd.f32 %v12409, %v12697
  %v12699 = vpop.f32.mrb[0].mxu0
  %12700 = vmatprep.mubr.bf16.mxu0 %v7457
  %12701 = vmatmul.mubr.bf16.gmra.mrb[0].mxu0 %v9452
  %v12702 = vpop.f32.mrb[0].mxu0
  %v12703 = vadd.f32 %v12414, %v12702
  %v12704 = vpop.f32.mrb[0].mxu0
  %v12705 = vpop.f32.mrb[0].mxu0
  %v12706 = vadd.f32 %v12417, %v12705
  %v12707 = vpop.f32.mrb[0].mxu0
  %12708 = vmatprep.mubr.bf16.mxu0 %v7457
  %12709 = vmatmul.mubr.bf16.gmra.mrb[0].mxu0 %v9559
  %v12710 = vpop.f32.mrb[0].mxu0
  %v12711 = vadd.f32 %v12422, %v12710
  %v12712 = vpop.f32.mrb[0].mxu0
  %v12713 = vpop.f32.mrb[0].mxu0
  %v12714 = vadd.f32 %v12425, %v12713
  %v12715 = vpop.f32.mrb[0].mxu0
  %12716 = vmatprep.mubr.bf16.mxu0 %v9681
  %12717 = vmatmul.mubr.bf16.gmra.mrb[0].mxu0 %v9666
  %v12718 = vpop.f32.mrb[0].mxu0
  %v12719 = vadd.f32 %v12430, %v12718
  %v12720 = vpop.f32.mrb[0].mxu0
  %v12721 = vpop.f32.mrb[0].mxu0
  %v12722 = vadd.f32 %v12433, %v12721
  %v12723 = vpop.f32.mrb[0].mxu0
  %12724 = vmatprep.mubr.bf16.mxu0 %v9803
  %12725 = vmatmul.mubr.bf16.gmra.mrb[0].mxu0 %v9788
  %v12726 = vpop.f32.mrb[0].mxu0
  %v12727 = vadd.f32 %v12438, %v12726
  %v12728 = vpop.f32.mrb[0].mxu0
  %v12729 = vpop.f32.mrb[0].mxu0
  %v12730 = vadd.f32 %v12441, %v12729
  %v12731 = vpop.f32.mrb[0].mxu0
  %12732 = vmatprep.mubr.bf16.mxu0 %v9925
  %12733 = vmatmul.mubr.bf16.gmra.mrb[0].mxu0 %v9910
  %v12734 = vpop.f32.mrb[0].mxu0
  %v12735 = vadd.f32 %v12446, %v12734
  %v12736 = vpop.f32.mrb[0].mxu0
  %v12737 = vpop.f32.mrb[0].mxu0
  %v12738 = vadd.f32 %v12449, %v12737
  %v12739 = vpop.f32.mrb[0].mxu0
  %12740 = vmatprep.mubr.bf16.mxu0 %v10047
  %12741 = vmatmul.mubr.bf16.gmra.mrb[0].mxu0 %v10032
  %v12742 = vpop.f32.mrb[0].mxu0
  %v12743 = vadd.f32 %v12454, %v12742
  %v12744 = vpop.f32.mrb[0].mxu0
  %v12745 = vpop.f32.mrb[0].mxu0
  %v12746 = vadd.f32 %v12457, %v12745
  %v12747 = vpop.f32.mrb[0].mxu0
  %12748 = vmatprep.mubr.bf16.mxu0 %v10169
  %12749 = vmatmul.mubr.bf16.gmra.mrb[0].mxu0 %v10154
  %v12750 = vpop.f32.mrb[0].mxu0
  %v12751 = vadd.f32 %v12462, %v12750
  %v12752 = vpop.f32.mrb[0].mxu0
  %v12753 = vpop.f32.mrb[0].mxu0
  %v12754 = vadd.f32 %v12465, %v12753
  %v12755 = vpop.f32.mrb[0].mxu0
  %12756 = vmatprep.mubr.bf16.mxu0 %v10291
  %12757 = vmatmul.mubr.bf16.gmra.mrb[0].mxu0 %v10276
  %v12758 = vpop.f32.mrb[0].mxu0
  %v12759 = vadd.f32 %v12470, %v12758
  %v12760 = vpop.f32.mrb[0].mxu0
  %v12761 = vpop.f32.mrb[0].mxu0
  %v12762 = vadd.f32 %v12473, %v12761
  %v12763 = vpop.f32.mrb[0].mxu0
  %12764 = vmatprep.mubr.bf16.mxu0 %v10413
  %12765 = vmatmul.mubr.bf16.gmra.mrb[0].mxu0 %v10398
  %v12766 = vpop.f32.mrb[0].mxu0
  %v12767 = vadd.f32 %v12478, %v12766
  %v12768 = vpop.f32.mrb[0].mxu0
  %v12769 = vpop.f32.mrb[0].mxu0
  %v12770 = vadd.f32 %v12481, %v12769
  %v12771 = vpop.f32.mrb[0].mxu0
  %12772 = vmatprep.mubr.bf16.mxu0 %v10535
  %12773 = vmatmul.mubr.bf16.gmra.mrb[0].mxu0 %v10520
  %v12774 = vpop.f32.mrb[0].mxu0
  %v12775 = vadd.f32 %v12486, %v12774
  %v12776 = vpop.f32.mrb[0].mxu0
  %v12777 = vpop.f32.mrb[0].mxu0
  %v12778 = vadd.f32 %v12489, %v12777
  %v12779 = vpop.f32.mrb[0].mxu0
  %12780 = vmatprep.mubr.bf16.mxu0 %v10657
  %12781 = vmatmul.mubr.bf16.gmra.mrb[0].mxu0 %v10642
  %v12782 = vpop.f32.mrb[0].mxu0
  %v12783 = vadd.f32 %v12494, %v12782
  %v12784 = vpop.f32.mrb[0].mxu0
  %v12785 = vpop.f32.mrb[0].mxu0
  %v12786 = vadd.f32 %v12497, %v12785
  %v12787 = vpop.f32.mrb[0].mxu0
  %12788 = vmatprep.mubr.bf16.mxu0 %v10779
  %12789 = vmatmul.mubr.bf16.gmra.mrb[0].mxu0 %v10764
  %v12790 = vpop.f32.mrb[0].mxu0
  %v12791 = vadd.f32 %v12502, %v12790
  %v12792 = vpop.f32.mrb[0].mxu0
  %v12793 = vpop.f32.mrb[0].mxu0
  %v12794 = vadd.f32 %v12505, %v12793
  %v12795 = vpop.f32.mrb[0].mxu0
  %12796 = vmatprep.mubr.bf16.mxu0 %v10901
  %12797 = vmatmul.mubr.bf16.gmra.mrb[0].mxu0 %v10886
  %v12798 = vpop.f32.mrb[0].mxu0
  %v12799 = vadd.f32 %v12510, %v12798
  %v12800 = vpop.f32.mrb[0].mxu0
  %v12801 = vpop.f32.mrb[0].mxu0
  %v12802 = vadd.f32 %v12513, %v12801
  %v12803 = vpop.f32.mrb[0].mxu0
  %12804 = vmatprep.mubr.bf16.mxu0 %v11006
  %12805 = vmatmul.mubr.bf16.gmra.mrb[0].mxu0 %v10991
  %v12806 = vpop.f32.mrb[0].mxu0
  %v12807 = vadd.f32 %v12518, %v12806
  %v12808 = vpop.f32.mrb[0].mxu0
  %v12809 = vpop.f32.mrb[0].mxu0
  %v12810 = vadd.f32 %v12521, %v12809
  %v12811 = vpop.f32.mrb[0].mxu0
  %12812 = vmatprep.mubr.bf16.mxu0 %v11096
  %12813 = vmatmul.mubr.bf16.gmra.mrb[0].mxu0 %v11081
  %v12814 = vpop.f32.mrb[0].mxu0
  %v12815 = vadd.f32 %v12526, %v12814
  %v12816 = vpop.f32.mrb[0].mxu0
  %v12817 = vpop.f32.mrb[0].mxu0
  %v12818 = vadd.f32 %v12529, %v12817
  %v12819 = vpop.f32.mrb[0].mxu0
  %12820 = vdwg.mxu0
  %12821 = vmatprep.subr.bf16.mxu0 0
  %12822 = vmatpush1.bf16.msra.mxu0 %v11858
  %12823 = vmatprep.subr.bf16.mxu0 0
  %12824 = vmatpush1.bf16.msra.mxu0 %v11859
  %12825 = vmatprep.subr.bf16.mxu0 0
  %12826 = vmatpush1.bf16.msra.mxu0 %v11860
  %12827 = vmatprep.subr.bf16.mxu0 0
  %12828 = vmatpush1.bf16.msra.mxu0 %v11861
  %12829 = vmatprep.subr.bf16.mxu0 0
  %12830 = vmatpush1.bf16.msra.mxu0 %v11862
  %12831 = vmatprep.subr.bf16.mxu0 0
  %12832 = vmatpush1.bf16.msra.mxu0 %v11863
  %12833 = vmatprep.subr.bf16.mxu0 0
  %12834 = vmatpush1.bf16.msra.mxu0 %v11864
  %12835 = vmatprep.subr.bf16.mxu0 0
  %12836 = vmatpush1.bf16.msra.mxu0 %v11865
  %12837 = vmatprep.subr.bf16.mxu0 0
  %12838 = vmatpush1.bf16.msra.mxu0 %v11866
  %12839 = vmatprep.subr.bf16.mxu0 0
  %12840 = vmatpush1.bf16.msra.mxu0 %v11867
  %12841 = vmatprep.subr.bf16.mxu0 0
  %12842 = vmatpush1.bf16.msra.mxu0 %v11868
  %12843 = vmatprep.subr.bf16.mxu0 0
  %12844 = vmatpush1.bf16.msra.mxu0 %v11869
  %12845 = vmatprep.subr.bf16.mxu0 0
  %12846 = vmatpush1.bf16.msra.mxu0 %v11870
  %12847 = vmatprep.subr.bf16.mxu0 0
  %12848 = vmatpush1.bf16.msra.mxu0 %v11871
  %12849 = vmatprep.subr.bf16.mxu0 0
  %12850 = vmatpush1.bf16.msra.mxu0 %v11872
  %12851 = vmatprep.subr.bf16.mxu0 0
  %12852 = vmatpush1.bf16.msra.mxu0 %v11873
  %12853 = vmatprep.mubr.bf16.mxu0 %v7487
  %12854 = vmatmul.mubr.bf16.gmra.mrb[0].mxu0 %v7472
  %v12855 = vpop.f32.mrb[0].mxu0
  %v12856 = vadd.f32 %v12567, %v12855
  %v12857 = vpop.f32.mrb[0].mxu0
  %v12858 = vpop.f32.mrb[0].mxu0
  %v12859 = vadd.f32 %v12570, %v12858
  %v12860 = vpop.f32.mrb[0].mxu0
  %12861 = vmatprep.mubr.bf16.mxu0 %v7609
  %12862 = vmatmul.mubr.bf16.gmra.mrb[0].mxu0 %v7594
  %v12863 = vpop.f32.mrb[0].mxu0
  %v12864 = vadd.f32 %v12575, %v12863
  %v12865 = vpop.f32.mrb[0].mxu0
  %v12866 = vpop.f32.mrb[0].mxu0
  %v12867 = vadd.f32 %v12578, %v12866
  %v12868 = vpop.f32.mrb[0].mxu0
  %12869 = vmatprep.mubr.bf16.mxu0 %v7716
  %12870 = vmatmul.mubr.bf16.gmra.mrb[0].mxu0 %v7701
  %v12871 = vpop.f32.mrb[0].mxu0
  %v12872 = vadd.f32 %v12583, %v12871
  %v12873 = vpop.f32.mrb[0].mxu0
  %v12874 = vpop.f32.mrb[0].mxu0
  %v12875 = vadd.f32 %v12586, %v12874
  %v12876 = vpop.f32.mrb[0].mxu0
  %12877 = vmatprep.mubr.bf16.mxu0 %v7838
  %12878 = vmatmul.mubr.bf16.gmra.mrb[0].mxu0 %v7823
  %v12879 = vpop.f32.mrb[0].mxu0
  %v12880 = vadd.f32 %v12591, %v12879
  %v12881 = vpop.f32.mrb[0].mxu0
  %v12882 = vpop.f32.mrb[0].mxu0
  %v12883 = vadd.f32 %v12594, %v12882
  %v12884 = vpop.f32.mrb[0].mxu0
  %12885 = vmatprep.mubr.bf16.mxu0 %v7960
  %12886 = vmatmul.mubr.bf16.gmra.mrb[0].mxu0 %v7945
  %v12887 = vpop.f32.mrb[0].mxu0
  %v12888 = vadd.f32 %v12599, %v12887
  %v12889 = vpop.f32.mrb[0].mxu0
  %v12890 = vpop.f32.mrb[0].mxu0
  %v12891 = vadd.f32 %v12602, %v12890
  %v12892 = vpop.f32.mrb[0].mxu0
  %12893 = vmatprep.mubr.bf16.mxu0 %v8082
  %12894 = vmatmul.mubr.bf16.gmra.mrb[0].mxu0 %v8067
  %v12895 = vpop.f32.mrb[0].mxu0
  %v12896 = vadd.f32 %v12607, %v12895
  %v12897 = vpop.f32.mrb[0].mxu0
  %v12898 = vpop.f32.mrb[0].mxu0
  %v12899 = vadd.f32 %v12610, %v12898
  %v12900 = vpop.f32.mrb[0].mxu0
  %12901 = vmatprep.mubr.bf16.mxu0 %v8204
  %12902 = vmatmul.mubr.bf16.gmra.mrb[0].mxu0 %v8189
  %v12903 = vpop.f32.mrb[0].mxu0
  %v12904 = vadd.f32 %v12615, %v12903
  %v12905 = vpop.f32.mrb[0].mxu0
  %v12906 = vpop.f32.mrb[0].mxu0
  %v12907 = vadd.f32 %v12618, %v12906
  %v12908 = vpop.f32.mrb[0].mxu0
  %12909 = vmatprep.mubr.bf16.mxu0 %v8326
  %12910 = vmatmul.mubr.bf16.gmra.mrb[0].mxu0 %v8311
  %v12911 = vpop.f32.mrb[0].mxu0
  %v12912 = vadd.f32 %v12623, %v12911
  %v12913 = vpop.f32.mrb[0].mxu0
  %v12914 = vpop.f32.mrb[0].mxu0
  %v12915 = vadd.f32 %v12626, %v12914
  %v12916 = vpop.f32.mrb[0].mxu0
  %12917 = vmatprep.mubr.bf16.mxu0 %v8448
  %12918 = vmatmul.mubr.bf16.gmra.mrb[0].mxu0 %v8433
  %v12919 = vpop.f32.mrb[0].mxu0
  %v12920 = vadd.f32 %v12631, %v12919
  %v12921 = vpop.f32.mrb[0].mxu0
  %v12922 = vpop.f32.mrb[0].mxu0
  %v12923 = vadd.f32 %v12634, %v12922
  %v12924 = vpop.f32.mrb[0].mxu0
  %12925 = vmatprep.mubr.bf16.mxu0 %v8570
  %12926 = vmatmul.mubr.bf16.gmra.mrb[0].mxu0 %v8555
  %v12927 = vpop.f32.mrb[0].mxu0
  %v12928 = vadd.f32 %v12639, %v12927
  %v12929 = vpop.f32.mrb[0].mxu0
  %v12930 = vpop.f32.mrb[0].mxu0
  %v12931 = vadd.f32 %v12642, %v12930
  %v12932 = vpop.f32.mrb[0].mxu0
  %12933 = vmatprep.mubr.bf16.mxu0 %v8692
  %12934 = vmatmul.mubr.bf16.gmra.mrb[0].mxu0 %v8677
  %v12935 = vpop.f32.mrb[0].mxu0
  %v12936 = vadd.f32 %v12647, %v12935
  %v12937 = vpop.f32.mrb[0].mxu0
  %v12938 = vpop.f32.mrb[0].mxu0
  %v12939 = vadd.f32 %v12650, %v12938
  %v12940 = vpop.f32.mrb[0].mxu0
  %12941 = vmatprep.mubr.bf16.mxu0 %v8814
  %12942 = vmatmul.mubr.bf16.gmra.mrb[0].mxu0 %v8799
  %v12943 = vpop.f32.mrb[0].mxu0
  %v12944 = vadd.f32 %v12655, %v12943
  %v12945 = vpop.f32.mrb[0].mxu0
  %v12946 = vpop.f32.mrb[0].mxu0
  %v12947 = vadd.f32 %v12658, %v12946
  %v12948 = vpop.f32.mrb[0].mxu0
  %12949 = vmatprep.mubr.bf16.mxu0 %v8936
  %12950 = vmatmul.mubr.bf16.gmra.mrb[0].mxu0 %v8921
  %v12951 = vpop.f32.mrb[0].mxu0
  %v12952 = vadd.f32 %v12663, %v12951
  %v12953 = vpop.f32.mrb[0].mxu0
  %v12954 = vpop.f32.mrb[0].mxu0
  %v12955 = vadd.f32 %v12666, %v12954
  %v12956 = vpop.f32.mrb[0].mxu0
  %12957 = vmatprep.mubr.bf16.mxu0 %v9058
  %12958 = vmatmul.mubr.bf16.gmra.mrb[0].mxu0 %v9043
  %v12959 = vpop.f32.mrb[0].mxu0
  %v12960 = vadd.f32 %v12671, %v12959
  %v12961 = vpop.f32.mrb[0].mxu0
  %v12962 = vpop.f32.mrb[0].mxu0
  %v12963 = vadd.f32 %v12674, %v12962
  %v12964 = vpop.f32.mrb[0].mxu0
  %12965 = vmatprep.mubr.bf16.mxu0 %v9180
  %12966 = vmatmul.mubr.bf16.gmra.mrb[0].mxu0 %v9165
  %v12967 = vpop.f32.mrb[0].mxu0
  %v12968 = vadd.f32 %v12679, %v12967
  %v12969 = vpop.f32.mrb[0].mxu0
  %v12970 = vpop.f32.mrb[0].mxu0
  %v12971 = vadd.f32 %v12682, %v12970
  %v12972 = vpop.f32.mrb[0].mxu0
  %12973 = vmatprep.mubr.bf16.mxu0 %v9270
  %12974 = vmatmul.mubr.bf16.gmra.mrb[0].mxu0 %v9255
  %v12975 = vpop.f32.mrb[0].mxu0
  %v12976 = vadd.f32 %v12687, %v12975
  %v12977 = vpop.f32.mrb[0].mxu0
  %v12978 = vpop.f32.mrb[0].mxu0
  %v12979 = vadd.f32 %v12690, %v12978
  %v12980 = vpop.f32.mrb[0].mxu0
  %12981 = vmatprep.mubr.bf16.mxu0 %v9360
  %12982 = vmatmul.mubr.bf16.gmra.mrb[0].mxu0 %v9345
  %v12983 = vpop.f32.mrb[0].mxu0
  %v12984 = vadd.f32 %v12695, %v12983
  %v12985 = vpop.f32.mrb[0].mxu0
  %v12986 = vpop.f32.mrb[0].mxu0
  %v12987 = vadd.f32 %v12698, %v12986
  %v12988 = vpop.f32.mrb[0].mxu0
  %12989 = vmatprep.mubr.bf16.mxu0 %v9482
  %12990 = vmatmul.mubr.bf16.gmra.mrb[0].mxu0 %v9467
  %v12991 = vpop.f32.mrb[0].mxu0
  %v12992 = vadd.f32 %v12703, %v12991
  %v12993 = vpop.f32.mrb[0].mxu0
  %v12994 = vpop.f32.mrb[0].mxu0
  %v12995 = vadd.f32 %v12706, %v12994
  %v12996 = vpop.f32.mrb[0].mxu0
  %12997 = vmatprep.mubr.bf16.mxu0 %v9589
  %12998 = vmatmul.mubr.bf16.gmra.mrb[0].mxu0 %v9574
  %v12999 = vpop.f32.mrb[0].mxu0
  %v13000 = vadd.f32 %v12711, %v12999
  %v13001 = vpop.f32.mrb[0].mxu0
  %v13002 = vpop.f32.mrb[0].mxu0
  %v13003 = vadd.f32 %v12714, %v13002
  %v13004 = vpop.f32.mrb[0].mxu0
  %13005 = vmatprep.mubr.bf16.mxu0 %v9711
  %13006 = vmatmul.mubr.bf16.gmra.mrb[0].mxu0 %v9696
  %v13007 = vpop.f32.mrb[0].mxu0
  %v13008 = vadd.f32 %v12719, %v13007
  %v13009 = vpop.f32.mrb[0].mxu0
  %v13010 = vpop.f32.mrb[0].mxu0
  %v13011 = vadd.f32 %v12722, %v13010
  %v13012 = vpop.f32.mrb[0].mxu0
  %13013 = vmatprep.mubr.bf16.mxu0 %v9833
  %13014 = vmatmul.mubr.bf16.gmra.mrb[0].mxu0 %v9818
  %v13015 = vpop.f32.mrb[0].mxu0
  %v13016 = vadd.f32 %v12727, %v13015
  %v13017 = vpop.f32.mrb[0].mxu0
  %v13018 = vpop.f32.mrb[0].mxu0
  %v13019 = vadd.f32 %v12730, %v13018
  %v13020 = vpop.f32.mrb[0].mxu0
  %13021 = vmatprep.mubr.bf16.mxu0 %v9955
  %13022 = vmatmul.mubr.bf16.gmra.mrb[0].mxu0 %v9940
  %v13023 = vpop.f32.mrb[0].mxu0
  %v13024 = vadd.f32 %v12735, %v13023
  %v13025 = vpop.f32.mrb[0].mxu0
  %v13026 = vpop.f32.mrb[0].mxu0
  %v13027 = vadd.f32 %v12738, %v13026
  %v13028 = vpop.f32.mrb[0].mxu0
  %13029 = vmatprep.mubr.bf16.mxu0 %v10077
  %13030 = vmatmul.mubr.bf16.gmra.mrb[0].mxu0 %v10062
  %v13031 = vpop.f32.mrb[0].mxu0
  %v13032 = vadd.f32 %v12743, %v13031
  %v13033 = vpop.f32.mrb[0].mxu0
  %v13034 = vpop.f32.mrb[0].mxu0
  %v13035 = vadd.f32 %v12746, %v13034
  %v13036 = vpop.f32.mrb[0].mxu0
  %13037 = vmatprep.mubr.bf16.mxu0 %v10199
  %13038 = vmatmul.mubr.bf16.gmra.mrb[0].mxu0 %v10184
  %v13039 = vpop.f32.mrb[0].mxu0
  %v13040 = vadd.f32 %v12751, %v13039
  %v13041 = vpop.f32.mrb[0].mxu0
  %v13042 = vpop.f32.mrb[0].mxu0
  %v13043 = vadd.f32 %v12754, %v13042
  %v13044 = vpop.f32.mrb[0].mxu0
  %13045 = vmatprep.mubr.bf16.mxu0 %v10321
  %13046 = vmatmul.mubr.bf16.gmra.mrb[0].mxu0 %v10306
  %v13047 = vpop.f32.mrb[0].mxu0
  %v13048 = vadd.f32 %v12759, %v13047
  %v13049 = vpop.f32.mrb[0].mxu0
  %v13050 = vpop.f32.mrb[0].mxu0
  %v13051 = vadd.f32 %v12762, %v13050
  %v13052 = vpop.f32.mrb[0].mxu0
  %13053 = vmatprep.mubr.bf16.mxu0 %v10443
  %13054 = vmatmul.mubr.bf16.gmra.mrb[0].mxu0 %v10428
  %v13055 = vpop.f32.mrb[0].mxu0
  %v13056 = vadd.f32 %v12767, %v13055
  %v13057 = vpop.f32.mrb[0].mxu0
  %v13058 = vpop.f32.mrb[0].mxu0
  %v13059 = vadd.f32 %v12770, %v13058
  %v13060 = vpop.f32.mrb[0].mxu0
  %13061 = vmatprep.mubr.bf16.mxu0 %v10565
  %13062 = vmatmul.mubr.bf16.gmra.mrb[0].mxu0 %v10550
  %v13063 = vpop.f32.mrb[0].mxu0
  %v13064 = vadd.f32 %v12775, %v13063
  %v13065 = vpop.f32.mrb[0].mxu0
  %v13066 = vpop.f32.mrb[0].mxu0
  %v13067 = vadd.f32 %v12778, %v13066
  %v13068 = vpop.f32.mrb[0].mxu0
  %13069 = vmatprep.mubr.bf16.mxu0 %v10687
  %13070 = vmatmul.mubr.bf16.gmra.mrb[0].mxu0 %v10672
  %v13071 = vpop.f32.mrb[0].mxu0
  %v13072 = vadd.f32 %v12783, %v13071
  %v13073 = vpop.f32.mrb[0].mxu0
  %v13074 = vpop.f32.mrb[0].mxu0
  %v13075 = vadd.f32 %v12786, %v13074
  %v13076 = vpop.f32.mrb[0].mxu0
  %13077 = vmatprep.mubr.bf16.mxu0 %v10809
  %13078 = vmatmul.mubr.bf16.gmra.mrb[0].mxu0 %v10794
  %v13079 = vpop.f32.mrb[0].mxu0
  %v13080 = vadd.f32 %v12791, %v13079
  %v13081 = vpop.f32.mrb[0].mxu0
  %v13082 = vpop.f32.mrb[0].mxu0
  %v13083 = vadd.f32 %v12794, %v13082
  %v13084 = vpop.f32.mrb[0].mxu0
  %13085 = vmatprep.mubr.bf16.mxu0 %v10931
  %13086 = vmatmul.mubr.bf16.gmra.mrb[0].mxu0 %v10916
  %v13087 = vpop.f32.mrb[0].mxu0
  %v13088 = vadd.f32 %v12799, %v13087
  %v13089 = vpop.f32.mrb[0].mxu0
  %v13090 = vpop.f32.mrb[0].mxu0
  %v13091 = vadd.f32 %v12802, %v13090
  %v13092 = vpop.f32.mrb[0].mxu0
  %13093 = vmatprep.mubr.bf16.mxu0 %v11036
  %13094 = vmatmul.mubr.bf16.gmra.mrb[0].mxu0 %v11021
  %v13095 = vpop.f32.mrb[0].mxu0
  %v13096 = vadd.f32 %v12807, %v13095
  %v13097 = vpop.f32.mrb[0].mxu0
  %v13098 = vpop.f32.mrb[0].mxu0
  %v13099 = vadd.f32 %v12810, %v13098
  %v13100 = vpop.f32.mrb[0].mxu0
  %13101 = vmatprep.mubr.bf16.mxu0 %v11126
  %13102 = vmatmul.mubr.bf16.gmra.mrb[0].mxu0 %v11111
  %v13103 = vpop.f32.mrb[0].mxu0
  %v13104 = vadd.f32 %v12815, %v13103
  %v13105 = vpop.f32.mrb[0].mxu0
  %v13106 = vpop.f32.mrb[0].mxu0
  %v13107 = vadd.f32 %v12818, %v13106
  %v13108 = vpop.f32.mrb[0].mxu0
  %13109 = vdwg.mxu0
  %13110 = vmatprep.subr.bf16.mxu0 0
  %13111 = vmatpush1.bf16.msra.mxu0 %v11874
  %13112 = vmatprep.subr.bf16.mxu0 0
  %13113 = vmatpush1.bf16.msra.mxu0 %v11875
  %13114 = vmatprep.subr.bf16.mxu0 0
  %13115 = vmatpush1.bf16.msra.mxu0 %v11876
  %13116 = vmatprep.subr.bf16.mxu0 0
  %13117 = vmatpush1.bf16.msra.mxu0 %v11877
  %13118 = vmatprep.subr.bf16.mxu0 0
  %13119 = vmatpush1.bf16.msra.mxu0 %v11878
  %13120 = vmatprep.subr.bf16.mxu0 0
  %13121 = vmatpush1.bf16.msra.mxu0 %v11879
  %13122 = vmatprep.subr.bf16.mxu0 0
  %13123 = vmatpush1.bf16.msra.mxu0 %v11880
  %13124 = vmatprep.subr.bf16.mxu0 0
  %13125 = vmatpush1.bf16.msra.mxu0 %v11881
  %13126 = vmatprep.subr.bf16.mxu0 0
  %13127 = vmatpush1.bf16.msra.mxu0 0
  %13128 = vmatprep.subr.bf16.mxu0 0
  %13129 = vmatpush1.bf16.msra.mxu0 0
  %13130 = vmatprep.subr.bf16.mxu0 0
  %13131 = vmatpush1.bf16.msra.mxu0 0
  %13132 = vmatprep.subr.bf16.mxu0 0
  %13133 = vmatpush1.bf16.msra.mxu0 0
  %13134 = vmatprep.subr.bf16.mxu0 0
  %13135 = vmatpush1.bf16.msra.mxu0 0
  %13136 = vmatprep.subr.bf16.mxu0 0
  %13137 = vmatpush1.bf16.msra.mxu0 0
  %13138 = vmatprep.subr.bf16.mxu0 0
  %13139 = vmatpush1.bf16.msra.mxu0 0
  %13140 = vmatprep.subr.bf16.mxu0 0
  %13141 = vmatpush1.bf16.msra.mxu0 0
  %13142 = vmatprep.mubr.bf16.mxu0 0
  %13143 = vmatmul.mubr.bf16.gmra.mrb[0].mxu0 %v7504
  %v13144 = vpop.f32.mrb[0].mxu0
  %v13145 = vadd.f32 %v12856, %v13144
  %v13146 = vpop.f32.mrb[0].mxu0
  %v13147 = vpop.f32.mrb[0].mxu0
  %v13148 = vadd.f32 %v12859, %v13147
  %v13149 = vpop.f32.mrb[0].mxu0
  %13150 = vmatprep.mubr.bf16.mxu0 0
  %13151 = vmatmul.mubr.bf16.gmra.mrb[0].mxu0 %v7626
  %v13152 = vpop.f32.mrb[0].mxu0
  %v13153 = vadd.f32 %v12864, %v13152
  %v13154 = vpop.f32.mrb[0].mxu0
  %v13155 = vpop.f32.mrb[0].mxu0
  %v13156 = vadd.f32 %v12867, %v13155
  %v13157 = vpop.f32.mrb[0].mxu0
  %13158 = vmatprep.mubr.bf16.mxu0 0
  %13159 = vmatmul.mubr.bf16.gmra.mrb[0].mxu0 %v7733
  %v13160 = vpop.f32.mrb[0].mxu0
  %v13161 = vadd.f32 %v12872, %v13160
  %v13162 = vpop.f32.mrb[0].mxu0
  %v13163 = vpop.f32.mrb[0].mxu0
  %v13164 = vadd.f32 %v12875, %v13163
  %v13165 = vpop.f32.mrb[0].mxu0
  %13166 = vmatprep.mubr.bf16.mxu0 0
  %13167 = vmatmul.mubr.bf16.gmra.mrb[0].mxu0 %v7855
  %v13168 = vpop.f32.mrb[0].mxu0
  %v13169 = vadd.f32 %v12880, %v13168
  %v13170 = vpop.f32.mrb[0].mxu0
  %v13171 = vpop.f32.mrb[0].mxu0
  %v13172 = vadd.f32 %v12883, %v13171
  %v13173 = vpop.f32.mrb[0].mxu0
  %13174 = vmatprep.mubr.bf16.mxu0 0
  %13175 = vmatmul.mubr.bf16.gmra.mrb[0].mxu0 %v7977
  %v13176 = vpop.f32.mrb[0].mxu0
  %v13177 = vadd.f32 %v12888, %v13176
  %v13178 = vpop.f32.mrb[0].mxu0
  %v13179 = vpop.f32.mrb[0].mxu0
  %v13180 = vadd.f32 %v12891, %v13179
  %v13181 = vpop.f32.mrb[0].mxu0
  %13182 = vmatprep.mubr.bf16.mxu0 0
  %13183 = vmatmul.mubr.bf16.gmra.mrb[0].mxu0 %v8099
  %v13184 = vpop.f32.mrb[0].mxu0
  %v13185 = vadd.f32 %v12896, %v13184
  %v13186 = vpop.f32.mrb[0].mxu0
  %v13187 = vpop.f32.mrb[0].mxu0
  %v13188 = vadd.f32 %v12899, %v13187
  %v13189 = vpop.f32.mrb[0].mxu0
  %13190 = vmatprep.mubr.bf16.mxu0 0
  %13191 = vmatmul.mubr.bf16.gmra.mrb[0].mxu0 %v8221
  %v13192 = vpop.f32.mrb[0].mxu0
  %v13193 = vadd.f32 %v12904, %v13192
  %v13194 = vpop.f32.mrb[0].mxu0
  %v13195 = vpop.f32.mrb[0].mxu0
  %v13196 = vadd.f32 %v12907, %v13195
  %v13197 = vpop.f32.mrb[0].mxu0
  %13198 = vmatprep.mubr.bf16.mxu0 0
  %13199 = vmatmul.mubr.bf16.gmra.mrb[0].mxu0 %v8343
  %v13200 = vpop.f32.mrb[0].mxu0
  %v13201 = vadd.f32 %v12912, %v13200
  %v13202 = vpop.f32.mrb[0].mxu0
  %v13203 = vpop.f32.mrb[0].mxu0
  %v13204 = vadd.f32 %v12915, %v13203
  %v13205 = vpop.f32.mrb[0].mxu0
  %13206 = vmatprep.mubr.bf16.mxu0 0
  %13207 = vmatmul.mubr.bf16.gmra.mrb[0].mxu0 %v8465
  %v13208 = vpop.f32.mrb[0].mxu0
  %v13209 = vadd.f32 %v12920, %v13208
  %v13210 = vpop.f32.mrb[0].mxu0
  %v13211 = vpop.f32.mrb[0].mxu0
  %v13212 = vadd.f32 %v12923, %v13211
  %v13213 = vpop.f32.mrb[0].mxu0
  %13214 = vmatprep.mubr.bf16.mxu0 0
  %13215 = vmatmul.mubr.bf16.gmra.mrb[0].mxu0 %v8587
  %v13216 = vpop.f32.mrb[0].mxu0
  %v13217 = vadd.f32 %v12928, %v13216
  %v13218 = vpop.f32.mrb[0].mxu0
  %v13219 = vpop.f32.mrb[0].mxu0
  %v13220 = vadd.f32 %v12931, %v13219
  %v13221 = vpop.f32.mrb[0].mxu0
  %13222 = vmatprep.mubr.bf16.mxu0 0
  %13223 = vmatmul.mubr.bf16.gmra.mrb[0].mxu0 %v8709
  %v13224 = vpop.f32.mrb[0].mxu0
  %v13225 = vadd.f32 %v12936, %v13224
  %v13226 = vpop.f32.mrb[0].mxu0
  %v13227 = vpop.f32.mrb[0].mxu0
  %v13228 = vadd.f32 %v12939, %v13227
  %v13229 = vpop.f32.mrb[0].mxu0
  %13230 = vmatprep.mubr.bf16.mxu0 0
  %13231 = vmatmul.mubr.bf16.gmra.mrb[0].mxu0 %v8831
  %v13232 = vpop.f32.mrb[0].mxu0
  %v13233 = vadd.f32 %v12944, %v13232
  %v13234 = vpop.f32.mrb[0].mxu0
  %v13235 = vpop.f32.mrb[0].mxu0
  %v13236 = vadd.f32 %v12947, %v13235
  %v13237 = vpop.f32.mrb[0].mxu0
  %13238 = vmatprep.mubr.bf16.mxu0 0
  %13239 = vmatmul.mubr.bf16.gmra.mrb[0].mxu0 %v8953
  %v13240 = vpop.f32.mrb[0].mxu0
  %v13241 = vadd.f32 %v12952, %v13240
  %v13242 = vpop.f32.mrb[0].mxu0
  %v13243 = vpop.f32.mrb[0].mxu0
  %v13244 = vadd.f32 %v12955, %v13243
  %v13245 = vpop.f32.mrb[0].mxu0
  %13246 = vmatprep.mubr.bf16.mxu0 0
  %13247 = vmatmul.mubr.bf16.gmra.mrb[0].mxu0 %v9075
  %v13248 = vpop.f32.mrb[0].mxu0
  %v13249 = vadd.f32 %v12960, %v13248
  %v13250 = vpop.f32.mrb[0].mxu0
  %v13251 = vpop.f32.mrb[0].mxu0
  %v13252 = vadd.f32 %v12963, %v13251
  %v13253 = vpop.f32.mrb[0].mxu0
  %13254 = vmatprep.mubr.bf16.mxu0 0
  %13255 = vmatmul.mubr.bf16.gmra.mrb[0].mxu0 %v9075
  %v13256 = vpop.f32.mrb[0].mxu0
  %v13257 = vadd.f32 %v12968, %v13256
  %v13258 = vpop.f32.mrb[0].mxu0
  %v13259 = vpop.f32.mrb[0].mxu0
  %v13260 = vadd.f32 %v12971, %v13259
  %v13261 = vpop.f32.mrb[0].mxu0
  %13262 = vmatprep.mubr.bf16.mxu0 0
  %13263 = vmatmul.mubr.bf16.gmra.mrb[0].mxu0 %v9075
  %v13264 = vpop.f32.mrb[0].mxu0
  %v13265 = vadd.f32 %v12976, %v13264
  %v13266 = vpop.f32.mrb[0].mxu0
  %v13267 = vpop.f32.mrb[0].mxu0
  %v13268 = vadd.f32 %v12979, %v13267
  %v13269 = vpop.f32.mrb[0].mxu0
  %13270 = vmatprep.mubr.bf16.mxu0 0
  %13271 = vmatmul.mubr.bf16.gmra.mrb[0].mxu0 %v9377
  %v13272 = vpop.f32.mrb[0].mxu0
  %v13273 = vadd.f32 %v12984, %v13272
  %v13274 = vpop.f32.mrb[0].mxu0
  %v13275 = vpop.f32.mrb[0].mxu0
  %v13276 = vadd.f32 %v12987, %v13275
  %v13277 = vpop.f32.mrb[0].mxu0
  %13278 = vmatprep.mubr.bf16.mxu0 0
  %13279 = vmatmul.mubr.bf16.gmra.mrb[0].mxu0 %v9499
  %v13280 = vpop.f32.mrb[0].mxu0
  %v13281 = vadd.f32 %v12992, %v13280
  %v13282 = vpop.f32.mrb[0].mxu0
  %v13283 = vpop.f32.mrb[0].mxu0
  %v13284 = vadd.f32 %v12995, %v13283
  %v13285 = vpop.f32.mrb[0].mxu0
  %13286 = vmatprep.mubr.bf16.mxu0 0
  %13287 = vmatmul.mubr.bf16.gmra.mrb[0].mxu0 %v9606
  %v13288 = vpop.f32.mrb[0].mxu0
  %v13289 = vadd.f32 %v13000, %v13288
  %v13290 = vpop.f32.mrb[0].mxu0
  %v13291 = vpop.f32.mrb[0].mxu0
  %v13292 = vadd.f32 %v13003, %v13291
  %v13293 = vpop.f32.mrb[0].mxu0
  %13294 = vmatprep.mubr.bf16.mxu0 0
  %13295 = vmatmul.mubr.bf16.gmra.mrb[0].mxu0 %v9728
  %v13296 = vpop.f32.mrb[0].mxu0
  %v13297 = vadd.f32 %v13008, %v13296
  %v13298 = vpop.f32.mrb[0].mxu0
  %v13299 = vpop.f32.mrb[0].mxu0
  %v13300 = vadd.f32 %v13011, %v13299
  %v13301 = vpop.f32.mrb[0].mxu0
  %13302 = vmatprep.mubr.bf16.mxu0 0
  %13303 = vmatmul.mubr.bf16.gmra.mrb[0].mxu0 %v9850
  %v13304 = vpop.f32.mrb[0].mxu0
  %v13305 = vadd.f32 %v13016, %v13304
  %v13306 = vpop.f32.mrb[0].mxu0
  %v13307 = vpop.f32.mrb[0].mxu0
  %v13308 = vadd.f32 %v13019, %v13307
  %v13309 = vpop.f32.mrb[0].mxu0
  %13310 = vmatprep.mubr.bf16.mxu0 0
  %13311 = vmatmul.mubr.bf16.gmra.mrb[0].mxu0 %v9972
  %v13312 = vpop.f32.mrb[0].mxu0
  %v13313 = vadd.f32 %v13024, %v13312
  %v13314 = vpop.f32.mrb[0].mxu0
  %v13315 = vpop.f32.mrb[0].mxu0
  %v13316 = vadd.f32 %v13027, %v13315
  %v13317 = vpop.f32.mrb[0].mxu0
  %13318 = vmatprep.mubr.bf16.mxu0 0
  %13319 = vmatmul.mubr.bf16.gmra.mrb[0].mxu0 %v10094
  %v13320 = vpop.f32.mrb[0].mxu0
  %v13321 = vadd.f32 %v13032, %v13320
  %v13322 = vpop.f32.mrb[0].mxu0
  %v13323 = vpop.f32.mrb[0].mxu0
  %v13324 = vadd.f32 %v13035, %v13323
  %v13325 = vpop.f32.mrb[0].mxu0
  %13326 = vmatprep.mubr.bf16.mxu0 0
  %13327 = vmatmul.mubr.bf16.gmra.mrb[0].mxu0 %v10216
  %v13328 = vpop.f32.mrb[0].mxu0
  %v13329 = vadd.f32 %v13040, %v13328
  %v13330 = vpop.f32.mrb[0].mxu0
  %v13331 = vpop.f32.mrb[0].mxu0
  %v13332 = vadd.f32 %v13043, %v13331
  %v13333 = vpop.f32.mrb[0].mxu0
  %13334 = vmatprep.mubr.bf16.mxu0 0
  %13335 = vmatmul.mubr.bf16.gmra.mrb[0].mxu0 %v10338
  %v13336 = vpop.f32.mrb[0].mxu0
  %v13337 = vadd.f32 %v13048, %v13336
  %v13338 = vpop.f32.mrb[0].mxu0
  %v13339 = vpop.f32.mrb[0].mxu0
  %v13340 = vadd.f32 %v13051, %v13339
  %v13341 = vpop.f32.mrb[0].mxu0
  %13342 = vmatprep.mubr.bf16.mxu0 0
  %13343 = vmatmul.mubr.bf16.gmra.mrb[0].mxu0 %v10460
  %v13344 = vpop.f32.mrb[0].mxu0
  %v13345 = vadd.f32 %v13056, %v13344
  %v13346 = vpop.f32.mrb[0].mxu0
  %v13347 = vpop.f32.mrb[0].mxu0
  %v13348 = vadd.f32 %v13059, %v13347
  %v13349 = vpop.f32.mrb[0].mxu0
  %13350 = vmatprep.mubr.bf16.mxu0 0
  %13351 = vmatmul.mubr.bf16.gmra.mrb[0].mxu0 %v10582
  %v13352 = vpop.f32.mrb[0].mxu0
  %v13353 = vadd.f32 %v13064, %v13352
  %v13354 = vpop.f32.mrb[0].mxu0
  %v13355 = vpop.f32.mrb[0].mxu0
  %v13356 = vadd.f32 %v13067, %v13355
  %v13357 = vpop.f32.mrb[0].mxu0
  %13358 = vmatprep.mubr.bf16.mxu0 0
  %13359 = vmatmul.mubr.bf16.gmra.mrb[0].mxu0 %v10704
  %v13360 = vpop.f32.mrb[0].mxu0
  %v13361 = vadd.f32 %v13072, %v13360
  %v13362 = vpop.f32.mrb[0].mxu0
  %v13363 = vpop.f32.mrb[0].mxu0
  %v13364 = vadd.f32 %v13075, %v13363
  %v13365 = vpop.f32.mrb[0].mxu0
  %13366 = vmatprep.mubr.bf16.mxu0 0
  %13367 = vmatmul.mubr.bf16.gmra.mrb[0].mxu0 %v10826
  %v13368 = vpop.f32.mrb[0].mxu0
  %v13369 = vadd.f32 %v13080, %v13368
  %v13370 = vpop.f32.mrb[0].mxu0
  %v13371 = vpop.f32.mrb[0].mxu0
  %v13372 = vadd.f32 %v13083, %v13371
  %v13373 = vpop.f32.mrb[0].mxu0
  %13374 = vmatprep.mubr.bf16.mxu0 0
  %13375 = vmatmul.mubr.bf16.gmra.mrb[0].mxu0 %v9075
  %v13376 = vpop.f32.mrb[0].mxu0
  %v13377 = vadd.f32 %v13088, %v13376
  %v13378 = vpop.f32.mrb[0].mxu0
  %v13379 = vpop.f32.mrb[0].mxu0
  %v13380 = vadd.f32 %v13091, %v13379
  %v13381 = vpop.f32.mrb[0].mxu0
  %13382 = vmatprep.mubr.bf16.mxu0 0
  %13383 = vmatmul.mubr.bf16.gmra.mrb[0].mxu0 %v9075
  %v13384 = vpop.f32.mrb[0].mxu0
  %v13385 = vadd.f32 %v13096, %v13384
  %v13386 = vpop.f32.mrb[0].mxu0
  %v13387 = vpop.f32.mrb[0].mxu0
  %v13388 = vadd.f32 %v13099, %v13387
  %v13389 = vpop.f32.mrb[0].mxu0
  %13390 = vmatprep.mubr.bf16.mxu0 0
  %13391 = vmatmul.mubr.bf16.gmra.mrb[0].mxu0 %v9075
  %v13392 = vpop.f32.mrb[0].mxu0
  %v13393 = vadd.f32 %v13104, %v13392
  %v13394 = vpop.f32.mrb[0].mxu0
  %v13395 = vpop.f32.mrb[0].mxu0
  %v13396 = vadd.f32 %v13107, %v13395
  %v13397 = vpop.f32.mrb[0].mxu0
  %13398 = vdwg.mxu0
  %vm13399 = vcmask 146432
  %v13400 = vsel %vm13399, %v13145, 0.0
  %v13401 = vsel %vm13399, %v13148, 0.0
  %v13402 = vadd.f32 %v13400, %v13401
  %v13403 = vrot.slane %v13402, 4
  %v13404 = vadd.f32 %v13402, %v13403
  %v13405 = vrot.slane %v13404, 2
  %v13406 = vadd.f32 %v13404, %v13405
  %v13407 = vrot.slane %v13406, 1
  %v13408 = vadd.f32 %v13406, %v13407
  %v13409 = vsel %vm13399, %v13153, 0.0
  %v13410 = vsel %vm13399, %v13156, 0.0
  %v13411 = vadd.f32 %v13409, %v13410
  %v13412 = vrot.slane %v13411, 4
  %v13413 = vadd.f32 %v13411, %v13412
  %v13414 = vrot.slane %v13413, 2
  %v13415 = vadd.f32 %v13413, %v13414
  %v13416 = vrot.slane %v13415, 1
  %v13417 = vadd.f32 %v13415, %v13416
  %v13418 = vsel %vm13399, %v13161, 0.0
  %v13419 = vsel %vm13399, %v13164, 0.0
  %v13420 = vadd.f32 %v13418, %v13419
  %v13421 = vrot.slane %v13420, 4
  %v13422 = vadd.f32 %v13420, %v13421
  %v13423 = vrot.slane %v13422, 2
  %v13424 = vadd.f32 %v13422, %v13423
  %v13425 = vrot.slane %v13424, 1
  %v13426 = vadd.f32 %v13424, %v13425
  %v13427 = vsel %vm13399, %v13169, 0.0
  %v13428 = vsel %vm13399, %v13172, 0.0
  %v13429 = vadd.f32 %v13427, %v13428
  %v13430 = vrot.slane %v13429, 4
  %v13431 = vadd.f32 %v13429, %v13430
  %v13432 = vrot.slane %v13431, 2
  %v13433 = vadd.f32 %v13431, %v13432
  %v13434 = vrot.slane %v13433, 1
  %v13435 = vadd.f32 %v13433, %v13434
  %v13436 = vsel %vm13399, %v13177, 0.0
  %v13437 = vsel %vm13399, %v13180, 0.0
  %v13438 = vadd.f32 %v13436, %v13437
  %v13439 = vrot.slane %v13438, 4
  %v13440 = vadd.f32 %v13438, %v13439
  %v13441 = vrot.slane %v13440, 2
  %v13442 = vadd.f32 %v13440, %v13441
  %v13443 = vrot.slane %v13442, 1
  %v13444 = vadd.f32 %v13442, %v13443
  %v13445 = vsel %vm13399, %v13185, 0.0
  %v13446 = vsel %vm13399, %v13188, 0.0
  %v13447 = vadd.f32 %v13445, %v13446
  %v13448 = vrot.slane %v13447, 4
  %v13449 = vadd.f32 %v13447, %v13448
  %v13450 = vrot.slane %v13449, 2
  %v13451 = vadd.f32 %v13449, %v13450
  %v13452 = vrot.slane %v13451, 1
  %v13453 = vadd.f32 %v13451, %v13452
  %v13454 = vsel %vm13399, %v13193, 0.0
  %v13455 = vsel %vm13399, %v13196, 0.0
  %v13456 = vadd.f32 %v13454, %v13455
  %v13457 = vrot.slane %v13456, 4
  %v13458 = vadd.f32 %v13456, %v13457
  %v13459 = vrot.slane %v13458, 2
  %v13460 = vadd.f32 %v13458, %v13459
  %v13461 = vrot.slane %v13460, 1
  %v13462 = vadd.f32 %v13460, %v13461
  %v13463 = vsel %vm13399, %v13201, 0.0
  %v13464 = vsel %vm13399, %v13204, 0.0
  %v13465 = vadd.f32 %v13463, %v13464
  %v13466 = vrot.slane %v13465, 4
  %v13467 = vadd.f32 %v13465, %v13466
  %v13468 = vrot.slane %v13467, 2
  %v13469 = vadd.f32 %v13467, %v13468
  %v13470 = vrot.slane %v13469, 1
  %v13471 = vadd.f32 %v13469, %v13470
  %v13472 = vsel %vm13399, %v13209, 0.0
  %v13473 = vsel %vm13399, %v13212, 0.0
  %v13474 = vadd.f32 %v13472, %v13473
  %v13475 = vrot.slane %v13474, 4
  %v13476 = vadd.f32 %v13474, %v13475
  %v13477 = vrot.slane %v13476, 2
  %v13478 = vadd.f32 %v13476, %v13477
  %v13479 = vrot.slane %v13478, 1
  %v13480 = vadd.f32 %v13478, %v13479
  %v13481 = vsel %vm13399, %v13217, 0.0
  %v13482 = vsel %vm13399, %v13220, 0.0
  %v13483 = vadd.f32 %v13481, %v13482
  %v13484 = vrot.slane %v13483, 4
  %v13485 = vadd.f32 %v13483, %v13484
  %v13486 = vrot.slane %v13485, 2
  %v13487 = vadd.f32 %v13485, %v13486
  %v13488 = vrot.slane %v13487, 1
  %v13489 = vadd.f32 %v13487, %v13488
  %v13490 = vsel %vm13399, %v13225, 0.0
  %v13491 = vsel %vm13399, %v13228, 0.0
  %v13492 = vadd.f32 %v13490, %v13491
  %v13493 = vrot.slane %v13492, 4
  %v13494 = vadd.f32 %v13492, %v13493
  %v13495 = vrot.slane %v13494, 2
  %v13496 = vadd.f32 %v13494, %v13495
  %v13497 = vrot.slane %v13496, 1
  %v13498 = vadd.f32 %v13496, %v13497
  %v13499 = vsel %vm13399, %v13233, 0.0
  %v13500 = vsel %vm13399, %v13236, 0.0
  %v13501 = vadd.f32 %v13499, %v13500
  %v13502 = vrot.slane %v13501, 4
  %v13503 = vadd.f32 %v13501, %v13502
  %v13504 = vrot.slane %v13503, 2
  %v13505 = vadd.f32 %v13503, %v13504
  %v13506 = vrot.slane %v13505, 1
  %v13507 = vadd.f32 %v13505, %v13506
  %v13508 = vsel %vm13399, %v13241, 0.0
  %v13509 = vsel %vm13399, %v13244, 0.0
  %v13510 = vadd.f32 %v13508, %v13509
  %v13511 = vrot.slane %v13510, 4
  %v13512 = vadd.f32 %v13510, %v13511
  %v13513 = vrot.slane %v13512, 2
  %v13514 = vadd.f32 %v13512, %v13513
  %v13515 = vrot.slane %v13514, 1
  %v13516 = vadd.f32 %v13514, %v13515
  %v13517 = vsel %vm13399, %v13249, 0.0
  %v13518 = vsel %vm13399, %v13252, 0.0
  %v13519 = vadd.f32 %v13517, %v13518
  %v13520 = vrot.slane %v13519, 4
  %v13521 = vadd.f32 %v13519, %v13520
  %v13522 = vrot.slane %v13521, 2
  %v13523 = vadd.f32 %v13521, %v13522
  %v13524 = vrot.slane %v13523, 1
  %v13525 = vadd.f32 %v13523, %v13524
  %v13526 = vsel %vm13399, %v13257, 0.0
  %v13527 = vsel %vm13399, %v13260, 0.0
  %v13528 = vadd.f32 %v13526, %v13527
  %v13529 = vrot.slane %v13528, 4
  %v13530 = vadd.f32 %v13528, %v13529
  %v13531 = vrot.slane %v13530, 2
  %v13532 = vadd.f32 %v13530, %v13531
  %v13533 = vrot.slane %v13532, 1
  %v13534 = vadd.f32 %v13532, %v13533
  %v13535 = vsel %vm13399, %v13265, 0.0
  %v13536 = vsel %vm13399, %v13268, 0.0
  %v13537 = vadd.f32 %v13535, %v13536
  %v13538 = vrot.slane %v13537, 4
  %v13539 = vadd.f32 %v13537, %v13538
  %v13540 = vrot.slane %v13539, 2
  %v13541 = vadd.f32 %v13539, %v13540
  %v13542 = vrot.slane %v13541, 1
  %v13543 = vadd.f32 %v13541, %v13542
  %v13544 = vsel %vm13399, %v13273, 0.0
  %v13545 = vsel %vm13399, %v13276, 0.0
  %v13546 = vadd.f32 %v13544, %v13545
  %v13547 = vrot.slane %v13546, 4
  %v13548 = vadd.f32 %v13546, %v13547
  %v13549 = vrot.slane %v13548, 2
  %v13550 = vadd.f32 %v13548, %v13549
  %v13551 = vrot.slane %v13550, 1
  %v13552 = vadd.f32 %v13550, %v13551
  %v13553 = vsel %vm13399, %v13281, 0.0
  %v13554 = vsel %vm13399, %v13284, 0.0
  %v13555 = vadd.f32 %v13553, %v13554
  %v13556 = vrot.slane %v13555, 4
  %v13557 = vadd.f32 %v13555, %v13556
  %v13558 = vrot.slane %v13557, 2
  %v13559 = vadd.f32 %v13557, %v13558
  %v13560 = vrot.slane %v13559, 1
  %v13561 = vadd.f32 %v13559, %v13560
  %v13562 = vsel %vm13399, %v13289, 0.0
  %v13563 = vsel %vm13399, %v13292, 0.0
  %v13564 = vadd.f32 %v13562, %v13563
  %v13565 = vrot.slane %v13564, 4
  %v13566 = vadd.f32 %v13564, %v13565
  %v13567 = vrot.slane %v13566, 2
  %v13568 = vadd.f32 %v13566, %v13567
  %v13569 = vrot.slane %v13568, 1
  %v13570 = vadd.f32 %v13568, %v13569
  %v13571 = vsel %vm13399, %v13297, 0.0
  %v13572 = vsel %vm13399, %v13300, 0.0
  %v13573 = vadd.f32 %v13571, %v13572
  %v13574 = vrot.slane %v13573, 4
  %v13575 = vadd.f32 %v13573, %v13574
  %v13576 = vrot.slane %v13575, 2
  %v13577 = vadd.f32 %v13575, %v13576
  %v13578 = vrot.slane %v13577, 1
  %v13579 = vadd.f32 %v13577, %v13578
  %v13580 = vsel %vm13399, %v13305, 0.0
  %v13581 = vsel %vm13399, %v13308, 0.0
  %v13582 = vadd.f32 %v13580, %v13581
  %v13583 = vrot.slane %v13582, 4
  %v13584 = vadd.f32 %v13582, %v13583
  %v13585 = vrot.slane %v13584, 2
  %v13586 = vadd.f32 %v13584, %v13585
  %v13587 = vrot.slane %v13586, 1
  %v13588 = vadd.f32 %v13586, %v13587
  %v13589 = vsel %vm13399, %v13313, 0.0
  %v13590 = vsel %vm13399, %v13316, 0.0
  %v13591 = vadd.f32 %v13589, %v13590
  %v13592 = vrot.slane %v13591, 4
  %v13593 = vadd.f32 %v13591, %v13592
  %v13594 = vrot.slane %v13593, 2
  %v13595 = vadd.f32 %v13593, %v13594
  %v13596 = vrot.slane %v13595, 1
  %v13597 = vadd.f32 %v13595, %v13596
  %v13598 = vsel %vm13399, %v13321, 0.0
  %v13599 = vsel %vm13399, %v13324, 0.0
  %v13600 = vadd.f32 %v13598, %v13599
  %v13601 = vrot.slane %v13600, 4
  %v13602 = vadd.f32 %v13600, %v13601
  %v13603 = vrot.slane %v13602, 2
  %v13604 = vadd.f32 %v13602, %v13603
  %v13605 = vrot.slane %v13604, 1
  %v13606 = vadd.f32 %v13604, %v13605
  %v13607 = vsel %vm13399, %v13329, 0.0
  %v13608 = vsel %vm13399, %v13332, 0.0
  %v13609 = vadd.f32 %v13607, %v13608
  %v13610 = vrot.slane %v13609, 4
  %v13611 = vadd.f32 %v13609, %v13610
  %v13612 = vrot.slane %v13611, 2
  %v13613 = vadd.f32 %v13611, %v13612
  %v13614 = vrot.slane %v13613, 1
  %v13615 = vadd.f32 %v13613, %v13614
  %v13616 = vsel %vm13399, %v13337, 0.0
  %v13617 = vsel %vm13399, %v13340, 0.0
  %v13618 = vadd.f32 %v13616, %v13617
  %v13619 = vrot.slane %v13618, 4
  %v13620 = vadd.f32 %v13618, %v13619
  %v13621 = vrot.slane %v13620, 2
  %v13622 = vadd.f32 %v13620, %v13621
  %v13623 = vrot.slane %v13622, 1
  %v13624 = vadd.f32 %v13622, %v13623
  %v13625 = vsel %vm13399, %v13345, 0.0
  %v13626 = vsel %vm13399, %v13348, 0.0
  %v13627 = vadd.f32 %v13625, %v13626
  %v13628 = vrot.slane %v13627, 4
  %v13629 = vadd.f32 %v13627, %v13628
  %v13630 = vrot.slane %v13629, 2
  %v13631 = vadd.f32 %v13629, %v13630
  %v13632 = vrot.slane %v13631, 1
  %v13633 = vadd.f32 %v13631, %v13632
  %v13634 = vsel %vm13399, %v13353, 0.0
  %v13635 = vsel %vm13399, %v13356, 0.0
  %v13636 = vadd.f32 %v13634, %v13635
  %v13637 = vrot.slane %v13636, 4
  %v13638 = vadd.f32 %v13636, %v13637
  %v13639 = vrot.slane %v13638, 2
  %v13640 = vadd.f32 %v13638, %v13639
  %v13641 = vrot.slane %v13640, 1
  %v13642 = vadd.f32 %v13640, %v13641
  %v13643 = vsel %vm13399, %v13361, 0.0
  %v13644 = vsel %vm13399, %v13364, 0.0
  %v13645 = vadd.f32 %v13643, %v13644
  %v13646 = vrot.slane %v13645, 4
  %v13647 = vadd.f32 %v13645, %v13646
  %v13648 = vrot.slane %v13647, 2
  %v13649 = vadd.f32 %v13647, %v13648
  %v13650 = vrot.slane %v13649, 1
  %v13651 = vadd.f32 %v13649, %v13650
  %v13652 = vsel %vm13399, %v13369, 0.0
  %v13653 = vsel %vm13399, %v13372, 0.0
  %v13654 = vadd.f32 %v13652, %v13653
  %v13655 = vrot.slane %v13654, 4
  %v13656 = vadd.f32 %v13654, %v13655
  %v13657 = vrot.slane %v13656, 2
  %v13658 = vadd.f32 %v13656, %v13657
  %v13659 = vrot.slane %v13658, 1
  %v13660 = vadd.f32 %v13658, %v13659
  %v13661 = vsel %vm13399, %v13377, 0.0
  %v13662 = vsel %vm13399, %v13380, 0.0
  %v13663 = vadd.f32 %v13661, %v13662
  %v13664 = vrot.slane %v13663, 4
  %v13665 = vadd.f32 %v13663, %v13664
  %v13666 = vrot.slane %v13665, 2
  %v13667 = vadd.f32 %v13665, %v13666
  %v13668 = vrot.slane %v13667, 1
  %v13669 = vadd.f32 %v13667, %v13668
  %v13670 = vsel %vm13399, %v13385, 0.0
  %v13671 = vsel %vm13399, %v13388, 0.0
  %v13672 = vadd.f32 %v13670, %v13671
  %v13673 = vrot.slane %v13672, 4
  %v13674 = vadd.f32 %v13672, %v13673
  %v13675 = vrot.slane %v13674, 2
  %v13676 = vadd.f32 %v13674, %v13675
  %v13677 = vrot.slane %v13676, 1
  %v13678 = vadd.f32 %v13676, %v13677
  %v13679 = vsel %vm13399, %v13393, 0.0
  %v13680 = vsel %vm13399, %v13396, 0.0
  %v13681 = vadd.f32 %v13679, %v13680
  %v13682 = vrot.slane %v13681, 4
  %v13683 = vadd.f32 %v13681, %v13682
  %v13684 = vrot.slane %v13683, 2
  %v13685 = vadd.f32 %v13683, %v13684
  %v13686 = vrot.slane %v13685, 1
  %v13687 = vadd.f32 %v13685, %v13686
  %v13688 = vrcp.pop 16.0
  %v13689 = vmul.f32 %v13408, %v13688
  %v13690 = vmul.f32 %v13417, %v13688
  %v13691 = vmul.f32 %v13426, %v13688
  %v13692 = vmul.f32 %v13435, %v13688
  %v13693 = vmul.f32 %v13444, %v13688
  %v13694 = vmul.f32 %v13453, %v13688
  %v13695 = vmul.f32 %v13462, %v13688
  %v13696 = vmul.f32 %v13471, %v13688
  %v13697 = vmul.f32 %v13480, %v13688
  %v13698 = vmul.f32 %v13489, %v13688
  %v13699 = vmul.f32 %v13498, %v13688
  %v13700 = vmul.f32 %v13507, %v13688
  %v13701 = vmul.f32 %v13516, %v13688
  %v13702 = vmul.f32 %v13525, %v13688
  %v13703 = vmul.f32 %v13534, %v13688
  %v13704 = vmul.f32 %v13543, %v13688
  %v13705 = vmul.f32 %v13552, %v13688
  %v13706 = vmul.f32 %v13561, %v13688
  %v13707 = vmul.f32 %v13570, %v13688
  %v13708 = vmul.f32 %v13579, %v13688
  %v13709 = vmul.f32 %v13588, %v13688
  %v13710 = vmul.f32 %v13597, %v13688
  %v13711 = vmul.f32 %v13606, %v13688
  %v13712 = vmul.f32 %v13615, %v13688
  %v13713 = vmul.f32 %v13624, %v13688
  %v13714 = vmul.f32 %v13633, %v13688
  %v13715 = vmul.f32 %v13642, %v13688
  %v13716 = vmul.f32 %v13651, %v13688
  %v13717 = vmul.f32 %v13660, %v13688
  %v13718 = vmul.f32 %v13669, %v13688
  %v13719 = vmul.f32 %v13678, %v13688
  %v13720 = vmul.f32 %v13687, %v13688
  %v13721 = vadd.f32 %v13400, %v13409
  %v13722 = vadd.f32 %v13721, %v13418
  %v13723 = vadd.f32 %v13722, %v13427
  %v13724 = vadd.f32 %v13723, %v13436
  %v13725 = vadd.f32 %v13724, %v13445
  %v13726 = vadd.f32 %v13725, %v13454
  %v13727 = vadd.f32 %v13726, %v13463
  %v13728 = vadd.f32 %v13727, %v13472
  %v13729 = vadd.f32 %v13728, %v13481
  %v13730 = vadd.f32 %v13729, %v13490
  %v13731 = vadd.f32 %v13730, %v13499
  %v13732 = vadd.f32 %v13731, %v13508
  %v13733 = vadd.f32 %v13732, %v13517
  %v13734 = vadd.f32 %v13733, %v13526
  %v13735 = vadd.f32 %v13734, %v13535
  %v13736 = vadd.f32 %v13401, %v13410
  %v13737 = vadd.f32 %v13736, %v13419
  %v13738 = vadd.f32 %v13737, %v13428
  %v13739 = vadd.f32 %v13738, %v13437
  %v13740 = vadd.f32 %v13739, %v13446
  %v13741 = vadd.f32 %v13740, %v13455
  %v13742 = vadd.f32 %v13741, %v13464
  %v13743 = vadd.f32 %v13742, %v13473
  %v13744 = vadd.f32 %v13743, %v13482
  %v13745 = vadd.f32 %v13744, %v13491
  %v13746 = vadd.f32 %v13745, %v13500
  %v13747 = vadd.f32 %v13746, %v13509
  %v13748 = vadd.f32 %v13747, %v13518
  %v13749 = vadd.f32 %v13748, %v13527
  %v13750 = vadd.f32 %v13749, %v13536
  %v13751 = vadd.f32 %v13544, %v13553
  %v13752 = vadd.f32 %v13751, %v13562
  %v13753 = vadd.f32 %v13752, %v13571
  %v13754 = vadd.f32 %v13753, %v13580
  %v13755 = vadd.f32 %v13754, %v13589
  %v13756 = vadd.f32 %v13755, %v13598
  %v13757 = vadd.f32 %v13756, %v13607
  %v13758 = vadd.f32 %v13757, %v13616
  %v13759 = vadd.f32 %v13758, %v13625
  %v13760 = vadd.f32 %v13759, %v13634
  %v13761 = vadd.f32 %v13760, %v13643
  %v13762 = vadd.f32 %v13761, %v13652
  %v13763 = vadd.f32 %v13762, %v13661
  %v13764 = vadd.f32 %v13763, %v13670
  %v13765 = vadd.f32 %v13764, %v13679
  %v13766 = vadd.f32 %v13545, %v13554
  %v13767 = vadd.f32 %v13766, %v13563
  %v13768 = vadd.f32 %v13767, %v13572
  %v13769 = vadd.f32 %v13768, %v13581
  %v13770 = vadd.f32 %v13769, %v13590
  %v13771 = vadd.f32 %v13770, %v13599
  %v13772 = vadd.f32 %v13771, %v13608
  %v13773 = vadd.f32 %v13772, %v13617
  %v13774 = vadd.f32 %v13773, %v13626
  %v13775 = vadd.f32 %v13774, %v13635
  %v13776 = vadd.f32 %v13775, %v13644
  %v13777 = vadd.f32 %v13776, %v13653
  %v13778 = vadd.f32 %v13777, %v13662
  %v13779 = vadd.f32 %v13778, %v13671
  %v13780 = vadd.f32 %v13779, %v13680
  %v13781 = vmul.f32 %v13735, %v13688
  %v13782 = vmul.f32 %v13750, %v13688
  %v13783 = vmul.f32 %v13765, %v13688
  %v13784 = vmul.f32 %v13780, %v13688
  %vm13817 = vcmask 1041409
  %v13818 = vsel %vm13817, %v13690, %v13689
  %vm13819 = vcmask 1042434
  %v13820 = vsel %vm13819, %v13691, %v13818
  %vm13821 = vcmask 1043459
  %v13822 = vsel %vm13821, %v13692, %v13820
  %vm13823 = vcmask 1044484
  %v13824 = vsel %vm13823, %v13693, %v13822
  %vm13825 = vcmask 1045509
  %v13826 = vsel %vm13825, %v13694, %v13824
  %vm13827 = vcmask 1046534
  %v13828 = vsel %vm13827, %v13695, %v13826
  %vm13829 = vcmask 1047559
  %v13830 = vsel %vm13829, %v13696, %v13828
  %v13831 = vsel %vm13817, %v13698, %v13697
  %v13832 = vsel %vm13819, %v13699, %v13831
  %v13833 = vsel %vm13821, %v13700, %v13832
  %v13834 = vsel %vm13823, %v13701, %v13833
  %v13835 = vsel %vm13825, %v13702, %v13834
  %v13836 = vsel %vm13827, %v13703, %v13835
  %v13837 = vsel %vm13829, %v13704, %v13836
  %v13838 = vsel %vm13817, %v13706, %v13705
  %v13839 = vsel %vm13819, %v13707, %v13838
  %v13840 = vsel %vm13821, %v13708, %v13839
  %v13841 = vsel %vm13823, %v13709, %v13840
  %v13842 = vsel %vm13825, %v13710, %v13841
  %v13843 = vsel %vm13827, %v13711, %v13842
  %v13844 = vsel %vm13829, %v13712, %v13843
  %v13845 = vsel %vm13817, %v13714, %v13713
  %v13846 = vsel %vm13819, %v13715, %v13845
  %v13847 = vsel %vm13821, %v13716, %v13846
  %v13848 = vsel %vm13823, %v13717, %v13847
  %v13849 = vsel %vm13825, %v13718, %v13848
  %v13850 = vsel %vm13827, %v13719, %v13849
  %v13851 = vsel %vm13829, %v13720, %v13850
  %v13852 = vld [vmem:[%s4] sm:$0xff]
  %v13853 = vld [vmem:[%s4 + $0x8] sm:$0xff]
  %v13854 = vld [vmem:[%s4 + $0x10] sm:$0x3]
  %v13855 = vlaneseq
  %v13856 = vshrl.u32 %v13855, 7
  %v13857 = vsub.s32 3, %v13856
  %v13858 = vrot.slane %v135, %v13857
  %v13859 = vsel %vm13399, %v13830, 0
  %v13861 = vsel %vm13399, %v13837, 0
  %v13864 = vsel %vm13399, %v13781, 0
  %v13867 = vsel %vm13399, %v13782, 0
  %v13869 = vsel %vm13399, %v13844, 0
  %v13871 = vsel %vm13399, %v13851, 0
  %v13874 = vsel %vm13399, %v13783, 0
  %v13877 = vsel %vm13399, %v13784, 0
  %v13880 = vsel %vm4162, %v13854, 0
  %13882 = vmatprep.subr.mxu0 0.0
  %13883 = vmatpush1.msra.mxu0 %v13852
  %13884 = vmatprep.subr.mxu0 0.0
  %13885 = vmatpush1.msra.mxu0 %v13853
  %13886 = vmatprep.subr.mxu0 0.0
  %13887 = vmatpush1.msra.mxu0 %v13880
  %13888 = vmatprep.subr.mxu0 0.0
  %13889 = vmatpush1.msra.mxu0 0.0
  %13890 = vmatprep.subr.mxu0 0.0
  %13891 = vmatpush1.msra.mxu0 0.0
  %13892 = vmatprep.subr.mxu0 0.0
  %13893 = vmatpush1.msra.mxu0 0.0
  %13894 = vmatprep.subr.mxu0 0.0
  %13895 = vmatpush1.msra.mxu0 0.0
  %13896 = vmatprep.subr.mxu0 0.0
  %13897 = vmatpush1.msra.mxu0 0.0
  %13898 = vmatprep.subr.mxu0 0.0
  %13899 = vmatpush1.msra.mxu0 0.0
  %13900 = vmatprep.subr.mxu0 0.0
  %13901 = vmatpush1.msra.mxu0 0.0
  %13902 = vmatprep.subr.mxu0 0.0
  %13903 = vmatpush1.msra.mxu0 0.0
  %13904 = vmatprep.subr.mxu0 0.0
  %13905 = vmatpush1.msra.mxu0 0.0
  %13906 = vmatprep.subr.mxu0 0.0
  %13907 = vmatpush1.msra.mxu0 0.0
  %13908 = vmatprep.subr.mxu0 0.0
  %13909 = vmatpush1.msra.mxu0 0.0
  %13910 = vmatprep.subr.mxu0 0.0
  %13911 = vmatpush1.msra.mxu0 0.0
  %13912 = vmatprep.subr.mxu0 0.0
  %13913 = vmatpush1.msra.mxu0 0.0
  %13914 = vmatprep.subr.mxu0 0.0
  %13915 = vmatpush1.msra.mxu0 0.0
  %13916 = vmatprep.subr.mxu0 0.0
  %13917 = vmatpush1.msra.mxu0 0.0
  %13918 = vmatprep.subr.mxu0 0.0
  %13919 = vmatpush1.msra.mxu0 0.0
  %13920 = vmatprep.subr.mxu0 0.0
  %13921 = vmatpush1.msra.mxu0 0.0
  %13922 = vmatprep.subr.mxu0 0.0
  %13923 = vmatpush1.msra.mxu0 0.0
  %13924 = vmatprep.subr.mxu0 0.0
  %13925 = vmatpush1.msra.mxu0 0.0
  %13926 = vmatprep.subr.mxu0 0.0
  %13927 = vmatpush1.msra.mxu0 0.0
  %13928 = vmatprep.subr.mxu0 0.0
  %13929 = vmatpush1.msra.mxu0 0.0
  %13930 = vmatprep.subr.mxu0 0.0
  %13931 = vmatpush1.msra.mxu0 0.0
  %13932 = vmatprep.subr.mxu0 0.0
  %13933 = vmatpush1.msra.mxu0 0.0
  %13934 = vmatprep.subr.mxu0 0.0
  %13935 = vmatpush1.msra.mxu0 0.0
  %13936 = vmatprep.subr.mxu0 0.0
  %13937 = vmatpush1.msra.mxu0 0.0
  %13938 = vmatprep.subr.mxu0 0.0
  %13939 = vmatpush1.msra.mxu0 0.0
  %13940 = vmatprep.subr.mxu0 0.0
  %13941 = vmatpush1.msra.mxu0 0.0
  %13942 = vmatprep.subr.mxu0 0.0
  %13943 = vmatpush1.msra.mxu0 0.0
  %13944 = vmatprep.subr.mxu0 0.0
  %13945 = vmatpush1.msra.mxu0 0.0
  %13946 = vmatprep.mubr.f32.mxu0 0.0
  %13947 = vmatmul.mubr.f32.gmra.mrb[0].mxu0 %v13859
  %v13948 = vpop.f32.mrb[0].mxu0
  %v13949 = vadd.f32 %v13858, %v13948
  %v13950 = vpop.f32.mrb[0].mxu0
  %13951 = vmatprep.mubr.f32.mxu0 0.0
  %13952 = vmatmul.mubr.f32.gmra.mrb[0].mxu0 %v13861
  %v13953 = vpop.f32.mrb[0].mxu0
  %v13954 = vadd.f32 %v13858, %v13953
  %v13955 = vpop.f32.mrb[0].mxu0
  %13956 = vmatprep.mubr.f32.mxu0 0.0
  %13957 = vmatmul.mubr.f32.gmra.mrb[0].mxu0 %v13864
  %v13958 = vpop.f32.mrb[0].mxu0
  %v13959 = vadd.f32 %v13858, %v13958
  %v13960 = vpop.f32.mrb[0].mxu0
  %13961 = vmatprep.mubr.f32.mxu0 0.0
  %13962 = vmatmul.mubr.f32.gmra.mrb[0].mxu0 %v13867
  %v13963 = vpop.f32.mrb[0].mxu0
  %v13964 = vadd.f32 %v13858, %v13963
  %v13965 = vpop.f32.mrb[0].mxu0
  %13966 = vmatprep.mubr.f32.mxu0 0.0
  %13967 = vmatmul.mubr.f32.gmra.mrb[0].mxu0 %v13869
  %v13968 = vpop.f32.mrb[0].mxu0
  %v13969 = vadd.f32 %v13858, %v13968
  %v13970 = vpop.f32.mrb[0].mxu0
  %13971 = vmatprep.mubr.f32.mxu0 0.0
  %13972 = vmatmul.mubr.f32.gmra.mrb[0].mxu0 %v13871
  %v13973 = vpop.f32.mrb[0].mxu0
  %v13974 = vadd.f32 %v13858, %v13973
  %v13975 = vpop.f32.mrb[0].mxu0
  %13976 = vmatprep.mubr.f32.mxu0 0.0
  %13977 = vmatmul.mubr.f32.gmra.mrb[0].mxu0 %v13874
  %v13978 = vpop.f32.mrb[0].mxu0
  %v13979 = vadd.f32 %v13858, %v13978
  %v13980 = vpop.f32.mrb[0].mxu0
  %13981 = vmatprep.mubr.f32.mxu0 0.0
  %13982 = vmatmul.mubr.f32.gmra.mrb[0].mxu0 %v13877
  %v13983 = vpop.f32.mrb[0].mxu0
  %v13984 = vadd.f32 %v13858, %v13983
  %v13985 = vpop.f32.mrb[0].mxu0
  %13986 = vdwg.mxu0
  %v13987 = vlaneseq
  %v13988 = vshrl.u32 %v13987, 7
  %v13989 = vsub.s32 4, %v13988
  %v13990 = vrot.slane %v135, %v13989
  %v13991 = vmul.f32 %v13949, %v13990
  %v13992 = vmul.f32 %v13954, %v13990
  %v13993 = vmul.f32 %v13959, %v13990
  %v13994 = vmul.f32 %v13964, %v13990
  %v13995 = vmul.f32 %v13969, %v13990
  %v13996 = vmul.f32 %v13974, %v13990
  %v13997 = vmul.f32 %v13979, %v13990
  %v13998 = vmul.f32 %v13984, %v13990
  %v13999 = vlaneseq
  %v14000 = vshrl.u32 %v13999, 7
  %v14001 = vsub.s32 5, %v14000
  %v14002 = vrot.slane %v135, %v14001
  %v14003 = vadd.f32 %v13991, %v14002
  %v14004 = vadd.f32 %v13992, %v14002
  %v14005 = vadd.f32 %v13993, %v14002
  %v14006 = vadd.f32 %v13994, %v14002
  %v14007 = vadd.f32 %v13995, %v14002
  %v14008 = vadd.f32 %v13996, %v14002
  %v14009 = vadd.f32 %v13997, %v14002
  %v14010 = vadd.f32 %v13998, %v14002
  %v14011 = vadd.f32 %v14003, 3.0
  %v14012 = vadd.f32 %v14004, 3.0
  %v14013 = vadd.f32 %v14005, 3.0
  %v14014 = vadd.f32 %v14006, 3.0
  %v14015 = vadd.f32 %v14007, 3.0
  %v14016 = vadd.f32 %v14008, 3.0
  %v14017 = vadd.f32 %v14009, 3.0
  %v14018 = vadd.f32 %v14010, 3.0
  %v14019 = vmax.f32 %v14011, 0.0
  %v14020 = vmax.f32 %v14012, 0.0
  %v14021 = vmax.f32 %v14013, 0.0
  %v14022 = vmax.f32 %v14014, 0.0
  %v14023 = vmax.f32 %v14015, 0.0
  %v14024 = vmax.f32 %v14016, 0.0
  %v14025 = vmax.f32 %v14017, 0.0
  %v14026 = vmax.f32 %v14018, 0.0
  %v14027 = vmin.f32 %v14019, 6.0
  %v14028 = vmin.f32 %v14020, 6.0
  %v14029 = vmin.f32 %v14021, 6.0
  %v14030 = vmin.f32 %v14022, 6.0
  %v14031 = vmin.f32 %v14023, 6.0
  %v14032 = vmin.f32 %v14024, 6.0
  %v14033 = vmin.f32 %v14025, 6.0
  %v14034 = vmin.f32 %v14026, 6.0
  %v14035 = vmul.f32 %v14027, 0.16666667
  %v14036 = vmul.f32 %v14028, 0.16666667
  %v14037 = vmul.f32 %v14029, 0.16666667
  %v14038 = vmul.f32 %v14030, 0.16666667
  %v14039 = vmul.f32 %v14031, 0.16666667
  %v14040 = vmul.f32 %v14032, 0.16666667
  %v14041 = vmul.f32 %v14033, 0.16666667
  %v14042 = vmul.f32 %v14034, 0.16666667
  %v14043 = vmul.f32 %v14003, %v14035
  %v14044 = vmul.f32 %v14004, %v14036
  %v14045 = vmul.f32 %v14005, %v14037
  %v14046 = vmul.f32 %v14006, %v14038
  %v14047 = vmul.f32 %v14007, %v14039
  %v14048 = vmul.f32 %v14008, %v14040
  %v14049 = vmul.f32 %v14009, %v14041
  %v14050 = vmul.f32 %v14010, %v14042
  %v14051 = vld [vmem:[%s5] sm:$0xff]
  %v14052 = vld [vmem:[%s5 + $0x8] sm:$0xff]
  %vm14053 = vcmask 130048
  %v14055 = vsel %vm14053, %v14043, 0
  %v14058 = vsel %vm14053, %v14044, 0
  %v14061 = vsel %vm14053, %v14045, 0
  %v14064 = vsel %vm14053, %v14046, 0
  %v14067 = vsel %vm14053, %v14047, 0
  %v14070 = vsel %vm14053, %v14048, 0
  %v14073 = vsel %vm14053, %v14049, 0
  %v14076 = vsel %vm14053, %v14050, 0
  %14078 = vmatprep.subr.mxu0 0.0
  %14079 = vmatpush1.msra.mxu0 %v14051
  %14080 = vmatprep.subr.mxu0 0.0
  %14081 = vmatpush1.msra.mxu0 %v14052
  %14082 = vmatprep.subr.mxu0 0.0
  %14083 = vmatpush1.msra.mxu0 0.0
  %14084 = vmatprep.subr.mxu0 0.0
  %14085 = vmatpush1.msra.mxu0 0.0
  %14086 = vmatprep.subr.mxu0 0.0
  %14087 = vmatpush1.msra.mxu0 0.0
  %14088 = vmatprep.subr.mxu0 0.0
  %14089 = vmatpush1.msra.mxu0 0.0
  %14090 = vmatprep.subr.mxu0 0.0
  %14091 = vmatpush1.msra.mxu0 0.0
  %14092 = vmatprep.subr.mxu0 0.0
  %14093 = vmatpush1.msra.mxu0 0.0
  %14094 = vmatprep.subr.mxu0 0.0
  %14095 = vmatpush1.msra.mxu0 0.0
  %14096 = vmatprep.subr.mxu0 0.0
  %14097 = vmatpush1.msra.mxu0 0.0
  %14098 = vmatprep.subr.mxu0 0.0
  %14099 = vmatpush1.msra.mxu0 0.0
  %14100 = vmatprep.subr.mxu0 0.0
  %14101 = vmatpush1.msra.mxu0 0.0
  %14102 = vmatprep.subr.mxu0 0.0
  %14103 = vmatpush1.msra.mxu0 0.0
  %14104 = vmatprep.subr.mxu0 0.0
  %14105 = vmatpush1.msra.mxu0 0.0
  %14106 = vmatprep.subr.mxu0 0.0
  %14107 = vmatpush1.msra.mxu0 0.0
  %14108 = vmatprep.subr.mxu0 0.0
  %14109 = vmatpush1.msra.mxu0 0.0
  %14110 = vmatprep.subr.mxu0 0.0
  %14111 = vmatpush1.msra.mxu0 0.0
  %14112 = vmatprep.subr.mxu0 0.0
  %14113 = vmatpush1.msra.mxu0 0.0
  %14114 = vmatprep.subr.mxu0 0.0
  %14115 = vmatpush1.msra.mxu0 0.0
  %14116 = vmatprep.subr.mxu0 0.0
  %14117 = vmatpush1.msra.mxu0 0.0
  %14118 = vmatprep.subr.mxu0 0.0
  %14119 = vmatpush1.msra.mxu0 0.0
  %14120 = vmatprep.subr.mxu0 0.0
  %14121 = vmatpush1.msra.mxu0 0.0
  %14122 = vmatprep.subr.mxu0 0.0
  %14123 = vmatpush1.msra.mxu0 0.0
  %14124 = vmatprep.subr.mxu0 0.0
  %14125 = vmatpush1.msra.mxu0 0.0
  %14126 = vmatprep.subr.mxu0 0.0
  %14127 = vmatpush1.msra.mxu0 0.0
  %14128 = vmatprep.subr.mxu0 0.0
  %14129 = vmatpush1.msra.mxu0 0.0
  %14130 = vmatprep.subr.mxu0 0.0
  %14131 = vmatpush1.msra.mxu0 0.0
  %14132 = vmatprep.subr.mxu0 0.0
  %14133 = vmatpush1.msra.mxu0 0.0
  %14134 = vmatprep.subr.mxu0 0.0
  %14135 = vmatpush1.msra.mxu0 0.0
  %14136 = vmatprep.subr.mxu0 0.0
  %14137 = vmatpush1.msra.mxu0 0.0
  %14138 = vmatprep.subr.mxu0 0.0
  %14139 = vmatpush1.msra.mxu0 0.0
  %14140 = vmatprep.subr.mxu0 0.0
  %14141 = vmatpush1.msra.mxu0 0.0
  %14142 = vmatprep.mubr.f32.mxu0 0.0
  %14143 = vmatmul.mubr.f32.gmra.mrb[0].mxu0 %v14055
  %v14144 = vpop.f32.mrb[0].mxu0
  %v14145 = vadd.f32 0.0, %v14144
  %v14146 = vpop.f32.mrb[0].mxu0
  %14147 = vmatprep.mubr.f32.mxu0 0.0
  %14148 = vmatmul.mubr.f32.gmra.mrb[0].mxu0 %v14058
  %v14149 = vpop.f32.mrb[0].mxu0
  %v14150 = vadd.f32 0.0, %v14149
  %v14151 = vpop.f32.mrb[0].mxu0
  %14152 = vmatprep.mubr.f32.mxu0 0.0
  %14153 = vmatmul.mubr.f32.gmra.mrb[0].mxu0 %v14061
  %v14154 = vpop.f32.mrb[0].mxu0
  %v14155 = vadd.f32 0.0, %v14154
  %v14156 = vpop.f32.mrb[0].mxu0
  %14157 = vmatprep.mubr.f32.mxu0 0.0
  %14158 = vmatmul.mubr.f32.gmra.mrb[0].mxu0 %v14064
  %v14159 = vpop.f32.mrb[0].mxu0
  %v14160 = vadd.f32 0.0, %v14159
  %v14161 = vpop.f32.mrb[0].mxu0
  %14162 = vmatprep.mubr.f32.mxu0 0.0
  %14163 = vmatmul.mubr.f32.gmra.mrb[0].mxu0 %v14067
  %v14164 = vpop.f32.mrb[0].mxu0
  %v14165 = vadd.f32 0.0, %v14164
  %v14166 = vpop.f32.mrb[0].mxu0
  %14167 = vmatprep.mubr.f32.mxu0 0.0
  %14168 = vmatmul.mubr.f32.gmra.mrb[0].mxu0 %v14070
  %v14169 = vpop.f32.mrb[0].mxu0
  %v14170 = vadd.f32 0.0, %v14169
  %v14171 = vpop.f32.mrb[0].mxu0
  %14172 = vmatprep.mubr.f32.mxu0 0.0
  %14173 = vmatmul.mubr.f32.gmra.mrb[0].mxu0 %v14073
  %v14174 = vpop.f32.mrb[0].mxu0
  %v14175 = vadd.f32 0.0, %v14174
  %v14176 = vpop.f32.mrb[0].mxu0
  %14177 = vmatprep.mubr.f32.mxu0 0.0
  %14178 = vmatmul.mubr.f32.gmra.mrb[0].mxu0 %v14076
  %v14179 = vpop.f32.mrb[0].mxu0
  %v14180 = vadd.f32 0.0, %v14179
  %v14181 = vpop.f32.mrb[0].mxu0
  %14182 = vdwg.mxu0
  %v14183 = vlaneseq
  %v14184 = vshrl.u32 %v14183, 7
  %v14185 = vsub.s32 6, %v14184
  %v14186 = vrot.slane %v135, %v14185
  %v14187 = vadd.f32 %v14145, %v14186
  %v14188 = vadd.f32 %v14150, %v14186
  %v14189 = vadd.f32 %v14165, %v14186
  %v14190 = vadd.f32 %v14170, %v14186
  %v14191 = vxor.u32 %v14187, 2147483648
  %v14192 = vxor.u32 %v14188, 2147483648
  %v14193 = vxor.u32 %v14189, 2147483648
  %v14194 = vxor.u32 %v14190, 2147483648
  %v14195 = vmul.f32 %v14191, 1.442695
  %v14196 = vpow.pop %v14195
  %v14197 = vmul.f32 %v14192, 1.442695
  %v14198 = vpow.pop %v14197
  %v14199 = vmul.f32 %v14193, 1.442695
  %v14200 = vpow.pop %v14199
  %v14201 = vmul.f32 %v14194, 1.442695
  %v14202 = vpow.pop %v14201
  %v14203 = vadd.f32 %v14196, 1.0
  %v14204 = vadd.f32 %v14198, 1.0
  %v14205 = vadd.f32 %v14200, 1.0
  %v14206 = vadd.f32 %v14202, 1.0
  %v14207 = vrcp.pop %v14203
  %v14208 = vmul.f32 1.0, %v14207
  %v14209 = vrcp.pop %v14204
  %v14210 = vmul.f32 1.0, %v14209
  %v14211 = vrcp.pop %v14205
  %v14212 = vmul.f32 1.0, %v14211
  %v14213 = vrcp.pop %v14206
  %v14214 = vmul.f32 1.0, %v14213
  %v14215 = vlaneseq
  %v14216 = vshrl.u32 %v14215, 7
  %v14217 = vsub.s32 7, %v14216
  %v14218 = vrot.slane %v135, %v14217
  %14220 = vrot.lane.b32.xlu0 %v14218, 18
  %v14221 = vpop.permute.xlu0 %14220
  %v14223 = vadd.f32 %v14155, %v14221
  %v14224 = vadd.f32 %v14160, %v14221
  %v14225 = vadd.f32 %v14175, %v14221
  %v14226 = vadd.f32 %v14180, %v14221
  %v14227 = vxor.u32 %v14223, 2147483648
  %v14228 = vxor.u32 %v14224, 2147483648
  %v14229 = vxor.u32 %v14225, 2147483648
  %v14230 = vxor.u32 %v14226, 2147483648
  %v14231 = vmul.f32 %v14227, 1.442695
  %v14232 = vpow.pop %v14231
  %v14233 = vmul.f32 %v14228, 1.442695
  %v14234 = vpow.pop %v14233
  %v14235 = vmul.f32 %v14229, 1.442695
  %v14236 = vpow.pop %v14235
  %v14237 = vmul.f32 %v14230, 1.442695
  %v14238 = vpow.pop %v14237
  %v14239 = vadd.f32 %v14232, 1.0
  %v14240 = vadd.f32 %v14234, 1.0
  %v14241 = vadd.f32 %v14236, 1.0
  %v14242 = vadd.f32 %v14238, 1.0
  %v14243 = vrcp.pop %v14239
  %v14244 = vmul.f32 1.0, %v14243
  %v14245 = vrcp.pop %v14240
  %v14246 = vmul.f32 1.0, %v14245
  %v14247 = vrcp.pop %v14241
  %v14248 = vmul.f32 1.0, %v14247
  %v14249 = vrcp.pop %v14242
  %v14250 = vmul.f32 1.0, %v14249
  %v14255 = vcombine.high %v14208, %v14208
  %v14257 = vunpack.c.l.s4 1966171168
  %v14258 = vunpack.c.0.s8 %v14257
  %v14259 = vlaneseq
  %v14260 = vshrl.u32 %v14259, 7
  %v14261 = vsub.s32 %v14258, %v14260
  %v14262 = vrot.slane %v14208, %v14261
  %v14264 = vunpack.c.l.s4 1966171168
  %v14265 = vunpack.c.0.s8 %v14264
  %v14266 = vlaneseq
  %v14267 = vshrl.u32 %v14266, 7
  %v14268 = vsub.s32 %v14265, %v14267
  %v14269 = vrot.slane %v14255, %v14268
  %v14270 = vcombine.high %v14262, %v14262
  %v14271 = vcombine.high %v14269, %v14269
  %v14273 = vunpack.c.l.s4 1966171168
  %v14274 = vunpack.c.0.s8 %v14273
  %v14275 = vlaneseq
  %v14276 = vshrl.u32 %v14275, 7
  %v14277 = vsub.s32 %v14274, %v14276
  %v14278 = vrot.slane %v14262, %v14277
  %v14280 = vunpack.c.l.s4 1966171168
  %v14281 = vunpack.c.0.s8 %v14280
  %v14282 = vlaneseq
  %v14283 = vshrl.u32 %v14282, 7
  %v14284 = vsub.s32 %v14281, %v14283
  %v14285 = vrot.slane %v14269, %v14284
  %v14287 = vunpack.c.l.s4 1966171168
  %v14288 = vunpack.c.0.s8 %v14287
  %v14289 = vlaneseq
  %v14290 = vshrl.u32 %v14289, 7
  %v14291 = vsub.s32 %v14288, %v14290
  %v14292 = vrot.slane %v14270, %v14291
  %v14294 = vunpack.c.l.s4 1966171168
  %v14295 = vunpack.c.0.s8 %v14294
  %v14296 = vlaneseq
  %v14297 = vshrl.u32 %v14296, 7
  %v14298 = vsub.s32 %v14295, %v14297
  %v14299 = vrot.slane %v14271, %v14298
  %v14300 = vcombine.high %v14278, %v14278
  %v14301 = vcombine.high %v14285, %v14285
  %v14302 = vcombine.high %v14292, %v14292
  %v14303 = vcombine.high %v14299, %v14299
  %v14304 = vcombine.high %v14210, %v14210
  %v14306 = vunpack.c.l.s4 1966171168
  %v14307 = vunpack.c.0.s8 %v14306
  %v14308 = vlaneseq
  %v14309 = vshrl.u32 %v14308, 7
  %v14310 = vsub.s32 %v14307, %v14309
  %v14311 = vrot.slane %v14210, %v14310
  %v14313 = vunpack.c.l.s4 1966171168
  %v14314 = vunpack.c.0.s8 %v14313
  %v14315 = vlaneseq
  %v14316 = vshrl.u32 %v14315, 7
  %v14317 = vsub.s32 %v14314, %v14316
  %v14318 = vrot.slane %v14304, %v14317
  %v14319 = vcombine.high %v14311, %v14311
  %v14320 = vcombine.high %v14318, %v14318
  %v14322 = vunpack.c.l.s4 1966171168
  %v14323 = vunpack.c.0.s8 %v14322
  %v14324 = vlaneseq
  %v14325 = vshrl.u32 %v14324, 7
  %v14326 = vsub.s32 %v14323, %v14325
  %v14327 = vrot.slane %v14311, %v14326
  %v14329 = vunpack.c.l.s4 1966171168
  %v14330 = vunpack.c.0.s8 %v14329
  %v14331 = vlaneseq
  %v14332 = vshrl.u32 %v14331, 7
  %v14333 = vsub.s32 %v14330, %v14332
  %v14334 = vrot.slane %v14318, %v14333
  %v14336 = vunpack.c.l.s4 1966171168
  %v14337 = vunpack.c.0.s8 %v14336
  %v14338 = vlaneseq
  %v14339 = vshrl.u32 %v14338, 7
  %v14340 = vsub.s32 %v14337, %v14339
  %v14341 = vrot.slane %v14319, %v14340
  %v14343 = vunpack.c.l.s4 1966171168
  %v14344 = vunpack.c.0.s8 %v14343
  %v14345 = vlaneseq
  %v14346 = vshrl.u32 %v14345, 7
  %v14347 = vsub.s32 %v14344, %v14346
  %v14348 = vrot.slane %v14320, %v14347
  %v14349 = vcombine.high %v14327, %v14327
  %v14350 = vcombine.high %v14334, %v14334
  %v14351 = vcombine.high %v14341, %v14341
  %v14352 = vcombine.high %v14348, %v14348
  %v14353 = vcombine.high %v14212, %v14212
  %v14355 = vunpack.c.l.s4 1966171168
  %v14356 = vunpack.c.0.s8 %v14355
  %v14357 = vlaneseq
  %v14358 = vshrl.u32 %v14357, 7
  %v14359 = vsub.s32 %v14356, %v14358
  %v14360 = vrot.slane %v14212, %v14359
  %v14362 = vunpack.c.l.s4 1966171168
  %v14363 = vunpack.c.0.s8 %v14362
  %v14364 = vlaneseq
  %v14365 = vshrl.u32 %v14364, 7
  %v14366 = vsub.s32 %v14363, %v14365
  %v14367 = vrot.slane %v14353, %v14366
  %v14368 = vcombine.high %v14360, %v14360
  %v14369 = vcombine.high %v14367, %v14367
  %v14371 = vunpack.c.l.s4 1966171168
  %v14372 = vunpack.c.0.s8 %v14371
  %v14373 = vlaneseq
  %v14374 = vshrl.u32 %v14373, 7
  %v14375 = vsub.s32 %v14372, %v14374
  %v14376 = vrot.slane %v14360, %v14375
  %v14378 = vunpack.c.l.s4 1966171168
  %v14379 = vunpack.c.0.s8 %v14378
  %v14380 = vlaneseq
  %v14381 = vshrl.u32 %v14380, 7
  %v14382 = vsub.s32 %v14379, %v14381
  %v14383 = vrot.slane %v14367, %v14382
  %v14385 = vunpack.c.l.s4 1966171168
  %v14386 = vunpack.c.0.s8 %v14385
  %v14387 = vlaneseq
  %v14388 = vshrl.u32 %v14387, 7
  %v14389 = vsub.s32 %v14386, %v14388
  %v14390 = vrot.slane %v14368, %v14389
  %v14392 = vunpack.c.l.s4 1966171168
  %v14393 = vunpack.c.0.s8 %v14392
  %v14394 = vlaneseq
  %v14395 = vshrl.u32 %v14394, 7
  %v14396 = vsub.s32 %v14393, %v14395
  %v14397 = vrot.slane %v14369, %v14396
  %v14398 = vcombine.high %v14376, %v14376
  %v14399 = vcombine.high %v14383, %v14383
  %v14400 = vcombine.high %v14390, %v14390
  %v14401 = vcombine.high %v14397, %v14397
  %v14402 = vcombine.high %v14214, %v14214
  %v14404 = vunpack.c.l.s4 1966171168
  %v14405 = vunpack.c.0.s8 %v14404
  %v14406 = vlaneseq
  %v14407 = vshrl.u32 %v14406, 7
  %v14408 = vsub.s32 %v14405, %v14407
  %v14409 = vrot.slane %v14214, %v14408
  %v14411 = vunpack.c.l.s4 1966171168
  %v14412 = vunpack.c.0.s8 %v14411
  %v14413 = vlaneseq
  %v14414 = vshrl.u32 %v14413, 7
  %v14415 = vsub.s32 %v14412, %v14414
  %v14416 = vrot.slane %v14402, %v14415
  %v14417 = vcombine.high %v14409, %v14409
  %v14418 = vcombine.high %v14416, %v14416
  %v14420 = vunpack.c.l.s4 1966171168
  %v14421 = vunpack.c.0.s8 %v14420
  %v14422 = vlaneseq
  %v14423 = vshrl.u32 %v14422, 7
  %v14424 = vsub.s32 %v14421, %v14423
  %v14425 = vrot.slane %v14409, %v14424
  %v14427 = vunpack.c.l.s4 1966171168
  %v14428 = vunpack.c.0.s8 %v14427
  %v14429 = vlaneseq
  %v14430 = vshrl.u32 %v14429, 7
  %v14431 = vsub.s32 %v14428, %v14430
  %v14432 = vrot.slane %v14416, %v14431
  %v14434 = vunpack.c.l.s4 1966171168
  %v14435 = vunpack.c.0.s8 %v14434
  %v14436 = vlaneseq
  %v14437 = vshrl.u32 %v14436, 7
  %v14438 = vsub.s32 %v14435, %v14437
  %v14439 = vrot.slane %v14417, %v14438
  %v14441 = vunpack.c.l.s4 1966171168
  %v14442 = vunpack.c.0.s8 %v14441
  %v14443 = vlaneseq
  %v14444 = vshrl.u32 %v14443, 7
  %v14445 = vsub.s32 %v14442, %v14444
  %v14446 = vrot.slane %v14418, %v14445
  %v14447 = vcombine.high %v14425, %v14425
  %v14448 = vcombine.high %v14432, %v14432
  %v14449 = vcombine.high %v14439, %v14439
  %v14450 = vcombine.high %v14446, %v14446
  %v14451 = vlaneseq
  %v14452 = vshrl.u32 %v14451, 7
  %v14453 = vsub.s32 0, %v14452
  %v14454 = vrot.slane %v14278, %v14453
  %v14455 = vlaneseq
  %v14456 = vshrl.u32 %v14455, 7
  %v14457 = vsub.s32 0, %v14456
  %v14458 = vrot.slane %v14292, %v14457
  %v14459 = vlaneseq
  %v14460 = vshrl.u32 %v14459, 7
  %v14461 = vsub.s32 0, %v14460
  %v14462 = vrot.slane %v14300, %v14461
  %v14463 = vlaneseq
  %v14464 = vshrl.u32 %v14463, 7
  %v14465 = vsub.s32 0, %v14464
  %v14466 = vrot.slane %v14302, %v14465
  %v14467 = vlaneseq
  %v14468 = vshrl.u32 %v14467, 7
  %v14469 = vsub.s32 0, %v14468
  %v14470 = vrot.slane %v14285, %v14469
  %v14471 = vlaneseq
  %v14472 = vshrl.u32 %v14471, 7
  %v14473 = vsub.s32 0, %v14472
  %v14474 = vrot.slane %v14299, %v14473
  %v14475 = vlaneseq
  %v14476 = vshrl.u32 %v14475, 7
  %v14477 = vsub.s32 0, %v14476
  %v14478 = vrot.slane %v14301, %v14477
  %v14479 = vlaneseq
  %v14480 = vshrl.u32 %v14479, 7
  %v14481 = vsub.s32 0, %v14480
  %v14482 = vrot.slane %v14303, %v14481
  %v14483 = vlaneseq
  %v14484 = vshrl.u32 %v14483, 7
  %v14485 = vsub.s32 0, %v14484
  %v14486 = vrot.slane %v14327, %v14485
  %v14487 = vlaneseq
  %v14488 = vshrl.u32 %v14487, 7
  %v14489 = vsub.s32 0, %v14488
  %v14490 = vrot.slane %v14341, %v14489
  %v14491 = vlaneseq
  %v14492 = vshrl.u32 %v14491, 7
  %v14493 = vsub.s32 0, %v14492
  %v14494 = vrot.slane %v14349, %v14493
  %v14495 = vlaneseq
  %v14496 = vshrl.u32 %v14495, 7
  %v14497 = vsub.s32 0, %v14496
  %v14498 = vrot.slane %v14351, %v14497
  %v14499 = vlaneseq
  %v14500 = vshrl.u32 %v14499, 7
  %v14501 = vsub.s32 0, %v14500
  %v14502 = vrot.slane %v14334, %v14501
  %v14503 = vlaneseq
  %v14504 = vshrl.u32 %v14503, 7
  %v14505 = vsub.s32 0, %v14504
  %v14506 = vrot.slane %v14348, %v14505
  %v14507 = vlaneseq
  %v14508 = vshrl.u32 %v14507, 7
  %v14509 = vsub.s32 0, %v14508
  %v14510 = vrot.slane %v14350, %v14509
  %v14511 = vlaneseq
  %v14512 = vshrl.u32 %v14511, 7
  %v14513 = vsub.s32 0, %v14512
  %v14514 = vrot.slane %v14352, %v14513
  %v14515 = vlaneseq
  %v14516 = vshrl.u32 %v14515, 7
  %v14517 = vsub.s32 0, %v14516
  %v14518 = vrot.slane %v14376, %v14517
  %v14519 = vlaneseq
  %v14520 = vshrl.u32 %v14519, 7
  %v14521 = vsub.s32 0, %v14520
  %v14522 = vrot.slane %v14390, %v14521
  %v14523 = vlaneseq
  %v14524 = vshrl.u32 %v14523, 7
  %v14525 = vsub.s32 0, %v14524
  %v14526 = vrot.slane %v14398, %v14525
  %v14527 = vlaneseq
  %v14528 = vshrl.u32 %v14527, 7
  %v14529 = vsub.s32 0, %v14528
  %v14530 = vrot.slane %v14400, %v14529
  %v14531 = vlaneseq
  %v14532 = vshrl.u32 %v14531, 7
  %v14533 = vsub.s32 0, %v14532
  %v14534 = vrot.slane %v14383, %v14533
  %v14535 = vlaneseq
  %v14536 = vshrl.u32 %v14535, 7
  %v14537 = vsub.s32 0, %v14536
  %v14538 = vrot.slane %v14397, %v14537
  %v14539 = vlaneseq
  %v14540 = vshrl.u32 %v14539, 7
  %v14541 = vsub.s32 0, %v14540
  %v14542 = vrot.slane %v14399, %v14541
  %v14543 = vlaneseq
  %v14544 = vshrl.u32 %v14543, 7
  %v14545 = vsub.s32 0, %v14544
  %v14546 = vrot.slane %v14401, %v14545
  %v14547 = vlaneseq
  %v14548 = vshrl.u32 %v14547, 7
  %v14549 = vsub.s32 0, %v14548
  %v14550 = vrot.slane %v14425, %v14549
  %v14551 = vlaneseq
  %v14552 = vshrl.u32 %v14551, 7
  %v14553 = vsub.s32 0, %v14552
  %v14554 = vrot.slane %v14439, %v14553
  %v14555 = vlaneseq
  %v14556 = vshrl.u32 %v14555, 7
  %v14557 = vsub.s32 0, %v14556
  %v14558 = vrot.slane %v14447, %v14557
  %v14559 = vlaneseq
  %v14560 = vshrl.u32 %v14559, 7
  %v14561 = vsub.s32 0, %v14560
  %v14562 = vrot.slane %v14449, %v14561
  %v14563 = vlaneseq
  %v14564 = vshrl.u32 %v14563, 7
  %v14565 = vsub.s32 0, %v14564
  %v14566 = vrot.slane %v14432, %v14565
  %v14567 = vlaneseq
  %v14568 = vshrl.u32 %v14567, 7
  %v14569 = vsub.s32 0, %v14568
  %v14570 = vrot.slane %v14446, %v14569
  %v14571 = vlaneseq
  %v14572 = vshrl.u32 %v14571, 7
  %v14573 = vsub.s32 0, %v14572
  %v14574 = vrot.slane %v14448, %v14573
  %v14575 = vlaneseq
  %v14576 = vshrl.u32 %v14575, 7
  %v14577 = vsub.s32 0, %v14576
  %v14578 = vrot.slane %v14450, %v14577
  %v14611 = vmul.f32 %v13145, %v14454
  %v14612 = vmul.f32 %v13148, %v14454
  %v14613 = vmul.f32 %v13153, %v14458
  %v14614 = vmul.f32 %v13156, %v14458
  %v14615 = vmul.f32 %v13161, %v14462
  %v14616 = vmul.f32 %v13164, %v14462
  %v14617 = vmul.f32 %v13169, %v14466
  %v14618 = vmul.f32 %v13172, %v14466
  %v14619 = vmul.f32 %v13177, %v14470
  %v14620 = vmul.f32 %v13180, %v14470
  %v14621 = vmul.f32 %v13185, %v14474
  %v14622 = vmul.f32 %v13188, %v14474
  %v14623 = vmul.f32 %v13193, %v14478
  %v14624 = vmul.f32 %v13196, %v14478
  %v14625 = vmul.f32 %v13201, %v14482
  %v14626 = vmul.f32 %v13204, %v14482
  %v14627 = vmul.f32 %v13209, %v14486
  %v14628 = vmul.f32 %v13212, %v14486
  %v14629 = vmul.f32 %v13217, %v14490
  %v14630 = vmul.f32 %v13220, %v14490
  %v14631 = vmul.f32 %v13225, %v14494
  %v14632 = vmul.f32 %v13228, %v14494
  %v14633 = vmul.f32 %v13233, %v14498
  %v14634 = vmul.f32 %v13236, %v14498
  %v14635 = vmul.f32 %v13241, %v14502
  %v14636 = vmul.f32 %v13244, %v14502
  %v14637 = vmul.f32 %v13249, %v14506
  %v14638 = vmul.f32 %v13252, %v14506
  %v14639 = vmul.f32 %v13257, %v14510
  %v14640 = vmul.f32 %v13260, %v14510
  %v14641 = vmul.f32 %v13265, %v14514
  %v14642 = vmul.f32 %v13268, %v14514
  %v14643 = vmul.f32 %v13273, %v14518
  %v14644 = vmul.f32 %v13276, %v14518
  %v14645 = vmul.f32 %v13281, %v14522
  %v14646 = vmul.f32 %v13284, %v14522
  %v14647 = vmul.f32 %v13289, %v14526
  %v14648 = vmul.f32 %v13292, %v14526
  %v14649 = vmul.f32 %v13297, %v14530
  %v14650 = vmul.f32 %v13300, %v14530
  %v14651 = vmul.f32 %v13305, %v14534
  %v14652 = vmul.f32 %v13308, %v14534
  %v14653 = vmul.f32 %v13313, %v14538
  %v14654 = vmul.f32 %v13316, %v14538
  %v14655 = vmul.f32 %v13321, %v14542
  %v14656 = vmul.f32 %v13324, %v14542
  %v14657 = vmul.f32 %v13329, %v14546
  %v14658 = vmul.f32 %v13332, %v14546
  %v14659 = vmul.f32 %v13337, %v14550
  %v14660 = vmul.f32 %v13340, %v14550
  %v14661 = vmul.f32 %v13345, %v14554
  %v14662 = vmul.f32 %v13348, %v14554
  %v14663 = vmul.f32 %v13353, %v14558
  %v14664 = vmul.f32 %v13356, %v14558
  %v14665 = vmul.f32 %v13361, %v14562
  %v14666 = vmul.f32 %v13364, %v14562
  %v14667 = vmul.f32 %v13369, %v14566
  %v14668 = vmul.f32 %v13372, %v14566
  %v14669 = vmul.f32 %v13377, %v14570
  %v14670 = vmul.f32 %v13380, %v14570
  %v14671 = vmul.f32 %v13385, %v14574
  %v14672 = vmul.f32 %v13388, %v14574
  %v14673 = vmul.f32 %v13393, %v14578
  %v14674 = vmul.f32 %v13396, %v14578
  %14679 = vrot.lane.b32.xlu0 %v14244, 110
  %v14680 = vpop.permute.xlu0 %14679
  %14681 = vrot.lane.b32.xlu0 %v14246, 110
  %v14682 = vpop.permute.xlu0 %14681
  %14683 = vrot.lane.b32.xlu0 %v14248, 110
  %v14684 = vpop.permute.xlu0 %14683
  %14685 = vrot.lane.b32.xlu0 %v14250, 110
  %v14686 = vpop.permute.xlu0 %14685
  %v14691 = vmul.f32 %v14611, %v14680
  %v14692 = vmul.f32 %v14612, %v14682
  %v14693 = vmul.f32 %v14613, %v14680
  %v14694 = vmul.f32 %v14614, %v14682
  %v14695 = vmul.f32 %v14615, %v14680
  %v14696 = vmul.f32 %v14616, %v14682
  %v14697 = vmul.f32 %v14617, %v14680
  %v14698 = vmul.f32 %v14618, %v14682
  %v14699 = vmul.f32 %v14619, %v14680
  %v14700 = vmul.f32 %v14620, %v14682
  %v14701 = vmul.f32 %v14621, %v14680
  %v14702 = vmul.f32 %v14622, %v14682
  %v14703 = vmul.f32 %v14623, %v14680
  %v14704 = vmul.f32 %v14624, %v14682
  %v14705 = vmul.f32 %v14625, %v14680
  %v14706 = vmul.f32 %v14626, %v14682
  %v14707 = vmul.f32 %v14627, %v14680
  %v14708 = vmul.f32 %v14628, %v14682
  %v14709 = vmul.f32 %v14629, %v14680
  %v14710 = vmul.f32 %v14630, %v14682
  %v14711 = vmul.f32 %v14631, %v14680
  %v14712 = vmul.f32 %v14632, %v14682
  %v14713 = vmul.f32 %v14633, %v14680
  %v14714 = vmul.f32 %v14634, %v14682
  %v14715 = vmul.f32 %v14635, %v14680
  %v14716 = vmul.f32 %v14636, %v14682
  %v14717 = vmul.f32 %v14637, %v14680
  %v14718 = vmul.f32 %v14638, %v14682
  %v14719 = vmul.f32 %v14639, %v14680
  %v14720 = vmul.f32 %v14640, %v14682
  %v14721 = vmul.f32 %v14641, %v14680
  %v14722 = vmul.f32 %v14642, %v14682
  %v14723 = vmul.f32 %v14643, %v14684
  %v14724 = vmul.f32 %v14644, %v14686
  %v14725 = vmul.f32 %v14645, %v14684
  %v14726 = vmul.f32 %v14646, %v14686
  %v14727 = vmul.f32 %v14647, %v14684
  %v14728 = vmul.f32 %v14648, %v14686
  %v14729 = vmul.f32 %v14649, %v14684
  %v14730 = vmul.f32 %v14650, %v14686
  %v14731 = vmul.f32 %v14651, %v14684
  %v14732 = vmul.f32 %v14652, %v14686
  %v14733 = vmul.f32 %v14653, %v14684
  %v14734 = vmul.f32 %v14654, %v14686
  %v14735 = vmul.f32 %v14655, %v14684
  %v14736 = vmul.f32 %v14656, %v14686
  %v14737 = vmul.f32 %v14657, %v14684
  %v14738 = vmul.f32 %v14658, %v14686
  %v14739 = vmul.f32 %v14659, %v14684
  %v14740 = vmul.f32 %v14660, %v14686
  %v14741 = vmul.f32 %v14661, %v14684
  %v14742 = vmul.f32 %v14662, %v14686
  %v14743 = vmul.f32 %v14663, %v14684
  %v14744 = vmul.f32 %v14664, %v14686
  %v14745 = vmul.f32 %v14665, %v14684
  %v14746 = vmul.f32 %v14666, %v14686
  %v14747 = vmul.f32 %v14667, %v14684
  %v14748 = vmul.f32 %v14668, %v14686
  %v14749 = vmul.f32 %v14669, %v14684
  %v14750 = vmul.f32 %v14670, %v14686
  %v14751 = vmul.f32 %v14671, %v14684
  %v14752 = vmul.f32 %v14672, %v14686
  %v14753 = vmul.f32 %v14673, %v14684
  %v14754 = vmul.f32 %v14674, %v14686
  %14787 = vrot.lane.b32.xlu0 %v14691, 2
  %v14788 = vpop.permute.xlu0 %14787
  %14789 = vrot.lane.b32.xlu0 %v14692, 2
  %v14790 = vpop.permute.xlu0 %14789
  %14791 = vrot.lane.b32.xlu0 %v14693, 2
  %v14792 = vpop.permute.xlu0 %14791
  %14793 = vrot.lane.b32.xlu0 %v14694, 2
  %v14794 = vpop.permute.xlu0 %14793
  %14795 = vrot.lane.b32.xlu0 %v14695, 2
  %v14796 = vpop.permute.xlu0 %14795
  %14797 = vrot.lane.b32.xlu0 %v14696, 2
  %v14798 = vpop.permute.xlu0 %14797
  %14799 = vrot.lane.b32.xlu0 %v14697, 2
  %v14800 = vpop.permute.xlu0 %14799
  %14801 = vrot.lane.b32.xlu0 %v14698, 2
  %v14802 = vpop.permute.xlu0 %14801
  %14803 = vrot.lane.b32.xlu0 %v14699, 2
  %v14804 = vpop.permute.xlu0 %14803
  %14805 = vrot.lane.b32.xlu0 %v14700, 2
  %v14806 = vpop.permute.xlu0 %14805
  %14807 = vrot.lane.b32.xlu0 %v14701, 2
  %v14808 = vpop.permute.xlu0 %14807
  %14809 = vrot.lane.b32.xlu0 %v14702, 2
  %v14810 = vpop.permute.xlu0 %14809
  %14811 = vrot.lane.b32.xlu0 %v14703, 2
  %v14812 = vpop.permute.xlu0 %14811
  %14813 = vrot.lane.b32.xlu0 %v14704, 2
  %v14814 = vpop.permute.xlu0 %14813
  %14815 = vrot.lane.b32.xlu0 %v14705, 2
  %v14816 = vpop.permute.xlu0 %14815
  %14817 = vrot.lane.b32.xlu0 %v14706, 2
  %v14818 = vpop.permute.xlu0 %14817
  %14819 = vrot.lane.b32.xlu0 %v14707, 2
  %v14820 = vpop.permute.xlu0 %14819
  %14821 = vrot.lane.b32.xlu0 %v14708, 2
  %v14822 = vpop.permute.xlu0 %14821
  %14823 = vrot.lane.b32.xlu0 %v14709, 2
  %v14824 = vpop.permute.xlu0 %14823
  %14825 = vrot.lane.b32.xlu0 %v14710, 2
  %v14826 = vpop.permute.xlu0 %14825
  %14827 = vrot.lane.b32.xlu0 %v14711, 2
  %v14828 = vpop.permute.xlu0 %14827
  %14829 = vrot.lane.b32.xlu0 %v14712, 2
  %v14830 = vpop.permute.xlu0 %14829
  %14831 = vrot.lane.b32.xlu0 %v14713, 2
  %v14832 = vpop.permute.xlu0 %14831
  %14833 = vrot.lane.b32.xlu0 %v14714, 2
  %v14834 = vpop.permute.xlu0 %14833
  %14835 = vrot.lane.b32.xlu0 %v14715, 2
  %v14836 = vpop.permute.xlu0 %14835
  %14837 = vrot.lane.b32.xlu0 %v14716, 2
  %v14838 = vpop.permute.xlu0 %14837
  %14839 = vrot.lane.b32.xlu0 %v14717, 2
  %v14840 = vpop.permute.xlu0 %14839
  %14841 = vrot.lane.b32.xlu0 %v14718, 2
  %v14842 = vpop.permute.xlu0 %14841
  %14843 = vrot.lane.b32.xlu0 %v14719, 2
  %v14844 = vpop.permute.xlu0 %14843
  %14845 = vrot.lane.b32.xlu0 %v14720, 2
  %v14846 = vpop.permute.xlu0 %14845
  %14847 = vrot.lane.b32.xlu0 %v14721, 2
  %v14848 = vpop.permute.xlu0 %14847
  %14849 = vrot.lane.b32.xlu0 %v14722, 2
  %v14850 = vpop.permute.xlu0 %14849
  %vm14883 = vcmask 15360
  %v14884 = vsel %vm14883, %v3937, %v14788
  %v14885 = vsel %vm14883, %v3939, %v14790
  %v14886 = vsel %vm14883, %v3941, %v14792
  %v14887 = vsel %vm14883, %v3943, %v14794
  %v14888 = vsel %vm14883, %v3945, %v14796
  %v14889 = vsel %vm14883, %v3947, %v14798
  %v14890 = vsel %vm14883, %v3949, %v14800
  %v14891 = vsel %vm14883, %v3951, %v14802
  %v14892 = vsel %vm14883, %v3953, %v14804
  %v14893 = vsel %vm14883, %v3955, %v14806
  %v14894 = vsel %vm14883, %v3957, %v14808
  %v14895 = vsel %vm14883, %v3959, %v14810
  %v14896 = vsel %vm14883, %v3961, %v14812
  %v14897 = vsel %vm14883, %v3963, %v14814
  %v14898 = vsel %vm14883, %v3965, %v14816
  %v14899 = vsel %vm14883, %v3967, %v14818
  %v14900 = vsel %vm14883, %v3969, %v14820
  %v14901 = vsel %vm14883, %v3971, %v14822
  %v14902 = vsel %vm14883, %v3973, %v14824
  %v14903 = vsel %vm14883, %v3975, %v14826
  %v14904 = vsel %vm14883, %v3977, %v14828
  %v14905 = vsel %vm14883, %v3979, %v14830
  %v14906 = vsel %vm14883, %v3981, %v14832
  %v14907 = vsel %vm14883, %v3983, %v14834
  %v14908 = vsel %vm14883, %v3985, %v14836
  %v14909 = vsel %vm14883, %v3987, %v14838
  %v14910 = vsel %vm14883, %v3989, %v14840
  %v14911 = vsel %vm14883, %v3991, %v14842
  %v14912 = vsel %vm14883, %v3993, %v14844
  %v14913 = vsel %vm14883, %v3995, %v14846
  %v14914 = vsel %vm14883, %v3997, %v14848
  %v14915 = vsel %vm14883, %v3999, %v14850
  %vm14916 = vcmask 162816
  %v14917 = vsel %vm14916, %v14884, 0.0
  %v14918 = vsel %vm14916, %v14885, 0.0
  %v14919 = vsel %vm14916, %v14886, 0.0
  %v14920 = vsel %vm14916, %v14887, 0.0
  %v14921 = vsel %vm14916, %v14888, 0.0
  %v14922 = vsel %vm14916, %v14889, 0.0
  %v14923 = vsel %vm14916, %v14890, 0.0
  %v14924 = vsel %vm14916, %v14891, 0.0
  %v14925 = vsel %vm14916, %v14892, 0.0
  %v14926 = vsel %vm14916, %v14893, 0.0
  %v14927 = vsel %vm14916, %v14894, 0.0
  %v14928 = vsel %vm14916, %v14895, 0.0
  %v14929 = vsel %vm14916, %v14896, 0.0
  %v14930 = vsel %vm14916, %v14897, 0.0
  %v14931 = vsel %vm14916, %v14898, 0.0
  %v14932 = vsel %vm14916, %v14899, 0.0
  %v14933 = vsel %vm14916, %v14900, 0.0
  %v14934 = vsel %vm14916, %v14901, 0.0
  %v14935 = vsel %vm14916, %v14902, 0.0
  %v14936 = vsel %vm14916, %v14903, 0.0
  %v14937 = vsel %vm14916, %v14904, 0.0
  %v14938 = vsel %vm14916, %v14905, 0.0
  %v14939 = vsel %vm14916, %v14906, 0.0
  %v14940 = vsel %vm14916, %v14907, 0.0
  %v14941 = vsel %vm14916, %v14908, 0.0
  %v14942 = vsel %vm14916, %v14909, 0.0
  %v14943 = vsel %vm14916, %v14910, 0.0
  %v14944 = vsel %vm14916, %v14911, 0.0
  %v14945 = vsel %vm14916, %v14912, 0.0
  %v14946 = vsel %vm14916, %v14913, 0.0
  %v14947 = vsel %vm14916, %v14914, 0.0
  %v14948 = vsel %vm14916, %v14915, 0.0
  %14949 = vxpose.xlu0.b32.start [1/16] %v14917, 128
  %14950 = vxpose.xlu0.b32.cont [2/16] %v14918, 128
  %14951 = vxpose.xlu0.b32.cont [3/16] %v14919, 128
  %14952 = vxpose.xlu0.b32.cont [4/16] %v14920, 128
  %14953 = vxpose.xlu0.b32.cont [5/16] %v14921, 128
  %14954 = vxpose.xlu0.b32.cont [6/16] %v14922, 128
  %14955 = vxpose.xlu0.b32.cont [7/16] %v14923, 128
  %14956 = vxpose.xlu0.b32.cont [8/16] %v14924, 128
  %14957 = vxpose.xlu0.b32.cont [9/16] %v14925, 128
  %14958 = vxpose.xlu0.b32.cont [10/16] %v14926, 128
  %14959 = vxpose.xlu0.b32.cont [11/16] %v14927, 128
  %14960 = vxpose.xlu0.b32.cont [12/16] %v14928, 128
  %14961 = vxpose.xlu0.b32.cont [13/16] %v14929, 128
  %14962 = vxpose.xlu0.b32.cont [14/16] %v14930, 128
  %14963 = vxpose.xlu0.b32.cont [15/16] %v14931, 128
  %14964 = vxpose.xlu0.b32.end [16/16] %v14932, 128
  %v14965 = vpop.trf.xlu0
  %v14966 = vpop.trf.xlu0
  %v14967 = vpop.trf.xlu0
  %v14968 = vpop.trf.xlu0
  %v14969 = vpop.trf.xlu0
  %v14970 = vpop.trf.xlu0
  %v14971 = vpop.trf.xlu0
  %v14972 = vpop.trf.xlu0
  %v14973 = vpop.trf.xlu0
  %v14974 = vpop.trf.xlu0
  %v14975 = vpop.trf.xlu0
  %v14976 = vpop.trf.xlu0
  %v14977 = vpop.trf.xlu0
  %v14978 = vpop.trf.xlu0
  %v14979 = vpop.trf.xlu0
  %v14980 = vpop.trf.xlu0
  %14981 = vxpose.xlu0.b32.start [1/16] %v14933, 128
  %14982 = vxpose.xlu0.b32.cont [2/16] %v14934, 128
  %14983 = vxpose.xlu0.b32.cont [3/16] %v14935, 128
  %14984 = vxpose.xlu0.b32.cont [4/16] %v14936, 128
  %14985 = vxpose.xlu0.b32.cont [5/16] %v14937, 128
  %14986 = vxpose.xlu0.b32.cont [6/16] %v14938, 128
  %14987 = vxpose.xlu0.b32.cont [7/16] %v14939, 128
  %14988 = vxpose.xlu0.b32.cont [8/16] %v14940, 128
  %14989 = vxpose.xlu0.b32.cont [9/16] %v14941, 128
  %14990 = vxpose.xlu0.b32.cont [10/16] %v14942, 128
  %14991 = vxpose.xlu0.b32.cont [11/16] %v14943, 128
  %14992 = vxpose.xlu0.b32.cont [12/16] %v14944, 128
  %14993 = vxpose.xlu0.b32.cont [13/16] %v14945, 128
  %14994 = vxpose.xlu0.b32.cont [14/16] %v14946, 128
  %14995 = vxpose.xlu0.b32.cont [15/16] %v14947, 128
  %14996 = vxpose.xlu0.b32.end [16/16] %v14948, 128
  %v14997 = vpop.trf.xlu0
  %v14998 = vpop.trf.xlu0
  %v14999 = vpop.trf.xlu0
  %v15000 = vpop.trf.xlu0
  %v15001 = vpop.trf.xlu0
  %v15002 = vpop.trf.xlu0
  %v15003 = vpop.trf.xlu0
  %v15004 = vpop.trf.xlu0
  %v15005 = vpop.trf.xlu0
  %v15006 = vpop.trf.xlu0
  %v15007 = vpop.trf.xlu0
  %v15008 = vpop.trf.xlu0
  %v15009 = vpop.trf.xlu0
  %v15010 = vpop.trf.xlu0
  %v15011 = vpop.trf.xlu0
  %v15012 = vpop.trf.xlu0
  %15013 = vst [vmem:[%s7] sm:$0xff] %v14965
  %15014 = vst [vmem:[%s7 + $0x8] sm:$0xff] %v14997
  %15015 = vst [vmem:[%s7 + $0x10] sm:$0xff] %v14966
  %15016 = vst [vmem:[%s7 + $0x18] sm:$0xff] %v14998
  %15017 = vst [vmem:[%s7 + $0x20] sm:$0xff] %v14967
  %15018 = vst [vmem:[%s7 + $0x28] sm:$0xff] %v14999
  %15051 = vrot.lane.b32.xlu0 %v14723, 2
  %v15052 = vpop.permute.xlu0 %15051
  %15053 = vrot.lane.b32.xlu0 %v14724, 2
  %v15054 = vpop.permute.xlu0 %15053
  %15055 = vrot.lane.b32.xlu0 %v14725, 2
  %v15056 = vpop.permute.xlu0 %15055
  %15057 = vrot.lane.b32.xlu0 %v14726, 2
  %v15058 = vpop.permute.xlu0 %15057
  %15059 = vrot.lane.b32.xlu0 %v14727, 2
  %v15060 = vpop.permute.xlu0 %15059
  %15061 = vrot.lane.b32.xlu0 %v14728, 2
  %v15062 = vpop.permute.xlu0 %15061
  %15063 = vrot.lane.b32.xlu0 %v14729, 2
  %v15064 = vpop.permute.xlu0 %15063
  %15065 = vrot.lane.b32.xlu0 %v14730, 2
  %v15066 = vpop.permute.xlu0 %15065
  %15067 = vrot.lane.b32.xlu0 %v14731, 2
  %v15068 = vpop.permute.xlu0 %15067
  %15069 = vrot.lane.b32.xlu0 %v14732, 2
  %v15070 = vpop.permute.xlu0 %15069
  %15071 = vrot.lane.b32.xlu0 %v14733, 2
  %v15072 = vpop.permute.xlu0 %15071
  %15073 = vrot.lane.b32.xlu0 %v14734, 2
  %v15074 = vpop.permute.xlu0 %15073
  %15075 = vrot.lane.b32.xlu0 %v14735, 2
  %v15076 = vpop.permute.xlu0 %15075
  %15077 = vrot.lane.b32.xlu0 %v14736, 2
  %v15078 = vpop.permute.xlu0 %15077
  %15079 = vrot.lane.b32.xlu0 %v14737, 2
  %v15080 = vpop.permute.xlu0 %15079
  %15081 = vrot.lane.b32.xlu0 %v14738, 2
  %v15082 = vpop.permute.xlu0 %15081
  %15083 = vrot.lane.b32.xlu0 %v14739, 2
  %v15084 = vpop.permute.xlu0 %15083
  %15085 = vrot.lane.b32.xlu0 %v14740, 2
  %v15086 = vpop.permute.xlu0 %15085
  %15087 = vrot.lane.b32.xlu0 %v14741, 2
  %v15088 = vpop.permute.xlu0 %15087
  %15089 = vrot.lane.b32.xlu0 %v14742, 2
  %v15090 = vpop.permute.xlu0 %15089
  %15091 = vrot.lane.b32.xlu0 %v14743, 2
  %v15092 = vpop.permute.xlu0 %15091
  %15093 = vrot.lane.b32.xlu0 %v14744, 2
  %v15094 = vpop.permute.xlu0 %15093
  %15095 = vrot.lane.b32.xlu0 %v14745, 2
  %v15096 = vpop.permute.xlu0 %15095
  %15097 = vrot.lane.b32.xlu0 %v14746, 2
  %v15098 = vpop.permute.xlu0 %15097
  %15099 = vrot.lane.b32.xlu0 %v14747, 2
  %v15100 = vpop.permute.xlu0 %15099
  %15101 = vrot.lane.b32.xlu0 %v14748, 2
  %v15102 = vpop.permute.xlu0 %15101
  %15103 = vrot.lane.b32.xlu0 %v14749, 2
  %v15104 = vpop.permute.xlu0 %15103
  %15105 = vrot.lane.b32.xlu0 %v14750, 2
  %v15106 = vpop.permute.xlu0 %15105
  %15107 = vrot.lane.b32.xlu0 %v14751, 2
  %v15108 = vpop.permute.xlu0 %15107
  %15109 = vrot.lane.b32.xlu0 %v14752, 2
  %v15110 = vpop.permute.xlu0 %15109
  %15111 = vrot.lane.b32.xlu0 %v14753, 2
  %v15112 = vpop.permute.xlu0 %15111
  %15113 = vrot.lane.b32.xlu0 %v14754, 2
  %v15114 = vpop.permute.xlu0 %15113
  %v15147 = vsel %vm14883, %v4001, %v15052
  %v15148 = vsel %vm14883, %v4003, %v15054
  %v15149 = vsel %vm14883, %v4005, %v15056
  %v15150 = vsel %vm14883, %v4007, %v15058
  %v15151 = vsel %vm14883, %v4009, %v15060
  %v15152 = vsel %vm14883, %v4011, %v15062
  %v15153 = vsel %vm14883, %v4013, %v15064
  %v15154 = vsel %vm14883, %v4015, %v15066
  %v15155 = vsel %vm14883, %v4017, %v15068
  %v15156 = vsel %vm14883, %v4019, %v15070
  %v15157 = vsel %vm14883, %v4021, %v15072
  %v15158 = vsel %vm14883, %v4023, %v15074
  %v15159 = vsel %vm14883, %v4025, %v15076
  %v15160 = vsel %vm14883, %v4027, %v15078
  %v15161 = vsel %vm14883, %v4029, %v15080
  %v15162 = vsel %vm14883, %v4031, %v15082
  %v15163 = vsel %vm14883, %v4033, %v15084
  %v15164 = vsel %vm14883, %v4035, %v15086
  %v15165 = vsel %vm14883, %v4037, %v15088
  %v15166 = vsel %vm14883, %v4039, %v15090
  %v15167 = vsel %vm14883, %v4041, %v15092
  %v15168 = vsel %vm14883, %v4043, %v15094
  %v15169 = vsel %vm14883, %v4045, %v15096
  %v15170 = vsel %vm14883, %v4047, %v15098
  %v15171 = vsel %vm14883, %v4049, %v15100
  %v15172 = vsel %vm14883, %v4051, %v15102
  %v15173 = vsel %vm14883, %v4053, %v15104
  %v15174 = vsel %vm14883, %v4055, %v15106
  %v15175 = vsel %vm14883, %v4057, %v15108
  %v15176 = vsel %vm14883, %v4059, %v15110
  %v15177 = vsel %vm14883, %v4061, %v15112
  %v15178 = vsel %vm14883, %v4063, %v15114
  %v15179 = vsel %vm14916, %v15147, 0.0
  %v15180 = vsel %vm14916, %v15148, 0.0
  %v15181 = vsel %vm14916, %v15149, 0.0
  %v15182 = vsel %vm14916, %v15150, 0.0
  %v15183 = vsel %vm14916, %v15151, 0.0
  %v15184 = vsel %vm14916, %v15152, 0.0
  %v15185 = vsel %vm14916, %v15153, 0.0
  %v15186 = vsel %vm14916, %v15154, 0.0
  %v15187 = vsel %vm14916, %v15155, 0.0
  %v15188 = vsel %vm14916, %v15156, 0.0
  %v15189 = vsel %vm14916, %v15157, 0.0
  %v15190 = vsel %vm14916, %v15158, 0.0
  %v15191 = vsel %vm14916, %v15159, 0.0
  %v15192 = vsel %vm14916, %v15160, 0.0
  %v15193 = vsel %vm14916, %v15161, 0.0
  %v15194 = vsel %vm14916, %v15162, 0.0
  %v15195 = vsel %vm14916, %v15163, 0.0
  %v15196 = vsel %vm14916, %v15164, 0.0
  %v15197 = vsel %vm14916, %v15165, 0.0
  %v15198 = vsel %vm14916, %v15166, 0.0
  %v15199 = vsel %vm14916, %v15167, 0.0
  %v15200 = vsel %vm14916, %v15168, 0.0
  %v15201 = vsel %vm14916, %v15169, 0.0
  %v15202 = vsel %vm14916, %v15170, 0.0
  %v15203 = vsel %vm14916, %v15171, 0.0
  %v15204 = vsel %vm14916, %v15172, 0.0
  %v15205 = vsel %vm14916, %v15173, 0.0
  %v15206 = vsel %vm14916, %v15174, 0.0
  %v15207 = vsel %vm14916, %v15175, 0.0
  %v15208 = vsel %vm14916, %v15176, 0.0
  %v15209 = vsel %vm14916, %v15177, 0.0
  %v15210 = vsel %vm14916, %v15178, 0.0
  %15211 = vxpose.xlu0.b32.start [1/16] %v15179, 128
  %15212 = vxpose.xlu0.b32.cont [2/16] %v15180, 128
  %15213 = vxpose.xlu0.b32.cont [3/16] %v15181, 128
  %15214 = vxpose.xlu0.b32.cont [4/16] %v15182, 128
  %15215 = vxpose.xlu0.b32.cont [5/16] %v15183, 128
  %15216 = vxpose.xlu0.b32.cont [6/16] %v15184, 128
  %15217 = vxpose.xlu0.b32.cont [7/16] %v15185, 128
  %15218 = vxpose.xlu0.b32.cont [8/16] %v15186, 128
  %15219 = vxpose.xlu0.b32.cont [9/16] %v15187, 128
  %15220 = vxpose.xlu0.b32.cont [10/16] %v15188, 128
  %15221 = vxpose.xlu0.b32.cont [11/16] %v15189, 128
  %15222 = vxpose.xlu0.b32.cont [12/16] %v15190, 128
  %15223 = vxpose.xlu0.b32.cont [13/16] %v15191, 128
  %15224 = vxpose.xlu0.b32.cont [14/16] %v15192, 128
  %15225 = vxpose.xlu0.b32.cont [15/16] %v15193, 128
  %15226 = vxpose.xlu0.b32.end [16/16] %v15194, 128
  %v15227 = vpop.trf.xlu0
  %v15228 = vpop.trf.xlu0
  %v15229 = vpop.trf.xlu0
  %v15230 = vpop.trf.xlu0
  %v15231 = vpop.trf.xlu0
  %v15232 = vpop.trf.xlu0
  %v15233 = vpop.trf.xlu0
  %v15234 = vpop.trf.xlu0
  %v15235 = vpop.trf.xlu0
  %v15236 = vpop.trf.xlu0
  %v15237 = vpop.trf.xlu0
  %v15238 = vpop.trf.xlu0
  %v15239 = vpop.trf.xlu0
  %v15240 = vpop.trf.xlu0
  %v15241 = vpop.trf.xlu0
  %v15242 = vpop.trf.xlu0
  %15243 = vxpose.xlu0.b32.start [1/16] %v15195, 128
  %15244 = vxpose.xlu0.b32.cont [2/16] %v15196, 128
  %15245 = vxpose.xlu0.b32.cont [3/16] %v15197, 128
  %15246 = vxpose.xlu0.b32.cont [4/16] %v15198, 128
  %15247 = vxpose.xlu0.b32.cont [5/16] %v15199, 128
  %15248 = vxpose.xlu0.b32.cont [6/16] %v15200, 128
  %15249 = vxpose.xlu0.b32.cont [7/16] %v15201, 128
  %15250 = vxpose.xlu0.b32.cont [8/16] %v15202, 128
  %15251 = vxpose.xlu0.b32.cont [9/16] %v15203, 128
  %15252 = vxpose.xlu0.b32.cont [10/16] %v15204, 128
  %15253 = vxpose.xlu0.b32.cont [11/16] %v15205, 128
  %15254 = vxpose.xlu0.b32.cont [12/16] %v15206, 128
  %15255 = vxpose.xlu0.b32.cont [13/16] %v15207, 128
  %15256 = vxpose.xlu0.b32.cont [14/16] %v15208, 128
  %15257 = vxpose.xlu0.b32.cont [15/16] %v15209, 128
  %15258 = vxpose.xlu0.b32.end [16/16] %v15210, 128
  %v15259 = vpop.trf.xlu0
  %v15260 = vpop.trf.xlu0
  %v15261 = vpop.trf.xlu0
  %v15262 = vpop.trf.xlu0
  %v15263 = vpop.trf.xlu0
  %v15264 = vpop.trf.xlu0
  %v15265 = vpop.trf.xlu0
  %v15266 = vpop.trf.xlu0
  %v15267 = vpop.trf.xlu0
  %v15268 = vpop.trf.xlu0
  %v15269 = vpop.trf.xlu0
  %v15270 = vpop.trf.xlu0
  %v15271 = vpop.trf.xlu0
  %v15272 = vpop.trf.xlu0
  %v15273 = vpop.trf.xlu0
  %v15274 = vpop.trf.xlu0
  %s15275 = scalar_lea.vmem %s7, 48
  %15276 = vst [vmem:[%s15275] sm:$0xff] %v15227
  %15277 = vst [vmem:[%s15275 + $0x8] sm:$0xff] %v15259
  %15278 = vst [vmem:[%s15275 + $0x10] sm:$0xff] %v15228
  %15279 = vst [vmem:[%s15275 + $0x18] sm:$0xff] %v15260
  %15280 = vst [vmem:[%s15275 + $0x20] sm:$0xff] %v15229
  %15281 = vst [vmem:[%s15275 + $0x28] sm:$0xff] %v15261
  // Predicated region
  $region30: #{connect_forward.1} parent=0 // pred_check
    _
  $region31: #{connect_forward.1} parent=0 // pred_check_branch
    %15283 = sbr.rel (0) target = $region33
  $region32: #{connect_forward.1} parent=0 // pred_region
    _
  $region33: #{connect_forward.1} parent=0 // pred_fallthru
    _
  // Predicated region
  $region34: #{connect_forward.1} parent=0 // pred_check
    _
  $region35: #{connect_forward.1} parent=0 // pred_check_branch
    %15285 = sbr.rel (0) target = $region37
  $region36: #{connect_forward.1} parent=0 // pred_region
    _
  $region37: #{connect_forward.1} parent=0 // pred_fallthru
    _

</llo_original>
